<compile_context>
chip_gen: v6e
topology: v6e:2x2x1
jax: 0.10.0
libtpu: 0.0.40
codegen_flags: <defaults>
</compile_context>

<pallas_src>
import functools
import math

import jax
import jax.numpy as jnp
from jax import lax
from jax.experimental import pallas as pl
from jax.experimental.pallas import tpu as pltpu


# ----------------------------- glue (plain JAX) ------------------------------

def patchify(x, patch):
    """(N, C, H, W) -> (N, T, C*patch*patch), matching torch unfold(stride=patch)."""
    n, c, h, w = x.shape
    hp, wp = h // patch, w // patch
    x = x.reshape(n, c, hp, patch, wp, patch)
    x = jnp.transpose(x, (0, 2, 4, 1, 3, 5))           # (N, hp, wp, C, p, p)
    return x.reshape(n, hp * wp, c * patch * patch)


def _layernorm(x, eps=1e-5):
    """LayerNorm over last dim, no affine (elementwise_affine=False), f32."""
    mu = jnp.mean(x, axis=-1, keepdims=True)
    xc = x - mu
    var = jnp.mean(xc * xc, axis=-1, keepdims=True)
    return xc * lax.rsqrt(var + eps)


def _pick_batch_block(B, T, target_rows=768, min_grid_blocks=2):
    """Pick bblk dividing B.

    Targets M = bblk*T >= target_rows so the per-layer weight DMA (24*C^2 bf16
    bytes) is hidden behind 24*M*C^2 flops of MXU work (need M ~ 240/680/310 on
    v5e/v6e/v7x), while keeping nb = B // bblk >= min_grid_blocks so the
    'parallel' batch axis can be split across TensorCores (v7x megacore)."""
    desired = max(1, -(-target_rows // T))              # ceil(target_rows / T)
    if min_grid_blocks > 1 and B >= min_grid_blocks:
        desired = min(desired, B // min_grid_blocks)
    desired = max(1, min(desired, B))
    for cand in range(desired, 0, -1):
        if B % cand == 0:
            return cand
    return 1


# ------------------------------ Pallas kernel --------------------------------

def make_metablock_kernel(num_layers, num_heads, head_dim, bblk, T, din, flip):
    C = num_heads * head_dim
    M = bblk * T                                       # rows fed to the MXU
    inv_sqrt_d = 1.0 / math.sqrt(head_dim)
    BF = jnp.bfloat16

    def kernel(x_ref, pos_ref, maskb_ref, win_ref, bin_ref,
               wqkv_ref, bqkv_ref, wpr_ref, bpr_ref,
               w1_ref, b1_ref, w2_ref, b2_ref,
               wout_ref, bout_ref,
               z_ref, logdet_ref, h_scr, attn_scr):
        l = pl.program_id(1)                           # layer index (streamed weights)

        # ---- proj_in + positional embedding (first layer step only) ----
        @pl.when(l == 0)
        def _():
            x2 = x_ref[...].reshape(M, din)            # (M, Din) f32
            h0 = jnp.dot(x2.astype(BF), win_ref[...],
                         preferred_element_type=jnp.float32) + bin_ref[...]
            # pos_ref is already reversed in the wrapper for flip blocks.
            h0 = (h0.reshape(bblk, T, C) + pos_ref[...][None]).reshape(M, C)
            h_scr[...] = h0

        h = h_scr[...]                                 # (M, C) f32

        # ---- attention sub-block (pre-norm, residual) ----
        hn = _layernorm(h)
        qkv = jnp.dot(hn.astype(BF), wqkv_ref[0],
                      preferred_element_type=jnp.float32) + bqkv_ref[0]   # (M, 3C) f32
        maskb = maskb_ref[...]                         # (T, T) additive mask (precomputed)

        # Per-head scores/softmax (batched over bblk); head outputs are staged into a
        # bf16 VMEM scratch at their lane offsets so the output projection is a single
        # full-K (M, C) x (C, C) matmul (no K=64 matmuls / f32 accumulator adds).
        for hh in range(num_heads):
            qs = slice(hh * head_dim, (hh + 1) * head_dim)
            ks = slice(C + hh * head_dim, C + (hh + 1) * head_dim)
            vs = slice(2 * C + hh * head_dim, 2 * C + (hh + 1) * head_dim)
            qh = qkv[:, qs].reshape(bblk, T, head_dim).astype(BF)
            kh = qkv[:, ks].reshape(bblk, T, head_dim).astype(BF)
            vh = qkv[:, vs].reshape(bblk, T, head_dim).astype(BF)
            s = jnp.einsum('bqd,bkd->bqk', qh, kh,
                           preferred_element_type=jnp.float32) * inv_sqrt_d
            s = s + maskb[None]                        # mask applied in f32
            m = jnp.max(s, axis=-1, keepdims=True)
            e = jnp.exp(s - m)
            p = e * pl.reciprocal(jnp.sum(e, axis=-1, keepdims=True), approx=True)
            oh = jnp.einsum('bqk,bkd->bqd', p.astype(BF), vh,
                            preferred_element_type=jnp.float32)           # (bblk, T, hd)
            attn_scr[:, hh * head_dim:(hh + 1) * head_dim] = (
                oh.reshape(M, head_dim).astype(BF))
        h = h + jnp.dot(attn_scr[...], wpr_ref[0],
                        preferred_element_type=jnp.float32) + bpr_ref[0]

        # ---- MLP sub-block (pre-norm, residual, tanh GELU -> EUP slot) ----
        hn2 = _layernorm(h)
        mid = jnp.dot(hn2.astype(BF), w1_ref[0],
                      preferred_element_type=jnp.float32) + b1_ref[0]
        mid = jax.nn.gelu(mid, approximate=True)
        h = h + jnp.dot(mid.astype(BF), w2_ref[0],
                        preferred_element_type=jnp.float32) + b2_ref[0]

        h_scr[...] = h                                 # carry across the layer axis

        # ---- proj_out + causal shift + affine coupling (last layer step only) ----
        @pl.when(l == num_layers - 1)
        def _():
            out = jnp.dot(h.astype(BF), wout_ref[...],
                          preferred_element_type=jnp.float32) + bout_ref[...]  # (M, 2Din)
            # identity perm: position t uses out[t-1]; flip perm: position t uses out[t+1].
            # Rows that would cross a sample boundary are exactly the rows zeroed below.
            # TODO(synk): shift=-1 would be a single XLU rotate for the flip path if the
            # lowering accepts negative shifts; M-1 is kept as the proven-equivalent form.
            shift = (M - 1) if flip else 1
            shifted = pltpu.roll(out, shift=shift, axis=0)
            rows = lax.broadcasted_iota(jnp.int32, (M, 1), 0) % T
            boundary = (T - 1) if flip else 0
            shifted = jnp.where(rows == boundary, 0.0, shifted)
            za = shifted[:, :din]                      # log-scale (f32)
            zb = shifted[:, din:]                      # bias
            x2 = x_ref[...].reshape(M, din)
            z2 = (x2 - zb) * jnp.exp(-za)              # coupling stays in f32
            z_ref[...] = z2.reshape(bblk, T, din).astype(z_ref.dtype)
            za3 = za.reshape(bblk, T, din)
            ld = jnp.sum(jnp.sum(za3, axis=2), axis=1, keepdims=True)   # (bblk, 1)
            val = -(ld * (1.0 / (T * din)))
            # Lane-dense logdet block: broadcast across 128 lanes -> unmasked stores,
            # no sublane divisibility constraint on bblk.
            logdet_ref[...] = jnp.broadcast_to(val, (bblk, 128))[None]

    return kernel


def metablock_forward(x, bp, *, num_layers, num_heads, head_dim, flip,
                      batch_block=None, target_rows=768):
    """One MetaBlock on x:(B,T,Din) -> (z:(B,T,Din), logdet:(B,))."""
    B, T, Din = x.shape
    C = num_heads * head_dim

    if batch_block is None:
        batch_block = _pick_batch_block(B, T, target_rows=target_rows)
    bblk = max(1, min(batch_block, B))
    while B % bblk:
        bblk -= 1
    nb = B // bblk

    kernel = make_metablock_kernel(num_layers, num_heads, head_dim, bblk, T, Din, flip)

    # PermutationFlip is realized inside the kernel (anti-causal mask + reversed shift);
    # only the tiny (T, C) positional embedding needs reversing, done once here.
    pos = jnp.flip(bp["pos"], axis=0) if flip else bp["pos"]

    # Precomputed additive attention mask (0 where attendable, -1e30 elsewhere):
    # causal for identity permutation, anti-causal realizes the flip permutation.
    r = jnp.arange(T)[:, None]
    c = jnp.arange(T)[None, :]
    allowed = (c >= r) if flip else (c <= r)
    maskb = jnp.where(allowed, 0.0, -1e30).astype(jnp.float32)

    def const_spec(a):
        zeros = (0,) * a.ndim
        return pl.BlockSpec(a.shape, lambda b, l: zeros)

    def layer_spec(a):                                 # arrays shaped (L, ...): stream per layer
        tail = (0,) * (a.ndim - 1)
        return pl.BlockSpec((1,) + tuple(a.shape[1:]), lambda b, l: (l,) + tail)

    in_specs = [
        pl.BlockSpec((bblk, T, Din), lambda b, l: (b, 0, 0)),   # x
        const_spec(pos),                                        # pos embedding
        const_spec(maskb),                                      # additive attn mask
        const_spec(bp["win"]), const_spec(bp["bin"]),
        layer_spec(bp["wqkv"]), layer_spec(bp["bqkv"]),
        layer_spec(bp["wpr"]), layer_spec(bp["bpr"]),
        layer_spec(bp["w1"]), layer_spec(bp["b1"]),
        layer_spec(bp["w2"]), layer_spec(bp["b2"]),
        const_spec(bp["wout"]), const_spec(bp["bout"]),
    ]
    out_specs = (pl.BlockSpec((bblk, T, Din), lambda b, l: (b, 0, 0)),
                 pl.BlockSpec((1, bblk, 128), lambda b, l: (b, 0, 0)))

    z, ld = pl.pallas_call(
        kernel,
        grid=(nb, num_layers),
        in_specs=in_specs,
        out_specs=out_specs,
        out_shape=(jax.ShapeDtypeStruct((B, T, Din), jnp.float32),
                   jax.ShapeDtypeStruct((nb, bblk, 128), jnp.float32)),
        scratch_shapes=[pltpu.VMEM((bblk * T, C), jnp.float32),    # hidden-state carry
                        pltpu.VMEM((bblk * T, C), jnp.bfloat16)],  # head-output staging
        compiler_params=pltpu.CompilerParams(
            dimension_semantics=("parallel", "arbitrary"),
            vmem_limit_bytes=48 * 1024 * 1024),
    )(x, pos, maskb, bp["win"], bp["bin"],
      bp["wqkv"], bp["bqkv"], bp["wpr"], bp["bpr"],
      bp["w1"], bp["b1"], bp["w2"], bp["b2"],
      bp["wout"], bp["bout"])
    return z, ld.reshape(B, 128)[:, 0]


# ---------------------------- full model forward -----------------------------

def model_forward(x_img, blocks, *, patch_size, num_layers, num_heads, head_dim,
                  batch_block=None, target_rows=768):
    x = patchify(x_img, patch_size)                    # (B, T, Din)
    outputs = []
    logdets = jnp.zeros((x.shape[0],), jnp.float32)
    for i, bp in enumerate(blocks):
        flip = (i % 2 == 1)                            # PermutationIdentity / PermutationFlip
        z, ld = metablock_forward(x, bp, num_layers=num_layers, num_heads=num_heads,
                                  head_dim=head_dim, flip=flip,
                                  batch_block=batch_block, target_rows=target_rows)
        x = z
        logdets = logdets + ld
        outputs.append(x)
    return x, outputs, logdets


# --------------------------- pure-JAX reference ------------------------------
# Same precision choices (bf16 weights, bf16 casts at matmuls, tanh GELU), but with
# the naive flip -> causal -> flip-back realization of PermutationFlip, so it also
# validates the in-kernel folded flip (review correctness concern).

def metablock_ref(x, bp, *, num_layers, num_heads, head_dim, flip):
    B, T, Din = x.shape
    C = num_heads * head_dim
    BF = jnp.bfloat16
    xp = jnp.flip(x, axis=1) if flip else x
    h = jnp.einsum('btd,dc->btc', xp.astype(BF), bp["win"],
                   preferred_element_type=jnp.float32) + bp["bin"]
    h = h + bp["pos"][None]
    r = jnp.arange(T)[:, None]
    c = jnp.arange(T)[None, :]
    maskb = jnp.where(c <= r, 0.0, -1e30).astype(jnp.float32)
    for l in range(num_layers):
        hn = _layernorm(h)
        qkv = jnp.einsum('btc,cd->btd', hn.astype(BF), bp["wqkv"][l],
                         preferred_element_type=jnp.float32) + bp["bqkv"][l]
        q = qkv[..., :C].reshape(B, T, num_heads, head_dim)
        k = qkv[..., C:2 * C].reshape(B, T, num_heads, head_dim)
        v = qkv[..., 2 * C:].reshape(B, T, num_heads, head_dim)
        s = jnp.einsum('bqhd,bkhd->bhqk', q.astype(BF), k.astype(BF),
                       preferred_element_type=jnp.float32) / math.sqrt(head_dim)
        s = s + maskb
        p = jax.nn.softmax(s, axis=-1)
        o = jnp.einsum('bhqk,bkhd->bqhd', p.astype(BF), v.astype(BF),
                       preferred_element_type=jnp.float32).reshape(B, T, C)
        h = h + jnp.einsum('btc,cd->btd', o.astype(BF), bp["wpr"][l],
                           preferred_element_type=jnp.float32) + bp["bpr"][l]
        hn2 = _layernorm(h)
        mid = jnp.einsum('btc,cd->btd', hn2.astype(BF), bp["w1"][l],
                         preferred_element_type=jnp.float32) + bp["b1"][l]
        mid = jax.nn.gelu(mid, approximate=True)
        h = h + jnp.einsum('btc,cd->btd', mid.astype(BF), bp["w2"][l],
                           preferred_element_type=jnp.float32) + bp["b2"][l]
    out = jnp.einsum('btc,cd->btd', h.astype(BF), bp["wout"],
                     preferred_element_type=jnp.float32) + bp["bout"]
    out = jnp.concatenate([jnp.zeros_like(out[:, :1]), out[:, :-1]], axis=1)
    za, zb = out[..., :Din], out[..., Din:]
    zp = (xp - zb) * jnp.exp(-za)
    z = jnp.flip(zp, axis=1) if flip else zp
    logdet = -jnp.mean(za.reshape(B, -1), axis=-1)
    return z, logdet


def model_forward_ref(x_img, blocks, *, patch_size, num_layers, num_heads, head_dim):
    x = patchify(x_img, patch_size)
    logdets = jnp.zeros((x.shape[0],), jnp.float32)
    outputs = []
    for i, bp in enumerate(blocks):
        x, ld = metablock_ref(x, bp, num_layers=num_layers, num_heads=num_heads,
                              head_dim=head_dim, flip=(i % 2 == 1))
        logdets = logdets + ld
        outputs.append(x)
    return x, outputs, logdets


# ------------------------------ parameter init -------------------------------

def init_params(key, *, in_dim, channels, num_blocks, layers, T):
    C = channels

    def nrm(k, shape, scale, dtype=jnp.bfloat16):      # matmul weights stored in bf16
        return (scale * jax.random.normal(k, shape, dtype=jnp.float32)).astype(dtype)

    blocks = []
    for _ in range(num_blocks):
        key, *ks = jax.random.split(key, 9)
        blocks.append(dict(
            pos=nrm(ks[0], (T, C), 0.02, jnp.float32),
            win=nrm(ks[1], (in_dim, C), 1.0 / math.sqrt(in_dim)),
            bin=jnp.zeros((1, C), jnp.float32),
            wqkv=nrm(ks[2], (layers, C, 3 * C), 1.0 / math.sqrt(C)),
            bqkv=jnp.zeros((layers, 1, 3 * C), jnp.float32),
            wpr=nrm(ks[3], (layers, C, C), 1.0 / math.sqrt(C)),
            bpr=jnp.zeros((layers, 1, C), jnp.float32),
            w1=nrm(ks[4], (layers, C, 4 * C), 1.0 / math.sqrt(C)),
            b1=jnp.zeros((layers, 1, 4 * C), jnp.float32),
            w2=nrm(ks[5], (layers, 4 * C, C), 1.0 / math.sqrt(4 * C)),
            b2=jnp.zeros((layers, 1, C), jnp.float32),
            # reference zero-inits proj_out.weight; small non-zero synthetic init so the
            # coupling path is actually exercised.
            wout=nrm(ks[6], (C, 2 * in_dim), 0.01),
            bout=nrm(ks[7], (1, 2 * in_dim), 0.01, jnp.float32),
        ))
    return blocks


# ----------------------------------- main -------------------------------------

if __name__ == "__main__":
    # Lane-dense small test shapes: Din = 4*8*8 = 256, T = (32/8)^2 = 16, C = 128.
    # The batch-block heuristic picks bblk=4 -> grid=(2, 2): two batch blocks for the
    # 'parallel' axis (v7x megacore), layer axis 'arbitrary' with streamed weights.
    B, Cin, IMG, PATCH = 8, 4, 32, 8
    CHANNELS, NUM_BLOCKS, LAYERS = 128, 2, 2
    NUM_HEADS, HEAD_DIM = 2, 64                        # NUM_HEADS * HEAD_DIM == CHANNELS
    T = (IMG // PATCH) ** 2                            # 16 patches
    DIN = Cin * PATCH * PATCH                          # 256

    key = jax.random.PRNGKey(0)
    k_img, k_par = jax.random.split(key)
    x_img = jax.random.normal(k_img, (B, Cin, IMG, IMG), dtype=jnp.float32)
    blocks = init_params(k_par, in_dim=DIN, channels=CHANNELS,
                         num_blocks=NUM_BLOCKS, layers=LAYERS, T=T)

    fwd = jax.jit(functools.partial(model_forward, patch_size=PATCH, num_layers=LAYERS,
                                    num_heads=NUM_HEADS, head_dim=HEAD_DIM))
    z, outputs, logdets = fwd(x_img, blocks)

    jax.block_until_ready(z)
    jax.block_until_ready(logdets)
    for o in outputs:
        jax.block_until_ready(o)

    assert z.shape == (B, T, DIN)
    assert logdets.shape == (B,)
    assert len(outputs) == NUM_BLOCKS
    assert bool(jnp.all(jnp.isfinite(z))) and bool(jnp.all(jnp.isfinite(logdets)))

    # Cross-check against the pure-JAX reference (naive flip -> causal -> flip-back).
    z_ref, outs_ref, ld_ref = model_forward_ref(
        x_img, blocks, patch_size=PATCH, num_layers=LAYERS,
        num_heads=NUM_HEADS, head_dim=HEAD_DIM)
    jax.block_until_ready(z_ref)
    assert bool(jnp.allclose(z, z_ref, rtol=2e-2, atol=2e-2)), (
        "z mismatch vs reference: max abs diff "
        f"{float(jnp.max(jnp.abs(z - z_ref)))}")
    assert bool(jnp.allclose(logdets, ld_ref, rtol=2e-2, atol=2e-2)), (
        "logdet mismatch vs reference: max abs diff "
        f"{float(jnp.max(jnp.abs(logdets - ld_ref)))}")

    print("KERNEL_OK")
</pallas_src>

<mosaic_0001>
module attributes {stable_mosaic.version = 11 : i64} {
  func.func @kernel(%arg0: i32, %arg1: i32, %arg2: memref<4x16x256xf32, #tpu.memory_space<vmem>>, %arg3: memref<16x128xf32, #tpu.memory_space<vmem>>, %arg4: memref<16x16xf32, #tpu.memory_space<vmem>>, %arg5: memref<256x128xbf16, #tpu.memory_space<vmem>>, %arg6: memref<1x128xf32, #tpu.memory_space<vmem>>, %arg7: memref<1x128x384xbf16, #tpu.memory_space<vmem>>, %arg8: memref<1x1x384xf32, #tpu.memory_space<vmem>>, %arg9: memref<1x128x128xbf16, #tpu.memory_space<vmem>>, %arg10: memref<1x1x128xf32, #tpu.memory_space<vmem>>, %arg11: memref<1x128x512xbf16, #tpu.memory_space<vmem>>, %arg12: memref<1x1x512xf32, #tpu.memory_space<vmem>>, %arg13: memref<1x512x128xbf16, #tpu.memory_space<vmem>>, %arg14: memref<1x1x128xf32, #tpu.memory_space<vmem>>, %arg15: memref<128x512xbf16, #tpu.memory_space<vmem>>, %arg16: memref<1x512xf32, #tpu.memory_space<vmem>>, %arg17: memref<4x16x256xf32, #tpu.memory_space<vmem>>, %arg18: memref<1x4x128xf32, #tpu.memory_space<vmem>>, %arg19: memref<64x128xf32, #tpu.memory_space<vmem>>, %arg20: memref<64x128xbf16, #tpu.memory_space<vmem>>) attributes {dimension_semantics = [#tpu.dimension_semantics<parallel>, #tpu.dimension_semantics<arbitrary>], iteration_bounds = array<i64: 2, 2>, scalar_prefetch = 0 : i64, scratch_operands = 2 : i64, tpu.core_type = #tpu.core_type<tc>, window_params = [{transform_indices = @transform_0, window_bounds = array<i64: 4, 16, 256>}, {pipeline_mode = #tpu.pipeline_mode<synchronous>, transform_indices = @transform_1, window_bounds = array<i64: 16, 128>}, {pipeline_mode = #tpu.pipeline_mode<synchronous>, transform_indices = @transform_2, window_bounds = array<i64: 16, 16>}, {pipeline_mode = #tpu.pipeline_mode<synchronous>, transform_indices = @transform_3, window_bounds = array<i64: 256, 128>}, {pipeline_mode = #tpu.pipeline_mode<synchronous>, transform_indices = @transform_4, window_bounds = array<i64: 1, 128>}, {transform_indices = @transform_5, window_bounds = array<i64: 1, 128, 384>}, {transform_indices = @transform_6, window_bounds = array<i64: 1, 1, 384>}, {transform_indices = @transform_7, window_bounds = array<i64: 1, 128, 128>}, {transform_indices = @transform_8, window_bounds = array<i64: 1, 1, 128>}, {transform_indices = @transform_9, window_bounds = array<i64: 1, 128, 512>}, {transform_indices = @transform_10, window_bounds = array<i64: 1, 1, 512>}, {transform_indices = @transform_11, window_bounds = array<i64: 1, 512, 128>}, {transform_indices = @transform_12, window_bounds = array<i64: 1, 1, 128>}, {pipeline_mode = #tpu.pipeline_mode<synchronous>, transform_indices = @transform_13, window_bounds = array<i64: 128, 512>}, {pipeline_mode = #tpu.pipeline_mode<synchronous>, transform_indices = @transform_14, window_bounds = array<i64: 1, 512>}, {transform_indices = @transform_15, window_bounds = array<i64: 4, 16, 256>}, {transform_indices = @transform_16, window_bounds = array<i64: 1, 4, 128>}]} {
    %c0_i32 = arith.constant 0 : i32
    %0 = arith.cmpi eq, %arg1, %c0_i32 : i32
    %1 = arith.extui %0 : i1 to i32
    %c0_i32_0 = arith.constant 0 : i32
    %2 = arith.cmpi ne, %1, %c0_i32_0 : i32
    scf.if %2 {
      %c0_63 = arith.constant 0 : index
      %c0_64 = arith.constant 0 : index
      %c0_65 = arith.constant 0 : index
      %148 = vector.load %arg2[%c0_63, %c0_64, %c0_65] : memref<4x16x256xf32, #tpu.memory_space<vmem>>, vector<4x16x256xf32>
      %149 = vector.shape_cast %148 : vector<4x16x256xf32> to vector<64x256xf32>
      %150 = arith.truncf %149 : vector<64x256xf32> to vector<64x256xbf16>
      %c0_66 = arith.constant 0 : index
      %c0_67 = arith.constant 0 : index
      %151 = vector.load %arg5[%c0_66, %c0_67] : memref<256x128xbf16, #tpu.memory_space<vmem>>, vector<256x128xbf16>
      %cst_68 = arith.constant dense<0.000000e+00> : vector<64x128xf32>
      %152 = tpu.matmul %150, %151, %cst_68 {dimension_numbers = #tpu.dot_dimension_numbers<[1], [0], [0], [1], [0, 0, 1, 1], [], []>} : vector<64x256xbf16>, vector<256x128xbf16>, vector<64x128xf32> -> vector<64x128xf32>
      %c0_69 = arith.constant 0 : index
      %c0_70 = arith.constant 0 : index
      %153 = vector.load %arg6[%c0_69, %c0_70] : memref<1x128xf32, #tpu.memory_space<vmem>>, vector<1x128xf32>
      %154 = vector.broadcast %153 : vector<1x128xf32> to vector<64x128xf32>
      %155 = arith.addf %152, %154 : vector<64x128xf32>
      %156 = vector.shape_cast %155 : vector<64x128xf32> to vector<4x16x128xf32>
      %c0_71 = arith.constant 0 : index
      %c0_72 = arith.constant 0 : index
      %157 = vector.load %arg3[%c0_71, %c0_72] : memref<16x128xf32, #tpu.memory_space<vmem>>, vector<16x128xf32>
      %158 = vector.shape_cast %157 : vector<16x128xf32> to vector<1x16x128xf32>
      %159 = vector.broadcast %158 : vector<1x16x128xf32> to vector<4x16x128xf32>
      %160 = arith.addf %156, %159 : vector<4x16x128xf32>
      %161 = vector.shape_cast %160 : vector<4x16x128xf32> to vector<64x128xf32>
      %c0_73 = arith.constant 0 : index
      %c0_74 = arith.constant 0 : index
      %162 = vector.load %arg19[%c0_73, %c0_74] : memref<64x128xf32, #tpu.memory_space<vmem>>, vector<64x128xf32>
      tpu.vector_store %arg19[%c0_73, %c0_74], %161 {strides = array<i32>} : memref<64x128xf32, #tpu.memory_space<vmem>>, vector<64x128xf32>,
    } else {
    }
    %c0 = arith.constant 0 : index
    %c0_1 = arith.constant 0 : index
    %3 = vector.load %arg19[%c0, %c0_1] : memref<64x128xf32, #tpu.memory_space<vmem>>, vector<64x128xf32>
    %cst = arith.constant dense<0.000000e+00> : vector<64xf32>
    %4 = vector.multi_reduction <add>, %3, %cst [1] : vector<64x128xf32> to vector<64xf32>
    %5 = vector.shape_cast %4 : vector<64xf32> to vector<64x1xf32>
    %cst_2 = arith.constant 1.280000e+02 : f32
    %6 = vector.broadcast %cst_2 : f32 to vector<64x1xf32>
    %7 = arith.divf %5, %6 : vector<64x1xf32>
    %8 = vector.broadcast %7 : vector<64x1xf32> to vector<64x128xf32>
    %9 = arith.subf %3, %8 : vector<64x128xf32>
    %10 = arith.mulf %9, %9 : vector<64x128xf32>
    %cst_3 = arith.constant dense<0.000000e+00> : vector<64xf32>
    %11 = vector.multi_reduction <add>, %10, %cst_3 [1] : vector<64x128xf32> to vector<64xf32>
    %12 = vector.shape_cast %11 : vector<64xf32> to vector<64x1xf32>
    %cst_4 = arith.constant 1.280000e+02 : f32
    %13 = vector.broadcast %cst_4 : f32 to vector<64x1xf32>
    %14 = arith.divf %12, %13 : vector<64x1xf32>
    %cst_5 = arith.constant 9.99999974E-6 : f32
    %15 = vector.broadcast %cst_5 : f32 to vector<64x1xf32>
    %16 = arith.addf %14, %15 : vector<64x1xf32>
    %17 = math.rsqrt %16 : vector<64x1xf32>
    %18 = vector.broadcast %17 : vector<64x1xf32> to vector<64x128xf32>
    %19 = arith.mulf %9, %18 : vector<64x128xf32>
    %20 = arith.truncf %19 : vector<64x128xf32> to vector<64x128xbf16>
    %c0_6 = arith.constant 0 : index
    %c0_7 = arith.constant 0 : index
    %c0_8 = arith.constant 0 : index
    %21 = vector.load %arg7[%c0_6, %c0_7, %c0_8] : memref<1x128x384xbf16, #tpu.memory_space<vmem>>, vector<1x128x384xbf16>
    %22 = vector.shape_cast %21 : vector<1x128x384xbf16> to vector<128x384xbf16>
    %cst_9 = arith.constant dense<0.000000e+00> : vector<64x384xf32>
    %23 = tpu.matmul %20, %22, %cst_9 {dimension_numbers = #tpu.dot_dimension_numbers<[1], [0], [0], [1], [0, 0, 1, 1], [], []>} : vector<64x128xbf16>, vector<128x384xbf16>, vector<64x384xf32> -> vector<64x384xf32>
    %c0_10 = arith.constant 0 : index
    %c0_11 = arith.constant 0 : index
    %c0_12 = arith.constant 0 : index
    %24 = vector.load %arg8[%c0_10, %c0_11, %c0_12] : memref<1x1x384xf32, #tpu.memory_space<vmem>>, vector<1x1x384xf32>
    %25 = vector.shape_cast %24 : vector<1x1x384xf32> to vector<1x384xf32>
    %26 = vector.broadcast %25 : vector<1x384xf32> to vector<64x384xf32>
    %27 = arith.addf %23, %26 : vector<64x384xf32>
    %c0_13 = arith.constant 0 : index
    %c0_14 = arith.constant 0 : index
    %28 = vector.load %arg4[%c0_13, %c0_14] : memref<16x16xf32, #tpu.memory_space<vmem>>, vector<16x16xf32>
    %29 = vector.extract_strided_slice %27 {offsets = [0, 0], sizes = [64, 64], strides = [1, 1]} : vector<64x384xf32> to vector<64x64xf32>
    %30 = vector.shape_cast %29 : vector<64x64xf32> to vector<4x16x64xf32>
    %31 = arith.truncf %30 : vector<4x16x64xf32> to vector<4x16x64xbf16>
    %32 = vector.extract_strided_slice %27 {offsets = [0, 128], sizes = [64, 64], strides = [1, 1]} : vector<64x384xf32> to vector<64x64xf32>
    %33 = vector.shape_cast %32 : vector<64x64xf32> to vector<4x16x64xf32>
    %34 = arith.truncf %33 : vector<4x16x64xf32> to vector<4x16x64xbf16>
    %35 = vector.extract_strided_slice %27 {offsets = [0, 256], sizes = [64, 64], strides = [1, 1]} : vector<64x384xf32> to vector<64x64xf32>
    %36 = vector.shape_cast %35 : vector<64x64xf32> to vector<4x16x64xf32>
    %37 = arith.truncf %36 : vector<4x16x64xf32> to vector<4x16x64xbf16>
    "tpu.trace_start"() <{level = 10 : i32, message = "bqd,bkd->bqk"}> : () -> ()
    %cst_15 = arith.constant dense<0.000000e+00> : vector<4x16x16xf32>
    %38 = tpu.matmul %31, %34, %cst_15 {dimension_numbers = #tpu.dot_dimension_numbers<[2], [2], [1], [1], [0, 0, 0, 1, 1, 1], [0], [0]>} : vector<4x16x64xbf16>, vector<4x16x64xbf16>, vector<4x16x16xf32> -> vector<4x16x16xf32>
    "tpu.trace_stop"() : () -> ()
    %cst_16 = arith.constant 1.250000e-01 : f32
    %39 = vector.broadcast %cst_16 : f32 to vector<4x16x16xf32>
    %40 = arith.mulf %38, %39 : vector<4x16x16xf32>
    %41 = vector.shape_cast %28 : vector<16x16xf32> to vector<1x16x16xf32>
    %42 = vector.broadcast %41 : vector<1x16x16xf32> to vector<4x16x16xf32>
    %43 = arith.addf %40, %42 : vector<4x16x16xf32>
    %cst_17 = arith.constant dense<0xFF800000> : vector<4x16xf32>
    %44 = vector.multi_reduction <maximumf>, %43, %cst_17 [2] : vector<4x16x16xf32> to vector<4x16xf32>
    %45 = vector.shape_cast %44 : vector<4x16xf32> to vector<4x16x1xf32>
    %46 = vector.broadcast %45 : vector<4x16x1xf32> to vector<4x16x16xf32>
    %47 = arith.subf %43, %46 : vector<4x16x16xf32>
    %48 = math.exp %47 : vector<4x16x16xf32>
    %cst_18 = arith.constant dense<0.000000e+00> : vector<4x16xf32>
    %49 = vector.multi_reduction <add>, %48, %cst_18 [2] : vector<4x16x16xf32> to vector<4x16xf32>
    %50 = vector.shape_cast %49 : vector<4x16xf32> to vector<4x16x1xf32>
    %51 = tpu.reciprocal %50 {approx = true} : vector<4x16x1xf32> -> vector<4x16x1xf32>
    %52 = vector.broadcast %51 : vector<4x16x1xf32> to vector<4x16x16xf32>
    %53 = arith.mulf %48, %52 : vector<4x16x16xf32>
    %54 = arith.truncf %53 : vector<4x16x16xf32> to vector<4x16x16xbf16>
    "tpu.trace_start"() <{level = 10 : i32, message = "bqk,bkd->bqd"}> : () -> ()
    %cst_19 = arith.constant dense<0.000000e+00> : vector<4x16x64xf32>
    %55 = tpu.matmul %54, %37, %cst_19 {dimension_numbers = #tpu.dot_dimension_numbers<[2], [1], [1], [2], [0, 0, 0, 1, 1, 2], [0], [0]>} : vector<4x16x16xbf16>, vector<4x16x64xbf16>, vector<4x16x64xf32> -> vector<4x16x64xf32>
    "tpu.trace_stop"() : () -> ()
    %56 = vector.shape_cast %55 : vector<4x16x64xf32> to vector<64x64xf32>
    %57 = arith.truncf %56 : vector<64x64xf32> to vector<64x64xbf16>
    %c0_20 = arith.constant 0 : index
    %c0_21 = arith.constant 0 : index
    %58 = vector.load %arg20[%c0_20, %c0_21] : memref<64x128xbf16, #tpu.memory_space<vmem>>, vector<64x64xbf16>
    tpu.vector_store %arg20[%c0_20, %c0_21], %57 {strides = array<i32>} : memref<64x128xbf16, #tpu.memory_space<vmem>>, vector<64x64xbf16>,
    %59 = vector.extract_strided_slice %27 {offsets = [0, 64], sizes = [64, 64], strides = [1, 1]} : vector<64x384xf32> to vector<64x64xf32>
    %60 = vector.shape_cast %59 : vector<64x64xf32> to vector<4x16x64xf32>
    %61 = arith.truncf %60 : vector<4x16x64xf32> to vector<4x16x64xbf16>
    %62 = vector.extract_strided_slice %27 {offsets = [0, 192], sizes = [64, 64], strides = [1, 1]} : vector<64x384xf32> to vector<64x64xf32>
    %63 = vector.shape_cast %62 : vector<64x64xf32> to vector<4x16x64xf32>
    %64 = arith.truncf %63 : vector<4x16x64xf32> to vector<4x16x64xbf16>
    %65 = vector.extract_strided_slice %27 {offsets = [0, 320], sizes = [64, 64], strides = [1, 1]} : vector<64x384xf32> to vector<64x64xf32>
    %66 = vector.shape_cast %65 : vector<64x64xf32> to vector<4x16x64xf32>
    %67 = arith.truncf %66 : vector<4x16x64xf32> to vector<4x16x64xbf16>
    "tpu.trace_start"() <{level = 10 : i32, message = "bqd,bkd->bqk"}> : () -> ()
    %cst_22 = arith.constant dense<0.000000e+00> : vector<4x16x16xf32>
    %68 = tpu.matmul %61, %64, %cst_22 {dimension_numbers = #tpu.dot_dimension_numbers<[2], [2], [1], [1], [0, 0, 0, 1, 1, 1], [0], [0]>} : vector<4x16x64xbf16>, vector<4x16x64xbf16>, vector<4x16x16xf32> -> vector<4x16x16xf32>
    "tpu.trace_stop"() : () -> ()
    %cst_23 = arith.constant 1.250000e-01 : f32
    %69 = vector.broadcast %cst_23 : f32 to vector<4x16x16xf32>
    %70 = arith.mulf %68, %69 : vector<4x16x16xf32>
    %71 = vector.shape_cast %28 : vector<16x16xf32> to vector<1x16x16xf32>
    %72 = vector.broadcast %71 : vector<1x16x16xf32> to vector<4x16x16xf32>
    %73 = arith.addf %70, %72 : vector<4x16x16xf32>
    %cst_24 = arith.constant dense<0xFF800000> : vector<4x16xf32>
    %74 = vector.multi_reduction <maximumf>, %73, %cst_24 [2] : vector<4x16x16xf32> to vector<4x16xf32>
    %75 = vector.shape_cast %74 : vector<4x16xf32> to vector<4x16x1xf32>
    %76 = vector.broadcast %75 : vector<4x16x1xf32> to vector<4x16x16xf32>
    %77 = arith.subf %73, %76 : vector<4x16x16xf32>
    %78 = math.exp %77 : vector<4x16x16xf32>
    %cst_25 = arith.constant dense<0.000000e+00> : vector<4x16xf32>
    %79 = vector.multi_reduction <add>, %78, %cst_25 [2] : vector<4x16x16xf32> to vector<4x16xf32>
    %80 = vector.shape_cast %79 : vector<4x16xf32> to vector<4x16x1xf32>
    %81 = tpu.reciprocal %80 {approx = true} : vector<4x16x1xf32> -> vector<4x16x1xf32>
    %82 = vector.broadcast %81 : vector<4x16x1xf32> to vector<4x16x16xf32>
    %83 = arith.mulf %78, %82 : vector<4x16x16xf32>
    %84 = arith.truncf %83 : vector<4x16x16xf32> to vector<4x16x16xbf16>
    "tpu.trace_start"() <{level = 10 : i32, message = "bqk,bkd->bqd"}> : () -> ()
    %cst_26 = arith.constant dense<0.000000e+00> : vector<4x16x64xf32>
    %85 = tpu.matmul %84, %67, %cst_26 {dimension_numbers = #tpu.dot_dimension_numbers<[2], [1], [1], [2], [0, 0, 0, 1, 1, 2], [0], [0]>} : vector<4x16x16xbf16>, vector<4x16x64xbf16>, vector<4x16x64xf32> -> vector<4x16x64xf32>
    "tpu.trace_stop"() : () -> ()
    %86 = vector.shape_cast %85 : vector<4x16x64xf32> to vector<64x64xf32>
    %87 = arith.truncf %86 : vector<64x64xf32> to vector<64x64xbf16>
    %c0_27 = arith.constant 0 : index
    %c64 = arith.constant 64 : index
    %88 = vector.load %arg20[%c0_27, %c64] : memref<64x128xbf16, #tpu.memory_space<vmem>>, vector<64x64xbf16>
    tpu.vector_store %arg20[%c0_27, %c64], %87 {strides = array<i32>} : memref<64x128xbf16, #tpu.memory_space<vmem>>, vector<64x64xbf16>,
    %c0_28 = arith.constant 0 : index
    %c0_29 = arith.constant 0 : index
    %89 = vector.load %arg20[%c0_28, %c0_29] : memref<64x128xbf16, #tpu.memory_space<vmem>>, vector<64x128xbf16>
    %c0_30 = arith.constant 0 : index
    %c0_31 = arith.constant 0 : index
    %c0_32 = arith.constant 0 : index
    %90 = vector.load %arg9[%c0_30, %c0_31, %c0_32] : memref<1x128x128xbf16, #tpu.memory_space<vmem>>, vector<1x128x128xbf16>
    %91 = vector.shape_cast %90 : vector<1x128x128xbf16> to vector<128x128xbf16>
    %cst_33 = arith.constant dense<0.000000e+00> : vector<64x128xf32>
    %92 = tpu.matmul %89, %91, %cst_33 {dimension_numbers = #tpu.dot_dimension_numbers<[1], [0], [0], [1], [0, 0, 1, 1], [], []>} : vector<64x128xbf16>, vector<128x128xbf16>, vector<64x128xf32> -> vector<64x128xf32>
    %93 = arith.addf %3, %92 : vector<64x128xf32>
    %c0_34 = arith.constant 0 : index
    %c0_35 = arith.constant 0 : index
    %c0_36 = arith.constant 0 : index
    %94 = vector.load %arg10[%c0_34, %c0_35, %c0_36] : memref<1x1x128xf32, #tpu.memory_space<vmem>>, vector<1x1x128xf32>
    %95 = vector.shape_cast %94 : vector<1x1x128xf32> to vector<1x128xf32>
    %96 = vector.broadcast %95 : vector<1x128xf32> to vector<64x128xf32>
    %97 = arith.addf %93, %96 : vector<64x128xf32>
    %cst_37 = arith.constant dense<0.000000e+00> : vector<64xf32>
    %98 = vector.multi_reduction <add>, %97, %cst_37 [1] : vector<64x128xf32> to vector<64xf32>
    %99 = vector.shape_cast %98 : vector<64xf32> to vector<64x1xf32>
    %cst_38 = arith.constant 1.280000e+02 : f32
    %100 = vector.broadcast %cst_38 : f32 to vector<64x1xf32>
    %101 = arith.divf %99, %100 : vector<64x1xf32>
    %102 = vector.broadcast %101 : vector<64x1xf32> to vector<64x128xf32>
    %103 = arith.subf %97, %102 : vector<64x128xf32>
    %104 = arith.mulf %103, %103 : vector<64x128xf32>
    %cst_39 = arith.constant dense<0.000000e+00> : vector<64xf32>
    %105 = vector.multi_reduction <add>, %104, %cst_39 [1] : vector<64x128xf32> to vector<64xf32>
    %106 = vector.shape_cast %105 : vector<64xf32> to vector<64x1xf32>
    %cst_40 = arith.constant 1.280000e+02 : f32
    %107 = vector.broadcast %cst_40 : f32 to vector<64x1xf32>
    %108 = arith.divf %106, %107 : vector<64x1xf32>
    %cst_41 = arith.constant 9.99999974E-6 : f32
    %109 = vector.broadcast %cst_41 : f32 to vector<64x1xf32>
    %110 = arith.addf %108, %109 : vector<64x1xf32>
    %111 = math.rsqrt %110 : vector<64x1xf32>
    %112 = vector.broadcast %111 : vector<64x1xf32> to vector<64x128xf32>
    %113 = arith.mulf %103, %112 : vector<64x128xf32>
    %114 = arith.truncf %113 : vector<64x128xf32> to vector<64x128xbf16>
    %c0_42 = arith.constant 0 : index
    %c0_43 = arith.constant 0 : index
    %c0_44 = arith.constant 0 : index
    %115 = vector.load %arg11[%c0_42, %c0_43, %c0_44] : memref<1x128x512xbf16, #tpu.memory_space<vmem>>, vector<1x128x512xbf16>
    %116 = vector.shape_cast %115 : vector<1x128x512xbf16> to vector<128x512xbf16>
    %cst_45 = arith.constant dense<0.000000e+00> : vector<64x512xf32>
    %117 = tpu.matmul %114, %116, %cst_45 {dimension_numbers = #tpu.dot_dimension_numbers<[1], [0], [0], [1], [0, 0, 1, 1], [], []>} : vector<64x128xbf16>, vector<128x512xbf16>, vector<64x512xf32> -> vector<64x512xf32>
    %c0_46 = arith.constant 0 : index
    %c0_47 = arith.constant 0 : index
    %c0_48 = arith.constant 0 : index
    %118 = vector.load %arg12[%c0_46, %c0_47, %c0_48] : memref<1x1x512xf32, #tpu.memory_space<vmem>>, vector<1x1x512xf32>
    %119 = vector.shape_cast %118 : vector<1x1x512xf32> to vector<1x512xf32>
    %120 = vector.broadcast %119 : vector<1x512xf32> to vector<64x512xf32>
    %121 = arith.addf %117, %120 : vector<64x512xf32>
    %122 = arith.mulf %121, %121 : vector<64x512xf32>
    %123 = arith.mulf %121, %122 : vector<64x512xf32>
    %cst_49 = arith.constant 4.471500e-02 : f32
    %124 = vector.broadcast %cst_49 : f32 to vector<64x512xf32>
    %125 = arith.mulf %124, %123 : vector<64x512xf32>
    %126 = arith.addf %121, %125 : vector<64x512xf32>
    %cst_50 = arith.constant 0.797884583 : f32
    %127 = vector.broadcast %cst_50 : f32 to vector<64x512xf32>
    %128 = arith.mulf %127, %126 : vector<64x512xf32>
    %129 = math.tanh %128 : vector<64x512xf32>
    %cst_51 = arith.constant 1.000000e+00 : f32
    %130 = vector.broadcast %cst_51 : f32 to vector<64x512xf32>
    %131 = arith.addf %130, %129 : vector<64x512xf32>
    %cst_52 = arith.constant 5.000000e-01 : f32
    %132 = vector.broadcast %cst_52 : f32 to vector<64x512xf32>
    %133 = arith.mulf %132, %131 : vector<64x512xf32>
    %134 = arith.mulf %121, %133 : vector<64x512xf32>
    %135 = arith.truncf %134 : vector<64x512xf32> to vector<64x512xbf16>
    %c0_53 = arith.constant 0 : index
    %c0_54 = arith.constant 0 : index
    %c0_55 = arith.constant 0 : index
    %136 = vector.load %arg13[%c0_53, %c0_54, %c0_55] : memref<1x512x128xbf16, #tpu.memory_space<vmem>>, vector<1x512x128xbf16>
    %137 = vector.shape_cast %136 : vector<1x512x128xbf16> to vector<512x128xbf16>
    %cst_56 = arith.constant dense<0.000000e+00> : vector<64x128xf32>
    %138 = tpu.matmul %135, %137, %cst_56 {dimension_numbers = #tpu.dot_dimension_numbers<[1], [0], [0], [1], [0, 0, 1, 1], [], []>} : vector<64x512xbf16>, vector<512x128xbf16>, vector<64x128xf32> -> vector<64x128xf32>
    %139 = arith.addf %97, %138 : vector<64x128xf32>
    %c0_57 = arith.constant 0 : index
    %c0_58 = arith.constant 0 : index
    %c0_59 = arith.constant 0 : index
    %140 = vector.load %arg14[%c0_57, %c0_58, %c0_59] : memref<1x1x128xf32, #tpu.memory_space<vmem>>, vector<1x1x128xf32>
    %141 = vector.shape_cast %140 : vector<1x1x128xf32> to vector<1x128xf32>
    %142 = vector.broadcast %141 : vector<1x128xf32> to vector<64x128xf32>
    %143 = arith.addf %139, %142 : vector<64x128xf32>
    %c0_60 = arith.constant 0 : index
    %c0_61 = arith.constant 0 : index
    %144 = vector.load %arg19[%c0_60, %c0_61] : memref<64x128xf32, #tpu.memory_space<vmem>>, vector<64x128xf32>
    tpu.vector_store %arg19[%c0_60, %c0_61], %143 {strides = array<i32>} : memref<64x128xf32, #tpu.memory_space<vmem>>, vector<64x128xf32>,
    %c1_i32 = arith.constant 1 : i32
    %145 = arith.cmpi eq, %arg1, %c1_i32 : i32
    %146 = arith.extui %145 : i1 to i32
    %c0_i32_62 = arith.constant 0 : i32
    %147 = arith.cmpi ne, %146, %c0_i32_62 : i32
    scf.if %147 {
      %148 = arith.truncf %143 : vector<64x128xf32> to vector<64x128xbf16>
      %c0_63 = arith.constant 0 : index
      %c0_64 = arith.constant 0 : index
      %149 = vector.load %arg15[%c0_63, %c0_64] : memref<128x512xbf16, #tpu.memory_space<vmem>>, vector<128x512xbf16>
      %cst_65 = arith.constant dense<0.000000e+00> : vector<64x512xf32>
      %150 = tpu.matmul %148, %149, %cst_65 {dimension_numbers = #tpu.dot_dimension_numbers<[1], [0], [0], [1], [0, 0, 1, 1], [], []>} : vector<64x128xbf16>, vector<128x512xbf16>, vector<64x512xf32> -> vector<64x512xf32>
      %c0_66 = arith.constant 0 : index
      %c0_67 = arith.constant 0 : index
      %151 = vector.load %arg16[%c0_66, %c0_67] : memref<1x512xf32, #tpu.memory_space<vmem>>, vector<1x512xf32>
      %152 = vector.broadcast %151 : vector<1x512xf32> to vector<64x512xf32>
      %153 = arith.addf %150, %152 : vector<64x512xf32>
      %c1_i32_68 = arith.constant 1 : i32
      %154 = tpu.dynamic_rotate %153 by %c1_i32_68 dim 0 : vector<64x512xf32>, i32 -> vector<64x512xf32>
      %155 = tpu.iota {dimensions = array<i32: 0>} : vector<64x1xi32>
      %c16_i32 = arith.constant 16 : i32
      %c0_i32_69 = arith.constant 0 : i32
      %156 = arith.cmpi eq, %c16_i32, %c0_i32_69 : i32
      %c1_i32_70 = arith.constant 1 : i32
      %157 = arith.select %156, %c1_i32_70, %c16_i32 : i32
      %158 = vector.broadcast %157 : i32 to vector<64x1xi32>
      %159 = arith.remsi %155, %158 : vector<64x1xi32>
      %c0_i32_71 = arith.constant 0 : i32
      %160 = vector.broadcast %c0_i32_71 : i32 to vector<64x1xi32>
      %161 = arith.cmpi ne, %159, %160 : vector<64x1xi32>
      %c0_i32_72 = arith.constant 0 : i32
      %162 = vector.broadcast %c0_i32_72 : i32 to vector<64x1xi32>
      %163 = arith.cmpi slt, %159, %162 : vector<64x1xi32>
      %c0_i32_73 = arith.constant 0 : i32
      %164 = arith.cmpi slt, %157, %c0_i32_73 : i32
      %165 = vector.broadcast %164 : i1 to vector<64x1xi1>
      %166 = vector.broadcast %165 : vector<64x1xi1> to vector<64x1xi1>
      %167 = arith.xori %163, %166 : vector<64x1xi1>
      %168 = arith.andi %167, %161 : vector<64x1xi1>
      %169 = vector.broadcast %157 : i32 to vector<64x1xi32>
      %170 = arith.addi %159, %169 : vector<64x1xi32>
      %171 = arith.select %168, %170, %159 : vector<64x1xi1>, vector<64x1xi32>
      %c0_i32_74 = arith.constant 0 : i32
      %172 = vector.broadcast %c0_i32_74 : i32 to vector<64x1xi32>
      %173 = arith.cmpi eq, %171, %172 : vector<64x1xi32>
      %cst_75 = arith.constant 0.000000e+00 : f32
      %174 = vector.shape_cast %173 : vector<64x1xi1> to vector<64x1xi1>
      %175 = vector.broadcast %174 : vector<64x1xi1> to vector<64x512xi1>
      %176 = vector.broadcast %cst_75 : f32 to vector<64x512xf32>
      %177 = arith.select %175, %176, %154 : vector<64x512xi1>, vector<64x512xf32>
      %178 = vector.extract_strided_slice %177 {offsets = [0, 0], sizes = [64, 256], strides = [1, 1]} : vector<64x512xf32> to vector<64x256xf32>
      %179 = vector.extract_strided_slice %177 {offsets = [0, 256], sizes = [64, 256], strides = [1, 1]} : vector<64x512xf32> to vector<64x256xf32>
      %c0_76 = arith.constant 0 : index
      %c0_77 = arith.constant 0 : index
      %c0_78 = arith.constant 0 : index
      %180 = vector.load %arg2[%c0_76, %c0_77, %c0_78] : memref<4x16x256xf32, #tpu.memory_space<vmem>>, vector<4x16x256xf32>
      %181 = vector.shape_cast %180 : vector<4x16x256xf32> to vector<64x256xf32>
      %182 = arith.subf %181, %179 : vector<64x256xf32>
      %cst_79 = arith.constant 0.000000e+00 : f32
      %183 = vector.broadcast %cst_79 : f32 to vector<64x256xf32>
      %184 = arith.subf %183, %178 : vector<64x256xf32>
      %185 = math.exp %184 : vector<64x256xf32>
      %186 = arith.mulf %182, %185 : vector<64x256xf32>
      %187 = vector.shape_cast %186 : vector<64x256xf32> to vector<4x16x256xf32>
      %c0_80 = arith.constant 0 : index
      %c0_81 = arith.constant 0 : index
      %c0_82 = arith.constant 0 : index
      %188 = vector.load %arg17[%c0_80, %c0_81, %c0_82] : memref<4x16x256xf32, #tpu.memory_space<vmem>>, vector<4x16x256xf32>
      tpu.vector_store %arg17[%c0_80, %c0_81, %c0_82], %187 {strides = array<i32>} : memref<4x16x256xf32, #tpu.memory_space<vmem>>, vector<4x16x256xf32>,
      %189 = vector.shape_cast %178 : vector<64x256xf32> to vector<4x16x256xf32>
      %cst_83 = arith.constant dense<0.000000e+00> : vector<4x16xf32>
      %190 = vector.multi_reduction <add>, %189, %cst_83 [2] : vector<4x16x256xf32> to vector<4x16xf32>
      %cst_84 = arith.constant dense<0.000000e+00> : vector<4xf32>
      %191 = vector.multi_reduction <add>, %190, %cst_84 [1] : vector<4x16xf32> to vector<4xf32>
      %192 = vector.shape_cast %191 : vector<4xf32> to vector<4x1xf32>
      %cst_85 = arith.constant 2.44140625E-4 : f32
      %193 = vector.broadcast %cst_85 : f32 to vector<4x1xf32>
      %194 = arith.mulf %192, %193 : vector<4x1xf32>
      %cst_86 = arith.constant 0.000000e+00 : f32
      %195 = vector.broadcast %cst_86 : f32 to vector<4x1xf32>
      %196 = arith.subf %195, %194 : vector<4x1xf32>
      %197 = vector.shape_cast %196 : vector<4x1xf32> to vector<4x1xf32>
      %198 = vector.broadcast %197 : vector<4x1xf32> to vector<4x128xf32>
      %199 = vector.shape_cast %198 : vector<4x128xf32> to vector<1x4x128xf32>
      %c0_87 = arith.constant 0 : index
      %c0_88 = arith.constant 0 : index
      %c0_89 = arith.constant 0 : index
      %200 = vector.load %arg18[%c0_87, %c0_88, %c0_89] : memref<1x4x128xf32, #tpu.memory_space<vmem>>, vector<1x4x128xf32>
      tpu.vector_store %arg18[%c0_87, %c0_88, %c0_89], %199 {strides = array<i32>} : memref<1x4x128xf32, #tpu.memory_space<vmem>>, vector<1x4x128xf32>,
    } else {
    }
    return
  }
  func.func @transform_0(%arg0: i32, %arg1: i32) -> (i32, i32, i32) {
    %c0_i32 = arith.constant 0 : i32
    %c0_i32_0 = arith.constant 0 : i32
    %c0_i32_1 = arith.constant 0 : i32
    return %arg0, %c0_i32, %c0_i32_0 : i32, i32, i32
  }
  func.func @transform_1(%arg0: i32, %arg1: i32) -> (i32, i32) {
    %c0_i32 = arith.constant 0 : i32
    %c0_i32_0 = arith.constant 0 : i32
    %c0_i32_1 = arith.constant 0 : i32
    return %c0_i32, %c0_i32_0 : i32, i32
  }
  func.func @transform_2(%arg0: i32, %arg1: i32) -> (i32, i32) {
    %c0_i32 = arith.constant 0 : i32
    %c0_i32_0 = arith.constant 0 : i32
    %c0_i32_1 = arith.constant 0 : i32
    return %c0_i32, %c0_i32_0 : i32, i32
  }
  func.func @transform_3(%arg0: i32, %arg1: i32) -> (i32, i32) {
    %c0_i32 = arith.constant 0 : i32
    %c0_i32_0 = arith.constant 0 : i32
    %c0_i32_1 = arith.constant 0 : i32
    return %c0_i32, %c0_i32_0 : i32, i32
  }
  func.func @transform_4(%arg0: i32, %arg1: i32) -> (i32, i32) {
    %c0_i32 = arith.constant 0 : i32
    %c0_i32_0 = arith.constant 0 : i32
    %c0_i32_1 = arith.constant 0 : i32
    return %c0_i32, %c0_i32_0 : i32, i32
  }
  func.func @transform_5(%arg0: i32, %arg1: i32) -> (i32, i32, i32) {
    %c0_i32 = arith.constant 0 : i32
    %c0_i32_0 = arith.constant 0 : i32
    %c0_i32_1 = arith.constant 0 : i32
    return %arg1, %c0_i32, %c0_i32_0 : i32, i32, i32
  }
  func.func @transform_6(%arg0: i32, %arg1: i32) -> (i32, i32, i32) {
    %c0_i32 = arith.constant 0 : i32
    %c0_i32_0 = arith.constant 0 : i32
    %c0_i32_1 = arith.constant 0 : i32
    return %arg1, %c0_i32, %c0_i32_0 : i32, i32, i32
  }
  func.func @transform_7(%arg0: i32, %arg1: i32) -> (i32, i32, i32) {
    %c0_i32 = arith.constant 0 : i32
    %c0_i32_0 = arith.constant 0 : i32
    %c0_i32_1 = arith.constant 0 : i32
    return %arg1, %c0_i32, %c0_i32_0 : i32, i32, i32
  }
  func.func @transform_8(%arg0: i32, %arg1: i32) -> (i32, i32, i32) {
    %c0_i32 = arith.constant 0 : i32
    %c0_i32_0 = arith.constant 0 : i32
    %c0_i32_1 = arith.constant 0 : i32
    return %arg1, %c0_i32, %c0_i32_0 : i32, i32, i32
  }
  func.func @transform_9(%arg0: i32, %arg1: i32) -> (i32, i32, i32) {
    %c0_i32 = arith.constant 0 : i32
    %c0_i32_0 = arith.constant 0 : i32
    %c0_i32_1 = arith.constant 0 : i32
    return %arg1, %c0_i32, %c0_i32_0 : i32, i32, i32
  }
  func.func @transform_10(%arg0: i32, %arg1: i32) -> (i32, i32, i32) {
    %c0_i32 = arith.constant 0 : i32
    %c0_i32_0 = arith.constant 0 : i32
    %c0_i32_1 = arith.constant 0 : i32
    return %arg1, %c0_i32, %c0_i32_0 : i32, i32, i32
  }
  func.func @transform_11(%arg0: i32, %arg1: i32) -> (i32, i32, i32) {
    %c0_i32 = arith.constant 0 : i32
    %c0_i32_0 = arith.constant 0 : i32
    %c0_i32_1 = arith.constant 0 : i32
    return %arg1, %c0_i32, %c0_i32_0 : i32, i32, i32
  }
  func.func @transform_12(%arg0: i32, %arg1: i32) -> (i32, i32, i32) {
    %c0_i32 = arith.constant 0 : i32
    %c0_i32_0 = arith.constant 0 : i32
    %c0_i32_1 = arith.constant 0 : i32
    return %arg1, %c0_i32, %c0_i32_0 : i32, i32, i32
  }
  func.func @transform_13(%arg0: i32, %arg1: i32) -> (i32, i32) {
    %c0_i32 = arith.constant 0 : i32
    %c0_i32_0 = arith.constant 0 : i32
    %c0_i32_1 = arith.constant 0 : i32
    return %c0_i32, %c0_i32_0 : i32, i32
  }
  func.func @transform_14(%arg0: i32, %arg1: i32) -> (i32, i32) {
    %c0_i32 = arith.constant 0 : i32
    %c0_i32_0 = arith.constant 0 : i32
    %c0_i32_1 = arith.constant 0 : i32
    return %c0_i32, %c0_i32_0 : i32, i32
  }
  func.func @transform_15(%arg0: i32, %arg1: i32) -> (i32, i32, i32) {
    %c0_i32 = arith.constant 0 : i32
    %c0_i32_0 = arith.constant 0 : i32
    %c0_i32_1 = arith.constant 0 : i32
    return %arg0, %c0_i32, %c0_i32_0 : i32, i32, i32
  }
  func.func @transform_16(%arg0: i32, %arg1: i32) -> (i32, i32, i32) {
    %c0_i32 = arith.constant 0 : i32
    %c0_i32_0 = arith.constant 0 : i32
    %c0_i32_1 = arith.constant 0 : i32
    return %arg0, %c0_i32, %c0_i32_0 : i32, i32, i32
  }
}

module attributes {stable_mosaic.version = 11 : i64} {
  func.func @kernel(%arg0: i32, %arg1: i32, %arg2: memref<4x16x256xf32, #tpu.memory_space<vmem>>, %arg3: memref<16x128xf32, #tpu.memory_space<vmem>>, %arg4: memref<16x16xf32, #tpu.memory_space<vmem>>, %arg5: memref<256x128xbf16, #tpu.memory_space<vmem>>, %arg6: memref<1x128xf32, #tpu.memory_space<vmem>>, %arg7: memref<1x128x384xbf16, #tpu.memory_space<vmem>>, %arg8: memref<1x1x384xf32, #tpu.memory_space<vmem>>, %arg9: memref<1x128x128xbf16, #tpu.memory_space<vmem>>, %arg10: memref<1x1x128xf32, #tpu.memory_space<vmem>>, %arg11: memref<1x128x512xbf16, #tpu.memory_space<vmem>>, %arg12: memref<1x1x512xf32, #tpu.memory_space<vmem>>, %arg13: memref<1x512x128xbf16, #tpu.memory_space<vmem>>, %arg14: memref<1x1x128xf32, #tpu.memory_space<vmem>>, %arg15: memref<128x512xbf16, #tpu.memory_space<vmem>>, %arg16: memref<1x512xf32, #tpu.memory_space<vmem>>, %arg17: memref<4x16x256xf32, #tpu.memory_space<vmem>>, %arg18: memref<1x4x128xf32, #tpu.memory_space<vmem>>, %arg19: memref<64x128xf32, #tpu.memory_space<vmem>>, %arg20: memref<64x128xbf16, #tpu.memory_space<vmem>>) attributes {dimension_semantics = [#tpu.dimension_semantics<parallel>, #tpu.dimension_semantics<arbitrary>], iteration_bounds = array<i64: 2, 2>, scalar_prefetch = 0 : i64, scratch_operands = 2 : i64, tpu.core_type = #tpu.core_type<tc>, window_params = [{transform_indices = @transform_0, window_bounds = array<i64: 4, 16, 256>}, {pipeline_mode = #tpu.pipeline_mode<synchronous>, transform_indices = @transform_1, window_bounds = array<i64: 16, 128>}, {pipeline_mode = #tpu.pipeline_mode<synchronous>, transform_indices = @transform_2, window_bounds = array<i64: 16, 16>}, {pipeline_mode = #tpu.pipeline_mode<synchronous>, transform_indices = @transform_3, window_bounds = array<i64: 256, 128>}, {pipeline_mode = #tpu.pipeline_mode<synchronous>, transform_indices = @transform_4, window_bounds = array<i64: 1, 128>}, {transform_indices = @transform_5, window_bounds = array<i64: 1, 128, 384>}, {transform_indices = @transform_6, window_bounds = array<i64: 1, 1, 384>}, {transform_indices = @transform_7, window_bounds = array<i64: 1, 128, 128>}, {transform_indices = @transform_8, window_bounds = array<i64: 1, 1, 128>}, {transform_indices = @transform_9, window_bounds = array<i64: 1, 128, 512>}, {transform_indices = @transform_10, window_bounds = array<i64: 1, 1, 512>}, {transform_indices = @transform_11, window_bounds = array<i64: 1, 512, 128>}, {transform_indices = @transform_12, window_bounds = array<i64: 1, 1, 128>}, {pipeline_mode = #tpu.pipeline_mode<synchronous>, transform_indices = @transform_13, window_bounds = array<i64: 128, 512>}, {pipeline_mode = #tpu.pipeline_mode<synchronous>, transform_indices = @transform_14, window_bounds = array<i64: 1, 512>}, {transform_indices = @transform_15, window_bounds = array<i64: 4, 16, 256>}, {transform_indices = @transform_16, window_bounds = array<i64: 1, 4, 128>}]} {
    %c0_i32 = arith.constant 0 : i32
    %0 = arith.cmpi eq, %arg1, %c0_i32 : i32
    %1 = arith.extui %0 : i1 to i32
    %c0_i32_0 = arith.constant 0 : i32
    %2 = arith.cmpi ne, %1, %c0_i32_0 : i32
    scf.if %2 {
      %c0_63 = arith.constant 0 : index
      %c0_64 = arith.constant 0 : index
      %c0_65 = arith.constant 0 : index
      %148 = vector.load %arg2[%c0_63, %c0_64, %c0_65] : memref<4x16x256xf32, #tpu.memory_space<vmem>>, vector<4x16x256xf32>
      %149 = vector.shape_cast %148 : vector<4x16x256xf32> to vector<64x256xf32>
      %150 = arith.truncf %149 : vector<64x256xf32> to vector<64x256xbf16>
      %c0_66 = arith.constant 0 : index
      %c0_67 = arith.constant 0 : index
      %151 = vector.load %arg5[%c0_66, %c0_67] : memref<256x128xbf16, #tpu.memory_space<vmem>>, vector<256x128xbf16>
      %cst_68 = arith.constant dense<0.000000e+00> : vector<64x128xf32>
      %152 = tpu.matmul %150, %151, %cst_68 {dimension_numbers = #tpu.dot_dimension_numbers<[1], [0], [0], [1], [0, 0, 1, 1], [], []>} : vector<64x256xbf16>, vector<256x128xbf16>, vector<64x128xf32> -> vector<64x128xf32>
      %c0_69 = arith.constant 0 : index
      %c0_70 = arith.constant 0 : index
      %153 = vector.load %arg6[%c0_69, %c0_70] : memref<1x128xf32, #tpu.memory_space<vmem>>, vector<1x128xf32>
      %154 = vector.broadcast %153 : vector<1x128xf32> to vector<64x128xf32>
      %155 = arith.addf %152, %154 : vector<64x128xf32>
      %156 = vector.shape_cast %155 : vector<64x128xf32> to vector<4x16x128xf32>
      %c0_71 = arith.constant 0 : index
      %c0_72 = arith.constant 0 : index
      %157 = vector.load %arg3[%c0_71, %c0_72] : memref<16x128xf32, #tpu.memory_space<vmem>>, vector<16x128xf32>
      %158 = vector.shape_cast %157 : vector<16x128xf32> to vector<1x16x128xf32>
      %159 = vector.broadcast %158 : vector<1x16x128xf32> to vector<4x16x128xf32>
      %160 = arith.addf %156, %159 : vector<4x16x128xf32>
      %161 = vector.shape_cast %160 : vector<4x16x128xf32> to vector<64x128xf32>
      %c0_73 = arith.constant 0 : index
      %c0_74 = arith.constant 0 : index
      %162 = vector.load %arg19[%c0_73, %c0_74] : memref<64x128xf32, #tpu.memory_space<vmem>>, vector<64x128xf32>
      tpu.vector_store %arg19[%c0_73, %c0_74], %161 {strides = array<i32>} : memref<64x128xf32, #tpu.memory_space<vmem>>, vector<64x128xf32>,
    } else {
    }
    %c0 = arith.constant 0 : index
    %c0_1 = arith.constant 0 : index
    %3 = vector.load %arg19[%c0, %c0_1] : memref<64x128xf32, #tpu.memory_space<vmem>>, vector<64x128xf32>
    %cst = arith.constant dense<0.000000e+00> : vector<64xf32>
    %4 = vector.multi_reduction <add>, %3, %cst [1] : vector<64x128xf32> to vector<64xf32>
    %5 = vector.shape_cast %4 : vector<64xf32> to vector<64x1xf32>
    %cst_2 = arith.constant 1.280000e+02 : f32
    %6 = vector.broadcast %cst_2 : f32 to vector<64x1xf32>
    %7 = arith.divf %5, %6 : vector<64x1xf32>
    %8 = vector.broadcast %7 : vector<64x1xf32> to vector<64x128xf32>
    %9 = arith.subf %3, %8 : vector<64x128xf32>
    %10 = arith.mulf %9, %9 : vector<64x128xf32>
    %cst_3 = arith.constant dense<0.000000e+00> : vector<64xf32>
    %11 = vector.multi_reduction <add>, %10, %cst_3 [1] : vector<64x128xf32> to vector<64xf32>
    %12 = vector.shape_cast %11 : vector<64xf32> to vector<64x1xf32>
    %cst_4 = arith.constant 1.280000e+02 : f32
    %13 = vector.broadcast %cst_4 : f32 to vector<64x1xf32>
    %14 = arith.divf %12, %13 : vector<64x1xf32>
    %cst_5 = arith.constant 9.99999974E-6 : f32
    %15 = vector.broadcast %cst_5 : f32 to vector<64x1xf32>
    %16 = arith.addf %14, %15 : vector<64x1xf32>
    %17 = math.rsqrt %16 : vector<64x1xf32>
    %18 = vector.broadcast %17 : vector<64x1xf32> to vector<64x128xf32>
    %19 = arith.mulf %9, %18 : vector<64x128xf32>
    %20 = arith.truncf %19 : vector<64x128xf32> to vector<64x128xbf16>
    %c0_6 = arith.constant 0 : index
    %c0_7 = arith.constant 0 : index
    %c0_8 = arith.constant 0 : index
    %21 = vector.load %arg7[%c0_6, %c0_7, %c0_8] : memref<1x128x384xbf16, #tpu.memory_space<vmem>>, vector<1x128x384xbf16>
    %22 = vector.shape_cast %21 : vector<1x128x384xbf16> to vector<128x384xbf16>
    %cst_9 = arith.constant dense<0.000000e+00> : vector<64x384xf32>
    %23 = tpu.matmul %20, %22, %cst_9 {dimension_numbers = #tpu.dot_dimension_numbers<[1], [0], [0], [1], [0, 0, 1, 1], [], []>} : vector<64x128xbf16>, vector<128x384xbf16>, vector<64x384xf32> -> vector<64x384xf32>
    %c0_10 = arith.constant 0 : index
    %c0_11 = arith.constant 0 : index
    %c0_12 = arith.constant 0 : index
    %24 = vector.load %arg8[%c0_10, %c0_11, %c0_12] : memref<1x1x384xf32, #tpu.memory_space<vmem>>, vector<1x1x384xf32>
    %25 = vector.shape_cast %24 : vector<1x1x384xf32> to vector<1x384xf32>
    %26 = vector.broadcast %25 : vector<1x384xf32> to vector<64x384xf32>
    %27 = arith.addf %23, %26 : vector<64x384xf32>
    %c0_13 = arith.constant 0 : index
    %c0_14 = arith.constant 0 : index
    %28 = vector.load %arg4[%c0_13, %c0_14] : memref<16x16xf32, #tpu.memory_space<vmem>>, vector<16x16xf32>
    %29 = vector.extract_strided_slice %27 {offsets = [0, 0], sizes = [64, 64], strides = [1, 1]} : vector<64x384xf32> to vector<64x64xf32>
    %30 = vector.shape_cast %29 : vector<64x64xf32> to vector<4x16x64xf32>
    %31 = arith.truncf %30 : vector<4x16x64xf32> to vector<4x16x64xbf16>
    %32 = vector.extract_strided_slice %27 {offsets = [0, 128], sizes = [64, 64], strides = [1, 1]} : vector<64x384xf32> to vector<64x64xf32>
    %33 = vector.shape_cast %32 : vector<64x64xf32> to vector<4x16x64xf32>
    %34 = arith.truncf %33 : vector<4x16x64xf32> to vector<4x16x64xbf16>
    %35 = vector.extract_strided_slice %27 {offsets = [0, 256], sizes = [64, 64], strides = [1, 1]} : vector<64x384xf32> to vector<64x64xf32>
    %36 = vector.shape_cast %35 : vector<64x64xf32> to vector<4x16x64xf32>
    %37 = arith.truncf %36 : vector<4x16x64xf32> to vector<4x16x64xbf16>
    "tpu.trace_start"() <{level = 10 : i32, message = "bqd,bkd->bqk"}> : () -> ()
    %cst_15 = arith.constant dense<0.000000e+00> : vector<4x16x16xf32>
    %38 = tpu.matmul %31, %34, %cst_15 {dimension_numbers = #tpu.dot_dimension_numbers<[2], [2], [1], [1], [0, 0, 0, 1, 1, 1], [0], [0]>} : vector<4x16x64xbf16>, vector<4x16x64xbf16>, vector<4x16x16xf32> -> vector<4x16x16xf32>
    "tpu.trace_stop"() : () -> ()
    %cst_16 = arith.constant 1.250000e-01 : f32
    %39 = vector.broadcast %cst_16 : f32 to vector<4x16x16xf32>
    %40 = arith.mulf %38, %39 : vector<4x16x16xf32>
    %41 = vector.shape_cast %28 : vector<16x16xf32> to vector<1x16x16xf32>
    %42 = vector.broadcast %41 : vector<1x16x16xf32> to vector<4x16x16xf32>
    %43 = arith.addf %40, %42 : vector<4x16x16xf32>
    %cst_17 = arith.constant dense<0xFF800000> : vector<4x16xf32>
    %44 = vector.multi_reduction <maximumf>, %43, %cst_17 [2] : vector<4x16x16xf32> to vector<4x16xf32>
    %45 = vector.shape_cast %44 : vector<4x16xf32> to vector<4x16x1xf32>
    %46 = vector.broadcast %45 : vector<4x16x1xf32> to vector<4x16x16xf32>
    %47 = arith.subf %43, %46 : vector<4x16x16xf32>
    %48 = math.exp %47 : vector<4x16x16xf32>
    %cst_18 = arith.constant dense<0.000000e+00> : vector<4x16xf32>
    %49 = vector.multi_reduction <add>, %48, %cst_18 [2] : vector<4x16x16xf32> to vector<4x16xf32>
    %50 = vector.shape_cast %49 : vector<4x16xf32> to vector<4x16x1xf32>
    %51 = tpu.reciprocal %50 {approx = true} : vector<4x16x1xf32> -> vector<4x16x1xf32>
    %52 = vector.broadcast %51 : vector<4x16x1xf32> to vector<4x16x16xf32>
    %53 = arith.mulf %48, %52 : vector<4x16x16xf32>
    %54 = arith.truncf %53 : vector<4x16x16xf32> to vector<4x16x16xbf16>
    "tpu.trace_start"() <{level = 10 : i32, message = "bqk,bkd->bqd"}> : () -> ()
    %cst_19 = arith.constant dense<0.000000e+00> : vector<4x16x64xf32>
    %55 = tpu.matmul %54, %37, %cst_19 {dimension_numbers = #tpu.dot_dimension_numbers<[2], [1], [1], [2], [0, 0, 0, 1, 1, 2], [0], [0]>} : vector<4x16x16xbf16>, vector<4x16x64xbf16>, vector<4x16x64xf32> -> vector<4x16x64xf32>
    "tpu.trace_stop"() : () -> ()
    %56 = vector.shape_cast %55 : vector<4x16x64xf32> to vector<64x64xf32>
    %57 = arith.truncf %56 : vector<64x64xf32> to vector<64x64xbf16>
    %c0_20 = arith.constant 0 : index
    %c0_21 = arith.constant 0 : index
    %58 = vector.load %arg20[%c0_20, %c0_21] : memref<64x128xbf16, #tpu.memory_space<vmem>>, vector<64x64xbf16>
    tpu.vector_store %arg20[%c0_20, %c0_21], %57 {strides = array<i32>} : memref<64x128xbf16, #tpu.memory_space<vmem>>, vector<64x64xbf16>,
    %59 = vector.extract_strided_slice %27 {offsets = [0, 64], sizes = [64, 64], strides = [1, 1]} : vector<64x384xf32> to vector<64x64xf32>
    %60 = vector.shape_cast %59 : vector<64x64xf32> to vector<4x16x64xf32>
    %61 = arith.truncf %60 : vector<4x16x64xf32> to vector<4x16x64xbf16>
    %62 = vector.extract_strided_slice %27 {offsets = [0, 192], sizes = [64, 64], strides = [1, 1]} : vector<64x384xf32> to vector<64x64xf32>
    %63 = vector.shape_cast %62 : vector<64x64xf32> to vector<4x16x64xf32>
    %64 = arith.truncf %63 : vector<4x16x64xf32> to vector<4x16x64xbf16>
    %65 = vector.extract_strided_slice %27 {offsets = [0, 320], sizes = [64, 64], strides = [1, 1]} : vector<64x384xf32> to vector<64x64xf32>
    %66 = vector.shape_cast %65 : vector<64x64xf32> to vector<4x16x64xf32>
    %67 = arith.truncf %66 : vector<4x16x64xf32> to vector<4x16x64xbf16>
    "tpu.trace_start"() <{level = 10 : i32, message = "bqd,bkd->bqk"}> : () -> ()
    %cst_22 = arith.constant dense<0.000000e+00> : vector<4x16x16xf32>
    %68 = tpu.matmul %61, %64, %cst_22 {dimension_numbers = #tpu.dot_dimension_numbers<[2], [2], [1], [1], [0, 0, 0, 1, 1, 1], [0], [0]>} : vector<4x16x64xbf16>, vector<4x16x64xbf16>, vector<4x16x16xf32> -> vector<4x16x16xf32>
    "tpu.trace_stop"() : () -> ()
    %cst_23 = arith.constant 1.250000e-01 : f32
    %69 = vector.broadcast %cst_23 : f32 to vector<4x16x16xf32>
    %70 = arith.mulf %68, %69 : vector<4x16x16xf32>
    %71 = vector.shape_cast %28 : vector<16x16xf32> to vector<1x16x16xf32>
    %72 = vector.broadcast %71 : vector<1x16x16xf32> to vector<4x16x16xf32>
    %73 = arith.addf %70, %72 : vector<4x16x16xf32>
    %cst_24 = arith.constant dense<0xFF800000> : vector<4x16xf32>
    %74 = vector.multi_reduction <maximumf>, %73, %cst_24 [2] : vector<4x16x16xf32> to vector<4x16xf32>
    %75 = vector.shape_cast %74 : vector<4x16xf32> to vector<4x16x1xf32>
    %76 = vector.broadcast %75 : vector<4x16x1xf32> to vector<4x16x16xf32>
    %77 = arith.subf %73, %76 : vector<4x16x16xf32>
    %78 = math.exp %77 : vector<4x16x16xf32>
    %cst_25 = arith.constant dense<0.000000e+00> : vector<4x16xf32>
    %79 = vector.multi_reduction <add>, %78, %cst_25 [2] : vector<4x16x16xf32> to vector<4x16xf32>
    %80 = vector.shape_cast %79 : vector<4x16xf32> to vector<4x16x1xf32>
    %81 = tpu.reciprocal %80 {approx = true} : vector<4x16x1xf32> -> vector<4x16x1xf32>
    %82 = vector.broadcast %81 : vector<4x16x1xf32> to vector<4x16x16xf32>
    %83 = arith.mulf %78, %82 : vector<4x16x16xf32>
    %84 = arith.truncf %83 : vector<4x16x16xf32> to vector<4x16x16xbf16>
    "tpu.trace_start"() <{level = 10 : i32, message = "bqk,bkd->bqd"}> : () -> ()
    %cst_26 = arith.constant dense<0.000000e+00> : vector<4x16x64xf32>
    %85 = tpu.matmul %84, %67, %cst_26 {dimension_numbers = #tpu.dot_dimension_numbers<[2], [1], [1], [2], [0, 0, 0, 1, 1, 2], [0], [0]>} : vector<4x16x16xbf16>, vector<4x16x64xbf16>, vector<4x16x64xf32> -> vector<4x16x64xf32>
    "tpu.trace_stop"() : () -> ()
    %86 = vector.shape_cast %85 : vector<4x16x64xf32> to vector<64x64xf32>
    %87 = arith.truncf %86 : vector<64x64xf32> to vector<64x64xbf16>
    %c0_27 = arith.constant 0 : index
    %c64 = arith.constant 64 : index
    %88 = vector.load %arg20[%c0_27, %c64] : memref<64x128xbf16, #tpu.memory_space<vmem>>, vector<64x64xbf16>
    tpu.vector_store %arg20[%c0_27, %c64], %87 {strides = array<i32>} : memref<64x128xbf16, #tpu.memory_space<vmem>>, vector<64x64xbf16>,
    %c0_28 = arith.constant 0 : index
    %c0_29 = arith.constant 0 : index
    %89 = vector.load %arg20[%c0_28, %c0_29] : memref<64x128xbf16, #tpu.memory_space<vmem>>, vector<64x128xbf16>
    %c0_30 = arith.constant 0 : index
    %c0_31 = arith.constant 0 : index
    %c0_32 = arith.constant 0 : index
    %90 = vector.load %arg9[%c0_30, %c0_31, %c0_32] : memref<1x128x128xbf16, #tpu.memory_space<vmem>>, vector<1x128x128xbf16>
    %91 = vector.shape_cast %90 : vector<1x128x128xbf16> to vector<128x128xbf16>
    %cst_33 = arith.constant dense<0.000000e+00> : vector<64x128xf32>
    %92 = tpu.matmul %89, %91, %cst_33 {dimension_numbers = #tpu.dot_dimension_numbers<[1], [0], [0], [1], [0, 0, 1, 1], [], []>} : vector<64x128xbf16>, vector<128x128xbf16>, vector<64x128xf32> -> vector<64x128xf32>
    %93 = arith.addf %3, %92 : vector<64x128xf32>
    %c0_34 = arith.constant 0 : index
    %c0_35 = arith.constant 0 : index
    %c0_36 = arith.constant 0 : index
    %94 = vector.load %arg10[%c0_34, %c0_35, %c0_36] : memref<1x1x128xf32, #tpu.memory_space<vmem>>, vector<1x1x128xf32>
    %95 = vector.shape_cast %94 : vector<1x1x128xf32> to vector<1x128xf32>
    %96 = vector.broadcast %95 : vector<1x128xf32> to vector<64x128xf32>
    %97 = arith.addf %93, %96 : vector<64x128xf32>
    %cst_37 = arith.constant dense<0.000000e+00> : vector<64xf32>
    %98 = vector.multi_reduction <add>, %97, %cst_37 [1] : vector<64x128xf32> to vector<64xf32>
    %99 = vector.shape_cast %98 : vector<64xf32> to vector<64x1xf32>
    %cst_38 = arith.constant 1.280000e+02 : f32
    %100 = vector.broadcast %cst_38 : f32 to vector<64x1xf32>
    %101 = arith.divf %99, %100 : vector<64x1xf32>
    %102 = vector.broadcast %101 : vector<64x1xf32> to vector<64x128xf32>
    %103 = arith.subf %97, %102 : vector<64x128xf32>
    %104 = arith.mulf %103, %103 : vector<64x128xf32>
    %cst_39 = arith.constant dense<0.000000e+00> : vector<64xf32>
    %105 = vector.multi_reduction <add>, %104, %cst_39 [1] : vector<64x128xf32> to vector<64xf32>
    %106 = vector.shape_cast %105 : vector<64xf32> to vector<64x1xf32>
    %cst_40 = arith.constant 1.280000e+02 : f32
    %107 = vector.broadcast %cst_40 : f32 to vector<64x1xf32>
    %108 = arith.divf %106, %107 : vector<64x1xf32>
    %cst_41 = arith.constant 9.99999974E-6 : f32
    %109 = vector.broadcast %cst_41 : f32 to vector<64x1xf32>
    %110 = arith.addf %108, %109 : vector<64x1xf32>
    %111 = math.rsqrt %110 : vector<64x1xf32>
    %112 = vector.broadcast %111 : vector<64x1xf32> to vector<64x128xf32>
    %113 = arith.mulf %103, %112 : vector<64x128xf32>
    %114 = arith.truncf %113 : vector<64x128xf32> to vector<64x128xbf16>
    %c0_42 = arith.constant 0 : index
    %c0_43 = arith.constant 0 : index
    %c0_44 = arith.constant 0 : index
    %115 = vector.load %arg11[%c0_42, %c0_43, %c0_44] : memref<1x128x512xbf16, #tpu.memory_space<vmem>>, vector<1x128x512xbf16>
    %116 = vector.shape_cast %115 : vector<1x128x512xbf16> to vector<128x512xbf16>
    %cst_45 = arith.constant dense<0.000000e+00> : vector<64x512xf32>
    %117 = tpu.matmul %114, %116, %cst_45 {dimension_numbers = #tpu.dot_dimension_numbers<[1], [0], [0], [1], [0, 0, 1, 1], [], []>} : vector<64x128xbf16>, vector<128x512xbf16>, vector<64x512xf32> -> vector<64x512xf32>
    %c0_46 = arith.constant 0 : index
    %c0_47 = arith.constant 0 : index
    %c0_48 = arith.constant 0 : index
    %118 = vector.load %arg12[%c0_46, %c0_47, %c0_48] : memref<1x1x512xf32, #tpu.memory_space<vmem>>, vector<1x1x512xf32>
    %119 = vector.shape_cast %118 : vector<1x1x512xf32> to vector<1x512xf32>
    %120 = vector.broadcast %119 : vector<1x512xf32> to vector<64x512xf32>
    %121 = arith.addf %117, %120 : vector<64x512xf32>
    %122 = arith.mulf %121, %121 : vector<64x512xf32>
    %123 = arith.mulf %121, %122 : vector<64x512xf32>
    %cst_49 = arith.constant 4.471500e-02 : f32
    %124 = vector.broadcast %cst_49 : f32 to vector<64x512xf32>
    %125 = arith.mulf %124, %123 : vector<64x512xf32>
    %126 = arith.addf %121, %125 : vector<64x512xf32>
    %cst_50 = arith.constant 0.797884583 : f32
    %127 = vector.broadcast %cst_50 : f32 to vector<64x512xf32>
    %128 = arith.mulf %127, %126 : vector<64x512xf32>
    %129 = math.tanh %128 : vector<64x512xf32>
    %cst_51 = arith.constant 1.000000e+00 : f32
    %130 = vector.broadcast %cst_51 : f32 to vector<64x512xf32>
    %131 = arith.addf %130, %129 : vector<64x512xf32>
    %cst_52 = arith.constant 5.000000e-01 : f32
    %132 = vector.broadcast %cst_52 : f32 to vector<64x512xf32>
    %133 = arith.mulf %132, %131 : vector<64x512xf32>
    %134 = arith.mulf %121, %133 : vector<64x512xf32>
    %135 = arith.truncf %134 : vector<64x512xf32> to vector<64x512xbf16>
    %c0_53 = arith.constant 0 : index
    %c0_54 = arith.constant 0 : index
    %c0_55 = arith.constant 0 : index
    %136 = vector.load %arg13[%c0_53, %c0_54, %c0_55] : memref<1x512x128xbf16, #tpu.memory_space<vmem>>, vector<1x512x128xbf16>
    %137 = vector.shape_cast %136 : vector<1x512x128xbf16> to vector<512x128xbf16>
    %cst_56 = arith.constant dense<0.000000e+00> : vector<64x128xf32>
    %138 = tpu.matmul %135, %137, %cst_56 {dimension_numbers = #tpu.dot_dimension_numbers<[1], [0], [0], [1], [0, 0, 1, 1], [], []>} : vector<64x512xbf16>, vector<512x128xbf16>, vector<64x128xf32> -> vector<64x128xf32>
    %139 = arith.addf %97, %138 : vector<64x128xf32>
    %c0_57 = arith.constant 0 : index
    %c0_58 = arith.constant 0 : index
    %c0_59 = arith.constant 0 : index
    %140 = vector.load %arg14[%c0_57, %c0_58, %c0_59] : memref<1x1x128xf32, #tpu.memory_space<vmem>>, vector<1x1x128xf32>
    %141 = vector.shape_cast %140 : vector<1x1x128xf32> to vector<1x128xf32>
    %142 = vector.broadcast %141 : vector<1x128xf32> to vector<64x128xf32>
    %143 = arith.addf %139, %142 : vector<64x128xf32>
    %c0_60 = arith.constant 0 : index
    %c0_61 = arith.constant 0 : index
    %144 = vector.load %arg19[%c0_60, %c0_61] : memref<64x128xf32, #tpu.memory_space<vmem>>, vector<64x128xf32>
    tpu.vector_store %arg19[%c0_60, %c0_61], %143 {strides = array<i32>} : memref<64x128xf32, #tpu.memory_space<vmem>>, vector<64x128xf32>,
    %c1_i32 = arith.constant 1 : i32
    %145 = arith.cmpi eq, %arg1, %c1_i32 : i32
    %146 = arith.extui %145 : i1 to i32
    %c0_i32_62 = arith.constant 0 : i32
    %147 = arith.cmpi ne, %146, %c0_i32_62 : i32
    scf.if %147 {
      %148 = arith.truncf %143 : vector<64x128xf32> to vector<64x128xbf16>
      %c0_63 = arith.constant 0 : index
      %c0_64 = arith.constant 0 : index
      %149 = vector.load %arg15[%c0_63, %c0_64] : memref<128x512xbf16, #tpu.memory_space<vmem>>, vector<128x512xbf16>
      %cst_65 = arith.constant dense<0.000000e+00> : vector<64x512xf32>
      %150 = tpu.matmul %148, %149, %cst_65 {dimension_numbers = #tpu.dot_dimension_numbers<[1], [0], [0], [1], [0, 0, 1, 1], [], []>} : vector<64x128xbf16>, vector<128x512xbf16>, vector<64x512xf32> -> vector<64x512xf32>
      %c0_66 = arith.constant 0 : index
      %c0_67 = arith.constant 0 : index
      %151 = vector.load %arg16[%c0_66, %c0_67] : memref<1x512xf32, #tpu.memory_space<vmem>>, vector<1x512xf32>
      %152 = vector.broadcast %151 : vector<1x512xf32> to vector<64x512xf32>
      %153 = arith.addf %150, %152 : vector<64x512xf32>
      %c63_i32 = arith.constant 63 : i32
      %154 = tpu.dynamic_rotate %153 by %c63_i32 dim 0 : vector<64x512xf32>, i32 -> vector<64x512xf32>
      %155 = tpu.iota {dimensions = array<i32: 0>} : vector<64x1xi32>
      %c16_i32 = arith.constant 16 : i32
      %c0_i32_68 = arith.constant 0 : i32
      %156 = arith.cmpi eq, %c16_i32, %c0_i32_68 : i32
      %c1_i32_69 = arith.constant 1 : i32
      %157 = arith.select %156, %c1_i32_69, %c16_i32 : i32
      %158 = vector.broadcast %157 : i32 to vector<64x1xi32>
      %159 = arith.remsi %155, %158 : vector<64x1xi32>
      %c0_i32_70 = arith.constant 0 : i32
      %160 = vector.broadcast %c0_i32_70 : i32 to vector<64x1xi32>
      %161 = arith.cmpi ne, %159, %160 : vector<64x1xi32>
      %c0_i32_71 = arith.constant 0 : i32
      %162 = vector.broadcast %c0_i32_71 : i32 to vector<64x1xi32>
      %163 = arith.cmpi slt, %159, %162 : vector<64x1xi32>
      %c0_i32_72 = arith.constant 0 : i32
      %164 = arith.cmpi slt, %157, %c0_i32_72 : i32
      %165 = vector.broadcast %164 : i1 to vector<64x1xi1>
      %166 = vector.broadcast %165 : vector<64x1xi1> to vector<64x1xi1>
      %167 = arith.xori %163, %166 : vector<64x1xi1>
      %168 = arith.andi %167, %161 : vector<64x1xi1>
      %169 = vector.broadcast %157 : i32 to vector<64x1xi32>
      %170 = arith.addi %159, %169 : vector<64x1xi32>
      %171 = arith.select %168, %170, %159 : vector<64x1xi1>, vector<64x1xi32>
      %c15_i32 = arith.constant 15 : i32
      %172 = vector.broadcast %c15_i32 : i32 to vector<64x1xi32>
      %173 = arith.cmpi eq, %171, %172 : vector<64x1xi32>
      %cst_73 = arith.constant 0.000000e+00 : f32
      %174 = vector.shape_cast %173 : vector<64x1xi1> to vector<64x1xi1>
      %175 = vector.broadcast %174 : vector<64x1xi1> to vector<64x512xi1>
      %176 = vector.broadcast %cst_73 : f32 to vector<64x512xf32>
      %177 = arith.select %175, %176, %154 : vector<64x512xi1>, vector<64x512xf32>
      %178 = vector.extract_strided_slice %177 {offsets = [0, 0], sizes = [64, 256], strides = [1, 1]} : vector<64x512xf32> to vector<64x256xf32>
      %179 = vector.extract_strided_slice %177 {offsets = [0, 256], sizes = [64, 256], strides = [1, 1]} : vector<64x512xf32> to vector<64x256xf32>
      %c0_74 = arith.constant 0 : index
      %c0_75 = arith.constant 0 : index
      %c0_76 = arith.constant 0 : index
      %180 = vector.load %arg2[%c0_74, %c0_75, %c0_76] : memref<4x16x256xf32, #tpu.memory_space<vmem>>, vector<4x16x256xf32>
      %181 = vector.shape_cast %180 : vector<4x16x256xf32> to vector<64x256xf32>
      %182 = arith.subf %181, %179 : vector<64x256xf32>
      %cst_77 = arith.constant 0.000000e+00 : f32
      %183 = vector.broadcast %cst_77 : f32 to vector<64x256xf32>
      %184 = arith.subf %183, %178 : vector<64x256xf32>
      %185 = math.exp %184 : vector<64x256xf32>
      %186 = arith.mulf %182, %185 : vector<64x256xf32>
      %187 = vector.shape_cast %186 : vector<64x256xf32> to vector<4x16x256xf32>
      %c0_78 = arith.constant 0 : index
      %c0_79 = arith.constant 0 : index
      %c0_80 = arith.constant 0 : index
      %188 = vector.load %arg17[%c0_78, %c0_79, %c0_80] : memref<4x16x256xf32, #tpu.memory_space<vmem>>, vector<4x16x256xf32>
      tpu.vector_store %arg17[%c0_78, %c0_79, %c0_80], %187 {strides = array<i32>} : memref<4x16x256xf32, #tpu.memory_space<vmem>>, vector<4x16x256xf32>,
      %189 = vector.shape_cast %178 : vector<64x256xf32> to vector<4x16x256xf32>
      %cst_81 = arith.constant dense<0.000000e+00> : vector<4x16xf32>
      %190 = vector.multi_reduction <add>, %189, %cst_81 [2] : vector<4x16x256xf32> to vector<4x16xf32>
      %cst_82 = arith.constant dense<0.000000e+00> : vector<4xf32>
      %191 = vector.multi_reduction <add>, %190, %cst_82 [1] : vector<4x16xf32> to vector<4xf32>
      %192 = vector.shape_cast %191 : vector<4xf32> to vector<4x1xf32>
      %cst_83 = arith.constant 2.44140625E-4 : f32
      %193 = vector.broadcast %cst_83 : f32 to vector<4x1xf32>
      %194 = arith.mulf %192, %193 : vector<4x1xf32>
      %cst_84 = arith.constant 0.000000e+00 : f32
      %195 = vector.broadcast %cst_84 : f32 to vector<4x1xf32>
      %196 = arith.subf %195, %194 : vector<4x1xf32>
      %197 = vector.shape_cast %196 : vector<4x1xf32> to vector<4x1xf32>
      %198 = vector.broadcast %197 : vector<4x1xf32> to vector<4x128xf32>
      %199 = vector.shape_cast %198 : vector<4x128xf32> to vector<1x4x128xf32>
      %c0_85 = arith.constant 0 : index
      %c0_86 = arith.constant 0 : index
      %c0_87 = arith.constant 0 : index
      %200 = vector.load %arg18[%c0_85, %c0_86, %c0_87] : memref<1x4x128xf32, #tpu.memory_space<vmem>>, vector<1x4x128xf32>
      tpu.vector_store %arg18[%c0_85, %c0_86, %c0_87], %199 {strides = array<i32>} : memref<1x4x128xf32, #tpu.memory_space<vmem>>, vector<1x4x128xf32>,
    } else {
    }
    return
  }
  func.func @transform_0(%arg0: i32, %arg1: i32) -> (i32, i32, i32) {
    %c0_i32 = arith.constant 0 : i32
    %c0_i32_0 = arith.constant 0 : i32
    %c0_i32_1 = arith.constant 0 : i32
    return %arg0, %c0_i32, %c0_i32_0 : i32, i32, i32
  }
  func.func @transform_1(%arg0: i32, %arg1: i32) -> (i32, i32) {
    %c0_i32 = arith.constant 0 : i32
    %c0_i32_0 = arith.constant 0 : i32
    %c0_i32_1 = arith.constant 0 : i32
    return %c0_i32, %c0_i32_0 : i32, i32
  }
  func.func @transform_2(%arg0: i32, %arg1: i32) -> (i32, i32) {
    %c0_i32 = arith.constant 0 : i32
    %c0_i32_0 = arith.constant 0 : i32
    %c0_i32_1 = arith.constant 0 : i32
    return %c0_i32, %c0_i32_0 : i32, i32
  }
  func.func @transform_3(%arg0: i32, %arg1: i32) -> (i32, i32) {
    %c0_i32 = arith.constant 0 : i32
    %c0_i32_0 = arith.constant 0 : i32
    %c0_i32_1 = arith.constant 0 : i32
    return %c0_i32, %c0_i32_0 : i32, i32
  }
  func.func @transform_4(%arg0: i32, %arg1: i32) -> (i32, i32) {
    %c0_i32 = arith.constant 0 : i32
    %c0_i32_0 = arith.constant 0 : i32
    %c0_i32_1 = arith.constant 0 : i32
    return %c0_i32, %c0_i32_0 : i32, i32
  }
  func.func @transform_5(%arg0: i32, %arg1: i32) -> (i32, i32, i32) {
    %c0_i32 = arith.constant 0 : i32
    %c0_i32_0 = arith.constant 0 : i32
    %c0_i32_1 = arith.constant 0 : i32
    return %arg1, %c0_i32, %c0_i32_0 : i32, i32, i32
  }
  func.func @transform_6(%arg0: i32, %arg1: i32) -> (i32, i32, i32) {
    %c0_i32 = arith.constant 0 : i32
    %c0_i32_0 = arith.constant 0 : i32
    %c0_i32_1 = arith.constant 0 : i32
    return %arg1, %c0_i32, %c0_i32_0 : i32, i32, i32
  }
  func.func @transform_7(%arg0: i32, %arg1: i32) -> (i32, i32, i32) {
    %c0_i32 = arith.constant 0 : i32
    %c0_i32_0 = arith.constant 0 : i32
    %c0_i32_1 = arith.constant 0 : i32
    return %arg1, %c0_i32, %c0_i32_0 : i32, i32, i32
  }
  func.func @transform_8(%arg0: i32, %arg1: i32) -> (i32, i32, i32) {
    %c0_i32 = arith.constant 0 : i32
    %c0_i32_0 = arith.constant 0 : i32
    %c0_i32_1 = arith.constant 0 : i32
    return %arg1, %c0_i32, %c0_i32_0 : i32, i32, i32
  }
  func.func @transform_9(%arg0: i32, %arg1: i32) -> (i32, i32, i32) {
    %c0_i32 = arith.constant 0 : i32
    %c0_i32_0 = arith.constant 0 : i32
    %c0_i32_1 = arith.constant 0 : i32
    return %arg1, %c0_i32, %c0_i32_0 : i32, i32, i32
  }
  func.func @transform_10(%arg0: i32, %arg1: i32) -> (i32, i32, i32) {
    %c0_i32 = arith.constant 0 : i32
    %c0_i32_0 = arith.constant 0 : i32
    %c0_i32_1 = arith.constant 0 : i32
    return %arg1, %c0_i32, %c0_i32_0 : i32, i32, i32
  }
  func.func @transform_11(%arg0: i32, %arg1: i32) -> (i32, i32, i32) {
    %c0_i32 = arith.constant 0 : i32
    %c0_i32_0 = arith.constant 0 : i32
    %c0_i32_1 = arith.constant 0 : i32
    return %arg1, %c0_i32, %c0_i32_0 : i32, i32, i32
  }
  func.func @transform_12(%arg0: i32, %arg1: i32) -> (i32, i32, i32) {
    %c0_i32 = arith.constant 0 : i32
    %c0_i32_0 = arith.constant 0 : i32
    %c0_i32_1 = arith.constant 0 : i32
    return %arg1, %c0_i32, %c0_i32_0 : i32, i32, i32
  }
  func.func @transform_13(%arg0: i32, %arg1: i32) -> (i32, i32) {
    %c0_i32 = arith.constant 0 : i32
    %c0_i32_0 = arith.constant 0 : i32
    %c0_i32_1 = arith.constant 0 : i32
    return %c0_i32, %c0_i32_0 : i32, i32
  }
  func.func @transform_14(%arg0: i32, %arg1: i32) -> (i32, i32) {
    %c0_i32 = arith.constant 0 : i32
    %c0_i32_0 = arith.constant 0 : i32
    %c0_i32_1 = arith.constant 0 : i32
    return %c0_i32, %c0_i32_0 : i32, i32
  }
  func.func @transform_15(%arg0: i32, %arg1: i32) -> (i32, i32, i32) {
    %c0_i32 = arith.constant 0 : i32
    %c0_i32_0 = arith.constant 0 : i32
    %c0_i32_1 = arith.constant 0 : i32
    return %arg0, %c0_i32, %c0_i32_0 : i32, i32, i32
  }
  func.func @transform_16(%arg0: i32, %arg1: i32) -> (i32, i32, i32) {
    %c0_i32 = arith.constant 0 : i32
    %c0_i32_0 = arith.constant 0 : i32
    %c0_i32_1 = arith.constant 0 : i32
    return %arg0, %c0_i32, %c0_i32_0 : i32, i32, i32
  }
}

</mosaic_0001>

<llo_original>
// kernel: model_forward.2
$region0: #{model_forward.2}
  #allocation0 [shape = 'u32[]', space=smem, size = 0x4, offset = 0x4, fixed_abs, tag = 'smem constant byte address 0x4 - core index']
  #allocation1 [shape = 'u32[144,128]{1,0:T(1,128)}', space=vmem, size = 0x12000, scoped, tag = 'internal scratch']
  #allocation2 [shape = 'f32[64,128]{1,0:T(8,128)}', space=vmem, size = 0x8000, scoped, tag = 'scratch operand']
  #allocation3 [shape = 'bf16[64,128]{1,0:T(8,128)(2,1)}', space=vmem, size = 0x4000, scoped, tag = 'scratch operand']
  %s0 = inlined_call_operand.vmem [shape: f32[8,16,256], index: 0, kind: input, shape index: {}]
  %s1 = inlined_call_operand.vmem [shape: f32[16,128], index: 1, kind: input, shape index: {}]
  %s2 = inlined_call_operand.vmem [shape: f32[16,16], index: 2, kind: input, shape index: {}]
  %s3 = inlined_call_operand.vmem [shape: bf16[256,128], index: 3, kind: input, shape index: {}]
  %s4 = inlined_call_operand.vmem [shape: f32[1,128], index: 4, kind: input, shape index: {}]
  %s5 = inlined_call_operand.vmem [shape: bf16[2,128,384], index: 5, kind: input, shape index: {}]
  %s6 = inlined_call_operand.vmem [shape: f32[2,1,384], index: 6, kind: input, shape index: {}]
  %s7 = inlined_call_operand.vmem [shape: bf16[2,128,128], index: 7, kind: input, shape index: {}]
  %s8 = inlined_call_operand.vmem [shape: f32[2,1,128], index: 8, kind: input, shape index: {}]
  %s9 = inlined_call_operand.vmem [shape: bf16[2,128,512], index: 9, kind: input, shape index: {}]
  %s10 = inlined_call_operand.vmem [shape: f32[2,1,512], index: 10, kind: input, shape index: {}]
  %s11 = inlined_call_operand.vmem [shape: bf16[2,512,128], index: 11, kind: input, shape index: {}]
  %s12 = inlined_call_operand.vmem [shape: f32[2,1,128], index: 12, kind: input, shape index: {}]
  %s13 = inlined_call_operand.vmem [shape: bf16[128,512], index: 13, kind: input, shape index: {}]
  %s14 = inlined_call_operand.vmem [shape: f32[1,512], index: 14, kind: input, shape index: {}]
  %s15 = inlined_call_operand.vmem [shape: f32[8,16,256], index: 15, kind: output, shape index: {0}]
  %s16 = inlined_call_operand.vmem [shape: f32[2,4,128], index: 16, kind: output, shape index: {1}]
  %17 = xla_tuple %s15, %s16
  %s18 = sld [smem:[#allocation0]]
  $region109: #{model_forward.2} parent=0
    _
  %s20 = ssub.s32 1, %s18
  %s21 = scalar_select 0, %s20, %s18
  loop: start=0, step=1, limit=6
  $region2: #{model_forward.2} parent=0 // loop_pre_header
    _
  $region3: #{model_forward.2} parent=0 // loop_header
    %s23 = sphi 0, %s27
    %p24 = scmp.ge.s32.totalorder %s23, 6
    %s30 = sphi 0, %s42
    %s31 = sphi 0, %s38
    %s32 = sphi 0, %s30
    %s33 = sphi 0, %s31
    %s34 = sphi 0, %s32
    %s35 = sphi 0, %s33
    %s45 = sphi 0, %s47
    %s48 = sphi 0, %s45
    %s49 = sphi 0, %s48
    %s65 = sphi 0, %s49
    %s69 = sphi 0, %s69
    %s71 = sphi 0, %s69
    %s72 = sphi 0, %s71
    %s86 = sphi 0, %s72
    %s90 = sphi 0, %s90
    %s92 = sphi 0, %s90
    %s93 = sphi 0, %s92
    %s107 = sphi 0, %s93
    %s111 = sphi 0, %s111
    %s113 = sphi 0, %s111
    %s114 = sphi 0, %s113
    %s128 = sphi 0, %s114
    %s132 = sphi 0, %s132
    %s134 = sphi 0, %s132
    %s135 = sphi 0, %s134
    %s149 = sphi 0, %s135
    %s155 = sphi 0, %s157
    %s158 = sphi 0, %s155
    %s159 = sphi 0, %s158
    %s175 = sphi 0, %s159
    %s181 = sphi 0, %s183
    %s184 = sphi 0, %s181
    %s185 = sphi 0, %s184
    %s201 = sphi 0, %s185
    %s207 = sphi 0, %s209
    %s210 = sphi 0, %s207
    %s211 = sphi 0, %s210
    %s227 = sphi 0, %s211
    %s233 = sphi 0, %s235
    %s236 = sphi 0, %s233
    %s237 = sphi 0, %s236
    %s253 = sphi 0, %s237
    %s259 = sphi 0, %s261
    %s262 = sphi 0, %s259
    %s263 = sphi 0, %s262
    %s279 = sphi 0, %s263
    %s285 = sphi 0, %s287
    %s288 = sphi 0, %s285
    %s289 = sphi 0, %s288
    %s305 = sphi 0, %s289
    %s311 = sphi 0, %s313
    %s314 = sphi 0, %s311
    %s315 = sphi 0, %s314
    %s331 = sphi 0, %s315
    %s337 = sphi 0, %s339
    %s340 = sphi 0, %s337
    %s341 = sphi 0, %s340
    %s357 = sphi 0, %s341
    %s361 = sphi 0, %s361
    %s363 = sphi 0, %s361
    %s364 = sphi 0, %s363
    %s378 = sphi 0, %s364
    %s382 = sphi 0, %s382
    %s384 = sphi 0, %s382
    %s385 = sphi 0, %s384
    %s399 = sphi 0, %s385
    %s405 = sphi 0, %s407
    %s408 = sphi 0, %s405
    %s409 = sphi 0, %s408
    %s425 = sphi 0, %s409
    %s431 = sphi 0, %s433
    %s434 = sphi 0, %s431
    %s435 = sphi 0, %s434
    %s451 = sphi 0, %s435
  $region4: #{model_forward.2} parent=0 // loop_header_branch
    %26 = sbr.rel (%p24) target = $region8
  $region5: #{model_forward.2} parent=0 // loop_body
    %s28 = ssub.s32 %s23, 1
    %s29 = ssub.s32 %s23, 2
    %s36 = sadd.s32 1, %s31
    %p37 = scmp.ge.s32.totalorder %s36, 2
    %s38 = scalar_select %p37, 0, %s36
    %s39 = sadd.s32 1, %s30
    %s40 = scalar_select %p37, %s39, %s30
    %p41 = scmp.ge.s32.totalorder %s40, 2
    %s42 = scalar_select %p41, 0, %s40
    %s43 = ssub.s32 %s30, %s42
    %p44 = scmp.eq.s32.totalorder %s43, 0
    %s46 = sadd.s32 %s45, 1
    %s47 = scalar_select %p44, %s45, %s46
    %p50 = pneg %p44
    %p51 = scmp.eq.s32.totalorder %s23, 3
    %p52 = por %p50, %p51
    %p53 = scmp.ne.s32.totalorder %s45, %s48
    %p54 = scmp.eq.s32.totalorder %s23, 0
    %p55 = por %p53, %p54
    %p56 = scmp.ne.s32.totalorder %s45, %s48
    %p57 = scmp.eq.s32.totalorder %s28, 3
    %p58 = por %p56, %p57
    %p59 = scmp.ne.s32.totalorder %s48, %s49
    %p60 = scmp.eq.s32.totalorder %s28, 0
    %p61 = por %p59, %p60
    %p62 = scmp.ne.s32.totalorder %s48, %s49
    %p63 = scmp.eq.s32.totalorder %s29, 3
    %p64 = por %p62, %p63
    %p66 = scmp.ne.s32.totalorder %s49, %s65
    %p67 = scmp.eq.s32.totalorder %s29, 0
    %p68 = por %p66, %p67
    %s70 = sadd.s32 %s69, 1
    %p73 = scmp.eq.s32.totalorder %s23, 3
    %p74 = scmp.ne.s32.totalorder %s69, %s71
    %p75 = scmp.eq.s32.totalorder %s23, 0
    %p76 = por %p74, %p75
    %p77 = scmp.ne.s32.totalorder %s69, %s71
    %p78 = scmp.eq.s32.totalorder %s28, 3
    %p79 = por %p77, %p78
    %p80 = scmp.ne.s32.totalorder %s71, %s72
    %p81 = scmp.eq.s32.totalorder %s28, 0
    %p82 = por %p80, %p81
    %p83 = scmp.ne.s32.totalorder %s71, %s72
    %p84 = scmp.eq.s32.totalorder %s29, 3
    %p85 = por %p83, %p84
    %p87 = scmp.ne.s32.totalorder %s72, %s86
    %p88 = scmp.eq.s32.totalorder %s29, 0
    %p89 = por %p87, %p88
    %s91 = sadd.s32 %s90, 1
    %p94 = scmp.eq.s32.totalorder %s23, 3
    %p95 = scmp.ne.s32.totalorder %s90, %s92
    %p96 = scmp.eq.s32.totalorder %s23, 0
    %p97 = por %p95, %p96
    %p98 = scmp.ne.s32.totalorder %s90, %s92
    %p99 = scmp.eq.s32.totalorder %s28, 3
    %p100 = por %p98, %p99
    %p101 = scmp.ne.s32.totalorder %s92, %s93
    %p102 = scmp.eq.s32.totalorder %s28, 0
    %p103 = por %p101, %p102
    %p104 = scmp.ne.s32.totalorder %s92, %s93
    %p105 = scmp.eq.s32.totalorder %s29, 3
    %p106 = por %p104, %p105
    %p108 = scmp.ne.s32.totalorder %s93, %s107
    %p109 = scmp.eq.s32.totalorder %s29, 0
    %p110 = por %p108, %p109
    %s112 = sadd.s32 %s111, 1
    %p115 = scmp.eq.s32.totalorder %s23, 3
    %p116 = scmp.ne.s32.totalorder %s111, %s113
    %p117 = scmp.eq.s32.totalorder %s23, 0
    %p118 = por %p116, %p117
    %p119 = scmp.ne.s32.totalorder %s111, %s113
    %p120 = scmp.eq.s32.totalorder %s28, 3
    %p121 = por %p119, %p120
    %p122 = scmp.ne.s32.totalorder %s113, %s114
    %p123 = scmp.eq.s32.totalorder %s28, 0
    %p124 = por %p122, %p123
    %p125 = scmp.ne.s32.totalorder %s113, %s114
    %p126 = scmp.eq.s32.totalorder %s29, 3
    %p127 = por %p125, %p126
    %p129 = scmp.ne.s32.totalorder %s114, %s128
    %p130 = scmp.eq.s32.totalorder %s29, 0
    %p131 = por %p129, %p130
    %s133 = sadd.s32 %s132, 1
    %p136 = scmp.eq.s32.totalorder %s23, 3
    %p137 = scmp.ne.s32.totalorder %s132, %s134
    %p138 = scmp.eq.s32.totalorder %s23, 0
    %p139 = por %p137, %p138
    %p140 = scmp.ne.s32.totalorder %s132, %s134
    %p141 = scmp.eq.s32.totalorder %s28, 3
    %p142 = por %p140, %p141
    %p143 = scmp.ne.s32.totalorder %s134, %s135
    %p144 = scmp.eq.s32.totalorder %s28, 0
    %p145 = por %p143, %p144
    %p146 = scmp.ne.s32.totalorder %s134, %s135
    %p147 = scmp.eq.s32.totalorder %s29, 3
    %p148 = por %p146, %p147
    %p150 = scmp.ne.s32.totalorder %s135, %s149
    %p151 = scmp.eq.s32.totalorder %s29, 0
    %p152 = por %p150, %p151
    %s153 = ssub.s32 %s31, %s38
    %p154 = scmp.eq.s32.totalorder %s153, 0
    %s156 = sadd.s32 %s155, 1
    %s157 = scalar_select %p154, %s155, %s156
    %p160 = pneg %p154
    %p161 = scmp.eq.s32.totalorder %s23, 3
    %p162 = por %p160, %p161
    %p163 = scmp.ne.s32.totalorder %s155, %s158
    %p164 = scmp.eq.s32.totalorder %s23, 0
    %p165 = por %p163, %p164
    %p166 = scmp.ne.s32.totalorder %s155, %s158
    %p167 = scmp.eq.s32.totalorder %s28, 3
    %p168 = por %p166, %p167
    %p169 = scmp.ne.s32.totalorder %s158, %s159
    %p170 = scmp.eq.s32.totalorder %s28, 0
    %p171 = por %p169, %p170
    %p172 = scmp.ne.s32.totalorder %s158, %s159
    %p173 = scmp.eq.s32.totalorder %s29, 3
    %p174 = por %p172, %p173
    %p176 = scmp.ne.s32.totalorder %s159, %s175
    %p177 = scmp.eq.s32.totalorder %s29, 0
    %p178 = por %p176, %p177
    %s179 = ssub.s32 %s31, %s38
    %p180 = scmp.eq.s32.totalorder %s179, 0
    %s182 = sadd.s32 %s181, 1
    %s183 = scalar_select %p180, %s181, %s182
    %p186 = pneg %p180
    %p187 = scmp.eq.s32.totalorder %s23, 3
    %p188 = por %p186, %p187
    %p189 = scmp.ne.s32.totalorder %s181, %s184
    %p190 = scmp.eq.s32.totalorder %s23, 0
    %p191 = por %p189, %p190
    %p192 = scmp.ne.s32.totalorder %s181, %s184
    %p193 = scmp.eq.s32.totalorder %s28, 3
    %p194 = por %p192, %p193
    %p195 = scmp.ne.s32.totalorder %s184, %s185
    %p196 = scmp.eq.s32.totalorder %s28, 0
    %p197 = por %p195, %p196
    %p198 = scmp.ne.s32.totalorder %s184, %s185
    %p199 = scmp.eq.s32.totalorder %s29, 3
    %p200 = por %p198, %p199
    %p202 = scmp.ne.s32.totalorder %s185, %s201
    %p203 = scmp.eq.s32.totalorder %s29, 0
    %p204 = por %p202, %p203
    %s205 = ssub.s32 %s31, %s38
    %p206 = scmp.eq.s32.totalorder %s205, 0
    %s208 = sadd.s32 %s207, 1
    %s209 = scalar_select %p206, %s207, %s208
    %p212 = pneg %p206
    %p213 = scmp.eq.s32.totalorder %s23, 3
    %p214 = por %p212, %p213
    %p215 = scmp.ne.s32.totalorder %s207, %s210
    %p216 = scmp.eq.s32.totalorder %s23, 0
    %p217 = por %p215, %p216
    %p218 = scmp.ne.s32.totalorder %s207, %s210
    %p219 = scmp.eq.s32.totalorder %s28, 3
    %p220 = por %p218, %p219
    %p221 = scmp.ne.s32.totalorder %s210, %s211
    %p222 = scmp.eq.s32.totalorder %s28, 0
    %p223 = por %p221, %p222
    %p224 = scmp.ne.s32.totalorder %s210, %s211
    %p225 = scmp.eq.s32.totalorder %s29, 3
    %p226 = por %p224, %p225
    %p228 = scmp.ne.s32.totalorder %s211, %s227
    %p229 = scmp.eq.s32.totalorder %s29, 0
    %p230 = por %p228, %p229
    %s231 = ssub.s32 %s31, %s38
    %p232 = scmp.eq.s32.totalorder %s231, 0
    %s234 = sadd.s32 %s233, 1
    %s235 = scalar_select %p232, %s233, %s234
    %p238 = pneg %p232
    %p239 = scmp.eq.s32.totalorder %s23, 3
    %p240 = por %p238, %p239
    %p241 = scmp.ne.s32.totalorder %s233, %s236
    %p242 = scmp.eq.s32.totalorder %s23, 0
    %p243 = por %p241, %p242
    %p244 = scmp.ne.s32.totalorder %s233, %s236
    %p245 = scmp.eq.s32.totalorder %s28, 3
    %p246 = por %p244, %p245
    %p247 = scmp.ne.s32.totalorder %s236, %s237
    %p248 = scmp.eq.s32.totalorder %s28, 0
    %p249 = por %p247, %p248
    %p250 = scmp.ne.s32.totalorder %s236, %s237
    %p251 = scmp.eq.s32.totalorder %s29, 3
    %p252 = por %p250, %p251
    %p254 = scmp.ne.s32.totalorder %s237, %s253
    %p255 = scmp.eq.s32.totalorder %s29, 0
    %p256 = por %p254, %p255
    %s257 = ssub.s32 %s31, %s38
    %p258 = scmp.eq.s32.totalorder %s257, 0
    %s260 = sadd.s32 %s259, 1
    %s261 = scalar_select %p258, %s259, %s260
    %p264 = pneg %p258
    %p265 = scmp.eq.s32.totalorder %s23, 3
    %p266 = por %p264, %p265
    %p267 = scmp.ne.s32.totalorder %s259, %s262
    %p268 = scmp.eq.s32.totalorder %s23, 0
    %p269 = por %p267, %p268
    %p270 = scmp.ne.s32.totalorder %s259, %s262
    %p271 = scmp.eq.s32.totalorder %s28, 3
    %p272 = por %p270, %p271
    %p273 = scmp.ne.s32.totalorder %s262, %s263
    %p274 = scmp.eq.s32.totalorder %s28, 0
    %p275 = por %p273, %p274
    %p276 = scmp.ne.s32.totalorder %s262, %s263
    %p277 = scmp.eq.s32.totalorder %s29, 3
    %p278 = por %p276, %p277
    %p280 = scmp.ne.s32.totalorder %s263, %s279
    %p281 = scmp.eq.s32.totalorder %s29, 0
    %p282 = por %p280, %p281
    %s283 = ssub.s32 %s31, %s38
    %p284 = scmp.eq.s32.totalorder %s283, 0
    %s286 = sadd.s32 %s285, 1
    %s287 = scalar_select %p284, %s285, %s286
    %p290 = pneg %p284
    %p291 = scmp.eq.s32.totalorder %s23, 3
    %p292 = por %p290, %p291
    %p293 = scmp.ne.s32.totalorder %s285, %s288
    %p294 = scmp.eq.s32.totalorder %s23, 0
    %p295 = por %p293, %p294
    %p296 = scmp.ne.s32.totalorder %s285, %s288
    %p297 = scmp.eq.s32.totalorder %s28, 3
    %p298 = por %p296, %p297
    %p299 = scmp.ne.s32.totalorder %s288, %s289
    %p300 = scmp.eq.s32.totalorder %s28, 0
    %p301 = por %p299, %p300
    %p302 = scmp.ne.s32.totalorder %s288, %s289
    %p303 = scmp.eq.s32.totalorder %s29, 3
    %p304 = por %p302, %p303
    %p306 = scmp.ne.s32.totalorder %s289, %s305
    %p307 = scmp.eq.s32.totalorder %s29, 0
    %p308 = por %p306, %p307
    %s309 = ssub.s32 %s31, %s38
    %p310 = scmp.eq.s32.totalorder %s309, 0
    %s312 = sadd.s32 %s311, 1
    %s313 = scalar_select %p310, %s311, %s312
    %p316 = pneg %p310
    %p317 = scmp.eq.s32.totalorder %s23, 3
    %p318 = por %p316, %p317
    %p319 = scmp.ne.s32.totalorder %s311, %s314
    %p320 = scmp.eq.s32.totalorder %s23, 0
    %p321 = por %p319, %p320
    %p322 = scmp.ne.s32.totalorder %s311, %s314
    %p323 = scmp.eq.s32.totalorder %s28, 3
    %p324 = por %p322, %p323
    %p325 = scmp.ne.s32.totalorder %s314, %s315
    %p326 = scmp.eq.s32.totalorder %s28, 0
    %p327 = por %p325, %p326
    %p328 = scmp.ne.s32.totalorder %s314, %s315
    %p329 = scmp.eq.s32.totalorder %s29, 3
    %p330 = por %p328, %p329
    %p332 = scmp.ne.s32.totalorder %s315, %s331
    %p333 = scmp.eq.s32.totalorder %s29, 0
    %p334 = por %p332, %p333
    %s335 = ssub.s32 %s31, %s38
    %p336 = scmp.eq.s32.totalorder %s335, 0
    %s338 = sadd.s32 %s337, 1
    %s339 = scalar_select %p336, %s337, %s338
    %p342 = pneg %p336
    %p343 = scmp.eq.s32.totalorder %s23, 3
    %p344 = por %p342, %p343
    %p345 = scmp.ne.s32.totalorder %s337, %s340
    %p346 = scmp.eq.s32.totalorder %s23, 0
    %p347 = por %p345, %p346
    %p348 = scmp.ne.s32.totalorder %s337, %s340
    %p349 = scmp.eq.s32.totalorder %s28, 3
    %p350 = por %p348, %p349
    %p351 = scmp.ne.s32.totalorder %s340, %s341
    %p352 = scmp.eq.s32.totalorder %s28, 0
    %p353 = por %p351, %p352
    %p354 = scmp.ne.s32.totalorder %s340, %s341
    %p355 = scmp.eq.s32.totalorder %s29, 3
    %p356 = por %p354, %p355
    %p358 = scmp.ne.s32.totalorder %s341, %s357
    %p359 = scmp.eq.s32.totalorder %s29, 0
    %p360 = por %p358, %p359
    %s362 = sadd.s32 %s361, 1
    %p365 = scmp.eq.s32.totalorder %s23, 3
    %p366 = scmp.ne.s32.totalorder %s361, %s363
    %p367 = scmp.eq.s32.totalorder %s23, 0
    %p368 = por %p366, %p367
    %p369 = scmp.ne.s32.totalorder %s361, %s363
    %p370 = scmp.eq.s32.totalorder %s28, 3
    %p371 = por %p369, %p370
    %p372 = scmp.ne.s32.totalorder %s363, %s364
    %p373 = scmp.eq.s32.totalorder %s28, 0
    %p374 = por %p372, %p373
    %p375 = scmp.ne.s32.totalorder %s363, %s364
    %p376 = scmp.eq.s32.totalorder %s29, 3
    %p377 = por %p375, %p376
    %p379 = scmp.ne.s32.totalorder %s364, %s378
    %p380 = scmp.eq.s32.totalorder %s29, 0
    %p381 = por %p379, %p380
    %s383 = sadd.s32 %s382, 1
    %p386 = scmp.eq.s32.totalorder %s23, 3
    %p387 = scmp.ne.s32.totalorder %s382, %s384
    %p388 = scmp.eq.s32.totalorder %s23, 0
    %p389 = por %p387, %p388
    %p390 = scmp.ne.s32.totalorder %s382, %s384
    %p391 = scmp.eq.s32.totalorder %s28, 3
    %p392 = por %p390, %p391
    %p393 = scmp.ne.s32.totalorder %s384, %s385
    %p394 = scmp.eq.s32.totalorder %s28, 0
    %p395 = por %p393, %p394
    %p396 = scmp.ne.s32.totalorder %s384, %s385
    %p397 = scmp.eq.s32.totalorder %s29, 3
    %p398 = por %p396, %p397
    %p400 = scmp.ne.s32.totalorder %s385, %s399
    %p401 = scmp.eq.s32.totalorder %s29, 0
    %p402 = por %p400, %p401
    %s403 = ssub.s32 %s30, %s42
    %p404 = scmp.eq.s32.totalorder %s403, 0
    %s406 = sadd.s32 %s405, 1
    %s407 = scalar_select %p404, %s405, %s406
    %p410 = pneg %p404
    %p411 = scmp.eq.s32.totalorder %s23, 3
    %p412 = por %p410, %p411
    %p413 = scmp.ne.s32.totalorder %s405, %s408
    %p414 = scmp.eq.s32.totalorder %s23, 0
    %p415 = por %p413, %p414
    %p416 = scmp.ne.s32.totalorder %s405, %s408
    %p417 = scmp.eq.s32.totalorder %s28, 3
    %p418 = por %p416, %p417
    %p419 = scmp.ne.s32.totalorder %s408, %s409
    %p420 = scmp.eq.s32.totalorder %s28, 0
    %p421 = por %p419, %p420
    %p422 = scmp.ne.s32.totalorder %s408, %s409
    %p423 = scmp.eq.s32.totalorder %s29, 3
    %p424 = por %p422, %p423
    %p426 = scmp.ne.s32.totalorder %s409, %s425
    %p427 = scmp.eq.s32.totalorder %s29, 0
    %p428 = por %p426, %p427
    %s429 = ssub.s32 %s30, %s42
    %p430 = scmp.eq.s32.totalorder %s429, 0
    %s432 = sadd.s32 %s431, 1
    %s433 = scalar_select %p430, %s431, %s432
    %p436 = pneg %p430
    %p437 = scmp.eq.s32.totalorder %s23, 3
    %p438 = por %p436, %p437
    %p439 = scmp.ne.s32.totalorder %s431, %s434
    %p440 = scmp.eq.s32.totalorder %s23, 0
    %p441 = por %p439, %p440
    %p442 = scmp.ne.s32.totalorder %s431, %s434
    %p443 = scmp.eq.s32.totalorder %s28, 3
    %p444 = por %p442, %p443
    %p445 = scmp.ne.s32.totalorder %s434, %s435
    %p446 = scmp.eq.s32.totalorder %s28, 0
    %p447 = por %p445, %p446
    %p448 = scmp.ne.s32.totalorder %s434, %s435
    %p449 = scmp.eq.s32.totalorder %s29, 3
    %p450 = por %p448, %p449
    %p452 = scmp.ne.s32.totalorder %s435, %s451
    %p453 = scmp.eq.s32.totalorder %s29, 0
    %p454 = por %p452, %p453
    %p455 = scmp.le.s32.totalorder 1, %s23
    %p456 = scmp.lt.s32.totalorder %s23, 5
    %p457 = pnand %p455, %p456
    %p458 = pneg %p457
    // Predicated region
    $region9: #{model_forward.2} parent=5 // pred_check
      _
    $region10: #{model_forward.2} parent=5 // pred_check_branch
      %460 = sbr.rel (%p457) target = $region12
    $region11: #{model_forward.2} parent=5 // pred_region
      %s461 = ssub.s32 %s23, 1
      // Predicated region
      $region13: #{model_forward.2} parent=11 // pred_check
        %p462 = pneg %p82
      $region14: #{model_forward.2} parent=11 // pred_check_branch
        %464 = sbr.rel (%p462) target = $region16
      $region15: #{model_forward.2} parent=11 // pred_region
        _
      $region16: #{model_forward.2} parent=11 // pred_fallthru
        _
      // Predicated region
      $region17: #{model_forward.2} parent=11 // pred_check
        %p465 = pneg %p103
      $region18: #{model_forward.2} parent=11 // pred_check_branch
        %467 = sbr.rel (%p465) target = $region20
      $region19: #{model_forward.2} parent=11 // pred_region
        _
      $region20: #{model_forward.2} parent=11 // pred_fallthru
        _
      // Predicated region
      $region21: #{model_forward.2} parent=11 // pred_check
        %p468 = pneg %p124
      $region22: #{model_forward.2} parent=11 // pred_check_branch
        %470 = sbr.rel (%p468) target = $region24
      $region23: #{model_forward.2} parent=11 // pred_region
        _
      $region24: #{model_forward.2} parent=11 // pred_fallthru
        _
      // Predicated region
      $region25: #{model_forward.2} parent=11 // pred_check
        %p471 = pneg %p145
      $region26: #{model_forward.2} parent=11 // pred_check_branch
        %473 = sbr.rel (%p471) target = $region28
      $region27: #{model_forward.2} parent=11 // pred_region
        _
      $region28: #{model_forward.2} parent=11 // pred_fallthru
        _
      // Predicated region
      $region29: #{model_forward.2} parent=11 // pred_check
        %p474 = pneg %p374
      $region30: #{model_forward.2} parent=11 // pred_check_branch
        %476 = sbr.rel (%p474) target = $region32
      $region31: #{model_forward.2} parent=11 // pred_region
        _
      $region32: #{model_forward.2} parent=11 // pred_fallthru
        _
      // Predicated region
      $region33: #{model_forward.2} parent=11 // pred_check
        %p477 = pneg %p395
      $region34: #{model_forward.2} parent=11 // pred_check_branch
        %479 = sbr.rel (%p477) target = $region36
      $region35: #{model_forward.2} parent=11 // pred_region
        _
      $region36: #{model_forward.2} parent=11 // pred_fallthru
        _
    $region12: #{model_forward.2} parent=5 // pred_fallthru
      _
    %p480 = scmp.lt.s32.totalorder %s23, 4
    // Predicated region
    $region37: #{model_forward.2} parent=5 // pred_check
      %p481 = pneg %p480
    $region38: #{model_forward.2} parent=5 // pred_check_branch
      %483 = sbr.rel (%p481) target = $region40
    $region39: #{model_forward.2} parent=5 // pred_region
      // Predicated region
      $region41: #{model_forward.2} parent=39 // pred_check
        %p484 = pneg %p55
      $region42: #{model_forward.2} parent=39 // pred_check_branch
        %486 = sbr.rel (%p484) target = $region44
      $region43: #{model_forward.2} parent=39 // pred_region
        %s487 = smul.u32 4, %s30
        %p488 = scmp.lt.s32.totalorder %s487, 7
        %s489 = scalar_select %p488, %s487, 7
        %s490 = smul.addr %s489, 4
        %s491 = smul.addr %s490, 8
        %s492 = scalar_lea.vmem %s0, %s491
        %s493 = smul.u32 4, %s30
      $region44: #{model_forward.2} parent=39 // pred_fallthru
        _
      // Predicated region
      $region45: #{model_forward.2} parent=39 // pred_check
        %p494 = pneg %p165
      $region46: #{model_forward.2} parent=39 // pred_check_branch
        %496 = sbr.rel (%p494) target = $region48
      $region47: #{model_forward.2} parent=39 // pred_region
        %p497 = scmp.lt.s32.totalorder %s31, 1
        %s498 = scalar_select %p497, %s31, 1
        %s499 = smul.addr %s498, 48
        %s500 = smul.addr %s499, 4
        %s501 = scalar_lea.vmem %s5, %s500
      $region48: #{model_forward.2} parent=39 // pred_fallthru
        _
      // Predicated region
      $region49: #{model_forward.2} parent=39 // pred_check
        %p502 = pneg %p191
      $region50: #{model_forward.2} parent=39 // pred_check_branch
        %504 = sbr.rel (%p502) target = $region52
      $region51: #{model_forward.2} parent=39 // pred_region
        %p505 = scmp.lt.s32.totalorder %s31, 1
        %s506 = scalar_select %p505, %s31, 1
        %s507 = smul.addr %s506, 3
        %s508 = scalar_lea.vmem %s6, %s507
      $region52: #{model_forward.2} parent=39 // pred_fallthru
        _
      // Predicated region
      $region53: #{model_forward.2} parent=39 // pred_check
        %p509 = pneg %p217
      $region54: #{model_forward.2} parent=39 // pred_check_branch
        %511 = sbr.rel (%p509) target = $region56
      $region55: #{model_forward.2} parent=39 // pred_region
        %p512 = scmp.lt.s32.totalorder %s31, 1
        %s513 = scalar_select %p512, %s31, 1
        %s514 = smul.addr %s513, 16
        %s515 = smul.addr %s514, 4
        %s516 = scalar_lea.vmem %s7, %s515
      $region56: #{model_forward.2} parent=39 // pred_fallthru
        _
      // Predicated region
      $region57: #{model_forward.2} parent=39 // pred_check
        %p517 = pneg %p243
      $region58: #{model_forward.2} parent=39 // pred_check_branch
        %519 = sbr.rel (%p517) target = $region60
      $region59: #{model_forward.2} parent=39 // pred_region
        %p520 = scmp.lt.s32.totalorder %s31, 1
        %s521 = scalar_select %p520, %s31, 1
        %s522 = scalar_lea.vmem %s8, %s521
      $region60: #{model_forward.2} parent=39 // pred_fallthru
        _
      // Predicated region
      $region61: #{model_forward.2} parent=39 // pred_check
        %p523 = pneg %p269
      $region62: #{model_forward.2} parent=39 // pred_check_branch
        %525 = sbr.rel (%p523) target = $region64
      $region63: #{model_forward.2} parent=39 // pred_region
        %p526 = scmp.lt.s32.totalorder %s31, 1
        %s527 = scalar_select %p526, %s31, 1
        %s528 = smul.addr %s527, 64
        %s529 = smul.addr %s528, 4
        %s530 = scalar_lea.vmem %s9, %s529
      $region64: #{model_forward.2} parent=39 // pred_fallthru
        _
      // Predicated region
      $region65: #{model_forward.2} parent=39 // pred_check
        %p531 = pneg %p295
      $region66: #{model_forward.2} parent=39 // pred_check_branch
        %533 = sbr.rel (%p531) target = $region68
      $region67: #{model_forward.2} parent=39 // pred_region
        %p534 = scmp.lt.s32.totalorder %s31, 1
        %s535 = scalar_select %p534, %s31, 1
        %s536 = smul.addr %s535, 4
        %s537 = scalar_lea.vmem %s10, %s536
      $region68: #{model_forward.2} parent=39 // pred_fallthru
        _
      // Predicated region
      $region69: #{model_forward.2} parent=39 // pred_check
        %p538 = pneg %p321
      $region70: #{model_forward.2} parent=39 // pred_check_branch
        %540 = sbr.rel (%p538) target = $region72
      $region71: #{model_forward.2} parent=39 // pred_region
        %p541 = scmp.lt.s32.totalorder %s31, 1
        %s542 = scalar_select %p541, %s31, 1
        %s543 = smul.addr %s542, 64
        %s544 = smul.addr %s543, 4
        %s545 = scalar_lea.vmem %s11, %s544
      $region72: #{model_forward.2} parent=39 // pred_fallthru
        _
      // Predicated region
      $region73: #{model_forward.2} parent=39 // pred_check
        %p546 = pneg %p347
      $region74: #{model_forward.2} parent=39 // pred_check_branch
        %548 = sbr.rel (%p546) target = $region76
      $region75: #{model_forward.2} parent=39 // pred_region
        %p549 = scmp.lt.s32.totalorder %s31, 1
        %s550 = scalar_select %p549, %s31, 1
        %s551 = scalar_lea.vmem %s12, %s550
      $region76: #{model_forward.2} parent=39 // pred_fallthru
        _
    $region40: #{model_forward.2} parent=5 // pred_fallthru
      _
    %p552 = scmp.le.s32.totalorder 1, %s23
    %p553 = scmp.lt.s32.totalorder %s23, 5
    %p554 = pnand %p552, %p553
    %p555 = pneg %p554
    // Predicated region
    $region77: #{model_forward.2} parent=5 // pred_check
      _
    $region78: #{model_forward.2} parent=5 // pred_check_branch
      %557 = sbr.rel (%p554) target = $region80
    $region79: #{model_forward.2} parent=5 // pred_region
      %s558 = ssub.s32 %s23, 1
      %s559 = smul.u32 4, %s32
      %p560 = scmp.lt.s32.totalorder %s559, 7
      %s561 = scalar_select %p560, %s559, 7
      %s562 = smul.addr %s561, 4
      %s563 = smul.addr %s562, 8
      %s564 = scalar_lea.vmem %s0, %s563
      %p565 = pneg %p61
      %p566 = pneg %p58
      %p567 = pneg %p82
      %p568 = pneg %p79
      %p569 = pneg %p103
      %p570 = pneg %p100
      %p571 = pneg %p124
      %p572 = pneg %p121
      %p573 = pneg %p145
      %p574 = pneg %p142
      %p575 = scmp.lt.s32.totalorder %s33, 1
      %s576 = scalar_select %p575, %s33, 1
      %s577 = smul.addr %s576, 48
      %s578 = smul.addr %s577, 4
      %s579 = scalar_lea.vmem %s5, %s578
      %p580 = pneg %p171
      %p581 = pneg %p168
      %p582 = scmp.lt.s32.totalorder %s33, 1
      %s583 = scalar_select %p582, %s33, 1
      %s584 = smul.addr %s583, 3
      %s585 = scalar_lea.vmem %s6, %s584
      %p586 = pneg %p197
      %p587 = pneg %p194
      %p588 = scmp.lt.s32.totalorder %s33, 1
      %s589 = scalar_select %p588, %s33, 1
      %s590 = smul.addr %s589, 16
      %s591 = smul.addr %s590, 4
      %s592 = scalar_lea.vmem %s7, %s591
      %p593 = pneg %p223
      %p594 = pneg %p220
      %p595 = scmp.lt.s32.totalorder %s33, 1
      %s596 = scalar_select %p595, %s33, 1
      %s597 = scalar_lea.vmem %s8, %s596
      %p598 = pneg %p249
      %p599 = pneg %p246
      %p600 = scmp.lt.s32.totalorder %s33, 1
      %s601 = scalar_select %p600, %s33, 1
      %s602 = smul.addr %s601, 64
      %s603 = smul.addr %s602, 4
      %s604 = scalar_lea.vmem %s9, %s603
      %p605 = pneg %p275
      %p606 = pneg %p272
      %p607 = scmp.lt.s32.totalorder %s33, 1
      %s608 = scalar_select %p607, %s33, 1
      %s609 = smul.addr %s608, 4
      %s610 = scalar_lea.vmem %s10, %s609
      %p611 = pneg %p301
      %p612 = pneg %p298
      %p613 = scmp.lt.s32.totalorder %s33, 1
      %s614 = scalar_select %p613, %s33, 1
      %s615 = smul.addr %s614, 64
      %s616 = smul.addr %s615, 4
      %s617 = scalar_lea.vmem %s11, %s616
      %p618 = pneg %p327
      %p619 = pneg %p324
      %p620 = scmp.lt.s32.totalorder %s33, 1
      %s621 = scalar_select %p620, %s33, 1
      %s622 = scalar_lea.vmem %s12, %s621
      %p623 = pneg %p353
      %p624 = pneg %p350
      %p625 = pneg %p374
      %p626 = pneg %p371
      %p627 = pneg %p395
      %p628 = pneg %p392
      %p629 = pneg %p421
      %p630 = pneg %p418
      %s631 = smul.u32 4, %s32
      %p632 = scmp.lt.s32.totalorder %s631, 7
      %s633 = scalar_select %p632, %s631, 7
      %s634 = smul.addr %s633, 4
      %s635 = smul.addr %s634, 8
      %s636 = scalar_lea.vmem %s15, %s635
      %p637 = pneg %p447
      %p638 = pneg %p444
      %p639 = scmp.lt.s32.totalorder %s32, 1
      %s640 = scalar_select %p639, %s32, 1
      %s641 = smul.addr %s640, 4
      %s642 = scalar_lea.vmem %s16, %s641
      %s643 = smul.u32 4, %s32
      %p644 = scmp.lt.s32.totalorder %s643, 7
      %s645 = scalar_select %p644, %s643, 7
      %s646 = smul.addr %s645, 4
      %s647 = smul.addr %s646, 8
      %s648 = scalar_lea.vmem %s0, %s647
      %s649 = smul.u32 4, %s32
      %p650 = scmp.lt.s32.totalorder %s33, 1
      %s651 = scalar_select %p650, %s33, 1
      %s652 = smul.addr %s651, 48
      %s653 = smul.addr %s652, 4
      %s654 = scalar_lea.vmem %s5, %s653
      %p655 = scmp.lt.s32.totalorder %s33, 1
      %s656 = scalar_select %p655, %s33, 1
      %s657 = smul.addr %s656, 3
      %s658 = scalar_lea.vmem %s6, %s657
      %p659 = scmp.lt.s32.totalorder %s33, 1
      %s660 = scalar_select %p659, %s33, 1
      %s661 = smul.addr %s660, 16
      %s662 = smul.addr %s661, 4
      %s663 = scalar_lea.vmem %s7, %s662
      %p664 = scmp.lt.s32.totalorder %s33, 1
      %s665 = scalar_select %p664, %s33, 1
      %s666 = scalar_lea.vmem %s8, %s665
      %p667 = scmp.lt.s32.totalorder %s33, 1
      %s668 = scalar_select %p667, %s33, 1
      %s669 = smul.addr %s668, 64
      %s670 = smul.addr %s669, 4
      %s671 = scalar_lea.vmem %s9, %s670
      %p672 = scmp.lt.s32.totalorder %s33, 1
      %s673 = scalar_select %p672, %s33, 1
      %s674 = smul.addr %s673, 4
      %s675 = scalar_lea.vmem %s10, %s674
      %p676 = scmp.lt.s32.totalorder %s33, 1
      %s677 = scalar_select %p676, %s33, 1
      %s678 = smul.addr %s677, 64
      %s679 = smul.addr %s678, 4
      %s680 = scalar_lea.vmem %s11, %s679
      %p681 = scmp.lt.s32.totalorder %s33, 1
      %s682 = scalar_select %p681, %s33, 1
      %s683 = scalar_lea.vmem %s12, %s682
      %s684 = smul.u32 4, %s32
      %p685 = scmp.lt.s32.totalorder %s684, 7
      %s686 = scalar_select %p685, %s684, 7
      %s687 = smul.addr %s686, 4
      %s688 = smul.addr %s687, 8
      %s689 = scalar_lea.vmem %s15, %s688
      %s690 = smul.u32 4, %s32
      %p691 = scmp.lt.s32.totalorder %s32, 1
      %s692 = scalar_select %p691, %s32, 1
      %s693 = smul.addr %s692, 4
      %s694 = scalar_lea.vmem %s16, %s693
      %p696 = scmp.eq.s32.totalorder %s33, 0
      // Predicated region
      $region81: #{model_forward.2} parent=79 // pred_check
        %p697 = pneg %p696
      $region82: #{model_forward.2} parent=79 // pred_check_branch
        %699 = sbr.rel (%p697) target = $region84
      $region83: #{model_forward.2} parent=79 // pred_region
        %v700 = vld [vmem:[%s648] sm:$0xff]
        %v701 = vld [vmem:[%s648 + $0x8] sm:$0xff]
        %v702 = vld [vmem:[%s648 + $0x10] sm:$0xff]
        %v703 = vld [vmem:[%s648 + $0x18] sm:$0xff]
        %v704 = vld [vmem:[%s648 + $0x20] sm:$0xff]
        %v705 = vld [vmem:[%s648 + $0x28] sm:$0xff]
        %v706 = vld [vmem:[%s648 + $0x30] sm:$0xff]
        %v707 = vld [vmem:[%s648 + $0x38] sm:$0xff]
        %v708 = vld [vmem:[%s648 + $0x40] sm:$0xff]
        %v709 = vld [vmem:[%s648 + $0x48] sm:$0xff]
        %v710 = vld [vmem:[%s648 + $0x50] sm:$0xff]
        %v711 = vld [vmem:[%s648 + $0x58] sm:$0xff]
        %v712 = vld [vmem:[%s648 + $0x60] sm:$0xff]
        %v713 = vld [vmem:[%s648 + $0x68] sm:$0xff]
        %v714 = vld [vmem:[%s648 + $0x70] sm:$0xff]
        %v715 = vld [vmem:[%s648 + $0x78] sm:$0xff]
        %v716 = vpack.c.bf16 %v702, %v700
        %v717 = vpack.c.bf16 %v703, %v701
        %v718 = vpack.c.bf16 %v706, %v704
        %v719 = vpack.c.bf16 %v707, %v705
        %v720 = vpack.c.bf16 %v710, %v708
        %v721 = vpack.c.bf16 %v711, %v709
        %v722 = vpack.c.bf16 %v714, %v712
        %v723 = vpack.c.bf16 %v715, %v713
        %v724 = vld [vmem:[%s3] sm:$0xf]
        %v725 = vld [vmem:[%s3 + $0x4] sm:$0xf]
        %v726 = vld [vmem:[%s3 + $0x8] sm:$0xf]
        %v727 = vld [vmem:[%s3 + $0xc] sm:$0xf]
        %v728 = vld [vmem:[%s3 + $0x10] sm:$0xf]
        %v729 = vld [vmem:[%s3 + $0x14] sm:$0xf]
        %v730 = vld [vmem:[%s3 + $0x18] sm:$0xf]
        %v731 = vld [vmem:[%s3 + $0x1c] sm:$0xf]
        %v732 = vld [vmem:[%s3 + $0x20] sm:$0xf]
        %v733 = vld [vmem:[%s3 + $0x24] sm:$0xf]
        %v734 = vld [vmem:[%s3 + $0x28] sm:$0xf]
        %v735 = vld [vmem:[%s3 + $0x2c] sm:$0xf]
        %v736 = vld [vmem:[%s3 + $0x30] sm:$0xf]
        %v737 = vld [vmem:[%s3 + $0x34] sm:$0xf]
        %v738 = vld [vmem:[%s3 + $0x38] sm:$0xf]
        %v739 = vld [vmem:[%s3 + $0x3c] sm:$0xf]
        %v740 = vld [vmem:[%s3 + $0x40] sm:$0xf]
        %v741 = vld [vmem:[%s3 + $0x44] sm:$0xf]
        %v742 = vld [vmem:[%s3 + $0x48] sm:$0xf]
        %v743 = vld [vmem:[%s3 + $0x4c] sm:$0xf]
        %v744 = vld [vmem:[%s3 + $0x50] sm:$0xf]
        %v745 = vld [vmem:[%s3 + $0x54] sm:$0xf]
        %v746 = vld [vmem:[%s3 + $0x58] sm:$0xf]
        %v747 = vld [vmem:[%s3 + $0x5c] sm:$0xf]
        %v748 = vld [vmem:[%s3 + $0x60] sm:$0xf]
        %v749 = vld [vmem:[%s3 + $0x64] sm:$0xf]
        %v750 = vld [vmem:[%s3 + $0x68] sm:$0xf]
        %v751 = vld [vmem:[%s3 + $0x6c] sm:$0xf]
        %v752 = vld [vmem:[%s3 + $0x70] sm:$0xf]
        %v753 = vld [vmem:[%s3 + $0x74] sm:$0xf]
        %v754 = vld [vmem:[%s3 + $0x78] sm:$0xf]
        %v755 = vld [vmem:[%s3 + $0x7c] sm:$0xf]
        %v756 = vld [vmem:[%s4] sm:$0x1]
        %v758 = vlaneseq
        %v759 = vshrl.u32 %v758, 7
        %v760 = vsub.s32 0, %v759
        %v761 = vrot.slane %v756, %v760
        %v795 = vunpack.c.l.b16 %v724
        %v796 = vunpack.c.l.b16 %v725
        %v797 = vunpack.c.l.b16 %v726
        %v798 = vunpack.c.l.b16 %v727
        %v799 = vunpack.c.l.b16 %v728
        %v800 = vunpack.c.l.b16 %v729
        %v801 = vunpack.c.l.b16 %v730
        %v802 = vunpack.c.l.b16 %v731
        %v803 = vunpack.c.l.b16 %v732
        %v804 = vunpack.c.l.b16 %v733
        %v805 = vunpack.c.l.b16 %v734
        %v806 = vunpack.c.l.b16 %v735
        %v807 = vunpack.c.l.b16 %v736
        %v808 = vunpack.c.l.b16 %v737
        %v809 = vunpack.c.l.b16 %v738
        %v810 = vunpack.c.l.b16 %v739
        %v811 = vunpack.c.l.b16 %v740
        %v812 = vunpack.c.l.b16 %v741
        %v813 = vunpack.c.l.b16 %v742
        %v814 = vunpack.c.l.b16 %v743
        %v815 = vunpack.c.l.b16 %v744
        %v816 = vunpack.c.l.b16 %v745
        %v817 = vunpack.c.l.b16 %v746
        %v818 = vunpack.c.l.b16 %v747
        %v819 = vunpack.c.l.b16 %v748
        %v820 = vunpack.c.l.b16 %v749
        %v821 = vunpack.c.l.b16 %v750
        %v822 = vunpack.c.l.b16 %v751
        %v823 = vunpack.c.l.b16 %v752
        %v824 = vunpack.c.l.b16 %v753
        %v825 = vunpack.c.l.b16 %v754
        %v826 = vunpack.c.l.b16 %v755
        %v827 = vpack.c.b16 %v796, %v795
        %v828 = vpack.c.b16 %v798, %v797
        %v829 = vpack.c.b16 %v800, %v799
        %v830 = vpack.c.b16 %v802, %v801
        %v831 = vpack.c.b16 %v804, %v803
        %v832 = vpack.c.b16 %v806, %v805
        %v833 = vpack.c.b16 %v808, %v807
        %v834 = vpack.c.b16 %v810, %v809
        %v835 = vpack.c.b16 %v812, %v811
        %v836 = vpack.c.b16 %v814, %v813
        %v837 = vpack.c.b16 %v816, %v815
        %v838 = vpack.c.b16 %v818, %v817
        %v839 = vpack.c.b16 %v820, %v819
        %v840 = vpack.c.b16 %v822, %v821
        %v841 = vpack.c.b16 %v824, %v823
        %v842 = vpack.c.b16 %v826, %v825
        %859 = vmatprep.subr.bf16.mxu0 0
        %860 = vmatpush1.bf16.msra.mxu0 %v834
        %861 = vmatprep.subr.bf16.mxu0 0
        %862 = vmatpush1.bf16.msra.mxu0 %v833
        %863 = vmatprep.subr.bf16.mxu0 0
        %864 = vmatpush1.bf16.msra.mxu0 %v832
        %865 = vmatprep.subr.bf16.mxu0 0
        %866 = vmatpush1.bf16.msra.mxu0 %v831
        %867 = vmatprep.subr.bf16.mxu0 0
        %868 = vmatpush1.bf16.msra.mxu0 %v830
        %869 = vmatprep.subr.bf16.mxu0 0
        %870 = vmatpush1.bf16.msra.mxu0 %v829
        %871 = vmatprep.subr.bf16.mxu0 0
        %872 = vmatpush1.bf16.msra.mxu0 %v828
        %873 = vmatprep.subr.bf16.mxu0 0
        %874 = vmatpush1.bf16.msra.mxu0 %v827
        %875 = vmatprep.subr.bf16.mxu0 0
        %876 = vmatpush2.bf16.msra.mxu0 %v842
        %877 = vmatprep.subr.bf16.mxu0 0
        %878 = vmatpush2.bf16.msra.mxu0 %v841
        %879 = vmatprep.subr.bf16.mxu0 0
        %880 = vmatpush2.bf16.msra.mxu0 %v840
        %881 = vmatprep.subr.bf16.mxu0 0
        %882 = vmatpush2.bf16.msra.mxu0 %v839
        %883 = vmatprep.subr.bf16.mxu0 0
        %884 = vmatpush2.bf16.msra.mxu0 %v838
        %885 = vmatprep.subr.bf16.mxu0 0
        %886 = vmatpush2.bf16.msra.mxu0 %v837
        %887 = vmatprep.subr.bf16.mxu0 0
        %888 = vmatpush2.bf16.msra.mxu0 %v836
        %889 = vmatprep.subr.bf16.mxu0 0
        %890 = vmatpush2.bf16.msra.mxu0 %v835
        %891 = vmatprep.mubr.bf16.mxu0 %v717
        %892 = vmatmul.mubr.bf16.gmra.mxu0 %v716
        %v893 = vpop.f32.mrf.mxu0
        %v894 = vadd.f32 %v761, %v893
        %v895 = vpop.f32.mrf.mxu0
        %v896 = vpop.f32.mrf.mxu0
        %v897 = vadd.f32 %v761, %v896
        %v898 = vpop.f32.mrf.mxu0
        %899 = vmatprep.mubr.bf16.mxu0 %v719
        %900 = vmatmul.mubr.bf16.gmra.mxu0 %v718
        %v901 = vpop.f32.mrf.mxu0
        %v902 = vadd.f32 %v761, %v901
        %v903 = vpop.f32.mrf.mxu0
        %v904 = vpop.f32.mrf.mxu0
        %v905 = vadd.f32 %v761, %v904
        %v906 = vpop.f32.mrf.mxu0
        %907 = vmatprep.mubr.bf16.mxu0 %v721
        %908 = vmatmul.mubr.bf16.gmra.mxu0 %v720
        %v909 = vpop.f32.mrf.mxu0
        %v910 = vadd.f32 %v761, %v909
        %v911 = vpop.f32.mrf.mxu0
        %v912 = vpop.f32.mrf.mxu0
        %v913 = vadd.f32 %v761, %v912
        %v914 = vpop.f32.mrf.mxu0
        %915 = vmatprep.mubr.bf16.mxu0 %v723
        %916 = vmatmul.mubr.bf16.gmra.mxu0 %v722
        %v917 = vpop.f32.mrf.mxu0
        %v918 = vadd.f32 %v761, %v917
        %v919 = vpop.f32.mrf.mxu0
        %v920 = vpop.f32.mrf.mxu0
        %v921 = vadd.f32 %v761, %v920
        %v922 = vpop.f32.mrf.mxu0
        %923 = vdwg.mxu0
        %v924 = vld [vmem:[%s1] sm:$0xff]
        %v925 = vld [vmem:[%s1 + $0x8] sm:$0xff]
        %v926 = vadd.f32 %v894, %v924
        %v927 = vadd.f32 %v897, %v925
        %v928 = vadd.f32 %v902, %v924
        %v929 = vadd.f32 %v905, %v925
        %v930 = vadd.f32 %v910, %v924
        %v931 = vadd.f32 %v913, %v925
        %v932 = vadd.f32 %v918, %v924
        %v933 = vadd.f32 %v921, %v925
        %934 = vst [vmem:[#allocation2] sm:$0xff] %v926
        %935 = vst [vmem:[#allocation2 + $0x8] sm:$0xff] %v927
        %936 = vst [vmem:[#allocation2 + $0x10] sm:$0xff] %v928
        %937 = vst [vmem:[#allocation2 + $0x18] sm:$0xff] %v929
        %938 = vst [vmem:[#allocation2 + $0x20] sm:$0xff] %v930
        %939 = vst [vmem:[#allocation2 + $0x28] sm:$0xff] %v931
        %940 = vst [vmem:[#allocation2 + $0x30] sm:$0xff] %v932
        %941 = vst [vmem:[#allocation2 + $0x38] sm:$0xff] %v933
      $region84: #{model_forward.2} parent=79 // pred_fallthru
        _
      %v942 = vld [vmem:[#allocation2] sm:$0xff]
      %v943 = vld [vmem:[#allocation2 + $0x8] sm:$0xff]
      %v944 = vld [vmem:[#allocation2 + $0x10] sm:$0xff]
      %v945 = vld [vmem:[#allocation2 + $0x18] sm:$0xff]
      %v946 = vld [vmem:[#allocation2 + $0x20] sm:$0xff]
      %v947 = vld [vmem:[#allocation2 + $0x28] sm:$0xff]
      %v948 = vld [vmem:[#allocation2 + $0x30] sm:$0xff]
      %v949 = vld [vmem:[#allocation2 + $0x38] sm:$0xff]
      %950 = vadd.xlane.f32.xlu0 %v942
      %v951 = vpop.xlane.xlu0 %950
      %952 = vadd.xlane.f32.xlu0 %v943
      %v953 = vpop.xlane.xlu0 %952
      %954 = vadd.xlane.f32.xlu0 %v944
      %v955 = vpop.xlane.xlu0 %954
      %956 = vadd.xlane.f32.xlu0 %v945
      %v957 = vpop.xlane.xlu0 %956
      %958 = vadd.xlane.f32.xlu0 %v946
      %v959 = vpop.xlane.xlu0 %958
      %960 = vadd.xlane.f32.xlu0 %v947
      %v961 = vpop.xlane.xlu0 %960
      %962 = vadd.xlane.f32.xlu0 %v948
      %v963 = vpop.xlane.xlu0 %962
      %964 = vadd.xlane.f32.xlu0 %v949
      %v965 = vpop.xlane.xlu0 %964
      %v966 = vrcp.pop 128.0
      %v967 = vmul.f32 %v951, %v966
      %v968 = vmul.f32 %v953, %v966
      %v969 = vmul.f32 %v955, %v966
      %v970 = vmul.f32 %v957, %v966
      %v971 = vmul.f32 %v959, %v966
      %v972 = vmul.f32 %v961, %v966
      %v973 = vmul.f32 %v963, %v966
      %v974 = vmul.f32 %v965, %v966
      %v975 = vsub.f32 %v942, %v967
      %v976 = vsub.f32 %v943, %v968
      %v977 = vsub.f32 %v944, %v969
      %v978 = vsub.f32 %v945, %v970
      %v979 = vsub.f32 %v946, %v971
      %v980 = vsub.f32 %v947, %v972
      %v981 = vsub.f32 %v948, %v973
      %v982 = vsub.f32 %v949, %v974
      %v983 = vmul.f32 %v975, %v975
      %v984 = vmul.f32 %v976, %v976
      %v985 = vmul.f32 %v977, %v977
      %v986 = vmul.f32 %v978, %v978
      %v987 = vmul.f32 %v979, %v979
      %v988 = vmul.f32 %v980, %v980
      %v989 = vmul.f32 %v981, %v981
      %v990 = vmul.f32 %v982, %v982
      %991 = vadd.xlane.f32.xlu0 %v983
      %v992 = vpop.xlane.xlu0 %991
      %993 = vadd.xlane.f32.xlu0 %v984
      %v994 = vpop.xlane.xlu0 %993
      %995 = vadd.xlane.f32.xlu0 %v985
      %v996 = vpop.xlane.xlu0 %995
      %997 = vadd.xlane.f32.xlu0 %v986
      %v998 = vpop.xlane.xlu0 %997
      %999 = vadd.xlane.f32.xlu0 %v987
      %v1000 = vpop.xlane.xlu0 %999
      %1001 = vadd.xlane.f32.xlu0 %v988
      %v1002 = vpop.xlane.xlu0 %1001
      %1003 = vadd.xlane.f32.xlu0 %v989
      %v1004 = vpop.xlane.xlu0 %1003
      %1005 = vadd.xlane.f32.xlu0 %v990
      %v1006 = vpop.xlane.xlu0 %1005
      %v1007 = vmul.f32 %v992, %v966
      %v1008 = vmul.f32 %v994, %v966
      %v1009 = vmul.f32 %v996, %v966
      %v1010 = vmul.f32 %v998, %v966
      %v1011 = vmul.f32 %v1000, %v966
      %v1012 = vmul.f32 %v1002, %v966
      %v1013 = vmul.f32 %v1004, %v966
      %v1014 = vmul.f32 %v1006, %v966
      %v1015 = vadd.f32 %v1007, 1e-05
      %v1016 = vadd.f32 %v1008, 1e-05
      %v1017 = vadd.f32 %v1009, 1e-05
      %v1018 = vadd.f32 %v1010, 1e-05
      %v1019 = vadd.f32 %v1011, 1e-05
      %v1020 = vadd.f32 %v1012, 1e-05
      %v1021 = vadd.f32 %v1013, 1e-05
      %v1022 = vadd.f32 %v1014, 1e-05
      %v1023 = vrsqrt.pop %v1015
      %v1024 = vrsqrt.pop %v1016
      %v1025 = vrsqrt.pop %v1017
      %v1026 = vrsqrt.pop %v1018
      %v1027 = vrsqrt.pop %v1019
      %v1028 = vrsqrt.pop %v1020
      %v1029 = vrsqrt.pop %v1021
      %v1030 = vrsqrt.pop %v1022
      %v1031 = vmul.f32 %v975, %v1023
      %v1032 = vmul.f32 %v976, %v1024
      %v1033 = vmul.f32 %v977, %v1025
      %v1034 = vmul.f32 %v978, %v1026
      %v1035 = vmul.f32 %v979, %v1027
      %v1036 = vmul.f32 %v980, %v1028
      %v1037 = vmul.f32 %v981, %v1029
      %v1038 = vmul.f32 %v982, %v1030
      %v1039 = vpack.c.bf16 %v1032, %v1031
      %v1040 = vpack.c.bf16 %v1034, %v1033
      %v1041 = vpack.c.bf16 %v1036, %v1035
      %v1042 = vpack.c.bf16 %v1038, %v1037
      %v1043 = vld [vmem:[%s654] sm:$0xff]
      %v1044 = vld [vmem:[%s654 + $0x8] sm:$0xf]
      %v1045 = vld [vmem:[%s654 + $0xc] sm:$0xff]
      %v1046 = vld [vmem:[%s654 + $0x14] sm:$0xf]
      %v1047 = vld [vmem:[%s654 + $0x18] sm:$0xff]
      %v1048 = vld [vmem:[%s654 + $0x20] sm:$0xf]
      %v1049 = vld [vmem:[%s654 + $0x24] sm:$0xff]
      %v1050 = vld [vmem:[%s654 + $0x2c] sm:$0xf]
      %v1051 = vld [vmem:[%s654 + $0x30] sm:$0xff]
      %v1052 = vld [vmem:[%s654 + $0x38] sm:$0xf]
      %v1053 = vld [vmem:[%s654 + $0x3c] sm:$0xff]
      %v1054 = vld [vmem:[%s654 + $0x44] sm:$0xf]
      %v1055 = vld [vmem:[%s654 + $0x48] sm:$0xff]
      %v1056 = vld [vmem:[%s654 + $0x50] sm:$0xf]
      %v1057 = vld [vmem:[%s654 + $0x54] sm:$0xff]
      %v1058 = vld [vmem:[%s654 + $0x5c] sm:$0xf]
      %v1059 = vld [vmem:[%s654 + $0x60] sm:$0xff]
      %v1060 = vld [vmem:[%s654 + $0x68] sm:$0xf]
      %v1061 = vld [vmem:[%s654 + $0x6c] sm:$0xff]
      %v1062 = vld [vmem:[%s654 + $0x74] sm:$0xf]
      %v1063 = vld [vmem:[%s654 + $0x78] sm:$0xff]
      %v1064 = vld [vmem:[%s654 + $0x80] sm:$0xf]
      %v1065 = vld [vmem:[%s654 + $0x84] sm:$0xff]
      %v1066 = vld [vmem:[%s654 + $0x8c] sm:$0xf]
      %v1067 = vld [vmem:[%s654 + $0x90] sm:$0xff]
      %v1068 = vld [vmem:[%s654 + $0x98] sm:$0xf]
      %v1069 = vld [vmem:[%s654 + $0x9c] sm:$0xff]
      %v1070 = vld [vmem:[%s654 + $0xa4] sm:$0xf]
      %v1071 = vld [vmem:[%s654 + $0xa8] sm:$0xff]
      %v1072 = vld [vmem:[%s654 + $0xb0] sm:$0xf]
      %v1073 = vld [vmem:[%s654 + $0xb4] sm:$0xff]
      %v1074 = vld [vmem:[%s654 + $0xbc] sm:$0xf]
      %v1075 = vld [vmem:[%s658] sm:$0x7]
      %v1077 = vlaneseq
      %v1078 = vshrl.u32 %v1077, 7
      %v1079 = vsub.s32 0, %v1078
      %v1080 = vrot.slane %v1075, %v1079
      %v1081 = vlaneseq
      %v1082 = vshrl.u32 %v1081, 7
      %v1083 = vsub.s32 1, %v1082
      %v1084 = vrot.slane %v1075, %v1083
      %v1085 = vlaneseq
      %v1086 = vshrl.u32 %v1085, 7
      %v1087 = vsub.s32 2, %v1086
      %v1088 = vrot.slane %v1075, %v1087
      %v1124 = vunpack.c.l.b16 %v1043
      %v1125 = vunpack.c.h.b16 %v1043
      %v1126 = vunpack.c.l.b16 %v1044
      %v1127 = vunpack.c.l.b16 %v1045
      %v1128 = vunpack.c.h.b16 %v1045
      %v1129 = vunpack.c.l.b16 %v1046
      %v1130 = vunpack.c.l.b16 %v1047
      %v1131 = vunpack.c.h.b16 %v1047
      %v1132 = vunpack.c.l.b16 %v1048
      %v1133 = vunpack.c.l.b16 %v1049
      %v1134 = vunpack.c.h.b16 %v1049
      %v1135 = vunpack.c.l.b16 %v1050
      %v1136 = vunpack.c.l.b16 %v1051
      %v1137 = vunpack.c.h.b16 %v1051
      %v1138 = vunpack.c.l.b16 %v1052
      %v1139 = vunpack.c.l.b16 %v1053
      %v1140 = vunpack.c.h.b16 %v1053
      %v1141 = vunpack.c.l.b16 %v1054
      %v1142 = vunpack.c.l.b16 %v1055
      %v1143 = vunpack.c.h.b16 %v1055
      %v1144 = vunpack.c.l.b16 %v1056
      %v1145 = vunpack.c.l.b16 %v1057
      %v1146 = vunpack.c.h.b16 %v1057
      %v1147 = vunpack.c.l.b16 %v1058
      %v1148 = vunpack.c.l.b16 %v1059
      %v1149 = vunpack.c.h.b16 %v1059
      %v1150 = vunpack.c.l.b16 %v1060
      %v1151 = vunpack.c.l.b16 %v1061
      %v1152 = vunpack.c.h.b16 %v1061
      %v1153 = vunpack.c.l.b16 %v1062
      %v1154 = vunpack.c.l.b16 %v1063
      %v1155 = vunpack.c.h.b16 %v1063
      %v1156 = vunpack.c.l.b16 %v1064
      %v1157 = vunpack.c.l.b16 %v1065
      %v1158 = vunpack.c.h.b16 %v1065
      %v1159 = vunpack.c.l.b16 %v1066
      %v1160 = vunpack.c.l.b16 %v1067
      %v1161 = vunpack.c.h.b16 %v1067
      %v1162 = vunpack.c.l.b16 %v1068
      %v1163 = vunpack.c.l.b16 %v1069
      %v1164 = vunpack.c.h.b16 %v1069
      %v1165 = vunpack.c.l.b16 %v1070
      %v1166 = vunpack.c.l.b16 %v1071
      %v1167 = vunpack.c.h.b16 %v1071
      %v1168 = vunpack.c.l.b16 %v1072
      %v1169 = vunpack.c.l.b16 %v1073
      %v1170 = vunpack.c.h.b16 %v1073
      %v1171 = vunpack.c.l.b16 %v1074
      %v1172 = vpack.c.b16 %v1127, %v1124
      %v1173 = vpack.c.b16 %v1128, %v1125
      %v1174 = vpack.c.b16 %v1129, %v1126
      %v1175 = vpack.c.b16 %v1133, %v1130
      %v1176 = vpack.c.b16 %v1134, %v1131
      %v1177 = vpack.c.b16 %v1135, %v1132
      %v1178 = vpack.c.b16 %v1139, %v1136
      %v1179 = vpack.c.b16 %v1140, %v1137
      %v1180 = vpack.c.b16 %v1141, %v1138
      %v1181 = vpack.c.b16 %v1145, %v1142
      %v1182 = vpack.c.b16 %v1146, %v1143
      %v1183 = vpack.c.b16 %v1147, %v1144
      %v1184 = vpack.c.b16 %v1151, %v1148
      %v1185 = vpack.c.b16 %v1152, %v1149
      %v1186 = vpack.c.b16 %v1153, %v1150
      %v1187 = vpack.c.b16 %v1157, %v1154
      %v1188 = vpack.c.b16 %v1158, %v1155
      %v1189 = vpack.c.b16 %v1159, %v1156
      %v1190 = vpack.c.b16 %v1163, %v1160
      %v1191 = vpack.c.b16 %v1164, %v1161
      %v1192 = vpack.c.b16 %v1165, %v1162
      %v1193 = vpack.c.b16 %v1169, %v1166
      %v1194 = vpack.c.b16 %v1170, %v1167
      %v1195 = vpack.c.b16 %v1171, %v1168
      %1220 = vmatprep.subr.bf16.mxu0 %v1194
      %1221 = vmatpush1.bf16.msra.mxu0 %v1193
      %1222 = vmatprep.subr.bf16.mxu0 %v1191
      %1223 = vmatpush1.bf16.msra.mxu0 %v1190
      %1224 = vmatprep.subr.bf16.mxu0 %v1188
      %1225 = vmatpush1.bf16.msra.mxu0 %v1187
      %1226 = vmatprep.subr.bf16.mxu0 %v1185
      %1227 = vmatpush1.bf16.msra.mxu0 %v1184
      %1228 = vmatprep.subr.bf16.mxu0 %v1182
      %1229 = vmatpush1.bf16.msra.mxu0 %v1181
      %1230 = vmatprep.subr.bf16.mxu0 %v1179
      %1231 = vmatpush1.bf16.msra.mxu0 %v1178
      %1232 = vmatprep.subr.bf16.mxu0 %v1176
      %1233 = vmatpush1.bf16.msra.mxu0 %v1175
      %1234 = vmatprep.subr.bf16.mxu0 %v1173
      %1235 = vmatpush1.bf16.msra.mxu0 %v1172
      %1236 = vmatprep.subr.bf16.mxu0 0
      %1237 = vmatpush2.bf16.msra.mxu0 0
      %1238 = vmatprep.subr.bf16.mxu0 0
      %1239 = vmatpush2.bf16.msra.mxu0 0
      %1240 = vmatprep.subr.bf16.mxu0 0
      %1241 = vmatpush2.bf16.msra.mxu0 0
      %1242 = vmatprep.subr.bf16.mxu0 0
      %1243 = vmatpush2.bf16.msra.mxu0 0
      %1244 = vmatprep.subr.bf16.mxu0 0
      %1245 = vmatpush2.bf16.msra.mxu0 0
      %1246 = vmatprep.subr.bf16.mxu0 0
      %1247 = vmatpush2.bf16.msra.mxu0 0
      %1248 = vmatprep.subr.bf16.mxu0 0
      %1249 = vmatpush2.bf16.msra.mxu0 0
      %1250 = vmatprep.subr.bf16.mxu0 0
      %1251 = vmatpush2.bf16.msra.mxu0 0
      %1252 = vmatprep.mubr.bf16.mxu0 0
      %1253 = vmatmul.mubr.bf16.gmra.mxu0 %v1039
      %v1254 = vpop.f32.mrf.mxu0
      %v1255 = vadd.f32 %v1080, %v1254
      %v1256 = vpop.f32.mrf.mxu0
      %v1257 = vadd.f32 %v1084, %v1256
      %v1258 = vpop.f32.mrf.mxu0
      %v1259 = vadd.f32 %v1080, %v1258
      %v1260 = vpop.f32.mrf.mxu0
      %v1261 = vadd.f32 %v1084, %v1260
      %1262 = vmatprep.mubr.bf16.mxu0 0
      %1263 = vmatmul.mubr.bf16.gmra.mxu0 %v1040
      %v1264 = vpop.f32.mrf.mxu0
      %v1265 = vadd.f32 %v1080, %v1264
      %v1266 = vpop.f32.mrf.mxu0
      %v1267 = vadd.f32 %v1084, %v1266
      %v1268 = vpop.f32.mrf.mxu0
      %v1269 = vadd.f32 %v1080, %v1268
      %v1270 = vpop.f32.mrf.mxu0
      %v1271 = vadd.f32 %v1084, %v1270
      %1272 = vmatprep.mubr.bf16.mxu0 0
      %1273 = vmatmul.mubr.bf16.gmra.mxu0 %v1041
      %v1274 = vpop.f32.mrf.mxu0
      %v1275 = vadd.f32 %v1080, %v1274
      %v1276 = vpop.f32.mrf.mxu0
      %v1277 = vadd.f32 %v1084, %v1276
      %v1278 = vpop.f32.mrf.mxu0
      %v1279 = vadd.f32 %v1080, %v1278
      %v1280 = vpop.f32.mrf.mxu0
      %v1281 = vadd.f32 %v1084, %v1280
      %1282 = vmatprep.mubr.bf16.mxu0 0
      %1283 = vmatmul.mubr.bf16.gmra.mxu0 %v1042
      %v1284 = vpop.f32.mrf.mxu0
      %v1285 = vadd.f32 %v1080, %v1284
      %v1286 = vpop.f32.mrf.mxu0
      %v1287 = vadd.f32 %v1084, %v1286
      %v1288 = vpop.f32.mrf.mxu0
      %v1289 = vadd.f32 %v1080, %v1288
      %v1290 = vpop.f32.mrf.mxu0
      %v1291 = vadd.f32 %v1084, %v1290
      %1292 = vdwg.mxu0
      %1293 = vmatprep.subr.bf16.mxu0 0
      %1294 = vmatpush1.bf16.msra.mxu0 %v1195
      %1295 = vmatprep.subr.bf16.mxu0 0
      %1296 = vmatpush1.bf16.msra.mxu0 %v1192
      %1297 = vmatprep.subr.bf16.mxu0 0
      %1298 = vmatpush1.bf16.msra.mxu0 %v1189
      %1299 = vmatprep.subr.bf16.mxu0 0
      %1300 = vmatpush1.bf16.msra.mxu0 %v1186
      %1301 = vmatprep.subr.bf16.mxu0 0
      %1302 = vmatpush1.bf16.msra.mxu0 %v1183
      %1303 = vmatprep.subr.bf16.mxu0 0
      %1304 = vmatpush1.bf16.msra.mxu0 %v1180
      %1305 = vmatprep.subr.bf16.mxu0 0
      %1306 = vmatpush1.bf16.msra.mxu0 %v1177
      %1307 = vmatprep.subr.bf16.mxu0 0
      %1308 = vmatpush1.bf16.msra.mxu0 %v1174
      %1309 = vmatprep.subr.bf16.mxu0 0
      %1310 = vmatpush2.bf16.msra.mxu0 0
      %1311 = vmatprep.subr.bf16.mxu0 0
      %1312 = vmatpush2.bf16.msra.mxu0 0
      %1313 = vmatprep.subr.bf16.mxu0 0
      %1314 = vmatpush2.bf16.msra.mxu0 0
      %1315 = vmatprep.subr.bf16.mxu0 0
      %1316 = vmatpush2.bf16.msra.mxu0 0
      %1317 = vmatprep.subr.bf16.mxu0 0
      %1318 = vmatpush2.bf16.msra.mxu0 0
      %1319 = vmatprep.subr.bf16.mxu0 0
      %1320 = vmatpush2.bf16.msra.mxu0 0
      %1321 = vmatprep.subr.bf16.mxu0 0
      %1322 = vmatpush2.bf16.msra.mxu0 0
      %1323 = vmatprep.subr.bf16.mxu0 0
      %1324 = vmatpush2.bf16.msra.mxu0 0
      %1325 = vmatprep.mubr.bf16.mxu0 0
      %1326 = vmatmul.mubr.bf16.gmra.mxu0 %v1039
      %v1327 = vpop.f32.mrf.mxu0
      %v1328 = vadd.f32 %v1088, %v1327
      %v1329 = vpop.f32.mrf.mxu0
      %v1330 = vpop.f32.mrf.mxu0
      %v1331 = vadd.f32 %v1088, %v1330
      %v1332 = vpop.f32.mrf.mxu0
      %1333 = vmatprep.mubr.bf16.mxu0 0
      %1334 = vmatmul.mubr.bf16.gmra.mxu0 %v1040
      %v1335 = vpop.f32.mrf.mxu0
      %v1336 = vadd.f32 %v1088, %v1335
      %v1337 = vpop.f32.mrf.mxu0
      %v1338 = vpop.f32.mrf.mxu0
      %v1339 = vadd.f32 %v1088, %v1338
      %v1340 = vpop.f32.mrf.mxu0
      %1341 = vmatprep.mubr.bf16.mxu0 0
      %1342 = vmatmul.mubr.bf16.gmra.mxu0 %v1041
      %v1343 = vpop.f32.mrf.mxu0
      %v1344 = vadd.f32 %v1088, %v1343
      %v1345 = vpop.f32.mrf.mxu0
      %v1346 = vpop.f32.mrf.mxu0
      %v1347 = vadd.f32 %v1088, %v1346
      %v1348 = vpop.f32.mrf.mxu0
      %1349 = vmatprep.mubr.bf16.mxu0 0
      %1350 = vmatmul.mubr.bf16.gmra.mxu0 %v1042
      %v1351 = vpop.f32.mrf.mxu0
      %v1352 = vadd.f32 %v1088, %v1351
      %v1353 = vpop.f32.mrf.mxu0
      %v1354 = vpop.f32.mrf.mxu0
      %v1355 = vadd.f32 %v1088, %v1354
      %v1356 = vpop.f32.mrf.mxu0
      %1357 = vdwg.mxu0
      %v1358 = vld [vmem:[%s2] sm:$0xff]
      %v1359 = vld [vmem:[%s2 + $0x8] sm:$0xff]
      %v1360 = vpack.c.bf16 %v1259, %v1255
      %v1361 = vpack.c.bf16 %v1269, %v1265
      %v1362 = vpack.c.bf16 %v1279, %v1275
      %v1363 = vpack.c.bf16 %v1289, %v1285
      %v1364 = vpack.c.bf16 %v1261, %v1257
      %v1365 = vpack.c.bf16 %v1271, %v1267
      %v1366 = vpack.c.bf16 %v1281, %v1277
      %v1367 = vpack.c.bf16 %v1291, %v1287
      %v1368 = vpack.c.bf16 %v1331, %v1328
      %v1369 = vpack.c.bf16 %v1339, %v1336
      %v1370 = vpack.c.bf16 %v1347, %v1344
      %v1371 = vpack.c.bf16 %v1355, %v1352
      %vm1372 = vcmask 523264
      %v1374 = vsel %vm1372, %v1360, 0
      %v1377 = vsel %vm1372, %v1364, 0
      %1379 = vmatprep.subr.bf16.mxu0 0
      %1380 = vmatpush1.bf16.xpose.msra.mxu0 0
      %1381 = vmatprep.subr.bf16.mxu0 0
      %1382 = vmatpush1.bf16.xpose.msra.mxu0 0
      %1383 = vmatprep.subr.bf16.mxu0 0
      %1384 = vmatpush1.bf16.xpose.msra.mxu0 0
      %1385 = vmatprep.subr.bf16.mxu0 0
      %1386 = vmatpush1.bf16.xpose.msra.mxu0 0
      %1387 = vmatprep.subr.bf16.mxu0 0
      %1388 = vmatpush1.bf16.xpose.msra.mxu0 0
      %1389 = vmatprep.subr.bf16.mxu0 0
      %1390 = vmatpush1.bf16.xpose.msra.mxu0 0
      %1391 = vmatprep.subr.bf16.mxu0 0
      %1392 = vmatpush1.bf16.xpose.msra.mxu0 0
      %1393 = vmatprep.subr.bf16.mxu0 0
      %1394 = vmatpush1.bf16.xpose.msra.mxu0 %v1377
      %1395 = vmatprep.subr.bf16.mxu0 0
      %1396 = vmatpush2.bf16.xpose.msra.mxu0 0
      %1397 = vmatprep.subr.bf16.mxu0 0
      %1398 = vmatpush2.bf16.xpose.msra.mxu0 0
      %1399 = vmatprep.subr.bf16.mxu0 0
      %1400 = vmatpush2.bf16.xpose.msra.mxu0 0
      %1401 = vmatprep.subr.bf16.mxu0 0
      %1402 = vmatpush2.bf16.xpose.msra.mxu0 0
      %1403 = vmatprep.subr.bf16.mxu0 0
      %1404 = vmatpush2.bf16.xpose.msra.mxu0 0
      %1405 = vmatprep.subr.bf16.mxu0 0
      %1406 = vmatpush2.bf16.xpose.msra.mxu0 0
      %1407 = vmatprep.subr.bf16.mxu0 0
      %1408 = vmatpush2.bf16.xpose.msra.mxu0 0
      %1409 = vmatprep.subr.bf16.mxu0 0
      %1410 = vmatpush2.bf16.xpose.msra.mxu0 0
      %1411 = vmatprep.mubr.bf16.mxu0 0
      %1412 = vmatmul.mubr.bf16.gmra.mxu0 %v1374
      %v1413 = vpop.f32.mrf.mxu0
      %v1414 = vadd.f32 0.0, %v1413
      %v1415 = vpop.f32.mrf.mxu0
      %v1416 = vpop.f32.mrf.mxu0
      %v1417 = vadd.f32 0.0, %v1416
      %v1418 = vpop.f32.mrf.mxu0
      %1419 = vdwg.mxu0
      %v1421 = vsel %vm1372, %v1361, 0
      %v1424 = vsel %vm1372, %v1365, 0
      %1426 = vmatprep.subr.bf16.mxu0 0
      %1427 = vmatpush1.bf16.xpose.msra.mxu0 0
      %1428 = vmatprep.subr.bf16.mxu0 0
      %1429 = vmatpush1.bf16.xpose.msra.mxu0 0
      %1430 = vmatprep.subr.bf16.mxu0 0
      %1431 = vmatpush1.bf16.xpose.msra.mxu0 0
      %1432 = vmatprep.subr.bf16.mxu0 0
      %1433 = vmatpush1.bf16.xpose.msra.mxu0 0
      %1434 = vmatprep.subr.bf16.mxu0 0
      %1435 = vmatpush1.bf16.xpose.msra.mxu0 0
      %1436 = vmatprep.subr.bf16.mxu0 0
      %1437 = vmatpush1.bf16.xpose.msra.mxu0 0
      %1438 = vmatprep.subr.bf16.mxu0 0
      %1439 = vmatpush1.bf16.xpose.msra.mxu0 0
      %1440 = vmatprep.subr.bf16.mxu0 0
      %1441 = vmatpush1.bf16.xpose.msra.mxu0 %v1424
      %1442 = vmatprep.subr.bf16.mxu0 0
      %1443 = vmatpush2.bf16.xpose.msra.mxu0 0
      %1444 = vmatprep.subr.bf16.mxu0 0
      %1445 = vmatpush2.bf16.xpose.msra.mxu0 0
      %1446 = vmatprep.subr.bf16.mxu0 0
      %1447 = vmatpush2.bf16.xpose.msra.mxu0 0
      %1448 = vmatprep.subr.bf16.mxu0 0
      %1449 = vmatpush2.bf16.xpose.msra.mxu0 0
      %1450 = vmatprep.subr.bf16.mxu0 0
      %1451 = vmatpush2.bf16.xpose.msra.mxu0 0
      %1452 = vmatprep.subr.bf16.mxu0 0
      %1453 = vmatpush2.bf16.xpose.msra.mxu0 0
      %1454 = vmatprep.subr.bf16.mxu0 0
      %1455 = vmatpush2.bf16.xpose.msra.mxu0 0
      %1456 = vmatprep.subr.bf16.mxu0 0
      %1457 = vmatpush2.bf16.xpose.msra.mxu0 0
      %1458 = vmatprep.mubr.bf16.mxu0 0
      %1459 = vmatmul.mubr.bf16.gmra.mxu0 %v1421
      %v1460 = vpop.f32.mrf.mxu0
      %v1461 = vadd.f32 0.0, %v1460
      %v1462 = vpop.f32.mrf.mxu0
      %v1463 = vpop.f32.mrf.mxu0
      %v1464 = vadd.f32 0.0, %v1463
      %v1465 = vpop.f32.mrf.mxu0
      %1466 = vdwg.mxu0
      %v1468 = vsel %vm1372, %v1362, 0
      %v1471 = vsel %vm1372, %v1366, 0
      %1473 = vmatprep.subr.bf16.mxu0 0
      %1474 = vmatpush1.bf16.xpose.msra.mxu0 0
      %1475 = vmatprep.subr.bf16.mxu0 0
      %1476 = vmatpush1.bf16.xpose.msra.mxu0 0
      %1477 = vmatprep.subr.bf16.mxu0 0
      %1478 = vmatpush1.bf16.xpose.msra.mxu0 0
      %1479 = vmatprep.subr.bf16.mxu0 0
      %1480 = vmatpush1.bf16.xpose.msra.mxu0 0
      %1481 = vmatprep.subr.bf16.mxu0 0
      %1482 = vmatpush1.bf16.xpose.msra.mxu0 0
      %1483 = vmatprep.subr.bf16.mxu0 0
      %1484 = vmatpush1.bf16.xpose.msra.mxu0 0
      %1485 = vmatprep.subr.bf16.mxu0 0
      %1486 = vmatpush1.bf16.xpose.msra.mxu0 0
      %1487 = vmatprep.subr.bf16.mxu0 0
      %1488 = vmatpush1.bf16.xpose.msra.mxu0 %v1471
      %1489 = vmatprep.subr.bf16.mxu0 0
      %1490 = vmatpush2.bf16.xpose.msra.mxu0 0
      %1491 = vmatprep.subr.bf16.mxu0 0
      %1492 = vmatpush2.bf16.xpose.msra.mxu0 0
      %1493 = vmatprep.subr.bf16.mxu0 0
      %1494 = vmatpush2.bf16.xpose.msra.mxu0 0
      %1495 = vmatprep.subr.bf16.mxu0 0
      %1496 = vmatpush2.bf16.xpose.msra.mxu0 0
      %1497 = vmatprep.subr.bf16.mxu0 0
      %1498 = vmatpush2.bf16.xpose.msra.mxu0 0
      %1499 = vmatprep.subr.bf16.mxu0 0
      %1500 = vmatpush2.bf16.xpose.msra.mxu0 0
      %1501 = vmatprep.subr.bf16.mxu0 0
      %1502 = vmatpush2.bf16.xpose.msra.mxu0 0
      %1503 = vmatprep.subr.bf16.mxu0 0
      %1504 = vmatpush2.bf16.xpose.msra.mxu0 0
      %1505 = vmatprep.mubr.bf16.mxu0 0
      %1506 = vmatmul.mubr.bf16.gmra.mxu0 %v1468
      %v1507 = vpop.f32.mrf.mxu0
      %v1508 = vadd.f32 0.0, %v1507
      %v1509 = vpop.f32.mrf.mxu0
      %v1510 = vpop.f32.mrf.mxu0
      %v1511 = vadd.f32 0.0, %v1510
      %v1512 = vpop.f32.mrf.mxu0
      %1513 = vdwg.mxu0
      %v1515 = vsel %vm1372, %v1363, 0
      %v1518 = vsel %vm1372, %v1367, 0
      %1520 = vmatprep.subr.bf16.mxu0 0
      %1521 = vmatpush1.bf16.xpose.msra.mxu0 0
      %1522 = vmatprep.subr.bf16.mxu0 0
      %1523 = vmatpush1.bf16.xpose.msra.mxu0 0
      %1524 = vmatprep.subr.bf16.mxu0 0
      %1525 = vmatpush1.bf16.xpose.msra.mxu0 0
      %1526 = vmatprep.subr.bf16.mxu0 0
      %1527 = vmatpush1.bf16.xpose.msra.mxu0 0
      %1528 = vmatprep.subr.bf16.mxu0 0
      %1529 = vmatpush1.bf16.xpose.msra.mxu0 0
      %1530 = vmatprep.subr.bf16.mxu0 0
      %1531 = vmatpush1.bf16.xpose.msra.mxu0 0
      %1532 = vmatprep.subr.bf16.mxu0 0
      %1533 = vmatpush1.bf16.xpose.msra.mxu0 0
      %1534 = vmatprep.subr.bf16.mxu0 0
      %1535 = vmatpush1.bf16.xpose.msra.mxu0 %v1518
      %1536 = vmatprep.subr.bf16.mxu0 0
      %1537 = vmatpush2.bf16.xpose.msra.mxu0 0
      %1538 = vmatprep.subr.bf16.mxu0 0
      %1539 = vmatpush2.bf16.xpose.msra.mxu0 0
      %1540 = vmatprep.subr.bf16.mxu0 0
      %1541 = vmatpush2.bf16.xpose.msra.mxu0 0
      %1542 = vmatprep.subr.bf16.mxu0 0
      %1543 = vmatpush2.bf16.xpose.msra.mxu0 0
      %1544 = vmatprep.subr.bf16.mxu0 0
      %1545 = vmatpush2.bf16.xpose.msra.mxu0 0
      %1546 = vmatprep.subr.bf16.mxu0 0
      %1547 = vmatpush2.bf16.xpose.msra.mxu0 0
      %1548 = vmatprep.subr.bf16.mxu0 0
      %1549 = vmatpush2.bf16.xpose.msra.mxu0 0
      %1550 = vmatprep.subr.bf16.mxu0 0
      %1551 = vmatpush2.bf16.xpose.msra.mxu0 0
      %1552 = vmatprep.mubr.bf16.mxu0 0
      %1553 = vmatmul.mubr.bf16.gmra.mxu0 %v1515
      %v1554 = vpop.f32.mrf.mxu0
      %v1555 = vadd.f32 0.0, %v1554
      %v1556 = vpop.f32.mrf.mxu0
      %v1557 = vpop.f32.mrf.mxu0
      %v1558 = vadd.f32 0.0, %v1557
      %v1559 = vpop.f32.mrf.mxu0
      %1560 = vdwg.mxu0
      %v1561 = vmul.f32 %v1414, 0.125
      %v1562 = vmul.f32 %v1417, 0.125
      %v1563 = vmul.f32 %v1461, 0.125
      %v1564 = vmul.f32 %v1464, 0.125
      %v1565 = vmul.f32 %v1508, 0.125
      %v1566 = vmul.f32 %v1511, 0.125
      %v1567 = vmul.f32 %v1555, 0.125
      %v1568 = vmul.f32 %v1558, 0.125
      %v1569 = vadd.f32 %v1561, %v1358
      %v1570 = vadd.f32 %v1562, %v1359
      %v1571 = vadd.f32 %v1563, %v1358
      %v1572 = vadd.f32 %v1564, %v1359
      %v1573 = vadd.f32 %v1565, %v1358
      %v1574 = vadd.f32 %v1566, %v1359
      %v1575 = vadd.f32 %v1567, %v1358
      %v1576 = vadd.f32 %v1568, %v1359
      %vm1577 = vcmask 130048
      %v1578 = vsel %vm1577, %v1569, -inf
      %1579 = vmax.xlane.f32.xlu0 %v1578
      %v1580 = vpop.xlane.xlu0 %1579
      %v1581 = vsel %vm1577, %v1570, -inf
      %1582 = vmax.xlane.f32.xlu0 %v1581
      %v1583 = vpop.xlane.xlu0 %1582
      %v1584 = vsel %vm1577, %v1571, -inf
      %1585 = vmax.xlane.f32.xlu0 %v1584
      %v1586 = vpop.xlane.xlu0 %1585
      %v1587 = vsel %vm1577, %v1572, -inf
      %1588 = vmax.xlane.f32.xlu0 %v1587
      %v1589 = vpop.xlane.xlu0 %1588
      %v1590 = vsel %vm1577, %v1573, -inf
      %1591 = vmax.xlane.f32.xlu0 %v1590
      %v1592 = vpop.xlane.xlu0 %1591
      %v1593 = vsel %vm1577, %v1574, -inf
      %1594 = vmax.xlane.f32.xlu0 %v1593
      %v1595 = vpop.xlane.xlu0 %1594
      %v1596 = vsel %vm1577, %v1575, -inf
      %1597 = vmax.xlane.f32.xlu0 %v1596
      %v1598 = vpop.xlane.xlu0 %1597
      %v1599 = vsel %vm1577, %v1576, -inf
      %1600 = vmax.xlane.f32.xlu0 %v1599
      %v1601 = vpop.xlane.xlu0 %1600
      %v1602 = vsub.f32 %v1569, %v1580
      %v1603 = vsub.f32 %v1570, %v1583
      %v1604 = vsub.f32 %v1571, %v1586
      %v1605 = vsub.f32 %v1572, %v1589
      %v1606 = vsub.f32 %v1573, %v1592
      %v1607 = vsub.f32 %v1574, %v1595
      %v1608 = vsub.f32 %v1575, %v1598
      %v1609 = vsub.f32 %v1576, %v1601
      %v1610 = vmul.f32 %v1602, 1.442695
      %v1611 = vpow.pop %v1610
      %v1612 = vmul.f32 %v1603, 1.442695
      %v1613 = vpow.pop %v1612
      %v1614 = vmul.f32 %v1604, 1.442695
      %v1615 = vpow.pop %v1614
      %v1616 = vmul.f32 %v1605, 1.442695
      %v1617 = vpow.pop %v1616
      %v1618 = vmul.f32 %v1606, 1.442695
      %v1619 = vpow.pop %v1618
      %v1620 = vmul.f32 %v1607, 1.442695
      %v1621 = vpow.pop %v1620
      %v1622 = vmul.f32 %v1608, 1.442695
      %v1623 = vpow.pop %v1622
      %v1624 = vmul.f32 %v1609, 1.442695
      %v1625 = vpow.pop %v1624
      %v1626 = vsel %vm1577, %v1611, 0.0
      %1627 = vadd.xlane.f32.xlu0 %v1626
      %v1628 = vpop.xlane.xlu0 %1627
      %v1629 = vsel %vm1577, %v1613, 0.0
      %1630 = vadd.xlane.f32.xlu0 %v1629
      %v1631 = vpop.xlane.xlu0 %1630
      %v1632 = vsel %vm1577, %v1615, 0.0
      %1633 = vadd.xlane.f32.xlu0 %v1632
      %v1634 = vpop.xlane.xlu0 %1633
      %v1635 = vsel %vm1577, %v1617, 0.0
      %1636 = vadd.xlane.f32.xlu0 %v1635
      %v1637 = vpop.xlane.xlu0 %1636
      %v1638 = vsel %vm1577, %v1619, 0.0
      %1639 = vadd.xlane.f32.xlu0 %v1638
      %v1640 = vpop.xlane.xlu0 %1639
      %v1641 = vsel %vm1577, %v1621, 0.0
      %1642 = vadd.xlane.f32.xlu0 %v1641
      %v1643 = vpop.xlane.xlu0 %1642
      %v1644 = vsel %vm1577, %v1623, 0.0
      %1645 = vadd.xlane.f32.xlu0 %v1644
      %v1646 = vpop.xlane.xlu0 %1645
      %v1647 = vsel %vm1577, %v1625, 0.0
      %1648 = vadd.xlane.f32.xlu0 %v1647
      %v1649 = vpop.xlane.xlu0 %1648
      %v1650 = vrcp.pop %v1628
      %v1651 = vrcp.pop %v1631
      %v1652 = vrcp.pop %v1634
      %v1653 = vrcp.pop %v1637
      %v1654 = vrcp.pop %v1640
      %v1655 = vrcp.pop %v1643
      %v1656 = vrcp.pop %v1646
      %v1657 = vrcp.pop %v1649
      %v1658 = vmul.f32 %v1611, %v1650
      %v1659 = vmul.f32 %v1613, %v1651
      %v1660 = vmul.f32 %v1615, %v1652
      %v1661 = vmul.f32 %v1617, %v1653
      %v1662 = vmul.f32 %v1619, %v1654
      %v1663 = vmul.f32 %v1621, %v1655
      %v1664 = vmul.f32 %v1623, %v1656
      %v1665 = vmul.f32 %v1625, %v1657
      %v1666 = vpack.c.bf16 %v1659, %v1658
      %v1667 = vpack.c.bf16 %v1661, %v1660
      %v1668 = vpack.c.bf16 %v1663, %v1662
      %v1669 = vpack.c.bf16 %v1665, %v1664
      %v1671 = vsel %vm1577, %v1666, 0
      %1673 = vmatprep.subr.bf16.mxu0 0
      %1674 = vmatpush1.bf16.msra.mxu0 0
      %1675 = vmatprep.subr.bf16.mxu0 0
      %1676 = vmatpush1.bf16.msra.mxu0 0
      %1677 = vmatprep.subr.bf16.mxu0 0
      %1678 = vmatpush1.bf16.msra.mxu0 0
      %1679 = vmatprep.subr.bf16.mxu0 0
      %1680 = vmatpush1.bf16.msra.mxu0 0
      %1681 = vmatprep.subr.bf16.mxu0 0
      %1682 = vmatpush1.bf16.msra.mxu0 0
      %1683 = vmatprep.subr.bf16.mxu0 0
      %1684 = vmatpush1.bf16.msra.mxu0 0
      %1685 = vmatprep.subr.bf16.mxu0 0
      %1686 = vmatpush1.bf16.msra.mxu0 0
      %1687 = vmatprep.subr.bf16.mxu0 0
      %1688 = vmatpush1.bf16.msra.mxu0 %v1368
      %1689 = vmatprep.subr.bf16.mxu0 0
      %1690 = vmatpush2.bf16.msra.mxu0 0
      %1691 = vmatprep.subr.bf16.mxu0 0
      %1692 = vmatpush2.bf16.msra.mxu0 0
      %1693 = vmatprep.subr.bf16.mxu0 0
      %1694 = vmatpush2.bf16.msra.mxu0 0
      %1695 = vmatprep.subr.bf16.mxu0 0
      %1696 = vmatpush2.bf16.msra.mxu0 0
      %1697 = vmatprep.subr.bf16.mxu0 0
      %1698 = vmatpush2.bf16.msra.mxu0 0
      %1699 = vmatprep.subr.bf16.mxu0 0
      %1700 = vmatpush2.bf16.msra.mxu0 0
      %1701 = vmatprep.subr.bf16.mxu0 0
      %1702 = vmatpush2.bf16.msra.mxu0 0
      %1703 = vmatprep.subr.bf16.mxu0 0
      %1704 = vmatpush2.bf16.msra.mxu0 0
      %1705 = vmatprep.mubr.bf16.mxu0 0
      %1706 = vmatmul.mubr.bf16.gmra.mxu0 %v1671
      %v1707 = vpop.f32.mrf.mxu0
      %v1708 = vadd.f32 0.0, %v1707
      %v1709 = vpop.f32.mrf.mxu0
      %v1710 = vpop.f32.mrf.mxu0
      %v1711 = vadd.f32 0.0, %v1710
      %v1712 = vpop.f32.mrf.mxu0
      %1713 = vdwg.mxu0
      %v1715 = vsel %vm1577, %v1667, 0
      %1717 = vmatprep.subr.bf16.mxu0 0
      %1718 = vmatpush1.bf16.msra.mxu0 0
      %1719 = vmatprep.subr.bf16.mxu0 0
      %1720 = vmatpush1.bf16.msra.mxu0 0
      %1721 = vmatprep.subr.bf16.mxu0 0
      %1722 = vmatpush1.bf16.msra.mxu0 0
      %1723 = vmatprep.subr.bf16.mxu0 0
      %1724 = vmatpush1.bf16.msra.mxu0 0
      %1725 = vmatprep.subr.bf16.mxu0 0
      %1726 = vmatpush1.bf16.msra.mxu0 0
      %1727 = vmatprep.subr.bf16.mxu0 0
      %1728 = vmatpush1.bf16.msra.mxu0 0
      %1729 = vmatprep.subr.bf16.mxu0 0
      %1730 = vmatpush1.bf16.msra.mxu0 0
      %1731 = vmatprep.subr.bf16.mxu0 0
      %1732 = vmatpush1.bf16.msra.mxu0 %v1369
      %1733 = vmatprep.subr.bf16.mxu0 0
      %1734 = vmatpush2.bf16.msra.mxu0 0
      %1735 = vmatprep.subr.bf16.mxu0 0
      %1736 = vmatpush2.bf16.msra.mxu0 0
      %1737 = vmatprep.subr.bf16.mxu0 0
      %1738 = vmatpush2.bf16.msra.mxu0 0
      %1739 = vmatprep.subr.bf16.mxu0 0
      %1740 = vmatpush2.bf16.msra.mxu0 0
      %1741 = vmatprep.subr.bf16.mxu0 0
      %1742 = vmatpush2.bf16.msra.mxu0 0
      %1743 = vmatprep.subr.bf16.mxu0 0
      %1744 = vmatpush2.bf16.msra.mxu0 0
      %1745 = vmatprep.subr.bf16.mxu0 0
      %1746 = vmatpush2.bf16.msra.mxu0 0
      %1747 = vmatprep.subr.bf16.mxu0 0
      %1748 = vmatpush2.bf16.msra.mxu0 0
      %1749 = vmatprep.mubr.bf16.mxu0 0
      %1750 = vmatmul.mubr.bf16.gmra.mxu0 %v1715
      %v1751 = vpop.f32.mrf.mxu0
      %v1752 = vadd.f32 0.0, %v1751
      %v1753 = vpop.f32.mrf.mxu0
      %v1754 = vpop.f32.mrf.mxu0
      %v1755 = vadd.f32 0.0, %v1754
      %v1756 = vpop.f32.mrf.mxu0
      %1757 = vdwg.mxu0
      %v1759 = vsel %vm1577, %v1668, 0
      %1761 = vmatprep.subr.bf16.mxu0 0
      %1762 = vmatpush1.bf16.msra.mxu0 0
      %1763 = vmatprep.subr.bf16.mxu0 0
      %1764 = vmatpush1.bf16.msra.mxu0 0
      %1765 = vmatprep.subr.bf16.mxu0 0
      %1766 = vmatpush1.bf16.msra.mxu0 0
      %1767 = vmatprep.subr.bf16.mxu0 0
      %1768 = vmatpush1.bf16.msra.mxu0 0
      %1769 = vmatprep.subr.bf16.mxu0 0
      %1770 = vmatpush1.bf16.msra.mxu0 0
      %1771 = vmatprep.subr.bf16.mxu0 0
      %1772 = vmatpush1.bf16.msra.mxu0 0
      %1773 = vmatprep.subr.bf16.mxu0 0
      %1774 = vmatpush1.bf16.msra.mxu0 0
      %1775 = vmatprep.subr.bf16.mxu0 0
      %1776 = vmatpush1.bf16.msra.mxu0 %v1370
      %1777 = vmatprep.subr.bf16.mxu0 0
      %1778 = vmatpush2.bf16.msra.mxu0 0
      %1779 = vmatprep.subr.bf16.mxu0 0
      %1780 = vmatpush2.bf16.msra.mxu0 0
      %1781 = vmatprep.subr.bf16.mxu0 0
      %1782 = vmatpush2.bf16.msra.mxu0 0
      %1783 = vmatprep.subr.bf16.mxu0 0
      %1784 = vmatpush2.bf16.msra.mxu0 0
      %1785 = vmatprep.subr.bf16.mxu0 0
      %1786 = vmatpush2.bf16.msra.mxu0 0
      %1787 = vmatprep.subr.bf16.mxu0 0
      %1788 = vmatpush2.bf16.msra.mxu0 0
      %1789 = vmatprep.subr.bf16.mxu0 0
      %1790 = vmatpush2.bf16.msra.mxu0 0
      %1791 = vmatprep.subr.bf16.mxu0 0
      %1792 = vmatpush2.bf16.msra.mxu0 0
      %1793 = vmatprep.mubr.bf16.mxu0 0
      %1794 = vmatmul.mubr.bf16.gmra.mxu0 %v1759
      %v1795 = vpop.f32.mrf.mxu0
      %v1796 = vadd.f32 0.0, %v1795
      %v1797 = vpop.f32.mrf.mxu0
      %v1798 = vpop.f32.mrf.mxu0
      %v1799 = vadd.f32 0.0, %v1798
      %v1800 = vpop.f32.mrf.mxu0
      %1801 = vdwg.mxu0
      %v1803 = vsel %vm1577, %v1669, 0
      %1805 = vmatprep.subr.bf16.mxu0 0
      %1806 = vmatpush1.bf16.msra.mxu0 0
      %1807 = vmatprep.subr.bf16.mxu0 0
      %1808 = vmatpush1.bf16.msra.mxu0 0
      %1809 = vmatprep.subr.bf16.mxu0 0
      %1810 = vmatpush1.bf16.msra.mxu0 0
      %1811 = vmatprep.subr.bf16.mxu0 0
      %1812 = vmatpush1.bf16.msra.mxu0 0
      %1813 = vmatprep.subr.bf16.mxu0 0
      %1814 = vmatpush1.bf16.msra.mxu0 0
      %1815 = vmatprep.subr.bf16.mxu0 0
      %1816 = vmatpush1.bf16.msra.mxu0 0
      %1817 = vmatprep.subr.bf16.mxu0 0
      %1818 = vmatpush1.bf16.msra.mxu0 0
      %1819 = vmatprep.subr.bf16.mxu0 0
      %1820 = vmatpush1.bf16.msra.mxu0 %v1371
      %1821 = vmatprep.subr.bf16.mxu0 0
      %1822 = vmatpush2.bf16.msra.mxu0 0
      %1823 = vmatprep.subr.bf16.mxu0 0
      %1824 = vmatpush2.bf16.msra.mxu0 0
      %1825 = vmatprep.subr.bf16.mxu0 0
      %1826 = vmatpush2.bf16.msra.mxu0 0
      %1827 = vmatprep.subr.bf16.mxu0 0
      %1828 = vmatpush2.bf16.msra.mxu0 0
      %1829 = vmatprep.subr.bf16.mxu0 0
      %1830 = vmatpush2.bf16.msra.mxu0 0
      %1831 = vmatprep.subr.bf16.mxu0 0
      %1832 = vmatpush2.bf16.msra.mxu0 0
      %1833 = vmatprep.subr.bf16.mxu0 0
      %1834 = vmatpush2.bf16.msra.mxu0 0
      %1835 = vmatprep.subr.bf16.mxu0 0
      %1836 = vmatpush2.bf16.msra.mxu0 0
      %1837 = vmatprep.mubr.bf16.mxu0 0
      %1838 = vmatmul.mubr.bf16.gmra.mxu0 %v1803
      %v1839 = vpop.f32.mrf.mxu0
      %v1840 = vadd.f32 0.0, %v1839
      %v1841 = vpop.f32.mrf.mxu0
      %v1842 = vpop.f32.mrf.mxu0
      %v1843 = vadd.f32 0.0, %v1842
      %v1844 = vpop.f32.mrf.mxu0
      %1845 = vdwg.mxu0
      %v1846 = vpack.c.bf16 %v1711, %v1708
      %v1847 = vpack.c.bf16 %v1755, %v1752
      %v1848 = vpack.c.bf16 %v1799, %v1796
      %v1849 = vpack.c.bf16 %v1843, %v1840
      %v1854 = vunpack.c.l.b16 %v1846
      %v1855 = vunpack.c.h.b16 %v1846
      %v1856 = vunpack.c.l.b16 %v1847
      %v1857 = vunpack.c.h.b16 %v1847
      %v1858 = vunpack.c.l.b16 %v1848
      %v1859 = vunpack.c.h.b16 %v1848
      %v1860 = vunpack.c.l.b16 %v1849
      %v1861 = vunpack.c.h.b16 %v1849
      %v1862 = vpack.c.b16 %v1854, %v1854
      %v1863 = vpack.c.b16 %v1855, %v1855
      %v1864 = vpack.c.b16 %v1856, %v1856
      %v1865 = vpack.c.b16 %v1857, %v1857
      %v1866 = vpack.c.b16 %v1858, %v1858
      %v1867 = vpack.c.b16 %v1859, %v1859
      %v1868 = vpack.c.b16 %v1860, %v1860
      %v1869 = vpack.c.b16 %v1861, %v1861
      %vm1878 = vcmask 519168
      %1879 = vst.msk [vmem:[#allocation3] sm:$0xf] %vm1878, %v1862
      %1880 = vst.msk [vmem:[#allocation3 + $0x4] sm:$0xf] %vm1878, %v1863
      %1881 = vst.msk [vmem:[#allocation3 + $0x8] sm:$0xf] %vm1878, %v1864
      %1882 = vst.msk [vmem:[#allocation3 + $0xc] sm:$0xf] %vm1878, %v1865
      %1883 = vst.msk [vmem:[#allocation3 + $0x10] sm:$0xf] %vm1878, %v1866
      %1884 = vst.msk [vmem:[#allocation3 + $0x14] sm:$0xf] %vm1878, %v1867
      %1885 = vst.msk [vmem:[#allocation3 + $0x18] sm:$0xf] %vm1878, %v1868
      %1886 = vst.msk [vmem:[#allocation3 + $0x1c] sm:$0xf] %vm1878, %v1869
      %1888 = vrot.lane.b32.xlu0 %v1360, 64
      %v1889 = vpop.permute.xlu0 %1888
      %1891 = vrot.lane.b32.xlu0 %v1364, 64
      %v1892 = vpop.permute.xlu0 %1891
      %v1894 = vsel %vm1372, %v1889, 0
      %v1897 = vsel %vm1372, %v1892, 0
      %1899 = vmatprep.subr.bf16.mxu0 0
      %1900 = vmatpush1.bf16.xpose.msra.mxu0 0
      %1901 = vmatprep.subr.bf16.mxu0 0
      %1902 = vmatpush1.bf16.xpose.msra.mxu0 0
      %1903 = vmatprep.subr.bf16.mxu0 0
      %1904 = vmatpush1.bf16.xpose.msra.mxu0 0
      %1905 = vmatprep.subr.bf16.mxu0 0
      %1906 = vmatpush1.bf16.xpose.msra.mxu0 0
      %1907 = vmatprep.subr.bf16.mxu0 0
      %1908 = vmatpush1.bf16.xpose.msra.mxu0 0
      %1909 = vmatprep.subr.bf16.mxu0 0
      %1910 = vmatpush1.bf16.xpose.msra.mxu0 0
      %1911 = vmatprep.subr.bf16.mxu0 0
      %1912 = vmatpush1.bf16.xpose.msra.mxu0 0
      %1913 = vmatprep.subr.bf16.mxu0 0
      %1914 = vmatpush1.bf16.xpose.msra.mxu0 %v1897
      %1915 = vmatprep.subr.bf16.mxu0 0
      %1916 = vmatpush2.bf16.xpose.msra.mxu0 0
      %1917 = vmatprep.subr.bf16.mxu0 0
      %1918 = vmatpush2.bf16.xpose.msra.mxu0 0
      %1919 = vmatprep.subr.bf16.mxu0 0
      %1920 = vmatpush2.bf16.xpose.msra.mxu0 0
      %1921 = vmatprep.subr.bf16.mxu0 0
      %1922 = vmatpush2.bf16.xpose.msra.mxu0 0
      %1923 = vmatprep.subr.bf16.mxu0 0
      %1924 = vmatpush2.bf16.xpose.msra.mxu0 0
      %1925 = vmatprep.subr.bf16.mxu0 0
      %1926 = vmatpush2.bf16.xpose.msra.mxu0 0
      %1927 = vmatprep.subr.bf16.mxu0 0
      %1928 = vmatpush2.bf16.xpose.msra.mxu0 0
      %1929 = vmatprep.subr.bf16.mxu0 0
      %1930 = vmatpush2.bf16.xpose.msra.mxu0 0
      %1931 = vmatprep.mubr.bf16.mxu0 0
      %1932 = vmatmul.mubr.bf16.gmra.mxu0 %v1894
      %v1933 = vpop.f32.mrf.mxu0
      %v1934 = vadd.f32 0.0, %v1933
      %v1935 = vpop.f32.mrf.mxu0
      %v1936 = vpop.f32.mrf.mxu0
      %v1937 = vadd.f32 0.0, %v1936
      %v1938 = vpop.f32.mrf.mxu0
      %1939 = vdwg.mxu0
      %1941 = vrot.lane.b32.xlu0 %v1361, 64
      %v1942 = vpop.permute.xlu0 %1941
      %1944 = vrot.lane.b32.xlu0 %v1365, 64
      %v1945 = vpop.permute.xlu0 %1944
      %v1947 = vsel %vm1372, %v1942, 0
      %v1950 = vsel %vm1372, %v1945, 0
      %1952 = vmatprep.subr.bf16.mxu0 0
      %1953 = vmatpush1.bf16.xpose.msra.mxu0 0
      %1954 = vmatprep.subr.bf16.mxu0 0
      %1955 = vmatpush1.bf16.xpose.msra.mxu0 0
      %1956 = vmatprep.subr.bf16.mxu0 0
      %1957 = vmatpush1.bf16.xpose.msra.mxu0 0
      %1958 = vmatprep.subr.bf16.mxu0 0
      %1959 = vmatpush1.bf16.xpose.msra.mxu0 0
      %1960 = vmatprep.subr.bf16.mxu0 0
      %1961 = vmatpush1.bf16.xpose.msra.mxu0 0
      %1962 = vmatprep.subr.bf16.mxu0 0
      %1963 = vmatpush1.bf16.xpose.msra.mxu0 0
      %1964 = vmatprep.subr.bf16.mxu0 0
      %1965 = vmatpush1.bf16.xpose.msra.mxu0 0
      %1966 = vmatprep.subr.bf16.mxu0 0
      %1967 = vmatpush1.bf16.xpose.msra.mxu0 %v1950
      %1968 = vmatprep.subr.bf16.mxu0 0
      %1969 = vmatpush2.bf16.xpose.msra.mxu0 0
      %1970 = vmatprep.subr.bf16.mxu0 0
      %1971 = vmatpush2.bf16.xpose.msra.mxu0 0
      %1972 = vmatprep.subr.bf16.mxu0 0
      %1973 = vmatpush2.bf16.xpose.msra.mxu0 0
      %1974 = vmatprep.subr.bf16.mxu0 0
      %1975 = vmatpush2.bf16.xpose.msra.mxu0 0
      %1976 = vmatprep.subr.bf16.mxu0 0
      %1977 = vmatpush2.bf16.xpose.msra.mxu0 0
      %1978 = vmatprep.subr.bf16.mxu0 0
      %1979 = vmatpush2.bf16.xpose.msra.mxu0 0
      %1980 = vmatprep.subr.bf16.mxu0 0
      %1981 = vmatpush2.bf16.xpose.msra.mxu0 0
      %1982 = vmatprep.subr.bf16.mxu0 0
      %1983 = vmatpush2.bf16.xpose.msra.mxu0 0
      %1984 = vmatprep.mubr.bf16.mxu0 0
      %1985 = vmatmul.mubr.bf16.gmra.mxu0 %v1947
      %v1986 = vpop.f32.mrf.mxu0
      %v1987 = vadd.f32 0.0, %v1986
      %v1988 = vpop.f32.mrf.mxu0
      %v1989 = vpop.f32.mrf.mxu0
      %v1990 = vadd.f32 0.0, %v1989
      %v1991 = vpop.f32.mrf.mxu0
      %1992 = vdwg.mxu0
      %1994 = vrot.lane.b32.xlu0 %v1362, 64
      %v1995 = vpop.permute.xlu0 %1994
      %1997 = vrot.lane.b32.xlu0 %v1366, 64
      %v1998 = vpop.permute.xlu0 %1997
      %v2000 = vsel %vm1372, %v1995, 0
      %v2003 = vsel %vm1372, %v1998, 0
      %2005 = vmatprep.subr.bf16.mxu0 0
      %2006 = vmatpush1.bf16.xpose.msra.mxu0 0
      %2007 = vmatprep.subr.bf16.mxu0 0
      %2008 = vmatpush1.bf16.xpose.msra.mxu0 0
      %2009 = vmatprep.subr.bf16.mxu0 0
      %2010 = vmatpush1.bf16.xpose.msra.mxu0 0
      %2011 = vmatprep.subr.bf16.mxu0 0
      %2012 = vmatpush1.bf16.xpose.msra.mxu0 0
      %2013 = vmatprep.subr.bf16.mxu0 0
      %2014 = vmatpush1.bf16.xpose.msra.mxu0 0
      %2015 = vmatprep.subr.bf16.mxu0 0
      %2016 = vmatpush1.bf16.xpose.msra.mxu0 0
      %2017 = vmatprep.subr.bf16.mxu0 0
      %2018 = vmatpush1.bf16.xpose.msra.mxu0 0
      %2019 = vmatprep.subr.bf16.mxu0 0
      %2020 = vmatpush1.bf16.xpose.msra.mxu0 %v2003
      %2021 = vmatprep.subr.bf16.mxu0 0
      %2022 = vmatpush2.bf16.xpose.msra.mxu0 0
      %2023 = vmatprep.subr.bf16.mxu0 0
      %2024 = vmatpush2.bf16.xpose.msra.mxu0 0
      %2025 = vmatprep.subr.bf16.mxu0 0
      %2026 = vmatpush2.bf16.xpose.msra.mxu0 0
      %2027 = vmatprep.subr.bf16.mxu0 0
      %2028 = vmatpush2.bf16.xpose.msra.mxu0 0
      %2029 = vmatprep.subr.bf16.mxu0 0
      %2030 = vmatpush2.bf16.xpose.msra.mxu0 0
      %2031 = vmatprep.subr.bf16.mxu0 0
      %2032 = vmatpush2.bf16.xpose.msra.mxu0 0
      %2033 = vmatprep.subr.bf16.mxu0 0
      %2034 = vmatpush2.bf16.xpose.msra.mxu0 0
      %2035 = vmatprep.subr.bf16.mxu0 0
      %2036 = vmatpush2.bf16.xpose.msra.mxu0 0
      %2037 = vmatprep.mubr.bf16.mxu0 0
      %2038 = vmatmul.mubr.bf16.gmra.mxu0 %v2000
      %v2039 = vpop.f32.mrf.mxu0
      %v2040 = vadd.f32 0.0, %v2039
      %v2041 = vpop.f32.mrf.mxu0
      %v2042 = vpop.f32.mrf.mxu0
      %v2043 = vadd.f32 0.0, %v2042
      %v2044 = vpop.f32.mrf.mxu0
      %2045 = vdwg.mxu0
      %2047 = vrot.lane.b32.xlu0 %v1363, 64
      %v2048 = vpop.permute.xlu0 %2047
      %2050 = vrot.lane.b32.xlu0 %v1367, 64
      %v2051 = vpop.permute.xlu0 %2050
      %v2053 = vsel %vm1372, %v2048, 0
      %v2056 = vsel %vm1372, %v2051, 0
      %2058 = vmatprep.subr.bf16.mxu0 0
      %2059 = vmatpush1.bf16.xpose.msra.mxu0 0
      %2060 = vmatprep.subr.bf16.mxu0 0
      %2061 = vmatpush1.bf16.xpose.msra.mxu0 0
      %2062 = vmatprep.subr.bf16.mxu0 0
      %2063 = vmatpush1.bf16.xpose.msra.mxu0 0
      %2064 = vmatprep.subr.bf16.mxu0 0
      %2065 = vmatpush1.bf16.xpose.msra.mxu0 0
      %2066 = vmatprep.subr.bf16.mxu0 0
      %2067 = vmatpush1.bf16.xpose.msra.mxu0 0
      %2068 = vmatprep.subr.bf16.mxu0 0
      %2069 = vmatpush1.bf16.xpose.msra.mxu0 0
      %2070 = vmatprep.subr.bf16.mxu0 0
      %2071 = vmatpush1.bf16.xpose.msra.mxu0 0
      %2072 = vmatprep.subr.bf16.mxu0 0
      %2073 = vmatpush1.bf16.xpose.msra.mxu0 %v2056
      %2074 = vmatprep.subr.bf16.mxu0 0
      %2075 = vmatpush2.bf16.xpose.msra.mxu0 0
      %2076 = vmatprep.subr.bf16.mxu0 0
      %2077 = vmatpush2.bf16.xpose.msra.mxu0 0
      %2078 = vmatprep.subr.bf16.mxu0 0
      %2079 = vmatpush2.bf16.xpose.msra.mxu0 0
      %2080 = vmatprep.subr.bf16.mxu0 0
      %2081 = vmatpush2.bf16.xpose.msra.mxu0 0
      %2082 = vmatprep.subr.bf16.mxu0 0
      %2083 = vmatpush2.bf16.xpose.msra.mxu0 0
      %2084 = vmatprep.subr.bf16.mxu0 0
      %2085 = vmatpush2.bf16.xpose.msra.mxu0 0
      %2086 = vmatprep.subr.bf16.mxu0 0
      %2087 = vmatpush2.bf16.xpose.msra.mxu0 0
      %2088 = vmatprep.subr.bf16.mxu0 0
      %2089 = vmatpush2.bf16.xpose.msra.mxu0 0
      %2090 = vmatprep.mubr.bf16.mxu0 0
      %2091 = vmatmul.mubr.bf16.gmra.mxu0 %v2053
      %v2092 = vpop.f32.mrf.mxu0
      %v2093 = vadd.f32 0.0, %v2092
      %v2094 = vpop.f32.mrf.mxu0
      %v2095 = vpop.f32.mrf.mxu0
      %v2096 = vadd.f32 0.0, %v2095
      %v2097 = vpop.f32.mrf.mxu0
      %2098 = vdwg.mxu0
      %v2099 = vmul.f32 %v1934, 0.125
      %v2100 = vmul.f32 %v1937, 0.125
      %v2101 = vmul.f32 %v1987, 0.125
      %v2102 = vmul.f32 %v1990, 0.125
      %v2103 = vmul.f32 %v2040, 0.125
      %v2104 = vmul.f32 %v2043, 0.125
      %v2105 = vmul.f32 %v2093, 0.125
      %v2106 = vmul.f32 %v2096, 0.125
      %v2107 = vadd.f32 %v2099, %v1358
      %v2108 = vadd.f32 %v2100, %v1359
      %v2109 = vadd.f32 %v2101, %v1358
      %v2110 = vadd.f32 %v2102, %v1359
      %v2111 = vadd.f32 %v2103, %v1358
      %v2112 = vadd.f32 %v2104, %v1359
      %v2113 = vadd.f32 %v2105, %v1358
      %v2114 = vadd.f32 %v2106, %v1359
      %v2115 = vsel %vm1577, %v2107, -inf
      %2116 = vmax.xlane.f32.xlu0 %v2115
      %v2117 = vpop.xlane.xlu0 %2116
      %v2118 = vsel %vm1577, %v2108, -inf
      %2119 = vmax.xlane.f32.xlu0 %v2118
      %v2120 = vpop.xlane.xlu0 %2119
      %v2121 = vsel %vm1577, %v2109, -inf
      %2122 = vmax.xlane.f32.xlu0 %v2121
      %v2123 = vpop.xlane.xlu0 %2122
      %v2124 = vsel %vm1577, %v2110, -inf
      %2125 = vmax.xlane.f32.xlu0 %v2124
      %v2126 = vpop.xlane.xlu0 %2125
      %v2127 = vsel %vm1577, %v2111, -inf
      %2128 = vmax.xlane.f32.xlu0 %v2127
      %v2129 = vpop.xlane.xlu0 %2128
      %v2130 = vsel %vm1577, %v2112, -inf
      %2131 = vmax.xlane.f32.xlu0 %v2130
      %v2132 = vpop.xlane.xlu0 %2131
      %v2133 = vsel %vm1577, %v2113, -inf
      %2134 = vmax.xlane.f32.xlu0 %v2133
      %v2135 = vpop.xlane.xlu0 %2134
      %v2136 = vsel %vm1577, %v2114, -inf
      %2137 = vmax.xlane.f32.xlu0 %v2136
      %v2138 = vpop.xlane.xlu0 %2137
      %v2139 = vsub.f32 %v2107, %v2117
      %v2140 = vsub.f32 %v2108, %v2120
      %v2141 = vsub.f32 %v2109, %v2123
      %v2142 = vsub.f32 %v2110, %v2126
      %v2143 = vsub.f32 %v2111, %v2129
      %v2144 = vsub.f32 %v2112, %v2132
      %v2145 = vsub.f32 %v2113, %v2135
      %v2146 = vsub.f32 %v2114, %v2138
      %v2147 = vmul.f32 %v2139, 1.442695
      %v2148 = vpow.pop %v2147
      %v2149 = vmul.f32 %v2140, 1.442695
      %v2150 = vpow.pop %v2149
      %v2151 = vmul.f32 %v2141, 1.442695
      %v2152 = vpow.pop %v2151
      %v2153 = vmul.f32 %v2142, 1.442695
      %v2154 = vpow.pop %v2153
      %v2155 = vmul.f32 %v2143, 1.442695
      %v2156 = vpow.pop %v2155
      %v2157 = vmul.f32 %v2144, 1.442695
      %v2158 = vpow.pop %v2157
      %v2159 = vmul.f32 %v2145, 1.442695
      %v2160 = vpow.pop %v2159
      %v2161 = vmul.f32 %v2146, 1.442695
      %v2162 = vpow.pop %v2161
      %v2163 = vsel %vm1577, %v2148, 0.0
      %2164 = vadd.xlane.f32.xlu0 %v2163
      %v2165 = vpop.xlane.xlu0 %2164
      %v2166 = vsel %vm1577, %v2150, 0.0
      %2167 = vadd.xlane.f32.xlu0 %v2166
      %v2168 = vpop.xlane.xlu0 %2167
      %v2169 = vsel %vm1577, %v2152, 0.0
      %2170 = vadd.xlane.f32.xlu0 %v2169
      %v2171 = vpop.xlane.xlu0 %2170
      %v2172 = vsel %vm1577, %v2154, 0.0
      %2173 = vadd.xlane.f32.xlu0 %v2172
      %v2174 = vpop.xlane.xlu0 %2173
      %v2175 = vsel %vm1577, %v2156, 0.0
      %2176 = vadd.xlane.f32.xlu0 %v2175
      %v2177 = vpop.xlane.xlu0 %2176
      %v2178 = vsel %vm1577, %v2158, 0.0
      %2179 = vadd.xlane.f32.xlu0 %v2178
      %v2180 = vpop.xlane.xlu0 %2179
      %v2181 = vsel %vm1577, %v2160, 0.0
      %2182 = vadd.xlane.f32.xlu0 %v2181
      %v2183 = vpop.xlane.xlu0 %2182
      %v2184 = vsel %vm1577, %v2162, 0.0
      %2185 = vadd.xlane.f32.xlu0 %v2184
      %v2186 = vpop.xlane.xlu0 %2185
      %v2187 = vrcp.pop %v2165
      %v2188 = vrcp.pop %v2168
      %v2189 = vrcp.pop %v2171
      %v2190 = vrcp.pop %v2174
      %v2191 = vrcp.pop %v2177
      %v2192 = vrcp.pop %v2180
      %v2193 = vrcp.pop %v2183
      %v2194 = vrcp.pop %v2186
      %v2195 = vmul.f32 %v2148, %v2187
      %v2196 = vmul.f32 %v2150, %v2188
      %v2197 = vmul.f32 %v2152, %v2189
      %v2198 = vmul.f32 %v2154, %v2190
      %v2199 = vmul.f32 %v2156, %v2191
      %v2200 = vmul.f32 %v2158, %v2192
      %v2201 = vmul.f32 %v2160, %v2193
      %v2202 = vmul.f32 %v2162, %v2194
      %v2203 = vpack.c.bf16 %v2196, %v2195
      %v2204 = vpack.c.bf16 %v2198, %v2197
      %v2205 = vpack.c.bf16 %v2200, %v2199
      %v2206 = vpack.c.bf16 %v2202, %v2201
      %2208 = vrot.lane.b32.xlu0 %v1368, 64
      %v2209 = vpop.permute.xlu0 %2208
      %v2212 = vsel %vm1577, %v2203, 0
      %2214 = vmatprep.subr.bf16.mxu0 0
      %2215 = vmatpush1.bf16.msra.mxu0 0
      %2216 = vmatprep.subr.bf16.mxu0 0
      %2217 = vmatpush1.bf16.msra.mxu0 0
      %2218 = vmatprep.subr.bf16.mxu0 0
      %2219 = vmatpush1.bf16.msra.mxu0 0
      %2220 = vmatprep.subr.bf16.mxu0 0
      %2221 = vmatpush1.bf16.msra.mxu0 0
      %2222 = vmatprep.subr.bf16.mxu0 0
      %2223 = vmatpush1.bf16.msra.mxu0 0
      %2224 = vmatprep.subr.bf16.mxu0 0
      %2225 = vmatpush1.bf16.msra.mxu0 0
      %2226 = vmatprep.subr.bf16.mxu0 0
      %2227 = vmatpush1.bf16.msra.mxu0 0
      %2228 = vmatprep.subr.bf16.mxu0 0
      %2229 = vmatpush1.bf16.msra.mxu0 %v2209
      %2230 = vmatprep.subr.bf16.mxu0 0
      %2231 = vmatpush2.bf16.msra.mxu0 0
      %2232 = vmatprep.subr.bf16.mxu0 0
      %2233 = vmatpush2.bf16.msra.mxu0 0
      %2234 = vmatprep.subr.bf16.mxu0 0
      %2235 = vmatpush2.bf16.msra.mxu0 0
      %2236 = vmatprep.subr.bf16.mxu0 0
      %2237 = vmatpush2.bf16.msra.mxu0 0
      %2238 = vmatprep.subr.bf16.mxu0 0
      %2239 = vmatpush2.bf16.msra.mxu0 0
      %2240 = vmatprep.subr.bf16.mxu0 0
      %2241 = vmatpush2.bf16.msra.mxu0 0
      %2242 = vmatprep.subr.bf16.mxu0 0
      %2243 = vmatpush2.bf16.msra.mxu0 0
      %2244 = vmatprep.subr.bf16.mxu0 0
      %2245 = vmatpush2.bf16.msra.mxu0 0
      %2246 = vmatprep.mubr.bf16.mxu0 0
      %2247 = vmatmul.mubr.bf16.gmra.mxu0 %v2212
      %v2248 = vpop.f32.mrf.mxu0
      %v2249 = vadd.f32 0.0, %v2248
      %v2250 = vpop.f32.mrf.mxu0
      %v2251 = vpop.f32.mrf.mxu0
      %v2252 = vadd.f32 0.0, %v2251
      %v2253 = vpop.f32.mrf.mxu0
      %2254 = vdwg.mxu0
      %2256 = vrot.lane.b32.xlu0 %v1369, 64
      %v2257 = vpop.permute.xlu0 %2256
      %v2260 = vsel %vm1577, %v2204, 0
      %2262 = vmatprep.subr.bf16.mxu0 0
      %2263 = vmatpush1.bf16.msra.mxu0 0
      %2264 = vmatprep.subr.bf16.mxu0 0
      %2265 = vmatpush1.bf16.msra.mxu0 0
      %2266 = vmatprep.subr.bf16.mxu0 0
      %2267 = vmatpush1.bf16.msra.mxu0 0
      %2268 = vmatprep.subr.bf16.mxu0 0
      %2269 = vmatpush1.bf16.msra.mxu0 0
      %2270 = vmatprep.subr.bf16.mxu0 0
      %2271 = vmatpush1.bf16.msra.mxu0 0
      %2272 = vmatprep.subr.bf16.mxu0 0
      %2273 = vmatpush1.bf16.msra.mxu0 0
      %2274 = vmatprep.subr.bf16.mxu0 0
      %2275 = vmatpush1.bf16.msra.mxu0 0
      %2276 = vmatprep.subr.bf16.mxu0 0
      %2277 = vmatpush1.bf16.msra.mxu0 %v2257
      %2278 = vmatprep.subr.bf16.mxu0 0
      %2279 = vmatpush2.bf16.msra.mxu0 0
      %2280 = vmatprep.subr.bf16.mxu0 0
      %2281 = vmatpush2.bf16.msra.mxu0 0
      %2282 = vmatprep.subr.bf16.mxu0 0
      %2283 = vmatpush2.bf16.msra.mxu0 0
      %2284 = vmatprep.subr.bf16.mxu0 0
      %2285 = vmatpush2.bf16.msra.mxu0 0
      %2286 = vmatprep.subr.bf16.mxu0 0
      %2287 = vmatpush2.bf16.msra.mxu0 0
      %2288 = vmatprep.subr.bf16.mxu0 0
      %2289 = vmatpush2.bf16.msra.mxu0 0
      %2290 = vmatprep.subr.bf16.mxu0 0
      %2291 = vmatpush2.bf16.msra.mxu0 0
      %2292 = vmatprep.subr.bf16.mxu0 0
      %2293 = vmatpush2.bf16.msra.mxu0 0
      %2294 = vmatprep.mubr.bf16.mxu0 0
      %2295 = vmatmul.mubr.bf16.gmra.mxu0 %v2260
      %v2296 = vpop.f32.mrf.mxu0
      %v2297 = vadd.f32 0.0, %v2296
      %v2298 = vpop.f32.mrf.mxu0
      %v2299 = vpop.f32.mrf.mxu0
      %v2300 = vadd.f32 0.0, %v2299
      %v2301 = vpop.f32.mrf.mxu0
      %2302 = vdwg.mxu0
      %2304 = vrot.lane.b32.xlu0 %v1370, 64
      %v2305 = vpop.permute.xlu0 %2304
      %v2308 = vsel %vm1577, %v2205, 0
      %2310 = vmatprep.subr.bf16.mxu0 0
      %2311 = vmatpush1.bf16.msra.mxu0 0
      %2312 = vmatprep.subr.bf16.mxu0 0
      %2313 = vmatpush1.bf16.msra.mxu0 0
      %2314 = vmatprep.subr.bf16.mxu0 0
      %2315 = vmatpush1.bf16.msra.mxu0 0
      %2316 = vmatprep.subr.bf16.mxu0 0
      %2317 = vmatpush1.bf16.msra.mxu0 0
      %2318 = vmatprep.subr.bf16.mxu0 0
      %2319 = vmatpush1.bf16.msra.mxu0 0
      %2320 = vmatprep.subr.bf16.mxu0 0
      %2321 = vmatpush1.bf16.msra.mxu0 0
      %2322 = vmatprep.subr.bf16.mxu0 0
      %2323 = vmatpush1.bf16.msra.mxu0 0
      %2324 = vmatprep.subr.bf16.mxu0 0
      %2325 = vmatpush1.bf16.msra.mxu0 %v2305
      %2326 = vmatprep.subr.bf16.mxu0 0
      %2327 = vmatpush2.bf16.msra.mxu0 0
      %2328 = vmatprep.subr.bf16.mxu0 0
      %2329 = vmatpush2.bf16.msra.mxu0 0
      %2330 = vmatprep.subr.bf16.mxu0 0
      %2331 = vmatpush2.bf16.msra.mxu0 0
      %2332 = vmatprep.subr.bf16.mxu0 0
      %2333 = vmatpush2.bf16.msra.mxu0 0
      %2334 = vmatprep.subr.bf16.mxu0 0
      %2335 = vmatpush2.bf16.msra.mxu0 0
      %2336 = vmatprep.subr.bf16.mxu0 0
      %2337 = vmatpush2.bf16.msra.mxu0 0
      %2338 = vmatprep.subr.bf16.mxu0 0
      %2339 = vmatpush2.bf16.msra.mxu0 0
      %2340 = vmatprep.subr.bf16.mxu0 0
      %2341 = vmatpush2.bf16.msra.mxu0 0
      %2342 = vmatprep.mubr.bf16.mxu0 0
      %2343 = vmatmul.mubr.bf16.gmra.mxu0 %v2308
      %v2344 = vpop.f32.mrf.mxu0
      %v2345 = vadd.f32 0.0, %v2344
      %v2346 = vpop.f32.mrf.mxu0
      %v2347 = vpop.f32.mrf.mxu0
      %v2348 = vadd.f32 0.0, %v2347
      %v2349 = vpop.f32.mrf.mxu0
      %2350 = vdwg.mxu0
      %2352 = vrot.lane.b32.xlu0 %v1371, 64
      %v2353 = vpop.permute.xlu0 %2352
      %v2356 = vsel %vm1577, %v2206, 0
      %2358 = vmatprep.subr.bf16.mxu0 0
      %2359 = vmatpush1.bf16.msra.mxu0 0
      %2360 = vmatprep.subr.bf16.mxu0 0
      %2361 = vmatpush1.bf16.msra.mxu0 0
      %2362 = vmatprep.subr.bf16.mxu0 0
      %2363 = vmatpush1.bf16.msra.mxu0 0
      %2364 = vmatprep.subr.bf16.mxu0 0
      %2365 = vmatpush1.bf16.msra.mxu0 0
      %2366 = vmatprep.subr.bf16.mxu0 0
      %2367 = vmatpush1.bf16.msra.mxu0 0
      %2368 = vmatprep.subr.bf16.mxu0 0
      %2369 = vmatpush1.bf16.msra.mxu0 0
      %2370 = vmatprep.subr.bf16.mxu0 0
      %2371 = vmatpush1.bf16.msra.mxu0 0
      %2372 = vmatprep.subr.bf16.mxu0 0
      %2373 = vmatpush1.bf16.msra.mxu0 %v2353
      %2374 = vmatprep.subr.bf16.mxu0 0
      %2375 = vmatpush2.bf16.msra.mxu0 0
      %2376 = vmatprep.subr.bf16.mxu0 0
      %2377 = vmatpush2.bf16.msra.mxu0 0
      %2378 = vmatprep.subr.bf16.mxu0 0
      %2379 = vmatpush2.bf16.msra.mxu0 0
      %2380 = vmatprep.subr.bf16.mxu0 0
      %2381 = vmatpush2.bf16.msra.mxu0 0
      %2382 = vmatprep.subr.bf16.mxu0 0
      %2383 = vmatpush2.bf16.msra.mxu0 0
      %2384 = vmatprep.subr.bf16.mxu0 0
      %2385 = vmatpush2.bf16.msra.mxu0 0
      %2386 = vmatprep.subr.bf16.mxu0 0
      %2387 = vmatpush2.bf16.msra.mxu0 0
      %2388 = vmatprep.subr.bf16.mxu0 0
      %2389 = vmatpush2.bf16.msra.mxu0 0
      %2390 = vmatprep.mubr.bf16.mxu0 0
      %2391 = vmatmul.mubr.bf16.gmra.mxu0 %v2356
      %v2392 = vpop.f32.mrf.mxu0
      %v2393 = vadd.f32 0.0, %v2392
      %v2394 = vpop.f32.mrf.mxu0
      %v2395 = vpop.f32.mrf.mxu0
      %v2396 = vadd.f32 0.0, %v2395
      %v2397 = vpop.f32.mrf.mxu0
      %2398 = vdwg.mxu0
      %v2399 = vpack.c.bf16 %v2252, %v2249
      %v2400 = vpack.c.bf16 %v2300, %v2297
      %v2401 = vpack.c.bf16 %v2348, %v2345
      %v2402 = vpack.c.bf16 %v2396, %v2393
      %v2407 = vunpack.c.l.b16 %v2399
      %v2408 = vunpack.c.h.b16 %v2399
      %v2409 = vunpack.c.l.b16 %v2400
      %v2410 = vunpack.c.h.b16 %v2400
      %v2411 = vunpack.c.l.b16 %v2401
      %v2412 = vunpack.c.h.b16 %v2401
      %v2413 = vunpack.c.l.b16 %v2402
      %v2414 = vunpack.c.h.b16 %v2402
      %v2415 = vpack.c.b16 %v2407, %v2407
      %v2416 = vpack.c.b16 %v2408, %v2408
      %v2417 = vpack.c.b16 %v2409, %v2409
      %v2418 = vpack.c.b16 %v2410, %v2410
      %v2419 = vpack.c.b16 %v2411, %v2411
      %v2420 = vpack.c.b16 %v2412, %v2412
      %v2421 = vpack.c.b16 %v2413, %v2413
      %v2422 = vpack.c.b16 %v2414, %v2414
      %2423 = vrot.lane.b32.xlu0 %v2415, 64
      %v2424 = vpop.permute.xlu0 %2423
      %2425 = vrot.lane.b32.xlu0 %v2416, 64
      %v2426 = vpop.permute.xlu0 %2425
      %2427 = vrot.lane.b32.xlu0 %v2417, 64
      %v2428 = vpop.permute.xlu0 %2427
      %2429 = vrot.lane.b32.xlu0 %v2418, 64
      %v2430 = vpop.permute.xlu0 %2429
      %2431 = vrot.lane.b32.xlu0 %v2419, 64
      %v2432 = vpop.permute.xlu0 %2431
      %2433 = vrot.lane.b32.xlu0 %v2420, 64
      %v2434 = vpop.permute.xlu0 %2433
      %2435 = vrot.lane.b32.xlu0 %v2421, 64
      %v2436 = vpop.permute.xlu0 %2435
      %2437 = vrot.lane.b32.xlu0 %v2422, 64
      %v2438 = vpop.permute.xlu0 %2437
      %vm2447 = vcmask 1043968
      %2448 = vst.msk [vmem:[#allocation3] sm:$0xf] %vm2447, %v2424
      %2449 = vst.msk [vmem:[#allocation3 + $0x4] sm:$0xf] %vm2447, %v2426
      %2450 = vst.msk [vmem:[#allocation3 + $0x8] sm:$0xf] %vm2447, %v2428
      %2451 = vst.msk [vmem:[#allocation3 + $0xc] sm:$0xf] %vm2447, %v2430
      %2452 = vst.msk [vmem:[#allocation3 + $0x10] sm:$0xf] %vm2447, %v2432
      %2453 = vst.msk [vmem:[#allocation3 + $0x14] sm:$0xf] %vm2447, %v2434
      %2454 = vst.msk [vmem:[#allocation3 + $0x18] sm:$0xf] %vm2447, %v2436
      %2455 = vst.msk [vmem:[#allocation3 + $0x1c] sm:$0xf] %vm2447, %v2438
      %v2456 = vld [vmem:[#allocation3] sm:$0xf]
      %v2457 = vld [vmem:[#allocation3 + $0x4] sm:$0xf]
      %v2458 = vld [vmem:[#allocation3 + $0x8] sm:$0xf]
      %v2459 = vld [vmem:[#allocation3 + $0xc] sm:$0xf]
      %v2460 = vld [vmem:[#allocation3 + $0x10] sm:$0xf]
      %v2461 = vld [vmem:[#allocation3 + $0x14] sm:$0xf]
      %v2462 = vld [vmem:[#allocation3 + $0x18] sm:$0xf]
      %v2463 = vld [vmem:[#allocation3 + $0x1c] sm:$0xf]
      %v2464 = vld [vmem:[%s663] sm:$0xf]
      %v2465 = vld [vmem:[%s663 + $0x4] sm:$0xf]
      %v2466 = vld [vmem:[%s663 + $0x8] sm:$0xf]
      %v2467 = vld [vmem:[%s663 + $0xc] sm:$0xf]
      %v2468 = vld [vmem:[%s663 + $0x10] sm:$0xf]
      %v2469 = vld [vmem:[%s663 + $0x14] sm:$0xf]
      %v2470 = vld [vmem:[%s663 + $0x18] sm:$0xf]
      %v2471 = vld [vmem:[%s663 + $0x1c] sm:$0xf]
      %v2472 = vld [vmem:[%s663 + $0x20] sm:$0xf]
      %v2473 = vld [vmem:[%s663 + $0x24] sm:$0xf]
      %v2474 = vld [vmem:[%s663 + $0x28] sm:$0xf]
      %v2475 = vld [vmem:[%s663 + $0x2c] sm:$0xf]
      %v2476 = vld [vmem:[%s663 + $0x30] sm:$0xf]
      %v2477 = vld [vmem:[%s663 + $0x34] sm:$0xf]
      %v2478 = vld [vmem:[%s663 + $0x38] sm:$0xf]
      %v2479 = vld [vmem:[%s663 + $0x3c] sm:$0xf]
      %v2488 = vunpack.c.l.b16 %v2456
      %v2489 = vunpack.c.l.b16 %v2457
      %v2490 = vunpack.c.l.b16 %v2458
      %v2491 = vunpack.c.l.b16 %v2459
      %v2492 = vunpack.c.l.b16 %v2460
      %v2493 = vunpack.c.l.b16 %v2461
      %v2494 = vunpack.c.l.b16 %v2462
      %v2495 = vunpack.c.l.b16 %v2463
      %v2496 = vpack.c.b16 %v2489, %v2488
      %v2497 = vpack.c.b16 %v2491, %v2490
      %v2498 = vpack.c.b16 %v2493, %v2492
      %v2499 = vpack.c.b16 %v2495, %v2494
      %v2520 = vunpack.c.l.b16 %v2464
      %v2521 = vunpack.c.l.b16 %v2465
      %v2522 = vunpack.c.l.b16 %v2466
      %v2523 = vunpack.c.l.b16 %v2467
      %v2524 = vunpack.c.l.b16 %v2468
      %v2525 = vunpack.c.l.b16 %v2469
      %v2526 = vunpack.c.l.b16 %v2470
      %v2527 = vunpack.c.l.b16 %v2471
      %v2528 = vunpack.c.l.b16 %v2472
      %v2529 = vunpack.c.l.b16 %v2473
      %v2530 = vunpack.c.l.b16 %v2474
      %v2531 = vunpack.c.l.b16 %v2475
      %v2532 = vunpack.c.l.b16 %v2476
      %v2533 = vunpack.c.l.b16 %v2477
      %v2534 = vunpack.c.l.b16 %v2478
      %v2535 = vunpack.c.l.b16 %v2479
      %v2536 = vpack.c.b16 %v2521, %v2520
      %v2537 = vpack.c.b16 %v2523, %v2522
      %v2538 = vpack.c.b16 %v2525, %v2524
      %v2539 = vpack.c.b16 %v2527, %v2526
      %v2540 = vpack.c.b16 %v2529, %v2528
      %v2541 = vpack.c.b16 %v2531, %v2530
      %v2542 = vpack.c.b16 %v2533, %v2532
      %v2543 = vpack.c.b16 %v2535, %v2534
      %2552 = vmatprep.subr.bf16.mxu0 0
      %2553 = vmatpush1.bf16.msra.mxu0 %v2543
      %2554 = vmatprep.subr.bf16.mxu0 0
      %2555 = vmatpush1.bf16.msra.mxu0 %v2542
      %2556 = vmatprep.subr.bf16.mxu0 0
      %2557 = vmatpush1.bf16.msra.mxu0 %v2541
      %2558 = vmatprep.subr.bf16.mxu0 0
      %2559 = vmatpush1.bf16.msra.mxu0 %v2540
      %2560 = vmatprep.subr.bf16.mxu0 0
      %2561 = vmatpush1.bf16.msra.mxu0 %v2539
      %2562 = vmatprep.subr.bf16.mxu0 0
      %2563 = vmatpush1.bf16.msra.mxu0 %v2538
      %2564 = vmatprep.subr.bf16.mxu0 0
      %2565 = vmatpush1.bf16.msra.mxu0 %v2537
      %2566 = vmatprep.subr.bf16.mxu0 0
      %2567 = vmatpush1.bf16.msra.mxu0 %v2536
      %2568 = vmatprep.subr.bf16.mxu0 0
      %2569 = vmatpush2.bf16.msra.mxu0 0
      %2570 = vmatprep.subr.bf16.mxu0 0
      %2571 = vmatpush2.bf16.msra.mxu0 0
      %2572 = vmatprep.subr.bf16.mxu0 0
      %2573 = vmatpush2.bf16.msra.mxu0 0
      %2574 = vmatprep.subr.bf16.mxu0 0
      %2575 = vmatpush2.bf16.msra.mxu0 0
      %2576 = vmatprep.subr.bf16.mxu0 0
      %2577 = vmatpush2.bf16.msra.mxu0 0
      %2578 = vmatprep.subr.bf16.mxu0 0
      %2579 = vmatpush2.bf16.msra.mxu0 0
      %2580 = vmatprep.subr.bf16.mxu0 0
      %2581 = vmatpush2.bf16.msra.mxu0 0
      %2582 = vmatprep.subr.bf16.mxu0 0
      %2583 = vmatpush2.bf16.msra.mxu0 0
      %2584 = vmatprep.mubr.bf16.mxu0 0
      %2585 = vmatmul.mubr.bf16.gmra.mxu0 %v2496
      %v2586 = vpop.f32.mrf.mxu0
      %v2587 = vadd.f32 0.0, %v2586
      %v2588 = vpop.f32.mrf.mxu0
      %v2589 = vpop.f32.mrf.mxu0
      %v2590 = vadd.f32 0.0, %v2589
      %v2591 = vpop.f32.mrf.mxu0
      %2592 = vmatprep.mubr.bf16.mxu0 0
      %2593 = vmatmul.mubr.bf16.gmra.mxu0 %v2497
      %v2594 = vpop.f32.mrf.mxu0
      %v2595 = vadd.f32 0.0, %v2594
      %v2596 = vpop.f32.mrf.mxu0
      %v2597 = vpop.f32.mrf.mxu0
      %v2598 = vadd.f32 0.0, %v2597
      %v2599 = vpop.f32.mrf.mxu0
      %2600 = vmatprep.mubr.bf16.mxu0 0
      %2601 = vmatmul.mubr.bf16.gmra.mxu0 %v2498
      %v2602 = vpop.f32.mrf.mxu0
      %v2603 = vadd.f32 0.0, %v2602
      %v2604 = vpop.f32.mrf.mxu0
      %v2605 = vpop.f32.mrf.mxu0
      %v2606 = vadd.f32 0.0, %v2605
      %v2607 = vpop.f32.mrf.mxu0
      %2608 = vmatprep.mubr.bf16.mxu0 0
      %2609 = vmatmul.mubr.bf16.gmra.mxu0 %v2499
      %v2610 = vpop.f32.mrf.mxu0
      %v2611 = vadd.f32 0.0, %v2610
      %v2612 = vpop.f32.mrf.mxu0
      %v2613 = vpop.f32.mrf.mxu0
      %v2614 = vadd.f32 0.0, %v2613
      %v2615 = vpop.f32.mrf.mxu0
      %2616 = vdwg.mxu0
      %v2617 = vadd.f32 %v942, %v2587
      %v2618 = vadd.f32 %v943, %v2590
      %v2619 = vadd.f32 %v944, %v2595
      %v2620 = vadd.f32 %v945, %v2598
      %v2621 = vadd.f32 %v946, %v2603
      %v2622 = vadd.f32 %v947, %v2606
      %v2623 = vadd.f32 %v948, %v2611
      %v2624 = vadd.f32 %v949, %v2614
      %v2625 = vld [vmem:[%s666] sm:$0x1]
      %v2627 = vlaneseq
      %v2628 = vshrl.u32 %v2627, 7
      %v2629 = vsub.s32 0, %v2628
      %v2630 = vrot.slane %v2625, %v2629
      %v2632 = vadd.f32 %v2617, %v2630
      %v2633 = vadd.f32 %v2618, %v2630
      %v2634 = vadd.f32 %v2619, %v2630
      %v2635 = vadd.f32 %v2620, %v2630
      %v2636 = vadd.f32 %v2621, %v2630
      %v2637 = vadd.f32 %v2622, %v2630
      %v2638 = vadd.f32 %v2623, %v2630
      %v2639 = vadd.f32 %v2624, %v2630
      %2640 = vadd.xlane.f32.xlu0 %v2632
      %v2641 = vpop.xlane.xlu0 %2640
      %2642 = vadd.xlane.f32.xlu0 %v2633
      %v2643 = vpop.xlane.xlu0 %2642
      %2644 = vadd.xlane.f32.xlu0 %v2634
      %v2645 = vpop.xlane.xlu0 %2644
      %2646 = vadd.xlane.f32.xlu0 %v2635
      %v2647 = vpop.xlane.xlu0 %2646
      %2648 = vadd.xlane.f32.xlu0 %v2636
      %v2649 = vpop.xlane.xlu0 %2648
      %2650 = vadd.xlane.f32.xlu0 %v2637
      %v2651 = vpop.xlane.xlu0 %2650
      %2652 = vadd.xlane.f32.xlu0 %v2638
      %v2653 = vpop.xlane.xlu0 %2652
      %2654 = vadd.xlane.f32.xlu0 %v2639
      %v2655 = vpop.xlane.xlu0 %2654
      %v2656 = vmul.f32 %v2641, %v966
      %v2657 = vmul.f32 %v2643, %v966
      %v2658 = vmul.f32 %v2645, %v966
      %v2659 = vmul.f32 %v2647, %v966
      %v2660 = vmul.f32 %v2649, %v966
      %v2661 = vmul.f32 %v2651, %v966
      %v2662 = vmul.f32 %v2653, %v966
      %v2663 = vmul.f32 %v2655, %v966
      %v2664 = vsub.f32 %v2632, %v2656
      %v2665 = vsub.f32 %v2633, %v2657
      %v2666 = vsub.f32 %v2634, %v2658
      %v2667 = vsub.f32 %v2635, %v2659
      %v2668 = vsub.f32 %v2636, %v2660
      %v2669 = vsub.f32 %v2637, %v2661
      %v2670 = vsub.f32 %v2638, %v2662
      %v2671 = vsub.f32 %v2639, %v2663
      %v2672 = vmul.f32 %v2664, %v2664
      %v2673 = vmul.f32 %v2665, %v2665
      %v2674 = vmul.f32 %v2666, %v2666
      %v2675 = vmul.f32 %v2667, %v2667
      %v2676 = vmul.f32 %v2668, %v2668
      %v2677 = vmul.f32 %v2669, %v2669
      %v2678 = vmul.f32 %v2670, %v2670
      %v2679 = vmul.f32 %v2671, %v2671
      %2680 = vadd.xlane.f32.xlu0 %v2672
      %v2681 = vpop.xlane.xlu0 %2680
      %2682 = vadd.xlane.f32.xlu0 %v2673
      %v2683 = vpop.xlane.xlu0 %2682
      %2684 = vadd.xlane.f32.xlu0 %v2674
      %v2685 = vpop.xlane.xlu0 %2684
      %2686 = vadd.xlane.f32.xlu0 %v2675
      %v2687 = vpop.xlane.xlu0 %2686
      %2688 = vadd.xlane.f32.xlu0 %v2676
      %v2689 = vpop.xlane.xlu0 %2688
      %2690 = vadd.xlane.f32.xlu0 %v2677
      %v2691 = vpop.xlane.xlu0 %2690
      %2692 = vadd.xlane.f32.xlu0 %v2678
      %v2693 = vpop.xlane.xlu0 %2692
      %2694 = vadd.xlane.f32.xlu0 %v2679
      %v2695 = vpop.xlane.xlu0 %2694
      %v2696 = vmul.f32 %v2681, %v966
      %v2697 = vmul.f32 %v2683, %v966
      %v2698 = vmul.f32 %v2685, %v966
      %v2699 = vmul.f32 %v2687, %v966
      %v2700 = vmul.f32 %v2689, %v966
      %v2701 = vmul.f32 %v2691, %v966
      %v2702 = vmul.f32 %v2693, %v966
      %v2703 = vmul.f32 %v2695, %v966
      %v2704 = vadd.f32 %v2696, 1e-05
      %v2705 = vadd.f32 %v2697, 1e-05
      %v2706 = vadd.f32 %v2698, 1e-05
      %v2707 = vadd.f32 %v2699, 1e-05
      %v2708 = vadd.f32 %v2700, 1e-05
      %v2709 = vadd.f32 %v2701, 1e-05
      %v2710 = vadd.f32 %v2702, 1e-05
      %v2711 = vadd.f32 %v2703, 1e-05
      %v2712 = vrsqrt.pop %v2704
      %v2713 = vrsqrt.pop %v2705
      %v2714 = vrsqrt.pop %v2706
      %v2715 = vrsqrt.pop %v2707
      %v2716 = vrsqrt.pop %v2708
      %v2717 = vrsqrt.pop %v2709
      %v2718 = vrsqrt.pop %v2710
      %v2719 = vrsqrt.pop %v2711
      %v2720 = vmul.f32 %v2664, %v2712
      %v2721 = vmul.f32 %v2665, %v2713
      %v2722 = vmul.f32 %v2666, %v2714
      %v2723 = vmul.f32 %v2667, %v2715
      %v2724 = vmul.f32 %v2668, %v2716
      %v2725 = vmul.f32 %v2669, %v2717
      %v2726 = vmul.f32 %v2670, %v2718
      %v2727 = vmul.f32 %v2671, %v2719
      %v2728 = vpack.c.bf16 %v2721, %v2720
      %v2729 = vpack.c.bf16 %v2723, %v2722
      %v2730 = vpack.c.bf16 %v2725, %v2724
      %v2731 = vpack.c.bf16 %v2727, %v2726
      %v2732 = vld [vmem:[%s671] sm:$0xff]
      %v2733 = vld [vmem:[%s671 + $0x8] sm:$0xff]
      %v2734 = vld [vmem:[%s671 + $0x10] sm:$0xff]
      %v2735 = vld [vmem:[%s671 + $0x18] sm:$0xff]
      %v2736 = vld [vmem:[%s671 + $0x20] sm:$0xff]
      %v2737 = vld [vmem:[%s671 + $0x28] sm:$0xff]
      %v2738 = vld [vmem:[%s671 + $0x30] sm:$0xff]
      %v2739 = vld [vmem:[%s671 + $0x38] sm:$0xff]
      %v2740 = vld [vmem:[%s671 + $0x40] sm:$0xff]
      %v2741 = vld [vmem:[%s671 + $0x48] sm:$0xff]
      %v2742 = vld [vmem:[%s671 + $0x50] sm:$0xff]
      %v2743 = vld [vmem:[%s671 + $0x58] sm:$0xff]
      %v2744 = vld [vmem:[%s671 + $0x60] sm:$0xff]
      %v2745 = vld [vmem:[%s671 + $0x68] sm:$0xff]
      %v2746 = vld [vmem:[%s671 + $0x70] sm:$0xff]
      %v2747 = vld [vmem:[%s671 + $0x78] sm:$0xff]
      %v2748 = vld [vmem:[%s671 + $0x80] sm:$0xff]
      %v2749 = vld [vmem:[%s671 + $0x88] sm:$0xff]
      %v2750 = vld [vmem:[%s671 + $0x90] sm:$0xff]
      %v2751 = vld [vmem:[%s671 + $0x98] sm:$0xff]
      %v2752 = vld [vmem:[%s671 + $0xa0] sm:$0xff]
      %v2753 = vld [vmem:[%s671 + $0xa8] sm:$0xff]
      %v2754 = vld [vmem:[%s671 + $0xb0] sm:$0xff]
      %v2755 = vld [vmem:[%s671 + $0xb8] sm:$0xff]
      %v2756 = vld [vmem:[%s671 + $0xc0] sm:$0xff]
      %v2757 = vld [vmem:[%s671 + $0xc8] sm:$0xff]
      %v2758 = vld [vmem:[%s671 + $0xd0] sm:$0xff]
      %v2759 = vld [vmem:[%s671 + $0xd8] sm:$0xff]
      %v2760 = vld [vmem:[%s671 + $0xe0] sm:$0xff]
      %v2761 = vld [vmem:[%s671 + $0xe8] sm:$0xff]
      %v2762 = vld [vmem:[%s671 + $0xf0] sm:$0xff]
      %v2763 = vld [vmem:[%s671 + $0xf8] sm:$0xff]
      %v2764 = vld [vmem:[%s675] sm:$0xf]
      %v2766 = vlaneseq
      %v2767 = vshrl.u32 %v2766, 7
      %v2768 = vsub.s32 0, %v2767
      %v2769 = vrot.slane %v2764, %v2768
      %v2770 = vlaneseq
      %v2771 = vshrl.u32 %v2770, 7
      %v2772 = vsub.s32 1, %v2771
      %v2773 = vrot.slane %v2764, %v2772
      %v2774 = vlaneseq
      %v2775 = vshrl.u32 %v2774, 7
      %v2776 = vsub.s32 2, %v2775
      %v2777 = vrot.slane %v2764, %v2776
      %v2778 = vlaneseq
      %v2779 = vshrl.u32 %v2778, 7
      %v2780 = vsub.s32 3, %v2779
      %v2781 = vrot.slane %v2764, %v2780
      %v2818 = vunpack.c.l.b16 %v2732
      %v2819 = vunpack.c.h.b16 %v2732
      %v2820 = vunpack.c.l.b16 %v2733
      %v2821 = vunpack.c.h.b16 %v2733
      %v2822 = vunpack.c.l.b16 %v2734
      %v2823 = vunpack.c.h.b16 %v2734
      %v2824 = vunpack.c.l.b16 %v2735
      %v2825 = vunpack.c.h.b16 %v2735
      %v2826 = vunpack.c.l.b16 %v2736
      %v2827 = vunpack.c.h.b16 %v2736
      %v2828 = vunpack.c.l.b16 %v2737
      %v2829 = vunpack.c.h.b16 %v2737
      %v2830 = vunpack.c.l.b16 %v2738
      %v2831 = vunpack.c.h.b16 %v2738
      %v2832 = vunpack.c.l.b16 %v2739
      %v2833 = vunpack.c.h.b16 %v2739
      %v2834 = vunpack.c.l.b16 %v2740
      %v2835 = vunpack.c.h.b16 %v2740
      %v2836 = vunpack.c.l.b16 %v2741
      %v2837 = vunpack.c.h.b16 %v2741
      %v2838 = vunpack.c.l.b16 %v2742
      %v2839 = vunpack.c.h.b16 %v2742
      %v2840 = vunpack.c.l.b16 %v2743
      %v2841 = vunpack.c.h.b16 %v2743
      %v2842 = vunpack.c.l.b16 %v2744
      %v2843 = vunpack.c.h.b16 %v2744
      %v2844 = vunpack.c.l.b16 %v2745
      %v2845 = vunpack.c.h.b16 %v2745
      %v2846 = vunpack.c.l.b16 %v2746
      %v2847 = vunpack.c.h.b16 %v2746
      %v2848 = vunpack.c.l.b16 %v2747
      %v2849 = vunpack.c.h.b16 %v2747
      %v2850 = vunpack.c.l.b16 %v2748
      %v2851 = vunpack.c.h.b16 %v2748
      %v2852 = vunpack.c.l.b16 %v2749
      %v2853 = vunpack.c.h.b16 %v2749
      %v2854 = vunpack.c.l.b16 %v2750
      %v2855 = vunpack.c.h.b16 %v2750
      %v2856 = vunpack.c.l.b16 %v2751
      %v2857 = vunpack.c.h.b16 %v2751
      %v2858 = vunpack.c.l.b16 %v2752
      %v2859 = vunpack.c.h.b16 %v2752
      %v2860 = vunpack.c.l.b16 %v2753
      %v2861 = vunpack.c.h.b16 %v2753
      %v2862 = vunpack.c.l.b16 %v2754
      %v2863 = vunpack.c.h.b16 %v2754
      %v2864 = vunpack.c.l.b16 %v2755
      %v2865 = vunpack.c.h.b16 %v2755
      %v2866 = vunpack.c.l.b16 %v2756
      %v2867 = vunpack.c.h.b16 %v2756
      %v2868 = vunpack.c.l.b16 %v2757
      %v2869 = vunpack.c.h.b16 %v2757
      %v2870 = vunpack.c.l.b16 %v2758
      %v2871 = vunpack.c.h.b16 %v2758
      %v2872 = vunpack.c.l.b16 %v2759
      %v2873 = vunpack.c.h.b16 %v2759
      %v2874 = vunpack.c.l.b16 %v2760
      %v2875 = vunpack.c.h.b16 %v2760
      %v2876 = vunpack.c.l.b16 %v2761
      %v2877 = vunpack.c.h.b16 %v2761
      %v2878 = vunpack.c.l.b16 %v2762
      %v2879 = vunpack.c.h.b16 %v2762
      %v2880 = vunpack.c.l.b16 %v2763
      %v2881 = vunpack.c.h.b16 %v2763
      %v2882 = vpack.c.b16 %v2822, %v2818
      %v2883 = vpack.c.b16 %v2823, %v2819
      %v2884 = vpack.c.b16 %v2824, %v2820
      %v2885 = vpack.c.b16 %v2825, %v2821
      %v2886 = vpack.c.b16 %v2830, %v2826
      %v2887 = vpack.c.b16 %v2831, %v2827
      %v2888 = vpack.c.b16 %v2832, %v2828
      %v2889 = vpack.c.b16 %v2833, %v2829
      %v2890 = vpack.c.b16 %v2838, %v2834
      %v2891 = vpack.c.b16 %v2839, %v2835
      %v2892 = vpack.c.b16 %v2840, %v2836
      %v2893 = vpack.c.b16 %v2841, %v2837
      %v2894 = vpack.c.b16 %v2846, %v2842
      %v2895 = vpack.c.b16 %v2847, %v2843
      %v2896 = vpack.c.b16 %v2848, %v2844
      %v2897 = vpack.c.b16 %v2849, %v2845
      %v2898 = vpack.c.b16 %v2854, %v2850
      %v2899 = vpack.c.b16 %v2855, %v2851
      %v2900 = vpack.c.b16 %v2856, %v2852
      %v2901 = vpack.c.b16 %v2857, %v2853
      %v2902 = vpack.c.b16 %v2862, %v2858
      %v2903 = vpack.c.b16 %v2863, %v2859
      %v2904 = vpack.c.b16 %v2864, %v2860
      %v2905 = vpack.c.b16 %v2865, %v2861
      %v2906 = vpack.c.b16 %v2870, %v2866
      %v2907 = vpack.c.b16 %v2871, %v2867
      %v2908 = vpack.c.b16 %v2872, %v2868
      %v2909 = vpack.c.b16 %v2873, %v2869
      %v2910 = vpack.c.b16 %v2878, %v2874
      %v2911 = vpack.c.b16 %v2879, %v2875
      %v2912 = vpack.c.b16 %v2880, %v2876
      %v2913 = vpack.c.b16 %v2881, %v2877
      %2946 = vmatprep.subr.bf16.mxu0 %v2911
      %2947 = vmatpush1.bf16.msra.mxu0 %v2910
      %2948 = vmatprep.subr.bf16.mxu0 %v2907
      %2949 = vmatpush1.bf16.msra.mxu0 %v2906
      %2950 = vmatprep.subr.bf16.mxu0 %v2903
      %2951 = vmatpush1.bf16.msra.mxu0 %v2902
      %2952 = vmatprep.subr.bf16.mxu0 %v2899
      %2953 = vmatpush1.bf16.msra.mxu0 %v2898
      %2954 = vmatprep.subr.bf16.mxu0 %v2895
      %2955 = vmatpush1.bf16.msra.mxu0 %v2894
      %2956 = vmatprep.subr.bf16.mxu0 %v2891
      %2957 = vmatpush1.bf16.msra.mxu0 %v2890
      %2958 = vmatprep.subr.bf16.mxu0 %v2887
      %2959 = vmatpush1.bf16.msra.mxu0 %v2886
      %2960 = vmatprep.subr.bf16.mxu0 %v2883
      %2961 = vmatpush1.bf16.msra.mxu0 %v2882
      %2962 = vmatprep.subr.bf16.mxu0 0
      %2963 = vmatpush2.bf16.msra.mxu0 0
      %2964 = vmatprep.subr.bf16.mxu0 0
      %2965 = vmatpush2.bf16.msra.mxu0 0
      %2966 = vmatprep.subr.bf16.mxu0 0
      %2967 = vmatpush2.bf16.msra.mxu0 0
      %2968 = vmatprep.subr.bf16.mxu0 0
      %2969 = vmatpush2.bf16.msra.mxu0 0
      %2970 = vmatprep.subr.bf16.mxu0 0
      %2971 = vmatpush2.bf16.msra.mxu0 0
      %2972 = vmatprep.subr.bf16.mxu0 0
      %2973 = vmatpush2.bf16.msra.mxu0 0
      %2974 = vmatprep.subr.bf16.mxu0 0
      %2975 = vmatpush2.bf16.msra.mxu0 0
      %2976 = vmatprep.subr.bf16.mxu0 0
      %2977 = vmatpush2.bf16.msra.mxu0 0
      %2978 = vmatprep.mubr.bf16.mxu0 0
      %2979 = vmatmul.mubr.bf16.gmra.mxu0 %v2728
      %v2980 = vpop.f32.mrf.mxu0
      %v2981 = vadd.f32 %v2769, %v2980
      %v2982 = vpop.f32.mrf.mxu0
      %v2983 = vadd.f32 %v2773, %v2982
      %v2984 = vpop.f32.mrf.mxu0
      %v2985 = vadd.f32 %v2769, %v2984
      %v2986 = vpop.f32.mrf.mxu0
      %v2987 = vadd.f32 %v2773, %v2986
      %2988 = vmatprep.mubr.bf16.mxu0 0
      %2989 = vmatmul.mubr.bf16.gmra.mxu0 %v2729
      %v2990 = vpop.f32.mrf.mxu0
      %v2991 = vadd.f32 %v2769, %v2990
      %v2992 = vpop.f32.mrf.mxu0
      %v2993 = vadd.f32 %v2773, %v2992
      %v2994 = vpop.f32.mrf.mxu0
      %v2995 = vadd.f32 %v2769, %v2994
      %v2996 = vpop.f32.mrf.mxu0
      %v2997 = vadd.f32 %v2773, %v2996
      %2998 = vmatprep.mubr.bf16.mxu0 0
      %2999 = vmatmul.mubr.bf16.gmra.mxu0 %v2730
      %v3000 = vpop.f32.mrf.mxu0
      %v3001 = vadd.f32 %v2769, %v3000
      %v3002 = vpop.f32.mrf.mxu0
      %v3003 = vadd.f32 %v2773, %v3002
      %v3004 = vpop.f32.mrf.mxu0
      %v3005 = vadd.f32 %v2769, %v3004
      %v3006 = vpop.f32.mrf.mxu0
      %v3007 = vadd.f32 %v2773, %v3006
      %3008 = vmatprep.mubr.bf16.mxu0 0
      %3009 = vmatmul.mubr.bf16.gmra.mxu0 %v2731
      %v3010 = vpop.f32.mrf.mxu0
      %v3011 = vadd.f32 %v2769, %v3010
      %v3012 = vpop.f32.mrf.mxu0
      %v3013 = vadd.f32 %v2773, %v3012
      %v3014 = vpop.f32.mrf.mxu0
      %v3015 = vadd.f32 %v2769, %v3014
      %v3016 = vpop.f32.mrf.mxu0
      %v3017 = vadd.f32 %v2773, %v3016
      %3018 = vdwg.mxu0
      %3019 = vmatprep.subr.bf16.mxu0 %v2913
      %3020 = vmatpush1.bf16.msra.mxu0 %v2912
      %3021 = vmatprep.subr.bf16.mxu0 %v2909
      %3022 = vmatpush1.bf16.msra.mxu0 %v2908
      %3023 = vmatprep.subr.bf16.mxu0 %v2905
      %3024 = vmatpush1.bf16.msra.mxu0 %v2904
      %3025 = vmatprep.subr.bf16.mxu0 %v2901
      %3026 = vmatpush1.bf16.msra.mxu0 %v2900
      %3027 = vmatprep.subr.bf16.mxu0 %v2897
      %3028 = vmatpush1.bf16.msra.mxu0 %v2896
      %3029 = vmatprep.subr.bf16.mxu0 %v2893
      %3030 = vmatpush1.bf16.msra.mxu0 %v2892
      %3031 = vmatprep.subr.bf16.mxu0 %v2889
      %3032 = vmatpush1.bf16.msra.mxu0 %v2888
      %3033 = vmatprep.subr.bf16.mxu0 %v2885
      %3034 = vmatpush1.bf16.msra.mxu0 %v2884
      %3035 = vmatprep.subr.bf16.mxu0 0
      %3036 = vmatpush2.bf16.msra.mxu0 0
      %3037 = vmatprep.subr.bf16.mxu0 0
      %3038 = vmatpush2.bf16.msra.mxu0 0
      %3039 = vmatprep.subr.bf16.mxu0 0
      %3040 = vmatpush2.bf16.msra.mxu0 0
      %3041 = vmatprep.subr.bf16.mxu0 0
      %3042 = vmatpush2.bf16.msra.mxu0 0
      %3043 = vmatprep.subr.bf16.mxu0 0
      %3044 = vmatpush2.bf16.msra.mxu0 0
      %3045 = vmatprep.subr.bf16.mxu0 0
      %3046 = vmatpush2.bf16.msra.mxu0 0
      %3047 = vmatprep.subr.bf16.mxu0 0
      %3048 = vmatpush2.bf16.msra.mxu0 0
      %3049 = vmatprep.subr.bf16.mxu0 0
      %3050 = vmatpush2.bf16.msra.mxu0 0
      %3051 = vmatprep.mubr.bf16.mxu0 0
      %3052 = vmatmul.mubr.bf16.gmra.mxu0 %v2728
      %v3053 = vpop.f32.mrf.mxu0
      %v3054 = vadd.f32 %v2777, %v3053
      %v3055 = vpop.f32.mrf.mxu0
      %v3056 = vadd.f32 %v2781, %v3055
      %v3057 = vpop.f32.mrf.mxu0
      %v3058 = vadd.f32 %v2777, %v3057
      %v3059 = vpop.f32.mrf.mxu0
      %v3060 = vadd.f32 %v2781, %v3059
      %3061 = vmatprep.mubr.bf16.mxu0 0
      %3062 = vmatmul.mubr.bf16.gmra.mxu0 %v2729
      %v3063 = vpop.f32.mrf.mxu0
      %v3064 = vadd.f32 %v2777, %v3063
      %v3065 = vpop.f32.mrf.mxu0
      %v3066 = vadd.f32 %v2781, %v3065
      %v3067 = vpop.f32.mrf.mxu0
      %v3068 = vadd.f32 %v2777, %v3067
      %v3069 = vpop.f32.mrf.mxu0
      %v3070 = vadd.f32 %v2781, %v3069
      %3071 = vmatprep.mubr.bf16.mxu0 0
      %3072 = vmatmul.mubr.bf16.gmra.mxu0 %v2730
      %v3073 = vpop.f32.mrf.mxu0
      %v3074 = vadd.f32 %v2777, %v3073
      %v3075 = vpop.f32.mrf.mxu0
      %v3076 = vadd.f32 %v2781, %v3075
      %v3077 = vpop.f32.mrf.mxu0
      %v3078 = vadd.f32 %v2777, %v3077
      %v3079 = vpop.f32.mrf.mxu0
      %v3080 = vadd.f32 %v2781, %v3079
      %3081 = vmatprep.mubr.bf16.mxu0 0
      %3082 = vmatmul.mubr.bf16.gmra.mxu0 %v2731
      %v3083 = vpop.f32.mrf.mxu0
      %v3084 = vadd.f32 %v2777, %v3083
      %v3085 = vpop.f32.mrf.mxu0
      %v3086 = vadd.f32 %v2781, %v3085
      %v3087 = vpop.f32.mrf.mxu0
      %v3088 = vadd.f32 %v2777, %v3087
      %v3089 = vpop.f32.mrf.mxu0
      %v3090 = vadd.f32 %v2781, %v3089
      %3091 = vdwg.mxu0
      %v3092 = vmul.f32 %v2981, %v2981
      %v3093 = vmul.f32 %v2983, %v2983
      %v3094 = vmul.f32 %v3054, %v3054
      %v3095 = vmul.f32 %v3056, %v3056
      %v3096 = vmul.f32 %v2985, %v2985
      %v3097 = vmul.f32 %v2987, %v2987
      %v3098 = vmul.f32 %v3058, %v3058
      %v3099 = vmul.f32 %v3060, %v3060
      %v3100 = vmul.f32 %v2991, %v2991
      %v3101 = vmul.f32 %v2993, %v2993
      %v3102 = vmul.f32 %v3064, %v3064
      %v3103 = vmul.f32 %v3066, %v3066
      %v3104 = vmul.f32 %v2995, %v2995
      %v3105 = vmul.f32 %v2997, %v2997
      %v3106 = vmul.f32 %v3068, %v3068
      %v3107 = vmul.f32 %v3070, %v3070
      %v3108 = vmul.f32 %v3001, %v3001
      %v3109 = vmul.f32 %v3003, %v3003
      %v3110 = vmul.f32 %v3074, %v3074
      %v3111 = vmul.f32 %v3076, %v3076
      %v3112 = vmul.f32 %v3005, %v3005
      %v3113 = vmul.f32 %v3007, %v3007
      %v3114 = vmul.f32 %v3078, %v3078
      %v3115 = vmul.f32 %v3080, %v3080
      %v3116 = vmul.f32 %v3011, %v3011
      %v3117 = vmul.f32 %v3013, %v3013
      %v3118 = vmul.f32 %v3084, %v3084
      %v3119 = vmul.f32 %v3086, %v3086
      %v3120 = vmul.f32 %v3015, %v3015
      %v3121 = vmul.f32 %v3017, %v3017
      %v3122 = vmul.f32 %v3088, %v3088
      %v3123 = vmul.f32 %v3090, %v3090
      %v3124 = vmul.f32 %v2981, %v3092
      %v3125 = vmul.f32 %v2983, %v3093
      %v3126 = vmul.f32 %v3054, %v3094
      %v3127 = vmul.f32 %v3056, %v3095
      %v3128 = vmul.f32 %v2985, %v3096
      %v3129 = vmul.f32 %v2987, %v3097
      %v3130 = vmul.f32 %v3058, %v3098
      %v3131 = vmul.f32 %v3060, %v3099
      %v3132 = vmul.f32 %v2991, %v3100
      %v3133 = vmul.f32 %v2993, %v3101
      %v3134 = vmul.f32 %v3064, %v3102
      %v3135 = vmul.f32 %v3066, %v3103
      %v3136 = vmul.f32 %v2995, %v3104
      %v3137 = vmul.f32 %v2997, %v3105
      %v3138 = vmul.f32 %v3068, %v3106
      %v3139 = vmul.f32 %v3070, %v3107
      %v3140 = vmul.f32 %v3001, %v3108
      %v3141 = vmul.f32 %v3003, %v3109
      %v3142 = vmul.f32 %v3074, %v3110
      %v3143 = vmul.f32 %v3076, %v3111
      %v3144 = vmul.f32 %v3005, %v3112
      %v3145 = vmul.f32 %v3007, %v3113
      %v3146 = vmul.f32 %v3078, %v3114
      %v3147 = vmul.f32 %v3080, %v3115
      %v3148 = vmul.f32 %v3011, %v3116
      %v3149 = vmul.f32 %v3013, %v3117
      %v3150 = vmul.f32 %v3084, %v3118
      %v3151 = vmul.f32 %v3086, %v3119
      %v3152 = vmul.f32 %v3015, %v3120
      %v3153 = vmul.f32 %v3017, %v3121
      %v3154 = vmul.f32 %v3088, %v3122
      %v3155 = vmul.f32 %v3090, %v3123
      %v3156 = vmul.f32 %v3124, 0.044715
      %v3157 = vmul.f32 %v3125, 0.044715
      %v3158 = vmul.f32 %v3126, 0.044715
      %v3159 = vmul.f32 %v3127, 0.044715
      %v3160 = vmul.f32 %v3128, 0.044715
      %v3161 = vmul.f32 %v3129, 0.044715
      %v3162 = vmul.f32 %v3130, 0.044715
      %v3163 = vmul.f32 %v3131, 0.044715
      %v3164 = vmul.f32 %v3132, 0.044715
      %v3165 = vmul.f32 %v3133, 0.044715
      %v3166 = vmul.f32 %v3134, 0.044715
      %v3167 = vmul.f32 %v3135, 0.044715
      %v3168 = vmul.f32 %v3136, 0.044715
      %v3169 = vmul.f32 %v3137, 0.044715
      %v3170 = vmul.f32 %v3138, 0.044715
      %v3171 = vmul.f32 %v3139, 0.044715
      %v3172 = vmul.f32 %v3140, 0.044715
      %v3173 = vmul.f32 %v3141, 0.044715
      %v3174 = vmul.f32 %v3142, 0.044715
      %v3175 = vmul.f32 %v3143, 0.044715
      %v3176 = vmul.f32 %v3144, 0.044715
      %v3177 = vmul.f32 %v3145, 0.044715
      %v3178 = vmul.f32 %v3146, 0.044715
      %v3179 = vmul.f32 %v3147, 0.044715
      %v3180 = vmul.f32 %v3148, 0.044715
      %v3181 = vmul.f32 %v3149, 0.044715
      %v3182 = vmul.f32 %v3150, 0.044715
      %v3183 = vmul.f32 %v3151, 0.044715
      %v3184 = vmul.f32 %v3152, 0.044715
      %v3185 = vmul.f32 %v3153, 0.044715
      %v3186 = vmul.f32 %v3154, 0.044715
      %v3187 = vmul.f32 %v3155, 0.044715
      %v3188 = vadd.f32 %v2981, %v3156
      %v3189 = vadd.f32 %v2983, %v3157
      %v3190 = vadd.f32 %v3054, %v3158
      %v3191 = vadd.f32 %v3056, %v3159
      %v3192 = vadd.f32 %v2985, %v3160
      %v3193 = vadd.f32 %v2987, %v3161
      %v3194 = vadd.f32 %v3058, %v3162
      %v3195 = vadd.f32 %v3060, %v3163
      %v3196 = vadd.f32 %v2991, %v3164
      %v3197 = vadd.f32 %v2993, %v3165
      %v3198 = vadd.f32 %v3064, %v3166
      %v3199 = vadd.f32 %v3066, %v3167
      %v3200 = vadd.f32 %v2995, %v3168
      %v3201 = vadd.f32 %v2997, %v3169
      %v3202 = vadd.f32 %v3068, %v3170
      %v3203 = vadd.f32 %v3070, %v3171
      %v3204 = vadd.f32 %v3001, %v3172
      %v3205 = vadd.f32 %v3003, %v3173
      %v3206 = vadd.f32 %v3074, %v3174
      %v3207 = vadd.f32 %v3076, %v3175
      %v3208 = vadd.f32 %v3005, %v3176
      %v3209 = vadd.f32 %v3007, %v3177
      %v3210 = vadd.f32 %v3078, %v3178
      %v3211 = vadd.f32 %v3080, %v3179
      %v3212 = vadd.f32 %v3011, %v3180
      %v3213 = vadd.f32 %v3013, %v3181
      %v3214 = vadd.f32 %v3084, %v3182
      %v3215 = vadd.f32 %v3086, %v3183
      %v3216 = vadd.f32 %v3015, %v3184
      %v3217 = vadd.f32 %v3017, %v3185
      %v3218 = vadd.f32 %v3088, %v3186
      %v3219 = vadd.f32 %v3090, %v3187
      %v3220 = vmul.f32 %v3188, 0.7978846
      %v3221 = vmul.f32 %v3189, 0.7978846
      %v3222 = vmul.f32 %v3190, 0.7978846
      %v3223 = vmul.f32 %v3191, 0.7978846
      %v3224 = vmul.f32 %v3192, 0.7978846
      %v3225 = vmul.f32 %v3193, 0.7978846
      %v3226 = vmul.f32 %v3194, 0.7978846
      %v3227 = vmul.f32 %v3195, 0.7978846
      %v3228 = vmul.f32 %v3196, 0.7978846
      %v3229 = vmul.f32 %v3197, 0.7978846
      %v3230 = vmul.f32 %v3198, 0.7978846
      %v3231 = vmul.f32 %v3199, 0.7978846
      %v3232 = vmul.f32 %v3200, 0.7978846
      %v3233 = vmul.f32 %v3201, 0.7978846
      %v3234 = vmul.f32 %v3202, 0.7978846
      %v3235 = vmul.f32 %v3203, 0.7978846
      %v3236 = vmul.f32 %v3204, 0.7978846
      %v3237 = vmul.f32 %v3205, 0.7978846
      %v3238 = vmul.f32 %v3206, 0.7978846
      %v3239 = vmul.f32 %v3207, 0.7978846
      %v3240 = vmul.f32 %v3208, 0.7978846
      %v3241 = vmul.f32 %v3209, 0.7978846
      %v3242 = vmul.f32 %v3210, 0.7978846
      %v3243 = vmul.f32 %v3211, 0.7978846
      %v3244 = vmul.f32 %v3212, 0.7978846
      %v3245 = vmul.f32 %v3213, 0.7978846
      %v3246 = vmul.f32 %v3214, 0.7978846
      %v3247 = vmul.f32 %v3215, 0.7978846
      %v3248 = vmul.f32 %v3216, 0.7978846
      %v3249 = vmul.f32 %v3217, 0.7978846
      %v3250 = vmul.f32 %v3218, 0.7978846
      %v3251 = vmul.f32 %v3219, 0.7978846
      %v3252 = vtanh.pop %v3220
      %v3253 = vtanh.pop %v3221
      %v3254 = vtanh.pop %v3222
      %v3255 = vtanh.pop %v3223
      %v3256 = vtanh.pop %v3224
      %v3257 = vtanh.pop %v3225
      %v3258 = vtanh.pop %v3226
      %v3259 = vtanh.pop %v3227
      %v3260 = vtanh.pop %v3228
      %v3261 = vtanh.pop %v3229
      %v3262 = vtanh.pop %v3230
      %v3263 = vtanh.pop %v3231
      %v3264 = vtanh.pop %v3232
      %v3265 = vtanh.pop %v3233
      %v3266 = vtanh.pop %v3234
      %v3267 = vtanh.pop %v3235
      %v3268 = vtanh.pop %v3236
      %v3269 = vtanh.pop %v3237
      %v3270 = vtanh.pop %v3238
      %v3271 = vtanh.pop %v3239
      %v3272 = vtanh.pop %v3240
      %v3273 = vtanh.pop %v3241
      %v3274 = vtanh.pop %v3242
      %v3275 = vtanh.pop %v3243
      %v3276 = vtanh.pop %v3244
      %v3277 = vtanh.pop %v3245
      %v3278 = vtanh.pop %v3246
      %v3279 = vtanh.pop %v3247
      %v3280 = vtanh.pop %v3248
      %v3281 = vtanh.pop %v3249
      %v3282 = vtanh.pop %v3250
      %v3283 = vtanh.pop %v3251
      %v3284 = vadd.f32 %v3252, 1.0
      %v3285 = vadd.f32 %v3253, 1.0
      %v3286 = vadd.f32 %v3254, 1.0
      %v3287 = vadd.f32 %v3255, 1.0
      %v3288 = vadd.f32 %v3256, 1.0
      %v3289 = vadd.f32 %v3257, 1.0
      %v3290 = vadd.f32 %v3258, 1.0
      %v3291 = vadd.f32 %v3259, 1.0
      %v3292 = vadd.f32 %v3260, 1.0
      %v3293 = vadd.f32 %v3261, 1.0
      %v3294 = vadd.f32 %v3262, 1.0
      %v3295 = vadd.f32 %v3263, 1.0
      %v3296 = vadd.f32 %v3264, 1.0
      %v3297 = vadd.f32 %v3265, 1.0
      %v3298 = vadd.f32 %v3266, 1.0
      %v3299 = vadd.f32 %v3267, 1.0
      %v3300 = vadd.f32 %v3268, 1.0
      %v3301 = vadd.f32 %v3269, 1.0
      %v3302 = vadd.f32 %v3270, 1.0
      %v3303 = vadd.f32 %v3271, 1.0
      %v3304 = vadd.f32 %v3272, 1.0
      %v3305 = vadd.f32 %v3273, 1.0
      %v3306 = vadd.f32 %v3274, 1.0
      %v3307 = vadd.f32 %v3275, 1.0
      %v3308 = vadd.f32 %v3276, 1.0
      %v3309 = vadd.f32 %v3277, 1.0
      %v3310 = vadd.f32 %v3278, 1.0
      %v3311 = vadd.f32 %v3279, 1.0
      %v3312 = vadd.f32 %v3280, 1.0
      %v3313 = vadd.f32 %v3281, 1.0
      %v3314 = vadd.f32 %v3282, 1.0
      %v3315 = vadd.f32 %v3283, 1.0
      %v3316 = vmul.f32 %v3284, 0.5
      %v3317 = vmul.f32 %v3285, 0.5
      %v3318 = vmul.f32 %v3286, 0.5
      %v3319 = vmul.f32 %v3287, 0.5
      %v3320 = vmul.f32 %v3288, 0.5
      %v3321 = vmul.f32 %v3289, 0.5
      %v3322 = vmul.f32 %v3290, 0.5
      %v3323 = vmul.f32 %v3291, 0.5
      %v3324 = vmul.f32 %v3292, 0.5
      %v3325 = vmul.f32 %v3293, 0.5
      %v3326 = vmul.f32 %v3294, 0.5
      %v3327 = vmul.f32 %v3295, 0.5
      %v3328 = vmul.f32 %v3296, 0.5
      %v3329 = vmul.f32 %v3297, 0.5
      %v3330 = vmul.f32 %v3298, 0.5
      %v3331 = vmul.f32 %v3299, 0.5
      %v3332 = vmul.f32 %v3300, 0.5
      %v3333 = vmul.f32 %v3301, 0.5
      %v3334 = vmul.f32 %v3302, 0.5
      %v3335 = vmul.f32 %v3303, 0.5
      %v3336 = vmul.f32 %v3304, 0.5
      %v3337 = vmul.f32 %v3305, 0.5
      %v3338 = vmul.f32 %v3306, 0.5
      %v3339 = vmul.f32 %v3307, 0.5
      %v3340 = vmul.f32 %v3308, 0.5
      %v3341 = vmul.f32 %v3309, 0.5
      %v3342 = vmul.f32 %v3310, 0.5
      %v3343 = vmul.f32 %v3311, 0.5
      %v3344 = vmul.f32 %v3312, 0.5
      %v3345 = vmul.f32 %v3313, 0.5
      %v3346 = vmul.f32 %v3314, 0.5
      %v3347 = vmul.f32 %v3315, 0.5
      %v3348 = vmul.f32 %v2981, %v3316
      %v3349 = vmul.f32 %v2983, %v3317
      %v3350 = vmul.f32 %v3054, %v3318
      %v3351 = vmul.f32 %v3056, %v3319
      %v3352 = vmul.f32 %v2985, %v3320
      %v3353 = vmul.f32 %v2987, %v3321
      %v3354 = vmul.f32 %v3058, %v3322
      %v3355 = vmul.f32 %v3060, %v3323
      %v3356 = vmul.f32 %v2991, %v3324
      %v3357 = vmul.f32 %v2993, %v3325
      %v3358 = vmul.f32 %v3064, %v3326
      %v3359 = vmul.f32 %v3066, %v3327
      %v3360 = vmul.f32 %v2995, %v3328
      %v3361 = vmul.f32 %v2997, %v3329
      %v3362 = vmul.f32 %v3068, %v3330
      %v3363 = vmul.f32 %v3070, %v3331
      %v3364 = vmul.f32 %v3001, %v3332
      %v3365 = vmul.f32 %v3003, %v3333
      %v3366 = vmul.f32 %v3074, %v3334
      %v3367 = vmul.f32 %v3076, %v3335
      %v3368 = vmul.f32 %v3005, %v3336
      %v3369 = vmul.f32 %v3007, %v3337
      %v3370 = vmul.f32 %v3078, %v3338
      %v3371 = vmul.f32 %v3080, %v3339
      %v3372 = vmul.f32 %v3011, %v3340
      %v3373 = vmul.f32 %v3013, %v3341
      %v3374 = vmul.f32 %v3084, %v3342
      %v3375 = vmul.f32 %v3086, %v3343
      %v3376 = vmul.f32 %v3015, %v3344
      %v3377 = vmul.f32 %v3017, %v3345
      %v3378 = vmul.f32 %v3088, %v3346
      %v3379 = vmul.f32 %v3090, %v3347
      %v3380 = vpack.c.bf16 %v3352, %v3348
      %v3381 = vpack.c.bf16 %v3353, %v3349
      %v3382 = vpack.c.bf16 %v3354, %v3350
      %v3383 = vpack.c.bf16 %v3355, %v3351
      %v3384 = vpack.c.bf16 %v3360, %v3356
      %v3385 = vpack.c.bf16 %v3361, %v3357
      %v3386 = vpack.c.bf16 %v3362, %v3358
      %v3387 = vpack.c.bf16 %v3363, %v3359
      %v3388 = vpack.c.bf16 %v3368, %v3364
      %v3389 = vpack.c.bf16 %v3369, %v3365
      %v3390 = vpack.c.bf16 %v3370, %v3366
      %v3391 = vpack.c.bf16 %v3371, %v3367
      %v3392 = vpack.c.bf16 %v3376, %v3372
      %v3393 = vpack.c.bf16 %v3377, %v3373
      %v3394 = vpack.c.bf16 %v3378, %v3374
      %v3395 = vpack.c.bf16 %v3379, %v3375
      %v3396 = vld [vmem:[%s680] sm:$0xf]
      %v3397 = vld [vmem:[%s680 + $0x4] sm:$0xf]
      %v3398 = vld [vmem:[%s680 + $0x8] sm:$0xf]
      %v3399 = vld [vmem:[%s680 + $0xc] sm:$0xf]
      %v3400 = vld [vmem:[%s680 + $0x10] sm:$0xf]
      %v3401 = vld [vmem:[%s680 + $0x14] sm:$0xf]
      %v3402 = vld [vmem:[%s680 + $0x18] sm:$0xf]
      %v3403 = vld [vmem:[%s680 + $0x1c] sm:$0xf]
      %v3404 = vld [vmem:[%s680 + $0x20] sm:$0xf]
      %v3405 = vld [vmem:[%s680 + $0x24] sm:$0xf]
      %v3406 = vld [vmem:[%s680 + $0x28] sm:$0xf]
      %v3407 = vld [vmem:[%s680 + $0x2c] sm:$0xf]
      %v3408 = vld [vmem:[%s680 + $0x30] sm:$0xf]
      %v3409 = vld [vmem:[%s680 + $0x34] sm:$0xf]
      %v3410 = vld [vmem:[%s680 + $0x38] sm:$0xf]
      %v3411 = vld [vmem:[%s680 + $0x3c] sm:$0xf]
      %v3412 = vld [vmem:[%s680 + $0x40] sm:$0xf]
      %v3413 = vld [vmem:[%s680 + $0x44] sm:$0xf]
      %v3414 = vld [vmem:[%s680 + $0x48] sm:$0xf]
      %v3415 = vld [vmem:[%s680 + $0x4c] sm:$0xf]
      %v3416 = vld [vmem:[%s680 + $0x50] sm:$0xf]
      %v3417 = vld [vmem:[%s680 + $0x54] sm:$0xf]
      %v3418 = vld [vmem:[%s680 + $0x58] sm:$0xf]
      %v3419 = vld [vmem:[%s680 + $0x5c] sm:$0xf]
      %v3420 = vld [vmem:[%s680 + $0x60] sm:$0xf]
      %v3421 = vld [vmem:[%s680 + $0x64] sm:$0xf]
      %v3422 = vld [vmem:[%s680 + $0x68] sm:$0xf]
      %v3423 = vld [vmem:[%s680 + $0x6c] sm:$0xf]
      %v3424 = vld [vmem:[%s680 + $0x70] sm:$0xf]
      %v3425 = vld [vmem:[%s680 + $0x74] sm:$0xf]
      %v3426 = vld [vmem:[%s680 + $0x78] sm:$0xf]
      %v3427 = vld [vmem:[%s680 + $0x7c] sm:$0xf]
      %v3428 = vld [vmem:[%s680 + $0x80] sm:$0xf]
      %v3429 = vld [vmem:[%s680 + $0x84] sm:$0xf]
      %v3430 = vld [vmem:[%s680 + $0x88] sm:$0xf]
      %v3431 = vld [vmem:[%s680 + $0x8c] sm:$0xf]
      %v3432 = vld [vmem:[%s680 + $0x90] sm:$0xf]
      %v3433 = vld [vmem:[%s680 + $0x94] sm:$0xf]
      %v3434 = vld [vmem:[%s680 + $0x98] sm:$0xf]
      %v3435 = vld [vmem:[%s680 + $0x9c] sm:$0xf]
      %v3436 = vld [vmem:[%s680 + $0xa0] sm:$0xf]
      %v3437 = vld [vmem:[%s680 + $0xa4] sm:$0xf]
      %v3438 = vld [vmem:[%s680 + $0xa8] sm:$0xf]
      %v3439 = vld [vmem:[%s680 + $0xac] sm:$0xf]
      %v3440 = vld [vmem:[%s680 + $0xb0] sm:$0xf]
      %v3441 = vld [vmem:[%s680 + $0xb4] sm:$0xf]
      %v3442 = vld [vmem:[%s680 + $0xb8] sm:$0xf]
      %v3443 = vld [vmem:[%s680 + $0xbc] sm:$0xf]
      %v3444 = vld [vmem:[%s680 + $0xc0] sm:$0xf]
      %v3445 = vld [vmem:[%s680 + $0xc4] sm:$0xf]
      %v3446 = vld [vmem:[%s680 + $0xc8] sm:$0xf]
      %v3447 = vld [vmem:[%s680 + $0xcc] sm:$0xf]
      %v3448 = vld [vmem:[%s680 + $0xd0] sm:$0xf]
      %v3449 = vld [vmem:[%s680 + $0xd4] sm:$0xf]
      %v3450 = vld [vmem:[%s680 + $0xd8] sm:$0xf]
      %v3451 = vld [vmem:[%s680 + $0xdc] sm:$0xf]
      %v3452 = vld [vmem:[%s680 + $0xe0] sm:$0xf]
      %v3453 = vld [vmem:[%s680 + $0xe4] sm:$0xf]
      %v3454 = vld [vmem:[%s680 + $0xe8] sm:$0xf]
      %v3455 = vld [vmem:[%s680 + $0xec] sm:$0xf]
      %v3456 = vld [vmem:[%s680 + $0xf0] sm:$0xf]
      %v3457 = vld [vmem:[%s680 + $0xf4] sm:$0xf]
      %v3458 = vld [vmem:[%s680 + $0xf8] sm:$0xf]
      %v3459 = vld [vmem:[%s680 + $0xfc] sm:$0xf]
      %v3524 = vunpack.c.l.b16 %v3396
      %v3525 = vunpack.c.l.b16 %v3397
      %v3526 = vunpack.c.l.b16 %v3398
      %v3527 = vunpack.c.l.b16 %v3399
      %v3528 = vunpack.c.l.b16 %v3400
      %v3529 = vunpack.c.l.b16 %v3401
      %v3530 = vunpack.c.l.b16 %v3402
      %v3531 = vunpack.c.l.b16 %v3403
      %v3532 = vunpack.c.l.b16 %v3404
      %v3533 = vunpack.c.l.b16 %v3405
      %v3534 = vunpack.c.l.b16 %v3406
      %v3535 = vunpack.c.l.b16 %v3407
      %v3536 = vunpack.c.l.b16 %v3408
      %v3537 = vunpack.c.l.b16 %v3409
      %v3538 = vunpack.c.l.b16 %v3410
      %v3539 = vunpack.c.l.b16 %v3411
      %v3540 = vunpack.c.l.b16 %v3412
      %v3541 = vunpack.c.l.b16 %v3413
      %v3542 = vunpack.c.l.b16 %v3414
      %v3543 = vunpack.c.l.b16 %v3415
      %v3544 = vunpack.c.l.b16 %v3416
      %v3545 = vunpack.c.l.b16 %v3417
      %v3546 = vunpack.c.l.b16 %v3418
      %v3547 = vunpack.c.l.b16 %v3419
      %v3548 = vunpack.c.l.b16 %v3420
      %v3549 = vunpack.c.l.b16 %v3421
      %v3550 = vunpack.c.l.b16 %v3422
      %v3551 = vunpack.c.l.b16 %v3423
      %v3552 = vunpack.c.l.b16 %v3424
      %v3553 = vunpack.c.l.b16 %v3425
      %v3554 = vunpack.c.l.b16 %v3426
      %v3555 = vunpack.c.l.b16 %v3427
      %v3556 = vunpack.c.l.b16 %v3428
      %v3557 = vunpack.c.l.b16 %v3429
      %v3558 = vunpack.c.l.b16 %v3430
      %v3559 = vunpack.c.l.b16 %v3431
      %v3560 = vunpack.c.l.b16 %v3432
      %v3561 = vunpack.c.l.b16 %v3433
      %v3562 = vunpack.c.l.b16 %v3434
      %v3563 = vunpack.c.l.b16 %v3435
      %v3564 = vunpack.c.l.b16 %v3436
      %v3565 = vunpack.c.l.b16 %v3437
      %v3566 = vunpack.c.l.b16 %v3438
      %v3567 = vunpack.c.l.b16 %v3439
      %v3568 = vunpack.c.l.b16 %v3440
      %v3569 = vunpack.c.l.b16 %v3441
      %v3570 = vunpack.c.l.b16 %v3442
      %v3571 = vunpack.c.l.b16 %v3443
      %v3572 = vunpack.c.l.b16 %v3444
      %v3573 = vunpack.c.l.b16 %v3445
      %v3574 = vunpack.c.l.b16 %v3446
      %v3575 = vunpack.c.l.b16 %v3447
      %v3576 = vunpack.c.l.b16 %v3448
      %v3577 = vunpack.c.l.b16 %v3449
      %v3578 = vunpack.c.l.b16 %v3450
      %v3579 = vunpack.c.l.b16 %v3451
      %v3580 = vunpack.c.l.b16 %v3452
      %v3581 = vunpack.c.l.b16 %v3453
      %v3582 = vunpack.c.l.b16 %v3454
      %v3583 = vunpack.c.l.b16 %v3455
      %v3584 = vunpack.c.l.b16 %v3456
      %v3585 = vunpack.c.l.b16 %v3457
      %v3586 = vunpack.c.l.b16 %v3458
      %v3587 = vunpack.c.l.b16 %v3459
      %v3588 = vpack.c.b16 %v3525, %v3524
      %v3589 = vpack.c.b16 %v3527, %v3526
      %v3590 = vpack.c.b16 %v3529, %v3528
      %v3591 = vpack.c.b16 %v3531, %v3530
      %v3592 = vpack.c.b16 %v3533, %v3532
      %v3593 = vpack.c.b16 %v3535, %v3534
      %v3594 = vpack.c.b16 %v3537, %v3536
      %v3595 = vpack.c.b16 %v3539, %v3538
      %v3596 = vpack.c.b16 %v3541, %v3540
      %v3597 = vpack.c.b16 %v3543, %v3542
      %v3598 = vpack.c.b16 %v3545, %v3544
      %v3599 = vpack.c.b16 %v3547, %v3546
      %v3600 = vpack.c.b16 %v3549, %v3548
      %v3601 = vpack.c.b16 %v3551, %v3550
      %v3602 = vpack.c.b16 %v3553, %v3552
      %v3603 = vpack.c.b16 %v3555, %v3554
      %v3604 = vpack.c.b16 %v3557, %v3556
      %v3605 = vpack.c.b16 %v3559, %v3558
      %v3606 = vpack.c.b16 %v3561, %v3560
      %v3607 = vpack.c.b16 %v3563, %v3562
      %v3608 = vpack.c.b16 %v3565, %v3564
      %v3609 = vpack.c.b16 %v3567, %v3566
      %v3610 = vpack.c.b16 %v3569, %v3568
      %v3611 = vpack.c.b16 %v3571, %v3570
      %v3612 = vpack.c.b16 %v3573, %v3572
      %v3613 = vpack.c.b16 %v3575, %v3574
      %v3614 = vpack.c.b16 %v3577, %v3576
      %v3615 = vpack.c.b16 %v3579, %v3578
      %v3616 = vpack.c.b16 %v3581, %v3580
      %v3617 = vpack.c.b16 %v3583, %v3582
      %v3618 = vpack.c.b16 %v3585, %v3584
      %v3619 = vpack.c.b16 %v3587, %v3586
      %3652 = vmatprep.subr.bf16.mxu0 0
      %3653 = vmatpush1.bf16.msra.mxu0 %v3595
      %3654 = vmatprep.subr.bf16.mxu0 0
      %3655 = vmatpush1.bf16.msra.mxu0 %v3594
      %3656 = vmatprep.subr.bf16.mxu0 0
      %3657 = vmatpush1.bf16.msra.mxu0 %v3593
      %3658 = vmatprep.subr.bf16.mxu0 0
      %3659 = vmatpush1.bf16.msra.mxu0 %v3592
      %3660 = vmatprep.subr.bf16.mxu0 0
      %3661 = vmatpush1.bf16.msra.mxu0 %v3591
      %3662 = vmatprep.subr.bf16.mxu0 0
      %3663 = vmatpush1.bf16.msra.mxu0 %v3590
      %3664 = vmatprep.subr.bf16.mxu0 0
      %3665 = vmatpush1.bf16.msra.mxu0 %v3589
      %3666 = vmatprep.subr.bf16.mxu0 0
      %3667 = vmatpush1.bf16.msra.mxu0 %v3588
      %3668 = vmatprep.subr.bf16.mxu0 0
      %3669 = vmatpush2.bf16.msra.mxu0 %v3603
      %3670 = vmatprep.subr.bf16.mxu0 0
      %3671 = vmatpush2.bf16.msra.mxu0 %v3602
      %3672 = vmatprep.subr.bf16.mxu0 0
      %3673 = vmatpush2.bf16.msra.mxu0 %v3601
      %3674 = vmatprep.subr.bf16.mxu0 0
      %3675 = vmatpush2.bf16.msra.mxu0 %v3600
      %3676 = vmatprep.subr.bf16.mxu0 0
      %3677 = vmatpush2.bf16.msra.mxu0 %v3599
      %3678 = vmatprep.subr.bf16.mxu0 0
      %3679 = vmatpush2.bf16.msra.mxu0 %v3598
      %3680 = vmatprep.subr.bf16.mxu0 0
      %3681 = vmatpush2.bf16.msra.mxu0 %v3597
      %3682 = vmatprep.subr.bf16.mxu0 0
      %3683 = vmatpush2.bf16.msra.mxu0 %v3596
      %3684 = vmatprep.mubr.bf16.mxu0 %v3381
      %3685 = vmatmul.mubr.bf16.gmra.mxu0 %v3380
      %v3686 = vpop.f32.mrf.mxu0
      %v3687 = vadd.f32 0.0, %v3686
      %v3688 = vpop.f32.mrf.mxu0
      %v3689 = vpop.f32.mrf.mxu0
      %v3690 = vadd.f32 0.0, %v3689
      %v3691 = vpop.f32.mrf.mxu0
      %3692 = vmatprep.mubr.bf16.mxu0 %v3385
      %3693 = vmatmul.mubr.bf16.gmra.mxu0 %v3384
      %v3694 = vpop.f32.mrf.mxu0
      %v3695 = vadd.f32 0.0, %v3694
      %v3696 = vpop.f32.mrf.mxu0
      %v3697 = vpop.f32.mrf.mxu0
      %v3698 = vadd.f32 0.0, %v3697
      %v3699 = vpop.f32.mrf.mxu0
      %3700 = vmatprep.mubr.bf16.mxu0 %v3389
      %3701 = vmatmul.mubr.bf16.gmra.mxu0 %v3388
      %v3702 = vpop.f32.mrf.mxu0
      %v3703 = vadd.f32 0.0, %v3702
      %v3704 = vpop.f32.mrf.mxu0
      %v3705 = vpop.f32.mrf.mxu0
      %v3706 = vadd.f32 0.0, %v3705
      %v3707 = vpop.f32.mrf.mxu0
      %3708 = vmatprep.mubr.bf16.mxu0 %v3393
      %3709 = vmatmul.mubr.bf16.gmra.mxu0 %v3392
      %v3710 = vpop.f32.mrf.mxu0
      %v3711 = vadd.f32 0.0, %v3710
      %v3712 = vpop.f32.mrf.mxu0
      %v3713 = vpop.f32.mrf.mxu0
      %v3714 = vadd.f32 0.0, %v3713
      %v3715 = vpop.f32.mrf.mxu0
      %3716 = vdwg.mxu0
      %3717 = vmatprep.subr.bf16.mxu0 0
      %3718 = vmatpush1.bf16.msra.mxu0 %v3611
      %3719 = vmatprep.subr.bf16.mxu0 0
      %3720 = vmatpush1.bf16.msra.mxu0 %v3610
      %3721 = vmatprep.subr.bf16.mxu0 0
      %3722 = vmatpush1.bf16.msra.mxu0 %v3609
      %3723 = vmatprep.subr.bf16.mxu0 0
      %3724 = vmatpush1.bf16.msra.mxu0 %v3608
      %3725 = vmatprep.subr.bf16.mxu0 0
      %3726 = vmatpush1.bf16.msra.mxu0 %v3607
      %3727 = vmatprep.subr.bf16.mxu0 0
      %3728 = vmatpush1.bf16.msra.mxu0 %v3606
      %3729 = vmatprep.subr.bf16.mxu0 0
      %3730 = vmatpush1.bf16.msra.mxu0 %v3605
      %3731 = vmatprep.subr.bf16.mxu0 0
      %3732 = vmatpush1.bf16.msra.mxu0 %v3604
      %3733 = vmatprep.subr.bf16.mxu0 0
      %3734 = vmatpush2.bf16.msra.mxu0 %v3619
      %3735 = vmatprep.subr.bf16.mxu0 0
      %3736 = vmatpush2.bf16.msra.mxu0 %v3618
      %3737 = vmatprep.subr.bf16.mxu0 0
      %3738 = vmatpush2.bf16.msra.mxu0 %v3617
      %3739 = vmatprep.subr.bf16.mxu0 0
      %3740 = vmatpush2.bf16.msra.mxu0 %v3616
      %3741 = vmatprep.subr.bf16.mxu0 0
      %3742 = vmatpush2.bf16.msra.mxu0 %v3615
      %3743 = vmatprep.subr.bf16.mxu0 0
      %3744 = vmatpush2.bf16.msra.mxu0 %v3614
      %3745 = vmatprep.subr.bf16.mxu0 0
      %3746 = vmatpush2.bf16.msra.mxu0 %v3613
      %3747 = vmatprep.subr.bf16.mxu0 0
      %3748 = vmatpush2.bf16.msra.mxu0 %v3612
      %3749 = vmatprep.mubr.bf16.mxu0 %v3383
      %3750 = vmatmul.mubr.bf16.gmra.mxu0 %v3382
      %v3751 = vpop.f32.mrf.mxu0
      %v3752 = vadd.f32 %v3687, %v3751
      %v3753 = vpop.f32.mrf.mxu0
      %v3754 = vpop.f32.mrf.mxu0
      %v3755 = vadd.f32 %v3690, %v3754
      %v3756 = vpop.f32.mrf.mxu0
      %3757 = vmatprep.mubr.bf16.mxu0 %v3387
      %3758 = vmatmul.mubr.bf16.gmra.mxu0 %v3386
      %v3759 = vpop.f32.mrf.mxu0
      %v3760 = vadd.f32 %v3695, %v3759
      %v3761 = vpop.f32.mrf.mxu0
      %v3762 = vpop.f32.mrf.mxu0
      %v3763 = vadd.f32 %v3698, %v3762
      %v3764 = vpop.f32.mrf.mxu0
      %3765 = vmatprep.mubr.bf16.mxu0 %v3391
      %3766 = vmatmul.mubr.bf16.gmra.mxu0 %v3390
      %v3767 = vpop.f32.mrf.mxu0
      %v3768 = vadd.f32 %v3703, %v3767
      %v3769 = vpop.f32.mrf.mxu0
      %v3770 = vpop.f32.mrf.mxu0
      %v3771 = vadd.f32 %v3706, %v3770
      %v3772 = vpop.f32.mrf.mxu0
      %3773 = vmatprep.mubr.bf16.mxu0 %v3395
      %3774 = vmatmul.mubr.bf16.gmra.mxu0 %v3394
      %v3775 = vpop.f32.mrf.mxu0
      %v3776 = vadd.f32 %v3711, %v3775
      %v3777 = vpop.f32.mrf.mxu0
      %v3778 = vpop.f32.mrf.mxu0
      %v3779 = vadd.f32 %v3714, %v3778
      %v3780 = vpop.f32.mrf.mxu0
      %3781 = vdwg.mxu0
      %v3782 = vadd.f32 %v2632, %v3752
      %v3783 = vadd.f32 %v2633, %v3755
      %v3784 = vadd.f32 %v2634, %v3760
      %v3785 = vadd.f32 %v2635, %v3763
      %v3786 = vadd.f32 %v2636, %v3768
      %v3787 = vadd.f32 %v2637, %v3771
      %v3788 = vadd.f32 %v2638, %v3776
      %v3789 = vadd.f32 %v2639, %v3779
      %v3790 = vld [vmem:[%s683] sm:$0x1]
      %v3792 = vlaneseq
      %v3793 = vshrl.u32 %v3792, 7
      %v3794 = vsub.s32 0, %v3793
      %v3795 = vrot.slane %v3790, %v3794
      %v3797 = vadd.f32 %v3782, %v3795
      %v3798 = vadd.f32 %v3783, %v3795
      %v3799 = vadd.f32 %v3784, %v3795
      %v3800 = vadd.f32 %v3785, %v3795
      %v3801 = vadd.f32 %v3786, %v3795
      %v3802 = vadd.f32 %v3787, %v3795
      %v3803 = vadd.f32 %v3788, %v3795
      %v3804 = vadd.f32 %v3789, %v3795
      %3805 = vst [vmem:[#allocation2] sm:$0xff] %v3797
      %3806 = vst [vmem:[#allocation2 + $0x8] sm:$0xff] %v3798
      %3807 = vst [vmem:[#allocation2 + $0x10] sm:$0xff] %v3799
      %3808 = vst [vmem:[#allocation2 + $0x18] sm:$0xff] %v3800
      %3809 = vst [vmem:[#allocation2 + $0x20] sm:$0xff] %v3801
      %3810 = vst [vmem:[#allocation2 + $0x28] sm:$0xff] %v3802
      %3811 = vst [vmem:[#allocation2 + $0x30] sm:$0xff] %v3803
      %3812 = vst [vmem:[#allocation2 + $0x38] sm:$0xff] %v3804
      %p3813 = scmp.eq.s32.totalorder %s33, 1
      // Predicated region
      $region85: #{model_forward.2} parent=79 // pred_check
        %p3814 = pneg %p3813
      $region86: #{model_forward.2} parent=79 // pred_check_branch
        %3816 = sbr.rel (%p3814) target = $region88
      $region87: #{model_forward.2} parent=79 // pred_region
        %v3817 = vpack.c.bf16 %v3798, %v3797
        %v3818 = vpack.c.bf16 %v3800, %v3799
        %v3819 = vpack.c.bf16 %v3802, %v3801
        %v3820 = vpack.c.bf16 %v3804, %v3803
        %v3821 = vld [vmem:[%s13] sm:$0xff]
        %v3822 = vld [vmem:[%s13 + $0x8] sm:$0xff]
        %v3823 = vld [vmem:[%s13 + $0x10] sm:$0xff]
        %v3824 = vld [vmem:[%s13 + $0x18] sm:$0xff]
        %v3825 = vld [vmem:[%s13 + $0x20] sm:$0xff]
        %v3826 = vld [vmem:[%s13 + $0x28] sm:$0xff]
        %v3827 = vld [vmem:[%s13 + $0x30] sm:$0xff]
        %v3828 = vld [vmem:[%s13 + $0x38] sm:$0xff]
        %v3829 = vld [vmem:[%s13 + $0x40] sm:$0xff]
        %v3830 = vld [vmem:[%s13 + $0x48] sm:$0xff]
        %v3831 = vld [vmem:[%s13 + $0x50] sm:$0xff]
        %v3832 = vld [vmem:[%s13 + $0x58] sm:$0xff]
        %v3833 = vld [vmem:[%s13 + $0x60] sm:$0xff]
        %v3834 = vld [vmem:[%s13 + $0x68] sm:$0xff]
        %v3835 = vld [vmem:[%s13 + $0x70] sm:$0xff]
        %v3836 = vld [vmem:[%s13 + $0x78] sm:$0xff]
        %v3837 = vld [vmem:[%s13 + $0x80] sm:$0xff]
        %v3838 = vld [vmem:[%s13 + $0x88] sm:$0xff]
        %v3839 = vld [vmem:[%s13 + $0x90] sm:$0xff]
        %v3840 = vld [vmem:[%s13 + $0x98] sm:$0xff]
        %v3841 = vld [vmem:[%s13 + $0xa0] sm:$0xff]
        %v3842 = vld [vmem:[%s13 + $0xa8] sm:$0xff]
        %v3843 = vld [vmem:[%s13 + $0xb0] sm:$0xff]
        %v3844 = vld [vmem:[%s13 + $0xb8] sm:$0xff]
        %v3845 = vld [vmem:[%s13 + $0xc0] sm:$0xff]
        %v3846 = vld [vmem:[%s13 + $0xc8] sm:$0xff]
        %v3847 = vld [vmem:[%s13 + $0xd0] sm:$0xff]
        %v3848 = vld [vmem:[%s13 + $0xd8] sm:$0xff]
        %v3849 = vld [vmem:[%s13 + $0xe0] sm:$0xff]
        %v3850 = vld [vmem:[%s13 + $0xe8] sm:$0xff]
        %v3851 = vld [vmem:[%s13 + $0xf0] sm:$0xff]
        %v3852 = vld [vmem:[%s13 + $0xf8] sm:$0xff]
        %v3853 = vld [vmem:[%s14] sm:$0xf]
        %v3855 = vlaneseq
        %v3856 = vshrl.u32 %v3855, 7
        %v3857 = vsub.s32 0, %v3856
        %v3858 = vrot.slane %v3853, %v3857
        %v3859 = vlaneseq
        %v3860 = vshrl.u32 %v3859, 7
        %v3861 = vsub.s32 1, %v3860
        %v3862 = vrot.slane %v3853, %v3861
        %v3863 = vlaneseq
        %v3864 = vshrl.u32 %v3863, 7
        %v3865 = vsub.s32 2, %v3864
        %v3866 = vrot.slane %v3853, %v3865
        %v3867 = vlaneseq
        %v3868 = vshrl.u32 %v3867, 7
        %v3869 = vsub.s32 3, %v3868
        %v3870 = vrot.slane %v3853, %v3869
        %v3907 = vunpack.c.l.b16 %v3821
        %v3908 = vunpack.c.h.b16 %v3821
        %v3909 = vunpack.c.l.b16 %v3822
        %v3910 = vunpack.c.h.b16 %v3822
        %v3911 = vunpack.c.l.b16 %v3823
        %v3912 = vunpack.c.h.b16 %v3823
        %v3913 = vunpack.c.l.b16 %v3824
        %v3914 = vunpack.c.h.b16 %v3824
        %v3915 = vunpack.c.l.b16 %v3825
        %v3916 = vunpack.c.h.b16 %v3825
        %v3917 = vunpack.c.l.b16 %v3826
        %v3918 = vunpack.c.h.b16 %v3826
        %v3919 = vunpack.c.l.b16 %v3827
        %v3920 = vunpack.c.h.b16 %v3827
        %v3921 = vunpack.c.l.b16 %v3828
        %v3922 = vunpack.c.h.b16 %v3828
        %v3923 = vunpack.c.l.b16 %v3829
        %v3924 = vunpack.c.h.b16 %v3829
        %v3925 = vunpack.c.l.b16 %v3830
        %v3926 = vunpack.c.h.b16 %v3830
        %v3927 = vunpack.c.l.b16 %v3831
        %v3928 = vunpack.c.h.b16 %v3831
        %v3929 = vunpack.c.l.b16 %v3832
        %v3930 = vunpack.c.h.b16 %v3832
        %v3931 = vunpack.c.l.b16 %v3833
        %v3932 = vunpack.c.h.b16 %v3833
        %v3933 = vunpack.c.l.b16 %v3834
        %v3934 = vunpack.c.h.b16 %v3834
        %v3935 = vunpack.c.l.b16 %v3835
        %v3936 = vunpack.c.h.b16 %v3835
        %v3937 = vunpack.c.l.b16 %v3836
        %v3938 = vunpack.c.h.b16 %v3836
        %v3939 = vunpack.c.l.b16 %v3837
        %v3940 = vunpack.c.h.b16 %v3837
        %v3941 = vunpack.c.l.b16 %v3838
        %v3942 = vunpack.c.h.b16 %v3838
        %v3943 = vunpack.c.l.b16 %v3839
        %v3944 = vunpack.c.h.b16 %v3839
        %v3945 = vunpack.c.l.b16 %v3840
        %v3946 = vunpack.c.h.b16 %v3840
        %v3947 = vunpack.c.l.b16 %v3841
        %v3948 = vunpack.c.h.b16 %v3841
        %v3949 = vunpack.c.l.b16 %v3842
        %v3950 = vunpack.c.h.b16 %v3842
        %v3951 = vunpack.c.l.b16 %v3843
        %v3952 = vunpack.c.h.b16 %v3843
        %v3953 = vunpack.c.l.b16 %v3844
        %v3954 = vunpack.c.h.b16 %v3844
        %v3955 = vunpack.c.l.b16 %v3845
        %v3956 = vunpack.c.h.b16 %v3845
        %v3957 = vunpack.c.l.b16 %v3846
        %v3958 = vunpack.c.h.b16 %v3846
        %v3959 = vunpack.c.l.b16 %v3847
        %v3960 = vunpack.c.h.b16 %v3847
        %v3961 = vunpack.c.l.b16 %v3848
        %v3962 = vunpack.c.h.b16 %v3848
        %v3963 = vunpack.c.l.b16 %v3849
        %v3964 = vunpack.c.h.b16 %v3849
        %v3965 = vunpack.c.l.b16 %v3850
        %v3966 = vunpack.c.h.b16 %v3850
        %v3967 = vunpack.c.l.b16 %v3851
        %v3968 = vunpack.c.h.b16 %v3851
        %v3969 = vunpack.c.l.b16 %v3852
        %v3970 = vunpack.c.h.b16 %v3852
        %v3971 = vpack.c.b16 %v3911, %v3907
        %v3972 = vpack.c.b16 %v3912, %v3908
        %v3973 = vpack.c.b16 %v3913, %v3909
        %v3974 = vpack.c.b16 %v3914, %v3910
        %v3975 = vpack.c.b16 %v3919, %v3915
        %v3976 = vpack.c.b16 %v3920, %v3916
        %v3977 = vpack.c.b16 %v3921, %v3917
        %v3978 = vpack.c.b16 %v3922, %v3918
        %v3979 = vpack.c.b16 %v3927, %v3923
        %v3980 = vpack.c.b16 %v3928, %v3924
        %v3981 = vpack.c.b16 %v3929, %v3925
        %v3982 = vpack.c.b16 %v3930, %v3926
        %v3983 = vpack.c.b16 %v3935, %v3931
        %v3984 = vpack.c.b16 %v3936, %v3932
        %v3985 = vpack.c.b16 %v3937, %v3933
        %v3986 = vpack.c.b16 %v3938, %v3934
        %v3987 = vpack.c.b16 %v3943, %v3939
        %v3988 = vpack.c.b16 %v3944, %v3940
        %v3989 = vpack.c.b16 %v3945, %v3941
        %v3990 = vpack.c.b16 %v3946, %v3942
        %v3991 = vpack.c.b16 %v3951, %v3947
        %v3992 = vpack.c.b16 %v3952, %v3948
        %v3993 = vpack.c.b16 %v3953, %v3949
        %v3994 = vpack.c.b16 %v3954, %v3950
        %v3995 = vpack.c.b16 %v3959, %v3955
        %v3996 = vpack.c.b16 %v3960, %v3956
        %v3997 = vpack.c.b16 %v3961, %v3957
        %v3998 = vpack.c.b16 %v3962, %v3958
        %v3999 = vpack.c.b16 %v3967, %v3963
        %v4000 = vpack.c.b16 %v3968, %v3964
        %v4001 = vpack.c.b16 %v3969, %v3965
        %v4002 = vpack.c.b16 %v3970, %v3966
        %4035 = vmatprep.subr.bf16.mxu0 %v4000
        %4036 = vmatpush1.bf16.msra.mxu0 %v3999
        %4037 = vmatprep.subr.bf16.mxu0 %v3996
        %4038 = vmatpush1.bf16.msra.mxu0 %v3995
        %4039 = vmatprep.subr.bf16.mxu0 %v3992
        %4040 = vmatpush1.bf16.msra.mxu0 %v3991
        %4041 = vmatprep.subr.bf16.mxu0 %v3988
        %4042 = vmatpush1.bf16.msra.mxu0 %v3987
        %4043 = vmatprep.subr.bf16.mxu0 %v3984
        %4044 = vmatpush1.bf16.msra.mxu0 %v3983
        %4045 = vmatprep.subr.bf16.mxu0 %v3980
        %4046 = vmatpush1.bf16.msra.mxu0 %v3979
        %4047 = vmatprep.subr.bf16.mxu0 %v3976
        %4048 = vmatpush1.bf16.msra.mxu0 %v3975
        %4049 = vmatprep.subr.bf16.mxu0 %v3972
        %4050 = vmatpush1.bf16.msra.mxu0 %v3971
        %4051 = vmatprep.subr.bf16.mxu0 0
        %4052 = vmatpush2.bf16.msra.mxu0 0
        %4053 = vmatprep.subr.bf16.mxu0 0
        %4054 = vmatpush2.bf16.msra.mxu0 0
        %4055 = vmatprep.subr.bf16.mxu0 0
        %4056 = vmatpush2.bf16.msra.mxu0 0
        %4057 = vmatprep.subr.bf16.mxu0 0
        %4058 = vmatpush2.bf16.msra.mxu0 0
        %4059 = vmatprep.subr.bf16.mxu0 0
        %4060 = vmatpush2.bf16.msra.mxu0 0
        %4061 = vmatprep.subr.bf16.mxu0 0
        %4062 = vmatpush2.bf16.msra.mxu0 0
        %4063 = vmatprep.subr.bf16.mxu0 0
        %4064 = vmatpush2.bf16.msra.mxu0 0
        %4065 = vmatprep.subr.bf16.mxu0 0
        %4066 = vmatpush2.bf16.msra.mxu0 0
        %4067 = vmatprep.mubr.bf16.mxu0 0
        %4068 = vmatmul.mubr.bf16.gmra.mxu0 %v3817
        %v4069 = vpop.f32.mrf.mxu0
        %v4070 = vadd.f32 %v3858, %v4069
        %v4071 = vpop.f32.mrf.mxu0
        %v4072 = vadd.f32 %v3862, %v4071
        %v4073 = vpop.f32.mrf.mxu0
        %v4074 = vadd.f32 %v3858, %v4073
        %v4075 = vpop.f32.mrf.mxu0
        %v4076 = vadd.f32 %v3862, %v4075
        %4077 = vmatprep.mubr.bf16.mxu0 0
        %4078 = vmatmul.mubr.bf16.gmra.mxu0 %v3818
        %v4079 = vpop.f32.mrf.mxu0
        %v4080 = vadd.f32 %v3858, %v4079
        %v4081 = vpop.f32.mrf.mxu0
        %v4082 = vadd.f32 %v3862, %v4081
        %v4083 = vpop.f32.mrf.mxu0
        %v4084 = vadd.f32 %v3858, %v4083
        %v4085 = vpop.f32.mrf.mxu0
        %v4086 = vadd.f32 %v3862, %v4085
        %4087 = vmatprep.mubr.bf16.mxu0 0
        %4088 = vmatmul.mubr.bf16.gmra.mxu0 %v3819
        %v4089 = vpop.f32.mrf.mxu0
        %v4090 = vadd.f32 %v3858, %v4089
        %v4091 = vpop.f32.mrf.mxu0
        %v4092 = vadd.f32 %v3862, %v4091
        %v4093 = vpop.f32.mrf.mxu0
        %v4094 = vadd.f32 %v3858, %v4093
        %v4095 = vpop.f32.mrf.mxu0
        %v4096 = vadd.f32 %v3862, %v4095
        %4097 = vmatprep.mubr.bf16.mxu0 0
        %4098 = vmatmul.mubr.bf16.gmra.mxu0 %v3820
        %v4099 = vpop.f32.mrf.mxu0
        %v4100 = vadd.f32 %v3858, %v4099
        %v4101 = vpop.f32.mrf.mxu0
        %v4102 = vadd.f32 %v3862, %v4101
        %v4103 = vpop.f32.mrf.mxu0
        %v4104 = vadd.f32 %v3858, %v4103
        %v4105 = vpop.f32.mrf.mxu0
        %v4106 = vadd.f32 %v3862, %v4105
        %4107 = vdwg.mxu0
        %4108 = vmatprep.subr.bf16.mxu0 %v4002
        %4109 = vmatpush1.bf16.msra.mxu0 %v4001
        %4110 = vmatprep.subr.bf16.mxu0 %v3998
        %4111 = vmatpush1.bf16.msra.mxu0 %v3997
        %4112 = vmatprep.subr.bf16.mxu0 %v3994
        %4113 = vmatpush1.bf16.msra.mxu0 %v3993
        %4114 = vmatprep.subr.bf16.mxu0 %v3990
        %4115 = vmatpush1.bf16.msra.mxu0 %v3989
        %4116 = vmatprep.subr.bf16.mxu0 %v3986
        %4117 = vmatpush1.bf16.msra.mxu0 %v3985
        %4118 = vmatprep.subr.bf16.mxu0 %v3982
        %4119 = vmatpush1.bf16.msra.mxu0 %v3981
        %4120 = vmatprep.subr.bf16.mxu0 %v3978
        %4121 = vmatpush1.bf16.msra.mxu0 %v3977
        %4122 = vmatprep.subr.bf16.mxu0 %v3974
        %4123 = vmatpush1.bf16.msra.mxu0 %v3973
        %4124 = vmatprep.subr.bf16.mxu0 0
        %4125 = vmatpush2.bf16.msra.mxu0 0
        %4126 = vmatprep.subr.bf16.mxu0 0
        %4127 = vmatpush2.bf16.msra.mxu0 0
        %4128 = vmatprep.subr.bf16.mxu0 0
        %4129 = vmatpush2.bf16.msra.mxu0 0
        %4130 = vmatprep.subr.bf16.mxu0 0
        %4131 = vmatpush2.bf16.msra.mxu0 0
        %4132 = vmatprep.subr.bf16.mxu0 0
        %4133 = vmatpush2.bf16.msra.mxu0 0
        %4134 = vmatprep.subr.bf16.mxu0 0
        %4135 = vmatpush2.bf16.msra.mxu0 0
        %4136 = vmatprep.subr.bf16.mxu0 0
        %4137 = vmatpush2.bf16.msra.mxu0 0
        %4138 = vmatprep.subr.bf16.mxu0 0
        %4139 = vmatpush2.bf16.msra.mxu0 0
        %4140 = vmatprep.mubr.bf16.mxu0 0
        %4141 = vmatmul.mubr.bf16.gmra.mxu0 %v3817
        %v4142 = vpop.f32.mrf.mxu0
        %v4143 = vadd.f32 %v3866, %v4142
        %v4144 = vpop.f32.mrf.mxu0
        %v4145 = vadd.f32 %v3870, %v4144
        %v4146 = vpop.f32.mrf.mxu0
        %v4147 = vadd.f32 %v3866, %v4146
        %v4148 = vpop.f32.mrf.mxu0
        %v4149 = vadd.f32 %v3870, %v4148
        %4150 = vmatprep.mubr.bf16.mxu0 0
        %4151 = vmatmul.mubr.bf16.gmra.mxu0 %v3818
        %v4152 = vpop.f32.mrf.mxu0
        %v4153 = vadd.f32 %v3866, %v4152
        %v4154 = vpop.f32.mrf.mxu0
        %v4155 = vadd.f32 %v3870, %v4154
        %v4156 = vpop.f32.mrf.mxu0
        %v4157 = vadd.f32 %v3866, %v4156
        %v4158 = vpop.f32.mrf.mxu0
        %v4159 = vadd.f32 %v3870, %v4158
        %4160 = vmatprep.mubr.bf16.mxu0 0
        %4161 = vmatmul.mubr.bf16.gmra.mxu0 %v3819
        %v4162 = vpop.f32.mrf.mxu0
        %v4163 = vadd.f32 %v3866, %v4162
        %v4164 = vpop.f32.mrf.mxu0
        %v4165 = vadd.f32 %v3870, %v4164
        %v4166 = vpop.f32.mrf.mxu0
        %v4167 = vadd.f32 %v3866, %v4166
        %v4168 = vpop.f32.mrf.mxu0
        %v4169 = vadd.f32 %v3870, %v4168
        %4170 = vmatprep.mubr.bf16.mxu0 0
        %4171 = vmatmul.mubr.bf16.gmra.mxu0 %v3820
        %v4172 = vpop.f32.mrf.mxu0
        %v4173 = vadd.f32 %v3866, %v4172
        %v4174 = vpop.f32.mrf.mxu0
        %v4175 = vadd.f32 %v3870, %v4174
        %v4176 = vpop.f32.mrf.mxu0
        %v4177 = vadd.f32 %v3866, %v4176
        %v4178 = vpop.f32.mrf.mxu0
        %v4179 = vadd.f32 %v3870, %v4178
        %4180 = vdwg.mxu0
        %v4181 = vrot.slane %v4070, 7
        %v4182 = vrot.slane %v4072, 7
        %v4183 = vrot.slane %v4143, 7
        %v4184 = vrot.slane %v4145, 7
        %v4185 = vrot.slane %v4074, 7
        %v4186 = vrot.slane %v4076, 7
        %v4187 = vrot.slane %v4147, 7
        %v4188 = vrot.slane %v4149, 7
        %v4189 = vrot.slane %v4080, 7
        %v4190 = vrot.slane %v4082, 7
        %v4191 = vrot.slane %v4153, 7
        %v4192 = vrot.slane %v4155, 7
        %v4193 = vrot.slane %v4084, 7
        %v4194 = vrot.slane %v4086, 7
        %v4195 = vrot.slane %v4157, 7
        %v4196 = vrot.slane %v4159, 7
        %v4197 = vrot.slane %v4090, 7
        %v4198 = vrot.slane %v4092, 7
        %v4199 = vrot.slane %v4163, 7
        %v4200 = vrot.slane %v4165, 7
        %v4201 = vrot.slane %v4094, 7
        %v4202 = vrot.slane %v4096, 7
        %v4203 = vrot.slane %v4167, 7
        %v4204 = vrot.slane %v4169, 7
        %v4205 = vrot.slane %v4100, 7
        %v4206 = vrot.slane %v4102, 7
        %v4207 = vrot.slane %v4173, 7
        %v4208 = vrot.slane %v4175, 7
        %v4209 = vrot.slane %v4104, 7
        %v4210 = vrot.slane %v4106, 7
        %v4211 = vrot.slane %v4177, 7
        %v4212 = vrot.slane %v4179, 7
        %v4213 = vlaneseq
        %v4214 = vshrl.u32 %v4213, 7
        %vm4215 = vcmp.lt.s32.totalorder %v4214, 1
        %v4216 = vsel %vm4215, %v4205, %v4209
        %v4217 = vsel %vm4215, %v4206, %v4210
        %v4218 = vsel %vm4215, %v4207, %v4211
        %v4219 = vsel %vm4215, %v4208, %v4212
        %v4220 = vsel %vm4215, %v4201, %v4205
        %v4221 = vsel %vm4215, %v4202, %v4206
        %v4222 = vsel %vm4215, %v4203, %v4207
        %v4223 = vsel %vm4215, %v4204, %v4208
        %v4224 = vsel %vm4215, %v4197, %v4201
        %v4225 = vsel %vm4215, %v4198, %v4202
        %v4226 = vsel %vm4215, %v4199, %v4203
        %v4227 = vsel %vm4215, %v4200, %v4204
        %v4228 = vsel %vm4215, %v4193, %v4197
        %v4229 = vsel %vm4215, %v4194, %v4198
        %v4230 = vsel %vm4215, %v4195, %v4199
        %v4231 = vsel %vm4215, %v4196, %v4200
        %v4232 = vsel %vm4215, %v4189, %v4193
        %v4233 = vsel %vm4215, %v4190, %v4194
        %v4234 = vsel %vm4215, %v4191, %v4195
        %v4235 = vsel %vm4215, %v4192, %v4196
        %v4236 = vsel %vm4215, %v4185, %v4189
        %v4237 = vsel %vm4215, %v4186, %v4190
        %v4238 = vsel %vm4215, %v4187, %v4191
        %v4239 = vsel %vm4215, %v4188, %v4192
        %v4240 = vsel %vm4215, %v4181, %v4185
        %v4241 = vsel %vm4215, %v4182, %v4186
        %v4242 = vsel %vm4215, %v4183, %v4187
        %v4243 = vsel %vm4215, %v4184, %v4188
        %v4244 = vsel %vm4215, %v4209, %v4181
        %v4245 = vsel %vm4215, %v4210, %v4182
        %v4246 = vsel %vm4215, %v4211, %v4183
        %v4247 = vsel %vm4215, %v4212, %v4184
        %v4248 = vadd.s32 %v4214, 8
        %v4249 = vadd.s32 %v4214, 16
        %v4250 = vadd.s32 %v4214, 24
        %v4251 = vadd.s32 %v4214, 32
        %v4252 = vadd.s32 %v4214, 40
        %v4253 = vadd.s32 %v4214, 48
        %v4254 = vadd.s32 %v4214, 56
        %vm4255 = vcmp.lt.s32.totalorder %v4214, 0
        %v4256 = vsub.s32 0, %v4214
        %v4257 = vsel %vm4255, %v4256, %v4214
        %v4258 = vshrl.u32 %v4257, 4
        %v4259 = vand.u32 %v4257, 15
        %v4260 = vsub.s32 0, %v4259
        %v4261 = vsel %vm4255, %v4260, %v4259
        %vm4262 = vcmp.lt.s32.totalorder %v4248, 0
        %v4263 = vsub.s32 0, %v4248
        %v4264 = vsel %vm4262, %v4263, %v4248
        %v4265 = vshrl.u32 %v4264, 4
        %v4266 = vand.u32 %v4264, 15
        %v4267 = vsub.s32 0, %v4266
        %v4268 = vsel %vm4262, %v4267, %v4266
        %vm4269 = vcmp.lt.s32.totalorder %v4249, 0
        %v4270 = vsub.s32 0, %v4249
        %v4271 = vsel %vm4269, %v4270, %v4249
        %v4272 = vshrl.u32 %v4271, 4
        %v4273 = vand.u32 %v4271, 15
        %v4274 = vsub.s32 0, %v4273
        %v4275 = vsel %vm4269, %v4274, %v4273
        %vm4276 = vcmp.lt.s32.totalorder %v4250, 0
        %v4277 = vsub.s32 0, %v4250
        %v4278 = vsel %vm4276, %v4277, %v4250
        %v4279 = vshrl.u32 %v4278, 4
        %v4280 = vand.u32 %v4278, 15
        %v4281 = vsub.s32 0, %v4280
        %v4282 = vsel %vm4276, %v4281, %v4280
        %vm4283 = vcmp.lt.s32.totalorder %v4251, 0
        %v4284 = vsub.s32 0, %v4251
        %v4285 = vsel %vm4283, %v4284, %v4251
        %v4286 = vshrl.u32 %v4285, 4
        %v4287 = vand.u32 %v4285, 15
        %v4288 = vsub.s32 0, %v4287
        %v4289 = vsel %vm4283, %v4288, %v4287
        %vm4290 = vcmp.lt.s32.totalorder %v4252, 0
        %v4291 = vsub.s32 0, %v4252
        %v4292 = vsel %vm4290, %v4291, %v4252
        %v4293 = vshrl.u32 %v4292, 4
        %v4294 = vand.u32 %v4292, 15
        %v4295 = vsub.s32 0, %v4294
        %v4296 = vsel %vm4290, %v4295, %v4294
        %vm4297 = vcmp.lt.s32.totalorder %v4253, 0
        %v4298 = vsub.s32 0, %v4253
        %v4299 = vsel %vm4297, %v4298, %v4253
        %v4300 = vshrl.u32 %v4299, 4
        %v4301 = vand.u32 %v4299, 15
        %v4302 = vsub.s32 0, %v4301
        %v4303 = vsel %vm4297, %v4302, %v4301
        %vm4304 = vcmp.lt.s32.totalorder %v4254, 0
        %v4305 = vsub.s32 0, %v4254
        %v4306 = vsel %vm4304, %v4305, %v4254
        %v4307 = vshrl.u32 %v4306, 4
        %v4308 = vand.u32 %v4306, 15
        %v4309 = vsub.s32 0, %v4308
        %v4310 = vsel %vm4304, %v4309, %v4308
        %vm4311 = vcmp.ne.s32.totalorder %v4261, 0
        %vm4312 = vcmp.ne.s32.totalorder %v4268, 0
        %vm4313 = vcmp.ne.s32.totalorder %v4275, 0
        %vm4314 = vcmp.ne.s32.totalorder %v4282, 0
        %vm4315 = vcmp.ne.s32.totalorder %v4289, 0
        %vm4316 = vcmp.ne.s32.totalorder %v4296, 0
        %vm4317 = vcmp.ne.s32.totalorder %v4303, 0
        %vm4318 = vcmp.ne.s32.totalorder %v4310, 0
        %vm4319 = vcmp.lt.s32.totalorder %v4261, 0
        %vm4320 = vcmp.lt.s32.totalorder %v4268, 0
        %vm4321 = vcmp.lt.s32.totalorder %v4275, 0
        %vm4322 = vcmp.lt.s32.totalorder %v4282, 0
        %vm4323 = vcmp.lt.s32.totalorder %v4289, 0
        %vm4324 = vcmp.lt.s32.totalorder %v4296, 0
        %vm4325 = vcmp.lt.s32.totalorder %v4303, 0
        %vm4326 = vcmp.lt.s32.totalorder %v4310, 0
        %vm4327 = vmand %vm4319, %vm4311
        %vm4328 = vmand %vm4320, %vm4312
        %vm4329 = vmand %vm4321, %vm4313
        %vm4330 = vmand %vm4322, %vm4314
        %vm4331 = vmand %vm4323, %vm4315
        %vm4332 = vmand %vm4324, %vm4316
        %vm4333 = vmand %vm4325, %vm4317
        %vm4334 = vmand %vm4326, %vm4318
        %v4335 = vadd.s32 %v4261, 16
        %v4336 = vadd.s32 %v4268, 16
        %v4337 = vadd.s32 %v4275, 16
        %v4338 = vadd.s32 %v4282, 16
        %v4339 = vadd.s32 %v4289, 16
        %v4340 = vadd.s32 %v4296, 16
        %v4341 = vadd.s32 %v4303, 16
        %v4342 = vadd.s32 %v4310, 16
        %v4343 = vsel %vm4327, %v4335, %v4261
        %v4344 = vsel %vm4328, %v4336, %v4268
        %v4345 = vsel %vm4329, %v4337, %v4275
        %v4346 = vsel %vm4330, %v4338, %v4282
        %v4347 = vsel %vm4331, %v4339, %v4289
        %v4348 = vsel %vm4332, %v4340, %v4296
        %v4349 = vsel %vm4333, %v4341, %v4303
        %v4350 = vsel %vm4334, %v4342, %v4310
        %vm4351 = vcmp.eq.s32.totalorder %v4343, 0
        %vm4352 = vcmp.eq.s32.totalorder %v4344, 0
        %vm4353 = vcmp.eq.s32.totalorder %v4345, 0
        %vm4354 = vcmp.eq.s32.totalorder %v4346, 0
        %vm4355 = vcmp.eq.s32.totalorder %v4347, 0
        %vm4356 = vcmp.eq.s32.totalorder %v4348, 0
        %vm4357 = vcmp.eq.s32.totalorder %v4349, 0
        %vm4358 = vcmp.eq.s32.totalorder %v4350, 0
        %v4359 = vsel %vm4351, 1, 0
        %v4360 = vsel %vm4352, 1, 0
        %v4361 = vsel %vm4353, 1, 0
        %v4362 = vsel %vm4354, 1, 0
        %v4363 = vsel %vm4355, 1, 0
        %v4364 = vsel %vm4356, 1, 0
        %v4365 = vsel %vm4357, 1, 0
        %v4366 = vsel %vm4358, 1, 0
        %vm4367 = vcmp.eq.s32.totalorder %v4359, 1
        %vm4368 = vcmp.eq.s32.totalorder %v4360, 1
        %vm4369 = vcmp.eq.s32.totalorder %v4361, 1
        %vm4370 = vcmp.eq.s32.totalorder %v4362, 1
        %vm4371 = vcmp.eq.s32.totalorder %v4363, 1
        %vm4372 = vcmp.eq.s32.totalorder %v4364, 1
        %vm4373 = vcmp.eq.s32.totalorder %v4365, 1
        %vm4374 = vcmp.eq.s32.totalorder %v4366, 1
        %v4375 = vsel %vm4367, 0.0, %v4244
        %v4376 = vsel %vm4367, 0.0, %v4245
        %v4377 = vsel %vm4367, 0.0, %v4246
        %v4378 = vsel %vm4367, 0.0, %v4247
        %v4379 = vsel %vm4368, 0.0, %v4240
        %v4380 = vsel %vm4368, 0.0, %v4241
        %v4381 = vsel %vm4368, 0.0, %v4242
        %v4382 = vsel %vm4368, 0.0, %v4243
        %v4383 = vsel %vm4369, 0.0, %v4236
        %v4384 = vsel %vm4369, 0.0, %v4237
        %v4385 = vsel %vm4369, 0.0, %v4238
        %v4386 = vsel %vm4369, 0.0, %v4239
        %v4387 = vsel %vm4370, 0.0, %v4232
        %v4388 = vsel %vm4370, 0.0, %v4233
        %v4389 = vsel %vm4370, 0.0, %v4234
        %v4390 = vsel %vm4370, 0.0, %v4235
        %v4391 = vsel %vm4371, 0.0, %v4228
        %v4392 = vsel %vm4371, 0.0, %v4229
        %v4393 = vsel %vm4371, 0.0, %v4230
        %v4394 = vsel %vm4371, 0.0, %v4231
        %v4395 = vsel %vm4372, 0.0, %v4224
        %v4396 = vsel %vm4372, 0.0, %v4225
        %v4397 = vsel %vm4372, 0.0, %v4226
        %v4398 = vsel %vm4372, 0.0, %v4227
        %v4399 = vsel %vm4373, 0.0, %v4220
        %v4400 = vsel %vm4373, 0.0, %v4221
        %v4401 = vsel %vm4373, 0.0, %v4222
        %v4402 = vsel %vm4373, 0.0, %v4223
        %v4403 = vsel %vm4374, 0.0, %v4216
        %v4404 = vsel %vm4374, 0.0, %v4217
        %v4405 = vsel %vm4374, 0.0, %v4218
        %v4406 = vsel %vm4374, 0.0, %v4219
        %v4407 = vld [vmem:[%s648] sm:$0xff]
        %v4408 = vld [vmem:[%s648 + $0x8] sm:$0xff]
        %v4409 = vld [vmem:[%s648 + $0x10] sm:$0xff]
        %v4410 = vld [vmem:[%s648 + $0x18] sm:$0xff]
        %v4411 = vld [vmem:[%s648 + $0x20] sm:$0xff]
        %v4412 = vld [vmem:[%s648 + $0x28] sm:$0xff]
        %v4413 = vld [vmem:[%s648 + $0x30] sm:$0xff]
        %v4414 = vld [vmem:[%s648 + $0x38] sm:$0xff]
        %v4415 = vld [vmem:[%s648 + $0x40] sm:$0xff]
        %v4416 = vld [vmem:[%s648 + $0x48] sm:$0xff]
        %v4417 = vld [vmem:[%s648 + $0x50] sm:$0xff]
        %v4418 = vld [vmem:[%s648 + $0x58] sm:$0xff]
        %v4419 = vld [vmem:[%s648 + $0x60] sm:$0xff]
        %v4420 = vld [vmem:[%s648 + $0x68] sm:$0xff]
        %v4421 = vld [vmem:[%s648 + $0x70] sm:$0xff]
        %v4422 = vld [vmem:[%s648 + $0x78] sm:$0xff]
        %v4423 = vsub.f32 %v4407, %v4377
        %v4424 = vsub.f32 %v4408, %v4378
        %v4425 = vsub.f32 %v4409, %v4381
        %v4426 = vsub.f32 %v4410, %v4382
        %v4427 = vsub.f32 %v4411, %v4385
        %v4428 = vsub.f32 %v4412, %v4386
        %v4429 = vsub.f32 %v4413, %v4389
        %v4430 = vsub.f32 %v4414, %v4390
        %v4431 = vsub.f32 %v4415, %v4393
        %v4432 = vsub.f32 %v4416, %v4394
        %v4433 = vsub.f32 %v4417, %v4397
        %v4434 = vsub.f32 %v4418, %v4398
        %v4435 = vsub.f32 %v4419, %v4401
        %v4436 = vsub.f32 %v4420, %v4402
        %v4437 = vsub.f32 %v4421, %v4405
        %v4438 = vsub.f32 %v4422, %v4406
        %v4439 = vsub.f32 0.0, %v4375
        %v4440 = vsub.f32 0.0, %v4376
        %v4441 = vsub.f32 0.0, %v4379
        %v4442 = vsub.f32 0.0, %v4380
        %v4443 = vsub.f32 0.0, %v4383
        %v4444 = vsub.f32 0.0, %v4384
        %v4445 = vsub.f32 0.0, %v4387
        %v4446 = vsub.f32 0.0, %v4388
        %v4447 = vsub.f32 0.0, %v4391
        %v4448 = vsub.f32 0.0, %v4392
        %v4449 = vsub.f32 0.0, %v4395
        %v4450 = vsub.f32 0.0, %v4396
        %v4451 = vsub.f32 0.0, %v4399
        %v4452 = vsub.f32 0.0, %v4400
        %v4453 = vsub.f32 0.0, %v4403
        %v4454 = vsub.f32 0.0, %v4404
        %v4455 = vmul.f32 %v4439, 1.442695
        %v4456 = vpow.pop %v4455
        %v4457 = vmul.f32 %v4440, 1.442695
        %v4458 = vpow.pop %v4457
        %v4459 = vmul.f32 %v4441, 1.442695
        %v4460 = vpow.pop %v4459
        %v4461 = vmul.f32 %v4442, 1.442695
        %v4462 = vpow.pop %v4461
        %v4463 = vmul.f32 %v4443, 1.442695
        %v4464 = vpow.pop %v4463
        %v4465 = vmul.f32 %v4444, 1.442695
        %v4466 = vpow.pop %v4465
        %v4467 = vmul.f32 %v4445, 1.442695
        %v4468 = vpow.pop %v4467
        %v4469 = vmul.f32 %v4446, 1.442695
        %v4470 = vpow.pop %v4469
        %v4471 = vmul.f32 %v4447, 1.442695
        %v4472 = vpow.pop %v4471
        %v4473 = vmul.f32 %v4448, 1.442695
        %v4474 = vpow.pop %v4473
        %v4475 = vmul.f32 %v4449, 1.442695
        %v4476 = vpow.pop %v4475
        %v4477 = vmul.f32 %v4450, 1.442695
        %v4478 = vpow.pop %v4477
        %v4479 = vmul.f32 %v4451, 1.442695
        %v4480 = vpow.pop %v4479
        %v4481 = vmul.f32 %v4452, 1.442695
        %v4482 = vpow.pop %v4481
        %v4483 = vmul.f32 %v4453, 1.442695
        %v4484 = vpow.pop %v4483
        %v4485 = vmul.f32 %v4454, 1.442695
        %v4486 = vpow.pop %v4485
        %v4487 = vmul.f32 %v4423, %v4456
        %v4488 = vmul.f32 %v4424, %v4458
        %v4489 = vmul.f32 %v4425, %v4460
        %v4490 = vmul.f32 %v4426, %v4462
        %v4491 = vmul.f32 %v4427, %v4464
        %v4492 = vmul.f32 %v4428, %v4466
        %v4493 = vmul.f32 %v4429, %v4468
        %v4494 = vmul.f32 %v4430, %v4470
        %v4495 = vmul.f32 %v4431, %v4472
        %v4496 = vmul.f32 %v4432, %v4474
        %v4497 = vmul.f32 %v4433, %v4476
        %v4498 = vmul.f32 %v4434, %v4478
        %v4499 = vmul.f32 %v4435, %v4480
        %v4500 = vmul.f32 %v4436, %v4482
        %v4501 = vmul.f32 %v4437, %v4484
        %v4502 = vmul.f32 %v4438, %v4486
        %4503 = vst [vmem:[%s689] sm:$0xff] %v4487
        %4504 = vst [vmem:[%s689 + $0x8] sm:$0xff] %v4488
        %4505 = vst [vmem:[%s689 + $0x10] sm:$0xff] %v4489
        %4506 = vst [vmem:[%s689 + $0x18] sm:$0xff] %v4490
        %4507 = vst [vmem:[%s689 + $0x20] sm:$0xff] %v4491
        %4508 = vst [vmem:[%s689 + $0x28] sm:$0xff] %v4492
        %4509 = vst [vmem:[%s689 + $0x30] sm:$0xff] %v4493
        %4510 = vst [vmem:[%s689 + $0x38] sm:$0xff] %v4494
        %4511 = vst [vmem:[%s689 + $0x40] sm:$0xff] %v4495
        %4512 = vst [vmem:[%s689 + $0x48] sm:$0xff] %v4496
        %4513 = vst [vmem:[%s689 + $0x50] sm:$0xff] %v4497
        %4514 = vst [vmem:[%s689 + $0x58] sm:$0xff] %v4498
        %4515 = vst [vmem:[%s689 + $0x60] sm:$0xff] %v4499
        %4516 = vst [vmem:[%s689 + $0x68] sm:$0xff] %v4500
        %4517 = vst [vmem:[%s689 + $0x70] sm:$0xff] %v4501
        %4518 = vst [vmem:[%s689 + $0x78] sm:$0xff] %v4502
        %v4519 = vadd.f32 %v4375, %v4376
        %4520 = vadd.xlane.f32.xlu0 %v4519
        %v4521 = vpop.xlane.xlu0 %4520
        %v4522 = vadd.f32 %v4379, %v4380
        %4523 = vadd.xlane.f32.xlu0 %v4522
        %v4524 = vpop.xlane.xlu0 %4523
        %v4525 = vadd.f32 %v4383, %v4384
        %4526 = vadd.xlane.f32.xlu0 %v4525
        %v4527 = vpop.xlane.xlu0 %4526
        %v4528 = vadd.f32 %v4387, %v4388
        %4529 = vadd.xlane.f32.xlu0 %v4528
        %v4530 = vpop.xlane.xlu0 %4529
        %v4531 = vadd.f32 %v4391, %v4392
        %4532 = vadd.xlane.f32.xlu0 %v4531
        %v4533 = vpop.xlane.xlu0 %4532
        %v4534 = vadd.f32 %v4395, %v4396
        %4535 = vadd.xlane.f32.xlu0 %v4534
        %v4536 = vpop.xlane.xlu0 %4535
        %v4537 = vadd.f32 %v4399, %v4400
        %4538 = vadd.xlane.f32.xlu0 %v4537
        %v4539 = vpop.xlane.xlu0 %4538
        %v4540 = vadd.f32 %v4403, %v4404
        %4541 = vadd.xlane.f32.xlu0 %v4540
        %v4542 = vpop.xlane.xlu0 %4541
        %v4551 = vlaneseq
        %v4552 = vand.u32 %v4551, 127
        %v4553 = vlaneseq
        %v4554 = vshrl.u32 %v4553, 7
        %v4555 = vsub.s32 %v4552, %v4554
        %v4556 = vrot.slane %v4521, %v4555
        %v4557 = vadd.s32 %v4552, 4294967288
        %v4558 = vlaneseq
        %v4559 = vshrl.u32 %v4558, 7
        %v4560 = vsub.s32 %v4557, %v4559
        %v4561 = vrot.slane %v4524, %v4560
        %vm4562 = vcmask 130112
        %v4563 = vsel %vm4562, %v4561, %v4556
        %v4564 = vlaneseq
        %v4565 = vshrl.u32 %v4564, 7
        %v4566 = vsub.s32 %v4552, %v4565
        %v4567 = vrot.slane %v4527, %v4566
        %v4568 = vlaneseq
        %v4569 = vshrl.u32 %v4568, 7
        %v4570 = vsub.s32 %v4557, %v4569
        %v4571 = vrot.slane %v4530, %v4570
        %v4572 = vsel %vm4562, %v4571, %v4567
        %v4573 = vlaneseq
        %v4574 = vshrl.u32 %v4573, 7
        %v4575 = vsub.s32 %v4552, %v4574
        %v4576 = vrot.slane %v4533, %v4575
        %v4577 = vlaneseq
        %v4578 = vshrl.u32 %v4577, 7
        %v4579 = vsub.s32 %v4557, %v4578
        %v4580 = vrot.slane %v4536, %v4579
        %v4581 = vsel %vm4562, %v4580, %v4576
        %v4582 = vlaneseq
        %v4583 = vshrl.u32 %v4582, 7
        %v4584 = vsub.s32 %v4552, %v4583
        %v4585 = vrot.slane %v4539, %v4584
        %v4586 = vlaneseq
        %v4587 = vshrl.u32 %v4586, 7
        %v4588 = vsub.s32 %v4557, %v4587
        %v4589 = vrot.slane %v4542, %v4588
        %v4590 = vsel %vm4562, %v4589, %v4585
        %vm4591 = vcmask 1041409
        %v4592 = vsel %vm4591, %v4572, %v4563
        %vm4593 = vcmask 1042434
        %v4594 = vsel %vm4593, %v4581, %v4592
        %vm4595 = vcmask 1043459
        %v4596 = vsel %vm4595, %v4590, %v4594
        %vm4598 = vcmask 125952
        %v4599 = vsel %vm4598, %v4596, 0.0
        %4600 = vadd.xlane.f32.xlu0 %v4599
        %v4601 = vpop.xlane.xlu0 %4600
        %v4602 = vmul.f32 %v4601, 0.00024414063
        %v4603 = vsub.f32 0.0, %v4602
        %4604 = vst [vmem:[%s694] sm:$0xf] %v4603
      $region88: #{model_forward.2} parent=79 // pred_fallthru
        _
      %s4605 = smul.u32 4, %s32
      %p4606 = scmp.lt.s32.totalorder %s4605, 7
      %s4607 = scalar_select %p4606, %s4605, 7
      %s4608 = smul.addr %s4607, 4
      %s4609 = smul.addr %s4608, 8
      %s4610 = scalar_lea.vmem %s15, %s4609
      %p4611 = scmp.lt.s32.totalorder %s32, 1
      %s4612 = scalar_select %p4611, %s32, 1
      %s4613 = smul.addr %s4612, 4
      %s4614 = scalar_lea.vmem %s16, %s4613
      // Predicated region
      $region89: #{model_forward.2} parent=79 // pred_check
        %p4615 = pneg %p418
      $region90: #{model_forward.2} parent=79 // pred_check_branch
        %4617 = sbr.rel (%p4615) target = $region92
      $region91: #{model_forward.2} parent=79 // pred_region
        %s4618 = smul.u32 4, %s32
      $region92: #{model_forward.2} parent=79 // pred_fallthru
        _
      // Predicated region
      $region93: #{model_forward.2} parent=79 // pred_check
        %p4619 = pneg %p444
      $region94: #{model_forward.2} parent=79 // pred_check_branch
        %4621 = sbr.rel (%p4619) target = $region96
      $region95: #{model_forward.2} parent=79 // pred_region
        _
      $region96: #{model_forward.2} parent=79 // pred_fallthru
        _
    $region80: #{model_forward.2} parent=5 // pred_fallthru
      _
    %p4622 = scmp.le.s32.totalorder 2, %s23
    // Predicated region
    $region97: #{model_forward.2} parent=5 // pred_check
      %p4623 = pneg %p4622
    $region98: #{model_forward.2} parent=5 // pred_check_branch
      %4625 = sbr.rel (%p4623) target = $region100
    $region99: #{model_forward.2} parent=5 // pred_region
      %s4626 = ssub.s32 %s23, 2
      // Predicated region
      $region101: #{model_forward.2} parent=99 // pred_check
        %p4627 = pneg %p424
      $region102: #{model_forward.2} parent=99 // pred_check_branch
        %4629 = sbr.rel (%p4627) target = $region104
      $region103: #{model_forward.2} parent=99 // pred_region
        %s4630 = smul.u32 4, %s34
        %p4631 = scmp.lt.s32.totalorder %s4630, 7
        %s4632 = scalar_select %p4631, %s4630, 7
        %s4633 = smul.addr %s4632, 4
        %s4634 = smul.addr %s4633, 8
        %s4635 = scalar_lea.vmem %s15, %s4634
      $region104: #{model_forward.2} parent=99 // pred_fallthru
        _
      // Predicated region
      $region105: #{model_forward.2} parent=99 // pred_check
        %p4636 = pneg %p450
      $region106: #{model_forward.2} parent=99 // pred_check_branch
        %4638 = sbr.rel (%p4636) target = $region108
      $region107: #{model_forward.2} parent=99 // pred_region
        %p4639 = scmp.lt.s32.totalorder %s34, 1
        %s4640 = scalar_select %p4639, %s34, 1
        %s4641 = smul.addr %s4640, 4
        %s4642 = scalar_lea.vmem %s16, %s4641
      $region108: #{model_forward.2} parent=99 // pred_fallthru
        _
    $region100: #{model_forward.2} parent=5 // pred_fallthru
      _
  $region6: #{model_forward.2} parent=0 // loop_footer
    %s27 = sadd.s32 1, %s23
  $region7: #{model_forward.2} parent=0 // loop_footer_branch
    %22 = sbr.rel target = $region3
  $region8: #{model_forward.2} parent=0 // loop_exit
    _

// kernel: model_forward.3
$region0: #{model_forward.3}
  #allocation0 [shape = 'u32[]', space=smem, size = 0x4, offset = 0x4, fixed_abs, tag = 'smem constant byte address 0x4 - core index']
  #allocation1 [shape = 'u32[144,128]{1,0:T(1,128)}', space=vmem, size = 0x12000, scoped, tag = 'internal scratch']
  #allocation2 [shape = 'f32[64,128]{1,0:T(8,128)}', space=vmem, size = 0x8000, scoped, tag = 'scratch operand']
  #allocation3 [shape = 'bf16[64,128]{1,0:T(8,128)(2,1)}', space=vmem, size = 0x4000, scoped, tag = 'scratch operand']
  %s0 = inlined_call_operand.vmem [shape: f32[8,16,256], index: 0, kind: input, shape index: {}]
  %s1 = inlined_call_operand.vmem [shape: f32[16,128], index: 1, kind: input, shape index: {}]
  %s2 = inlined_call_operand.vmem [shape: f32[16,16], index: 2, kind: input, shape index: {}]
  %s3 = inlined_call_operand.vmem [shape: bf16[256,128], index: 3, kind: input, shape index: {}]
  %s4 = inlined_call_operand.vmem [shape: f32[1,128], index: 4, kind: input, shape index: {}]
  %s5 = inlined_call_operand.vmem [shape: bf16[2,128,384], index: 5, kind: input, shape index: {}]
  %s6 = inlined_call_operand.vmem [shape: f32[2,1,384], index: 6, kind: input, shape index: {}]
  %s7 = inlined_call_operand.vmem [shape: bf16[2,128,128], index: 7, kind: input, shape index: {}]
  %s8 = inlined_call_operand.vmem [shape: f32[2,1,128], index: 8, kind: input, shape index: {}]
  %s9 = inlined_call_operand.vmem [shape: bf16[2,128,512], index: 9, kind: input, shape index: {}]
  %s10 = inlined_call_operand.vmem [shape: f32[2,1,512], index: 10, kind: input, shape index: {}]
  %s11 = inlined_call_operand.vmem [shape: bf16[2,512,128], index: 11, kind: input, shape index: {}]
  %s12 = inlined_call_operand.vmem [shape: f32[2,1,128], index: 12, kind: input, shape index: {}]
  %s13 = inlined_call_operand.vmem [shape: bf16[128,512], index: 13, kind: input, shape index: {}]
  %s14 = inlined_call_operand.vmem [shape: f32[1,512], index: 14, kind: input, shape index: {}]
  %s15 = inlined_call_operand.vmem [shape: f32[8,16,256], index: 15, kind: output, shape index: {0}]
  %s16 = inlined_call_operand.vmem [shape: f32[2,4,128], index: 16, kind: output, shape index: {1}]
  %17 = xla_tuple %s15, %s16
  %s18 = sld [smem:[#allocation0]]
  $region109: #{model_forward.3} parent=0
    _
  %s20 = ssub.s32 1, %s18
  %s21 = scalar_select 0, %s20, %s18
  loop: start=0, step=1, limit=6
  $region2: #{model_forward.3} parent=0 // loop_pre_header
    _
  $region3: #{model_forward.3} parent=0 // loop_header
    %s23 = sphi 0, %s27
    %p24 = scmp.ge.s32.totalorder %s23, 6
    %s30 = sphi 0, %s42
    %s31 = sphi 0, %s38
    %s32 = sphi 0, %s30
    %s33 = sphi 0, %s31
    %s34 = sphi 0, %s32
    %s35 = sphi 0, %s33
    %s45 = sphi 0, %s47
    %s48 = sphi 0, %s45
    %s49 = sphi 0, %s48
    %s65 = sphi 0, %s49
    %s69 = sphi 0, %s69
    %s71 = sphi 0, %s69
    %s72 = sphi 0, %s71
    %s86 = sphi 0, %s72
    %s90 = sphi 0, %s90
    %s92 = sphi 0, %s90
    %s93 = sphi 0, %s92
    %s107 = sphi 0, %s93
    %s111 = sphi 0, %s111
    %s113 = sphi 0, %s111
    %s114 = sphi 0, %s113
    %s128 = sphi 0, %s114
    %s132 = sphi 0, %s132
    %s134 = sphi 0, %s132
    %s135 = sphi 0, %s134
    %s149 = sphi 0, %s135
    %s155 = sphi 0, %s157
    %s158 = sphi 0, %s155
    %s159 = sphi 0, %s158
    %s175 = sphi 0, %s159
    %s181 = sphi 0, %s183
    %s184 = sphi 0, %s181
    %s185 = sphi 0, %s184
    %s201 = sphi 0, %s185
    %s207 = sphi 0, %s209
    %s210 = sphi 0, %s207
    %s211 = sphi 0, %s210
    %s227 = sphi 0, %s211
    %s233 = sphi 0, %s235
    %s236 = sphi 0, %s233
    %s237 = sphi 0, %s236
    %s253 = sphi 0, %s237
    %s259 = sphi 0, %s261
    %s262 = sphi 0, %s259
    %s263 = sphi 0, %s262
    %s279 = sphi 0, %s263
    %s285 = sphi 0, %s287
    %s288 = sphi 0, %s285
    %s289 = sphi 0, %s288
    %s305 = sphi 0, %s289
    %s311 = sphi 0, %s313
    %s314 = sphi 0, %s311
    %s315 = sphi 0, %s314
    %s331 = sphi 0, %s315
    %s337 = sphi 0, %s339
    %s340 = sphi 0, %s337
    %s341 = sphi 0, %s340
    %s357 = sphi 0, %s341
    %s361 = sphi 0, %s361
    %s363 = sphi 0, %s361
    %s364 = sphi 0, %s363
    %s378 = sphi 0, %s364
    %s382 = sphi 0, %s382
    %s384 = sphi 0, %s382
    %s385 = sphi 0, %s384
    %s399 = sphi 0, %s385
    %s405 = sphi 0, %s407
    %s408 = sphi 0, %s405
    %s409 = sphi 0, %s408
    %s425 = sphi 0, %s409
    %s431 = sphi 0, %s433
    %s434 = sphi 0, %s431
    %s435 = sphi 0, %s434
    %s451 = sphi 0, %s435
  $region4: #{model_forward.3} parent=0 // loop_header_branch
    %26 = sbr.rel (%p24) target = $region8
  $region5: #{model_forward.3} parent=0 // loop_body
    %s28 = ssub.s32 %s23, 1
    %s29 = ssub.s32 %s23, 2
    %s36 = sadd.s32 1, %s31
    %p37 = scmp.ge.s32.totalorder %s36, 2
    %s38 = scalar_select %p37, 0, %s36
    %s39 = sadd.s32 1, %s30
    %s40 = scalar_select %p37, %s39, %s30
    %p41 = scmp.ge.s32.totalorder %s40, 2
    %s42 = scalar_select %p41, 0, %s40
    %s43 = ssub.s32 %s30, %s42
    %p44 = scmp.eq.s32.totalorder %s43, 0
    %s46 = sadd.s32 %s45, 1
    %s47 = scalar_select %p44, %s45, %s46
    %p50 = pneg %p44
    %p51 = scmp.eq.s32.totalorder %s23, 3
    %p52 = por %p50, %p51
    %p53 = scmp.ne.s32.totalorder %s45, %s48
    %p54 = scmp.eq.s32.totalorder %s23, 0
    %p55 = por %p53, %p54
    %p56 = scmp.ne.s32.totalorder %s45, %s48
    %p57 = scmp.eq.s32.totalorder %s28, 3
    %p58 = por %p56, %p57
    %p59 = scmp.ne.s32.totalorder %s48, %s49
    %p60 = scmp.eq.s32.totalorder %s28, 0
    %p61 = por %p59, %p60
    %p62 = scmp.ne.s32.totalorder %s48, %s49
    %p63 = scmp.eq.s32.totalorder %s29, 3
    %p64 = por %p62, %p63
    %p66 = scmp.ne.s32.totalorder %s49, %s65
    %p67 = scmp.eq.s32.totalorder %s29, 0
    %p68 = por %p66, %p67
    %s70 = sadd.s32 %s69, 1
    %p73 = scmp.eq.s32.totalorder %s23, 3
    %p74 = scmp.ne.s32.totalorder %s69, %s71
    %p75 = scmp.eq.s32.totalorder %s23, 0
    %p76 = por %p74, %p75
    %p77 = scmp.ne.s32.totalorder %s69, %s71
    %p78 = scmp.eq.s32.totalorder %s28, 3
    %p79 = por %p77, %p78
    %p80 = scmp.ne.s32.totalorder %s71, %s72
    %p81 = scmp.eq.s32.totalorder %s28, 0
    %p82 = por %p80, %p81
    %p83 = scmp.ne.s32.totalorder %s71, %s72
    %p84 = scmp.eq.s32.totalorder %s29, 3
    %p85 = por %p83, %p84
    %p87 = scmp.ne.s32.totalorder %s72, %s86
    %p88 = scmp.eq.s32.totalorder %s29, 0
    %p89 = por %p87, %p88
    %s91 = sadd.s32 %s90, 1
    %p94 = scmp.eq.s32.totalorder %s23, 3
    %p95 = scmp.ne.s32.totalorder %s90, %s92
    %p96 = scmp.eq.s32.totalorder %s23, 0
    %p97 = por %p95, %p96
    %p98 = scmp.ne.s32.totalorder %s90, %s92
    %p99 = scmp.eq.s32.totalorder %s28, 3
    %p100 = por %p98, %p99
    %p101 = scmp.ne.s32.totalorder %s92, %s93
    %p102 = scmp.eq.s32.totalorder %s28, 0
    %p103 = por %p101, %p102
    %p104 = scmp.ne.s32.totalorder %s92, %s93
    %p105 = scmp.eq.s32.totalorder %s29, 3
    %p106 = por %p104, %p105
    %p108 = scmp.ne.s32.totalorder %s93, %s107
    %p109 = scmp.eq.s32.totalorder %s29, 0
    %p110 = por %p108, %p109
    %s112 = sadd.s32 %s111, 1
    %p115 = scmp.eq.s32.totalorder %s23, 3
    %p116 = scmp.ne.s32.totalorder %s111, %s113
    %p117 = scmp.eq.s32.totalorder %s23, 0
    %p118 = por %p116, %p117
    %p119 = scmp.ne.s32.totalorder %s111, %s113
    %p120 = scmp.eq.s32.totalorder %s28, 3
    %p121 = por %p119, %p120
    %p122 = scmp.ne.s32.totalorder %s113, %s114
    %p123 = scmp.eq.s32.totalorder %s28, 0
    %p124 = por %p122, %p123
    %p125 = scmp.ne.s32.totalorder %s113, %s114
    %p126 = scmp.eq.s32.totalorder %s29, 3
    %p127 = por %p125, %p126
    %p129 = scmp.ne.s32.totalorder %s114, %s128
    %p130 = scmp.eq.s32.totalorder %s29, 0
    %p131 = por %p129, %p130
    %s133 = sadd.s32 %s132, 1
    %p136 = scmp.eq.s32.totalorder %s23, 3
    %p137 = scmp.ne.s32.totalorder %s132, %s134
    %p138 = scmp.eq.s32.totalorder %s23, 0
    %p139 = por %p137, %p138
    %p140 = scmp.ne.s32.totalorder %s132, %s134
    %p141 = scmp.eq.s32.totalorder %s28, 3
    %p142 = por %p140, %p141
    %p143 = scmp.ne.s32.totalorder %s134, %s135
    %p144 = scmp.eq.s32.totalorder %s28, 0
    %p145 = por %p143, %p144
    %p146 = scmp.ne.s32.totalorder %s134, %s135
    %p147 = scmp.eq.s32.totalorder %s29, 3
    %p148 = por %p146, %p147
    %p150 = scmp.ne.s32.totalorder %s135, %s149
    %p151 = scmp.eq.s32.totalorder %s29, 0
    %p152 = por %p150, %p151
    %s153 = ssub.s32 %s31, %s38
    %p154 = scmp.eq.s32.totalorder %s153, 0
    %s156 = sadd.s32 %s155, 1
    %s157 = scalar_select %p154, %s155, %s156
    %p160 = pneg %p154
    %p161 = scmp.eq.s32.totalorder %s23, 3
    %p162 = por %p160, %p161
    %p163 = scmp.ne.s32.totalorder %s155, %s158
    %p164 = scmp.eq.s32.totalorder %s23, 0
    %p165 = por %p163, %p164
    %p166 = scmp.ne.s32.totalorder %s155, %s158
    %p167 = scmp.eq.s32.totalorder %s28, 3
    %p168 = por %p166, %p167
    %p169 = scmp.ne.s32.totalorder %s158, %s159
    %p170 = scmp.eq.s32.totalorder %s28, 0
    %p171 = por %p169, %p170
    %p172 = scmp.ne.s32.totalorder %s158, %s159
    %p173 = scmp.eq.s32.totalorder %s29, 3
    %p174 = por %p172, %p173
    %p176 = scmp.ne.s32.totalorder %s159, %s175
    %p177 = scmp.eq.s32.totalorder %s29, 0
    %p178 = por %p176, %p177
    %s179 = ssub.s32 %s31, %s38
    %p180 = scmp.eq.s32.totalorder %s179, 0
    %s182 = sadd.s32 %s181, 1
    %s183 = scalar_select %p180, %s181, %s182
    %p186 = pneg %p180
    %p187 = scmp.eq.s32.totalorder %s23, 3
    %p188 = por %p186, %p187
    %p189 = scmp.ne.s32.totalorder %s181, %s184
    %p190 = scmp.eq.s32.totalorder %s23, 0
    %p191 = por %p189, %p190
    %p192 = scmp.ne.s32.totalorder %s181, %s184
    %p193 = scmp.eq.s32.totalorder %s28, 3
    %p194 = por %p192, %p193
    %p195 = scmp.ne.s32.totalorder %s184, %s185
    %p196 = scmp.eq.s32.totalorder %s28, 0
    %p197 = por %p195, %p196
    %p198 = scmp.ne.s32.totalorder %s184, %s185
    %p199 = scmp.eq.s32.totalorder %s29, 3
    %p200 = por %p198, %p199
    %p202 = scmp.ne.s32.totalorder %s185, %s201
    %p203 = scmp.eq.s32.totalorder %s29, 0
    %p204 = por %p202, %p203
    %s205 = ssub.s32 %s31, %s38
    %p206 = scmp.eq.s32.totalorder %s205, 0
    %s208 = sadd.s32 %s207, 1
    %s209 = scalar_select %p206, %s207, %s208
    %p212 = pneg %p206
    %p213 = scmp.eq.s32.totalorder %s23, 3
    %p214 = por %p212, %p213
    %p215 = scmp.ne.s32.totalorder %s207, %s210
    %p216 = scmp.eq.s32.totalorder %s23, 0
    %p217 = por %p215, %p216
    %p218 = scmp.ne.s32.totalorder %s207, %s210
    %p219 = scmp.eq.s32.totalorder %s28, 3
    %p220 = por %p218, %p219
    %p221 = scmp.ne.s32.totalorder %s210, %s211
    %p222 = scmp.eq.s32.totalorder %s28, 0
    %p223 = por %p221, %p222
    %p224 = scmp.ne.s32.totalorder %s210, %s211
    %p225 = scmp.eq.s32.totalorder %s29, 3
    %p226 = por %p224, %p225
    %p228 = scmp.ne.s32.totalorder %s211, %s227
    %p229 = scmp.eq.s32.totalorder %s29, 0
    %p230 = por %p228, %p229
    %s231 = ssub.s32 %s31, %s38
    %p232 = scmp.eq.s32.totalorder %s231, 0
    %s234 = sadd.s32 %s233, 1
    %s235 = scalar_select %p232, %s233, %s234
    %p238 = pneg %p232
    %p239 = scmp.eq.s32.totalorder %s23, 3
    %p240 = por %p238, %p239
    %p241 = scmp.ne.s32.totalorder %s233, %s236
    %p242 = scmp.eq.s32.totalorder %s23, 0
    %p243 = por %p241, %p242
    %p244 = scmp.ne.s32.totalorder %s233, %s236
    %p245 = scmp.eq.s32.totalorder %s28, 3
    %p246 = por %p244, %p245
    %p247 = scmp.ne.s32.totalorder %s236, %s237
    %p248 = scmp.eq.s32.totalorder %s28, 0
    %p249 = por %p247, %p248
    %p250 = scmp.ne.s32.totalorder %s236, %s237
    %p251 = scmp.eq.s32.totalorder %s29, 3
    %p252 = por %p250, %p251
    %p254 = scmp.ne.s32.totalorder %s237, %s253
    %p255 = scmp.eq.s32.totalorder %s29, 0
    %p256 = por %p254, %p255
    %s257 = ssub.s32 %s31, %s38
    %p258 = scmp.eq.s32.totalorder %s257, 0
    %s260 = sadd.s32 %s259, 1
    %s261 = scalar_select %p258, %s259, %s260
    %p264 = pneg %p258
    %p265 = scmp.eq.s32.totalorder %s23, 3
    %p266 = por %p264, %p265
    %p267 = scmp.ne.s32.totalorder %s259, %s262
    %p268 = scmp.eq.s32.totalorder %s23, 0
    %p269 = por %p267, %p268
    %p270 = scmp.ne.s32.totalorder %s259, %s262
    %p271 = scmp.eq.s32.totalorder %s28, 3
    %p272 = por %p270, %p271
    %p273 = scmp.ne.s32.totalorder %s262, %s263
    %p274 = scmp.eq.s32.totalorder %s28, 0
    %p275 = por %p273, %p274
    %p276 = scmp.ne.s32.totalorder %s262, %s263
    %p277 = scmp.eq.s32.totalorder %s29, 3
    %p278 = por %p276, %p277
    %p280 = scmp.ne.s32.totalorder %s263, %s279
    %p281 = scmp.eq.s32.totalorder %s29, 0
    %p282 = por %p280, %p281
    %s283 = ssub.s32 %s31, %s38
    %p284 = scmp.eq.s32.totalorder %s283, 0
    %s286 = sadd.s32 %s285, 1
    %s287 = scalar_select %p284, %s285, %s286
    %p290 = pneg %p284
    %p291 = scmp.eq.s32.totalorder %s23, 3
    %p292 = por %p290, %p291
    %p293 = scmp.ne.s32.totalorder %s285, %s288
    %p294 = scmp.eq.s32.totalorder %s23, 0
    %p295 = por %p293, %p294
    %p296 = scmp.ne.s32.totalorder %s285, %s288
    %p297 = scmp.eq.s32.totalorder %s28, 3
    %p298 = por %p296, %p297
    %p299 = scmp.ne.s32.totalorder %s288, %s289
    %p300 = scmp.eq.s32.totalorder %s28, 0
    %p301 = por %p299, %p300
    %p302 = scmp.ne.s32.totalorder %s288, %s289
    %p303 = scmp.eq.s32.totalorder %s29, 3
    %p304 = por %p302, %p303
    %p306 = scmp.ne.s32.totalorder %s289, %s305
    %p307 = scmp.eq.s32.totalorder %s29, 0
    %p308 = por %p306, %p307
    %s309 = ssub.s32 %s31, %s38
    %p310 = scmp.eq.s32.totalorder %s309, 0
    %s312 = sadd.s32 %s311, 1
    %s313 = scalar_select %p310, %s311, %s312
    %p316 = pneg %p310
    %p317 = scmp.eq.s32.totalorder %s23, 3
    %p318 = por %p316, %p317
    %p319 = scmp.ne.s32.totalorder %s311, %s314
    %p320 = scmp.eq.s32.totalorder %s23, 0
    %p321 = por %p319, %p320
    %p322 = scmp.ne.s32.totalorder %s311, %s314
    %p323 = scmp.eq.s32.totalorder %s28, 3
    %p324 = por %p322, %p323
    %p325 = scmp.ne.s32.totalorder %s314, %s315
    %p326 = scmp.eq.s32.totalorder %s28, 0
    %p327 = por %p325, %p326
    %p328 = scmp.ne.s32.totalorder %s314, %s315
    %p329 = scmp.eq.s32.totalorder %s29, 3
    %p330 = por %p328, %p329
    %p332 = scmp.ne.s32.totalorder %s315, %s331
    %p333 = scmp.eq.s32.totalorder %s29, 0
    %p334 = por %p332, %p333
    %s335 = ssub.s32 %s31, %s38
    %p336 = scmp.eq.s32.totalorder %s335, 0
    %s338 = sadd.s32 %s337, 1
    %s339 = scalar_select %p336, %s337, %s338
    %p342 = pneg %p336
    %p343 = scmp.eq.s32.totalorder %s23, 3
    %p344 = por %p342, %p343
    %p345 = scmp.ne.s32.totalorder %s337, %s340
    %p346 = scmp.eq.s32.totalorder %s23, 0
    %p347 = por %p345, %p346
    %p348 = scmp.ne.s32.totalorder %s337, %s340
    %p349 = scmp.eq.s32.totalorder %s28, 3
    %p350 = por %p348, %p349
    %p351 = scmp.ne.s32.totalorder %s340, %s341
    %p352 = scmp.eq.s32.totalorder %s28, 0
    %p353 = por %p351, %p352
    %p354 = scmp.ne.s32.totalorder %s340, %s341
    %p355 = scmp.eq.s32.totalorder %s29, 3
    %p356 = por %p354, %p355
    %p358 = scmp.ne.s32.totalorder %s341, %s357
    %p359 = scmp.eq.s32.totalorder %s29, 0
    %p360 = por %p358, %p359
    %s362 = sadd.s32 %s361, 1
    %p365 = scmp.eq.s32.totalorder %s23, 3
    %p366 = scmp.ne.s32.totalorder %s361, %s363
    %p367 = scmp.eq.s32.totalorder %s23, 0
    %p368 = por %p366, %p367
    %p369 = scmp.ne.s32.totalorder %s361, %s363
    %p370 = scmp.eq.s32.totalorder %s28, 3
    %p371 = por %p369, %p370
    %p372 = scmp.ne.s32.totalorder %s363, %s364
    %p373 = scmp.eq.s32.totalorder %s28, 0
    %p374 = por %p372, %p373
    %p375 = scmp.ne.s32.totalorder %s363, %s364
    %p376 = scmp.eq.s32.totalorder %s29, 3
    %p377 = por %p375, %p376
    %p379 = scmp.ne.s32.totalorder %s364, %s378
    %p380 = scmp.eq.s32.totalorder %s29, 0
    %p381 = por %p379, %p380
    %s383 = sadd.s32 %s382, 1
    %p386 = scmp.eq.s32.totalorder %s23, 3
    %p387 = scmp.ne.s32.totalorder %s382, %s384
    %p388 = scmp.eq.s32.totalorder %s23, 0
    %p389 = por %p387, %p388
    %p390 = scmp.ne.s32.totalorder %s382, %s384
    %p391 = scmp.eq.s32.totalorder %s28, 3
    %p392 = por %p390, %p391
    %p393 = scmp.ne.s32.totalorder %s384, %s385
    %p394 = scmp.eq.s32.totalorder %s28, 0
    %p395 = por %p393, %p394
    %p396 = scmp.ne.s32.totalorder %s384, %s385
    %p397 = scmp.eq.s32.totalorder %s29, 3
    %p398 = por %p396, %p397
    %p400 = scmp.ne.s32.totalorder %s385, %s399
    %p401 = scmp.eq.s32.totalorder %s29, 0
    %p402 = por %p400, %p401
    %s403 = ssub.s32 %s30, %s42
    %p404 = scmp.eq.s32.totalorder %s403, 0
    %s406 = sadd.s32 %s405, 1
    %s407 = scalar_select %p404, %s405, %s406
    %p410 = pneg %p404
    %p411 = scmp.eq.s32.totalorder %s23, 3
    %p412 = por %p410, %p411
    %p413 = scmp.ne.s32.totalorder %s405, %s408
    %p414 = scmp.eq.s32.totalorder %s23, 0
    %p415 = por %p413, %p414
    %p416 = scmp.ne.s32.totalorder %s405, %s408
    %p417 = scmp.eq.s32.totalorder %s28, 3
    %p418 = por %p416, %p417
    %p419 = scmp.ne.s32.totalorder %s408, %s409
    %p420 = scmp.eq.s32.totalorder %s28, 0
    %p421 = por %p419, %p420
    %p422 = scmp.ne.s32.totalorder %s408, %s409
    %p423 = scmp.eq.s32.totalorder %s29, 3
    %p424 = por %p422, %p423
    %p426 = scmp.ne.s32.totalorder %s409, %s425
    %p427 = scmp.eq.s32.totalorder %s29, 0
    %p428 = por %p426, %p427
    %s429 = ssub.s32 %s30, %s42
    %p430 = scmp.eq.s32.totalorder %s429, 0
    %s432 = sadd.s32 %s431, 1
    %s433 = scalar_select %p430, %s431, %s432
    %p436 = pneg %p430
    %p437 = scmp.eq.s32.totalorder %s23, 3
    %p438 = por %p436, %p437
    %p439 = scmp.ne.s32.totalorder %s431, %s434
    %p440 = scmp.eq.s32.totalorder %s23, 0
    %p441 = por %p439, %p440
    %p442 = scmp.ne.s32.totalorder %s431, %s434
    %p443 = scmp.eq.s32.totalorder %s28, 3
    %p444 = por %p442, %p443
    %p445 = scmp.ne.s32.totalorder %s434, %s435
    %p446 = scmp.eq.s32.totalorder %s28, 0
    %p447 = por %p445, %p446
    %p448 = scmp.ne.s32.totalorder %s434, %s435
    %p449 = scmp.eq.s32.totalorder %s29, 3
    %p450 = por %p448, %p449
    %p452 = scmp.ne.s32.totalorder %s435, %s451
    %p453 = scmp.eq.s32.totalorder %s29, 0
    %p454 = por %p452, %p453
    %p455 = scmp.le.s32.totalorder 1, %s23
    %p456 = scmp.lt.s32.totalorder %s23, 5
    %p457 = pnand %p455, %p456
    %p458 = pneg %p457
    // Predicated region
    $region9: #{model_forward.3} parent=5 // pred_check
      _
    $region10: #{model_forward.3} parent=5 // pred_check_branch
      %460 = sbr.rel (%p457) target = $region12
    $region11: #{model_forward.3} parent=5 // pred_region
      %s461 = ssub.s32 %s23, 1
      // Predicated region
      $region13: #{model_forward.3} parent=11 // pred_check
        %p462 = pneg %p82
      $region14: #{model_forward.3} parent=11 // pred_check_branch
        %464 = sbr.rel (%p462) target = $region16
      $region15: #{model_forward.3} parent=11 // pred_region
        _
      $region16: #{model_forward.3} parent=11 // pred_fallthru
        _
      // Predicated region
      $region17: #{model_forward.3} parent=11 // pred_check
        %p465 = pneg %p103
      $region18: #{model_forward.3} parent=11 // pred_check_branch
        %467 = sbr.rel (%p465) target = $region20
      $region19: #{model_forward.3} parent=11 // pred_region
        _
      $region20: #{model_forward.3} parent=11 // pred_fallthru
        _
      // Predicated region
      $region21: #{model_forward.3} parent=11 // pred_check
        %p468 = pneg %p124
      $region22: #{model_forward.3} parent=11 // pred_check_branch
        %470 = sbr.rel (%p468) target = $region24
      $region23: #{model_forward.3} parent=11 // pred_region
        _
      $region24: #{model_forward.3} parent=11 // pred_fallthru
        _
      // Predicated region
      $region25: #{model_forward.3} parent=11 // pred_check
        %p471 = pneg %p145
      $region26: #{model_forward.3} parent=11 // pred_check_branch
        %473 = sbr.rel (%p471) target = $region28
      $region27: #{model_forward.3} parent=11 // pred_region
        _
      $region28: #{model_forward.3} parent=11 // pred_fallthru
        _
      // Predicated region
      $region29: #{model_forward.3} parent=11 // pred_check
        %p474 = pneg %p374
      $region30: #{model_forward.3} parent=11 // pred_check_branch
        %476 = sbr.rel (%p474) target = $region32
      $region31: #{model_forward.3} parent=11 // pred_region
        _
      $region32: #{model_forward.3} parent=11 // pred_fallthru
        _
      // Predicated region
      $region33: #{model_forward.3} parent=11 // pred_check
        %p477 = pneg %p395
      $region34: #{model_forward.3} parent=11 // pred_check_branch
        %479 = sbr.rel (%p477) target = $region36
      $region35: #{model_forward.3} parent=11 // pred_region
        _
      $region36: #{model_forward.3} parent=11 // pred_fallthru
        _
    $region12: #{model_forward.3} parent=5 // pred_fallthru
      _
    %p480 = scmp.lt.s32.totalorder %s23, 4
    // Predicated region
    $region37: #{model_forward.3} parent=5 // pred_check
      %p481 = pneg %p480
    $region38: #{model_forward.3} parent=5 // pred_check_branch
      %483 = sbr.rel (%p481) target = $region40
    $region39: #{model_forward.3} parent=5 // pred_region
      // Predicated region
      $region41: #{model_forward.3} parent=39 // pred_check
        %p484 = pneg %p55
      $region42: #{model_forward.3} parent=39 // pred_check_branch
        %486 = sbr.rel (%p484) target = $region44
      $region43: #{model_forward.3} parent=39 // pred_region
        %s487 = smul.u32 4, %s30
        %p488 = scmp.lt.s32.totalorder %s487, 7
        %s489 = scalar_select %p488, %s487, 7
        %s490 = smul.addr %s489, 4
        %s491 = smul.addr %s490, 8
        %s492 = scalar_lea.vmem %s0, %s491
        %s493 = smul.u32 4, %s30
      $region44: #{model_forward.3} parent=39 // pred_fallthru
        _
      // Predicated region
      $region45: #{model_forward.3} parent=39 // pred_check
        %p494 = pneg %p165
      $region46: #{model_forward.3} parent=39 // pred_check_branch
        %496 = sbr.rel (%p494) target = $region48
      $region47: #{model_forward.3} parent=39 // pred_region
        %p497 = scmp.lt.s32.totalorder %s31, 1
        %s498 = scalar_select %p497, %s31, 1
        %s499 = smul.addr %s498, 48
        %s500 = smul.addr %s499, 4
        %s501 = scalar_lea.vmem %s5, %s500
      $region48: #{model_forward.3} parent=39 // pred_fallthru
        _
      // Predicated region
      $region49: #{model_forward.3} parent=39 // pred_check
        %p502 = pneg %p191
      $region50: #{model_forward.3} parent=39 // pred_check_branch
        %504 = sbr.rel (%p502) target = $region52
      $region51: #{model_forward.3} parent=39 // pred_region
        %p505 = scmp.lt.s32.totalorder %s31, 1
        %s506 = scalar_select %p505, %s31, 1
        %s507 = smul.addr %s506, 3
        %s508 = scalar_lea.vmem %s6, %s507
      $region52: #{model_forward.3} parent=39 // pred_fallthru
        _
      // Predicated region
      $region53: #{model_forward.3} parent=39 // pred_check
        %p509 = pneg %p217
      $region54: #{model_forward.3} parent=39 // pred_check_branch
        %511 = sbr.rel (%p509) target = $region56
      $region55: #{model_forward.3} parent=39 // pred_region
        %p512 = scmp.lt.s32.totalorder %s31, 1
        %s513 = scalar_select %p512, %s31, 1
        %s514 = smul.addr %s513, 16
        %s515 = smul.addr %s514, 4
        %s516 = scalar_lea.vmem %s7, %s515
      $region56: #{model_forward.3} parent=39 // pred_fallthru
        _
      // Predicated region
      $region57: #{model_forward.3} parent=39 // pred_check
        %p517 = pneg %p243
      $region58: #{model_forward.3} parent=39 // pred_check_branch
        %519 = sbr.rel (%p517) target = $region60
      $region59: #{model_forward.3} parent=39 // pred_region
        %p520 = scmp.lt.s32.totalorder %s31, 1
        %s521 = scalar_select %p520, %s31, 1
        %s522 = scalar_lea.vmem %s8, %s521
      $region60: #{model_forward.3} parent=39 // pred_fallthru
        _
      // Predicated region
      $region61: #{model_forward.3} parent=39 // pred_check
        %p523 = pneg %p269
      $region62: #{model_forward.3} parent=39 // pred_check_branch
        %525 = sbr.rel (%p523) target = $region64
      $region63: #{model_forward.3} parent=39 // pred_region
        %p526 = scmp.lt.s32.totalorder %s31, 1
        %s527 = scalar_select %p526, %s31, 1
        %s528 = smul.addr %s527, 64
        %s529 = smul.addr %s528, 4
        %s530 = scalar_lea.vmem %s9, %s529
      $region64: #{model_forward.3} parent=39 // pred_fallthru
        _
      // Predicated region
      $region65: #{model_forward.3} parent=39 // pred_check
        %p531 = pneg %p295
      $region66: #{model_forward.3} parent=39 // pred_check_branch
        %533 = sbr.rel (%p531) target = $region68
      $region67: #{model_forward.3} parent=39 // pred_region
        %p534 = scmp.lt.s32.totalorder %s31, 1
        %s535 = scalar_select %p534, %s31, 1
        %s536 = smul.addr %s535, 4
        %s537 = scalar_lea.vmem %s10, %s536
      $region68: #{model_forward.3} parent=39 // pred_fallthru
        _
      // Predicated region
      $region69: #{model_forward.3} parent=39 // pred_check
        %p538 = pneg %p321
      $region70: #{model_forward.3} parent=39 // pred_check_branch
        %540 = sbr.rel (%p538) target = $region72
      $region71: #{model_forward.3} parent=39 // pred_region
        %p541 = scmp.lt.s32.totalorder %s31, 1
        %s542 = scalar_select %p541, %s31, 1
        %s543 = smul.addr %s542, 64
        %s544 = smul.addr %s543, 4
        %s545 = scalar_lea.vmem %s11, %s544
      $region72: #{model_forward.3} parent=39 // pred_fallthru
        _
      // Predicated region
      $region73: #{model_forward.3} parent=39 // pred_check
        %p546 = pneg %p347
      $region74: #{model_forward.3} parent=39 // pred_check_branch
        %548 = sbr.rel (%p546) target = $region76
      $region75: #{model_forward.3} parent=39 // pred_region
        %p549 = scmp.lt.s32.totalorder %s31, 1
        %s550 = scalar_select %p549, %s31, 1
        %s551 = scalar_lea.vmem %s12, %s550
      $region76: #{model_forward.3} parent=39 // pred_fallthru
        _
    $region40: #{model_forward.3} parent=5 // pred_fallthru
      _
    %p552 = scmp.le.s32.totalorder 1, %s23
    %p553 = scmp.lt.s32.totalorder %s23, 5
    %p554 = pnand %p552, %p553
    %p555 = pneg %p554
    // Predicated region
    $region77: #{model_forward.3} parent=5 // pred_check
      _
    $region78: #{model_forward.3} parent=5 // pred_check_branch
      %557 = sbr.rel (%p554) target = $region80
    $region79: #{model_forward.3} parent=5 // pred_region
      %s558 = ssub.s32 %s23, 1
      %s559 = smul.u32 4, %s32
      %p560 = scmp.lt.s32.totalorder %s559, 7
      %s561 = scalar_select %p560, %s559, 7
      %s562 = smul.addr %s561, 4
      %s563 = smul.addr %s562, 8
      %s564 = scalar_lea.vmem %s0, %s563
      %p565 = pneg %p61
      %p566 = pneg %p58
      %p567 = pneg %p82
      %p568 = pneg %p79
      %p569 = pneg %p103
      %p570 = pneg %p100
      %p571 = pneg %p124
      %p572 = pneg %p121
      %p573 = pneg %p145
      %p574 = pneg %p142
      %p575 = scmp.lt.s32.totalorder %s33, 1
      %s576 = scalar_select %p575, %s33, 1
      %s577 = smul.addr %s576, 48
      %s578 = smul.addr %s577, 4
      %s579 = scalar_lea.vmem %s5, %s578
      %p580 = pneg %p171
      %p581 = pneg %p168
      %p582 = scmp.lt.s32.totalorder %s33, 1
      %s583 = scalar_select %p582, %s33, 1
      %s584 = smul.addr %s583, 3
      %s585 = scalar_lea.vmem %s6, %s584
      %p586 = pneg %p197
      %p587 = pneg %p194
      %p588 = scmp.lt.s32.totalorder %s33, 1
      %s589 = scalar_select %p588, %s33, 1
      %s590 = smul.addr %s589, 16
      %s591 = smul.addr %s590, 4
      %s592 = scalar_lea.vmem %s7, %s591
      %p593 = pneg %p223
      %p594 = pneg %p220
      %p595 = scmp.lt.s32.totalorder %s33, 1
      %s596 = scalar_select %p595, %s33, 1
      %s597 = scalar_lea.vmem %s8, %s596
      %p598 = pneg %p249
      %p599 = pneg %p246
      %p600 = scmp.lt.s32.totalorder %s33, 1
      %s601 = scalar_select %p600, %s33, 1
      %s602 = smul.addr %s601, 64
      %s603 = smul.addr %s602, 4
      %s604 = scalar_lea.vmem %s9, %s603
      %p605 = pneg %p275
      %p606 = pneg %p272
      %p607 = scmp.lt.s32.totalorder %s33, 1
      %s608 = scalar_select %p607, %s33, 1
      %s609 = smul.addr %s608, 4
      %s610 = scalar_lea.vmem %s10, %s609
      %p611 = pneg %p301
      %p612 = pneg %p298
      %p613 = scmp.lt.s32.totalorder %s33, 1
      %s614 = scalar_select %p613, %s33, 1
      %s615 = smul.addr %s614, 64
      %s616 = smul.addr %s615, 4
      %s617 = scalar_lea.vmem %s11, %s616
      %p618 = pneg %p327
      %p619 = pneg %p324
      %p620 = scmp.lt.s32.totalorder %s33, 1
      %s621 = scalar_select %p620, %s33, 1
      %s622 = scalar_lea.vmem %s12, %s621
      %p623 = pneg %p353
      %p624 = pneg %p350
      %p625 = pneg %p374
      %p626 = pneg %p371
      %p627 = pneg %p395
      %p628 = pneg %p392
      %p629 = pneg %p421
      %p630 = pneg %p418
      %s631 = smul.u32 4, %s32
      %p632 = scmp.lt.s32.totalorder %s631, 7
      %s633 = scalar_select %p632, %s631, 7
      %s634 = smul.addr %s633, 4
      %s635 = smul.addr %s634, 8
      %s636 = scalar_lea.vmem %s15, %s635
      %p637 = pneg %p447
      %p638 = pneg %p444
      %p639 = scmp.lt.s32.totalorder %s32, 1
      %s640 = scalar_select %p639, %s32, 1
      %s641 = smul.addr %s640, 4
      %s642 = scalar_lea.vmem %s16, %s641
      %s643 = smul.u32 4, %s32
      %p644 = scmp.lt.s32.totalorder %s643, 7
      %s645 = scalar_select %p644, %s643, 7
      %s646 = smul.addr %s645, 4
      %s647 = smul.addr %s646, 8
      %s648 = scalar_lea.vmem %s0, %s647
      %s649 = smul.u32 4, %s32
      %p650 = scmp.lt.s32.totalorder %s33, 1
      %s651 = scalar_select %p650, %s33, 1
      %s652 = smul.addr %s651, 48
      %s653 = smul.addr %s652, 4
      %s654 = scalar_lea.vmem %s5, %s653
      %p655 = scmp.lt.s32.totalorder %s33, 1
      %s656 = scalar_select %p655, %s33, 1
      %s657 = smul.addr %s656, 3
      %s658 = scalar_lea.vmem %s6, %s657
      %p659 = scmp.lt.s32.totalorder %s33, 1
      %s660 = scalar_select %p659, %s33, 1
      %s661 = smul.addr %s660, 16
      %s662 = smul.addr %s661, 4
      %s663 = scalar_lea.vmem %s7, %s662
      %p664 = scmp.lt.s32.totalorder %s33, 1
      %s665 = scalar_select %p664, %s33, 1
      %s666 = scalar_lea.vmem %s8, %s665
      %p667 = scmp.lt.s32.totalorder %s33, 1
      %s668 = scalar_select %p667, %s33, 1
      %s669 = smul.addr %s668, 64
      %s670 = smul.addr %s669, 4
      %s671 = scalar_lea.vmem %s9, %s670
      %p672 = scmp.lt.s32.totalorder %s33, 1
      %s673 = scalar_select %p672, %s33, 1
      %s674 = smul.addr %s673, 4
      %s675 = scalar_lea.vmem %s10, %s674
      %p676 = scmp.lt.s32.totalorder %s33, 1
      %s677 = scalar_select %p676, %s33, 1
      %s678 = smul.addr %s677, 64
      %s679 = smul.addr %s678, 4
      %s680 = scalar_lea.vmem %s11, %s679
      %p681 = scmp.lt.s32.totalorder %s33, 1
      %s682 = scalar_select %p681, %s33, 1
      %s683 = scalar_lea.vmem %s12, %s682
      %s684 = smul.u32 4, %s32
      %p685 = scmp.lt.s32.totalorder %s684, 7
      %s686 = scalar_select %p685, %s684, 7
      %s687 = smul.addr %s686, 4
      %s688 = smul.addr %s687, 8
      %s689 = scalar_lea.vmem %s15, %s688
      %s690 = smul.u32 4, %s32
      %p691 = scmp.lt.s32.totalorder %s32, 1
      %s692 = scalar_select %p691, %s32, 1
      %s693 = smul.addr %s692, 4
      %s694 = scalar_lea.vmem %s16, %s693
      %p696 = scmp.eq.s32.totalorder %s33, 0
      // Predicated region
      $region81: #{model_forward.3} parent=79 // pred_check
        %p697 = pneg %p696
      $region82: #{model_forward.3} parent=79 // pred_check_branch
        %699 = sbr.rel (%p697) target = $region84
      $region83: #{model_forward.3} parent=79 // pred_region
        %v700 = vld [vmem:[%s648] sm:$0xff]
        %v701 = vld [vmem:[%s648 + $0x8] sm:$0xff]
        %v702 = vld [vmem:[%s648 + $0x10] sm:$0xff]
        %v703 = vld [vmem:[%s648 + $0x18] sm:$0xff]
        %v704 = vld [vmem:[%s648 + $0x20] sm:$0xff]
        %v705 = vld [vmem:[%s648 + $0x28] sm:$0xff]
        %v706 = vld [vmem:[%s648 + $0x30] sm:$0xff]
        %v707 = vld [vmem:[%s648 + $0x38] sm:$0xff]
        %v708 = vld [vmem:[%s648 + $0x40] sm:$0xff]
        %v709 = vld [vmem:[%s648 + $0x48] sm:$0xff]
        %v710 = vld [vmem:[%s648 + $0x50] sm:$0xff]
        %v711 = vld [vmem:[%s648 + $0x58] sm:$0xff]
        %v712 = vld [vmem:[%s648 + $0x60] sm:$0xff]
        %v713 = vld [vmem:[%s648 + $0x68] sm:$0xff]
        %v714 = vld [vmem:[%s648 + $0x70] sm:$0xff]
        %v715 = vld [vmem:[%s648 + $0x78] sm:$0xff]
        %v716 = vpack.c.bf16 %v702, %v700
        %v717 = vpack.c.bf16 %v703, %v701
        %v718 = vpack.c.bf16 %v706, %v704
        %v719 = vpack.c.bf16 %v707, %v705
        %v720 = vpack.c.bf16 %v710, %v708
        %v721 = vpack.c.bf16 %v711, %v709
        %v722 = vpack.c.bf16 %v714, %v712
        %v723 = vpack.c.bf16 %v715, %v713
        %v724 = vld [vmem:[%s3] sm:$0xf]
        %v725 = vld [vmem:[%s3 + $0x4] sm:$0xf]
        %v726 = vld [vmem:[%s3 + $0x8] sm:$0xf]
        %v727 = vld [vmem:[%s3 + $0xc] sm:$0xf]
        %v728 = vld [vmem:[%s3 + $0x10] sm:$0xf]
        %v729 = vld [vmem:[%s3 + $0x14] sm:$0xf]
        %v730 = vld [vmem:[%s3 + $0x18] sm:$0xf]
        %v731 = vld [vmem:[%s3 + $0x1c] sm:$0xf]
        %v732 = vld [vmem:[%s3 + $0x20] sm:$0xf]
        %v733 = vld [vmem:[%s3 + $0x24] sm:$0xf]
        %v734 = vld [vmem:[%s3 + $0x28] sm:$0xf]
        %v735 = vld [vmem:[%s3 + $0x2c] sm:$0xf]
        %v736 = vld [vmem:[%s3 + $0x30] sm:$0xf]
        %v737 = vld [vmem:[%s3 + $0x34] sm:$0xf]
        %v738 = vld [vmem:[%s3 + $0x38] sm:$0xf]
        %v739 = vld [vmem:[%s3 + $0x3c] sm:$0xf]
        %v740 = vld [vmem:[%s3 + $0x40] sm:$0xf]
        %v741 = vld [vmem:[%s3 + $0x44] sm:$0xf]
        %v742 = vld [vmem:[%s3 + $0x48] sm:$0xf]
        %v743 = vld [vmem:[%s3 + $0x4c] sm:$0xf]
        %v744 = vld [vmem:[%s3 + $0x50] sm:$0xf]
        %v745 = vld [vmem:[%s3 + $0x54] sm:$0xf]
        %v746 = vld [vmem:[%s3 + $0x58] sm:$0xf]
        %v747 = vld [vmem:[%s3 + $0x5c] sm:$0xf]
        %v748 = vld [vmem:[%s3 + $0x60] sm:$0xf]
        %v749 = vld [vmem:[%s3 + $0x64] sm:$0xf]
        %v750 = vld [vmem:[%s3 + $0x68] sm:$0xf]
        %v751 = vld [vmem:[%s3 + $0x6c] sm:$0xf]
        %v752 = vld [vmem:[%s3 + $0x70] sm:$0xf]
        %v753 = vld [vmem:[%s3 + $0x74] sm:$0xf]
        %v754 = vld [vmem:[%s3 + $0x78] sm:$0xf]
        %v755 = vld [vmem:[%s3 + $0x7c] sm:$0xf]
        %v756 = vld [vmem:[%s4] sm:$0x1]
        %v758 = vlaneseq
        %v759 = vshrl.u32 %v758, 7
        %v760 = vsub.s32 0, %v759
        %v761 = vrot.slane %v756, %v760
        %v795 = vunpack.c.l.b16 %v724
        %v796 = vunpack.c.l.b16 %v725
        %v797 = vunpack.c.l.b16 %v726
        %v798 = vunpack.c.l.b16 %v727
        %v799 = vunpack.c.l.b16 %v728
        %v800 = vunpack.c.l.b16 %v729
        %v801 = vunpack.c.l.b16 %v730
        %v802 = vunpack.c.l.b16 %v731
        %v803 = vunpack.c.l.b16 %v732
        %v804 = vunpack.c.l.b16 %v733
        %v805 = vunpack.c.l.b16 %v734
        %v806 = vunpack.c.l.b16 %v735
        %v807 = vunpack.c.l.b16 %v736
        %v808 = vunpack.c.l.b16 %v737
        %v809 = vunpack.c.l.b16 %v738
        %v810 = vunpack.c.l.b16 %v739
        %v811 = vunpack.c.l.b16 %v740
        %v812 = vunpack.c.l.b16 %v741
        %v813 = vunpack.c.l.b16 %v742
        %v814 = vunpack.c.l.b16 %v743
        %v815 = vunpack.c.l.b16 %v744
        %v816 = vunpack.c.l.b16 %v745
        %v817 = vunpack.c.l.b16 %v746
        %v818 = vunpack.c.l.b16 %v747
        %v819 = vunpack.c.l.b16 %v748
        %v820 = vunpack.c.l.b16 %v749
        %v821 = vunpack.c.l.b16 %v750
        %v822 = vunpack.c.l.b16 %v751
        %v823 = vunpack.c.l.b16 %v752
        %v824 = vunpack.c.l.b16 %v753
        %v825 = vunpack.c.l.b16 %v754
        %v826 = vunpack.c.l.b16 %v755
        %v827 = vpack.c.b16 %v796, %v795
        %v828 = vpack.c.b16 %v798, %v797
        %v829 = vpack.c.b16 %v800, %v799
        %v830 = vpack.c.b16 %v802, %v801
        %v831 = vpack.c.b16 %v804, %v803
        %v832 = vpack.c.b16 %v806, %v805
        %v833 = vpack.c.b16 %v808, %v807
        %v834 = vpack.c.b16 %v810, %v809
        %v835 = vpack.c.b16 %v812, %v811
        %v836 = vpack.c.b16 %v814, %v813
        %v837 = vpack.c.b16 %v816, %v815
        %v838 = vpack.c.b16 %v818, %v817
        %v839 = vpack.c.b16 %v820, %v819
        %v840 = vpack.c.b16 %v822, %v821
        %v841 = vpack.c.b16 %v824, %v823
        %v842 = vpack.c.b16 %v826, %v825
        %859 = vmatprep.subr.bf16.mxu0 0
        %860 = vmatpush1.bf16.msra.mxu0 %v834
        %861 = vmatprep.subr.bf16.mxu0 0
        %862 = vmatpush1.bf16.msra.mxu0 %v833
        %863 = vmatprep.subr.bf16.mxu0 0
        %864 = vmatpush1.bf16.msra.mxu0 %v832
        %865 = vmatprep.subr.bf16.mxu0 0
        %866 = vmatpush1.bf16.msra.mxu0 %v831
        %867 = vmatprep.subr.bf16.mxu0 0
        %868 = vmatpush1.bf16.msra.mxu0 %v830
        %869 = vmatprep.subr.bf16.mxu0 0
        %870 = vmatpush1.bf16.msra.mxu0 %v829
        %871 = vmatprep.subr.bf16.mxu0 0
        %872 = vmatpush1.bf16.msra.mxu0 %v828
        %873 = vmatprep.subr.bf16.mxu0 0
        %874 = vmatpush1.bf16.msra.mxu0 %v827
        %875 = vmatprep.subr.bf16.mxu0 0
        %876 = vmatpush2.bf16.msra.mxu0 %v842
        %877 = vmatprep.subr.bf16.mxu0 0
        %878 = vmatpush2.bf16.msra.mxu0 %v841
        %879 = vmatprep.subr.bf16.mxu0 0
        %880 = vmatpush2.bf16.msra.mxu0 %v840
        %881 = vmatprep.subr.bf16.mxu0 0
        %882 = vmatpush2.bf16.msra.mxu0 %v839
        %883 = vmatprep.subr.bf16.mxu0 0
        %884 = vmatpush2.bf16.msra.mxu0 %v838
        %885 = vmatprep.subr.bf16.mxu0 0
        %886 = vmatpush2.bf16.msra.mxu0 %v837
        %887 = vmatprep.subr.bf16.mxu0 0
        %888 = vmatpush2.bf16.msra.mxu0 %v836
        %889 = vmatprep.subr.bf16.mxu0 0
        %890 = vmatpush2.bf16.msra.mxu0 %v835
        %891 = vmatprep.mubr.bf16.mxu0 %v717
        %892 = vmatmul.mubr.bf16.gmra.mxu0 %v716
        %v893 = vpop.f32.mrf.mxu0
        %v894 = vadd.f32 %v761, %v893
        %v895 = vpop.f32.mrf.mxu0
        %v896 = vpop.f32.mrf.mxu0
        %v897 = vadd.f32 %v761, %v896
        %v898 = vpop.f32.mrf.mxu0
        %899 = vmatprep.mubr.bf16.mxu0 %v719
        %900 = vmatmul.mubr.bf16.gmra.mxu0 %v718
        %v901 = vpop.f32.mrf.mxu0
        %v902 = vadd.f32 %v761, %v901
        %v903 = vpop.f32.mrf.mxu0
        %v904 = vpop.f32.mrf.mxu0
        %v905 = vadd.f32 %v761, %v904
        %v906 = vpop.f32.mrf.mxu0
        %907 = vmatprep.mubr.bf16.mxu0 %v721
        %908 = vmatmul.mubr.bf16.gmra.mxu0 %v720
        %v909 = vpop.f32.mrf.mxu0
        %v910 = vadd.f32 %v761, %v909
        %v911 = vpop.f32.mrf.mxu0
        %v912 = vpop.f32.mrf.mxu0
        %v913 = vadd.f32 %v761, %v912
        %v914 = vpop.f32.mrf.mxu0
        %915 = vmatprep.mubr.bf16.mxu0 %v723
        %916 = vmatmul.mubr.bf16.gmra.mxu0 %v722
        %v917 = vpop.f32.mrf.mxu0
        %v918 = vadd.f32 %v761, %v917
        %v919 = vpop.f32.mrf.mxu0
        %v920 = vpop.f32.mrf.mxu0
        %v921 = vadd.f32 %v761, %v920
        %v922 = vpop.f32.mrf.mxu0
        %923 = vdwg.mxu0
        %v924 = vld [vmem:[%s1] sm:$0xff]
        %v925 = vld [vmem:[%s1 + $0x8] sm:$0xff]
        %v926 = vadd.f32 %v894, %v924
        %v927 = vadd.f32 %v897, %v925
        %v928 = vadd.f32 %v902, %v924
        %v929 = vadd.f32 %v905, %v925
        %v930 = vadd.f32 %v910, %v924
        %v931 = vadd.f32 %v913, %v925
        %v932 = vadd.f32 %v918, %v924
        %v933 = vadd.f32 %v921, %v925
        %934 = vst [vmem:[#allocation2] sm:$0xff] %v926
        %935 = vst [vmem:[#allocation2 + $0x8] sm:$0xff] %v927
        %936 = vst [vmem:[#allocation2 + $0x10] sm:$0xff] %v928
        %937 = vst [vmem:[#allocation2 + $0x18] sm:$0xff] %v929
        %938 = vst [vmem:[#allocation2 + $0x20] sm:$0xff] %v930
        %939 = vst [vmem:[#allocation2 + $0x28] sm:$0xff] %v931
        %940 = vst [vmem:[#allocation2 + $0x30] sm:$0xff] %v932
        %941 = vst [vmem:[#allocation2 + $0x38] sm:$0xff] %v933
      $region84: #{model_forward.3} parent=79 // pred_fallthru
        _
      %v942 = vld [vmem:[#allocation2] sm:$0xff]
      %v943 = vld [vmem:[#allocation2 + $0x8] sm:$0xff]
      %v944 = vld [vmem:[#allocation2 + $0x10] sm:$0xff]
      %v945 = vld [vmem:[#allocation2 + $0x18] sm:$0xff]
      %v946 = vld [vmem:[#allocation2 + $0x20] sm:$0xff]
      %v947 = vld [vmem:[#allocation2 + $0x28] sm:$0xff]
      %v948 = vld [vmem:[#allocation2 + $0x30] sm:$0xff]
      %v949 = vld [vmem:[#allocation2 + $0x38] sm:$0xff]
      %950 = vadd.xlane.f32.xlu0 %v942
      %v951 = vpop.xlane.xlu0 %950
      %952 = vadd.xlane.f32.xlu0 %v943
      %v953 = vpop.xlane.xlu0 %952
      %954 = vadd.xlane.f32.xlu0 %v944
      %v955 = vpop.xlane.xlu0 %954
      %956 = vadd.xlane.f32.xlu0 %v945
      %v957 = vpop.xlane.xlu0 %956
      %958 = vadd.xlane.f32.xlu0 %v946
      %v959 = vpop.xlane.xlu0 %958
      %960 = vadd.xlane.f32.xlu0 %v947
      %v961 = vpop.xlane.xlu0 %960
      %962 = vadd.xlane.f32.xlu0 %v948
      %v963 = vpop.xlane.xlu0 %962
      %964 = vadd.xlane.f32.xlu0 %v949
      %v965 = vpop.xlane.xlu0 %964
      %v966 = vrcp.pop 128.0
      %v967 = vmul.f32 %v951, %v966
      %v968 = vmul.f32 %v953, %v966
      %v969 = vmul.f32 %v955, %v966
      %v970 = vmul.f32 %v957, %v966
      %v971 = vmul.f32 %v959, %v966
      %v972 = vmul.f32 %v961, %v966
      %v973 = vmul.f32 %v963, %v966
      %v974 = vmul.f32 %v965, %v966
      %v975 = vsub.f32 %v942, %v967
      %v976 = vsub.f32 %v943, %v968
      %v977 = vsub.f32 %v944, %v969
      %v978 = vsub.f32 %v945, %v970
      %v979 = vsub.f32 %v946, %v971
      %v980 = vsub.f32 %v947, %v972
      %v981 = vsub.f32 %v948, %v973
      %v982 = vsub.f32 %v949, %v974
      %v983 = vmul.f32 %v975, %v975
      %v984 = vmul.f32 %v976, %v976
      %v985 = vmul.f32 %v977, %v977
      %v986 = vmul.f32 %v978, %v978
      %v987 = vmul.f32 %v979, %v979
      %v988 = vmul.f32 %v980, %v980
      %v989 = vmul.f32 %v981, %v981
      %v990 = vmul.f32 %v982, %v982
      %991 = vadd.xlane.f32.xlu0 %v983
      %v992 = vpop.xlane.xlu0 %991
      %993 = vadd.xlane.f32.xlu0 %v984
      %v994 = vpop.xlane.xlu0 %993
      %995 = vadd.xlane.f32.xlu0 %v985
      %v996 = vpop.xlane.xlu0 %995
      %997 = vadd.xlane.f32.xlu0 %v986
      %v998 = vpop.xlane.xlu0 %997
      %999 = vadd.xlane.f32.xlu0 %v987
      %v1000 = vpop.xlane.xlu0 %999
      %1001 = vadd.xlane.f32.xlu0 %v988
      %v1002 = vpop.xlane.xlu0 %1001
      %1003 = vadd.xlane.f32.xlu0 %v989
      %v1004 = vpop.xlane.xlu0 %1003
      %1005 = vadd.xlane.f32.xlu0 %v990
      %v1006 = vpop.xlane.xlu0 %1005
      %v1007 = vmul.f32 %v992, %v966
      %v1008 = vmul.f32 %v994, %v966
      %v1009 = vmul.f32 %v996, %v966
      %v1010 = vmul.f32 %v998, %v966
      %v1011 = vmul.f32 %v1000, %v966
      %v1012 = vmul.f32 %v1002, %v966
      %v1013 = vmul.f32 %v1004, %v966
      %v1014 = vmul.f32 %v1006, %v966
      %v1015 = vadd.f32 %v1007, 1e-05
      %v1016 = vadd.f32 %v1008, 1e-05
      %v1017 = vadd.f32 %v1009, 1e-05
      %v1018 = vadd.f32 %v1010, 1e-05
      %v1019 = vadd.f32 %v1011, 1e-05
      %v1020 = vadd.f32 %v1012, 1e-05
      %v1021 = vadd.f32 %v1013, 1e-05
      %v1022 = vadd.f32 %v1014, 1e-05
      %v1023 = vrsqrt.pop %v1015
      %v1024 = vrsqrt.pop %v1016
      %v1025 = vrsqrt.pop %v1017
      %v1026 = vrsqrt.pop %v1018
      %v1027 = vrsqrt.pop %v1019
      %v1028 = vrsqrt.pop %v1020
      %v1029 = vrsqrt.pop %v1021
      %v1030 = vrsqrt.pop %v1022
      %v1031 = vmul.f32 %v975, %v1023
      %v1032 = vmul.f32 %v976, %v1024
      %v1033 = vmul.f32 %v977, %v1025
      %v1034 = vmul.f32 %v978, %v1026
      %v1035 = vmul.f32 %v979, %v1027
      %v1036 = vmul.f32 %v980, %v1028
      %v1037 = vmul.f32 %v981, %v1029
      %v1038 = vmul.f32 %v982, %v1030
      %v1039 = vpack.c.bf16 %v1032, %v1031
      %v1040 = vpack.c.bf16 %v1034, %v1033
      %v1041 = vpack.c.bf16 %v1036, %v1035
      %v1042 = vpack.c.bf16 %v1038, %v1037
      %v1043 = vld [vmem:[%s654] sm:$0xff]
      %v1044 = vld [vmem:[%s654 + $0x8] sm:$0xf]
      %v1045 = vld [vmem:[%s654 + $0xc] sm:$0xff]
      %v1046 = vld [vmem:[%s654 + $0x14] sm:$0xf]
      %v1047 = vld [vmem:[%s654 + $0x18] sm:$0xff]
      %v1048 = vld [vmem:[%s654 + $0x20] sm:$0xf]
      %v1049 = vld [vmem:[%s654 + $0x24] sm:$0xff]
      %v1050 = vld [vmem:[%s654 + $0x2c] sm:$0xf]
      %v1051 = vld [vmem:[%s654 + $0x30] sm:$0xff]
      %v1052 = vld [vmem:[%s654 + $0x38] sm:$0xf]
      %v1053 = vld [vmem:[%s654 + $0x3c] sm:$0xff]
      %v1054 = vld [vmem:[%s654 + $0x44] sm:$0xf]
      %v1055 = vld [vmem:[%s654 + $0x48] sm:$0xff]
      %v1056 = vld [vmem:[%s654 + $0x50] sm:$0xf]
      %v1057 = vld [vmem:[%s654 + $0x54] sm:$0xff]
      %v1058 = vld [vmem:[%s654 + $0x5c] sm:$0xf]
      %v1059 = vld [vmem:[%s654 + $0x60] sm:$0xff]
      %v1060 = vld [vmem:[%s654 + $0x68] sm:$0xf]
      %v1061 = vld [vmem:[%s654 + $0x6c] sm:$0xff]
      %v1062 = vld [vmem:[%s654 + $0x74] sm:$0xf]
      %v1063 = vld [vmem:[%s654 + $0x78] sm:$0xff]
      %v1064 = vld [vmem:[%s654 + $0x80] sm:$0xf]
      %v1065 = vld [vmem:[%s654 + $0x84] sm:$0xff]
      %v1066 = vld [vmem:[%s654 + $0x8c] sm:$0xf]
      %v1067 = vld [vmem:[%s654 + $0x90] sm:$0xff]
      %v1068 = vld [vmem:[%s654 + $0x98] sm:$0xf]
      %v1069 = vld [vmem:[%s654 + $0x9c] sm:$0xff]
      %v1070 = vld [vmem:[%s654 + $0xa4] sm:$0xf]
      %v1071 = vld [vmem:[%s654 + $0xa8] sm:$0xff]
      %v1072 = vld [vmem:[%s654 + $0xb0] sm:$0xf]
      %v1073 = vld [vmem:[%s654 + $0xb4] sm:$0xff]
      %v1074 = vld [vmem:[%s654 + $0xbc] sm:$0xf]
      %v1075 = vld [vmem:[%s658] sm:$0x7]
      %v1077 = vlaneseq
      %v1078 = vshrl.u32 %v1077, 7
      %v1079 = vsub.s32 0, %v1078
      %v1080 = vrot.slane %v1075, %v1079
      %v1081 = vlaneseq
      %v1082 = vshrl.u32 %v1081, 7
      %v1083 = vsub.s32 1, %v1082
      %v1084 = vrot.slane %v1075, %v1083
      %v1085 = vlaneseq
      %v1086 = vshrl.u32 %v1085, 7
      %v1087 = vsub.s32 2, %v1086
      %v1088 = vrot.slane %v1075, %v1087
      %v1124 = vunpack.c.l.b16 %v1043
      %v1125 = vunpack.c.h.b16 %v1043
      %v1126 = vunpack.c.l.b16 %v1044
      %v1127 = vunpack.c.l.b16 %v1045
      %v1128 = vunpack.c.h.b16 %v1045
      %v1129 = vunpack.c.l.b16 %v1046
      %v1130 = vunpack.c.l.b16 %v1047
      %v1131 = vunpack.c.h.b16 %v1047
      %v1132 = vunpack.c.l.b16 %v1048
      %v1133 = vunpack.c.l.b16 %v1049
      %v1134 = vunpack.c.h.b16 %v1049
      %v1135 = vunpack.c.l.b16 %v1050
      %v1136 = vunpack.c.l.b16 %v1051
      %v1137 = vunpack.c.h.b16 %v1051
      %v1138 = vunpack.c.l.b16 %v1052
      %v1139 = vunpack.c.l.b16 %v1053
      %v1140 = vunpack.c.h.b16 %v1053
      %v1141 = vunpack.c.l.b16 %v1054
      %v1142 = vunpack.c.l.b16 %v1055
      %v1143 = vunpack.c.h.b16 %v1055
      %v1144 = vunpack.c.l.b16 %v1056
      %v1145 = vunpack.c.l.b16 %v1057
      %v1146 = vunpack.c.h.b16 %v1057
      %v1147 = vunpack.c.l.b16 %v1058
      %v1148 = vunpack.c.l.b16 %v1059
      %v1149 = vunpack.c.h.b16 %v1059
      %v1150 = vunpack.c.l.b16 %v1060
      %v1151 = vunpack.c.l.b16 %v1061
      %v1152 = vunpack.c.h.b16 %v1061
      %v1153 = vunpack.c.l.b16 %v1062
      %v1154 = vunpack.c.l.b16 %v1063
      %v1155 = vunpack.c.h.b16 %v1063
      %v1156 = vunpack.c.l.b16 %v1064
      %v1157 = vunpack.c.l.b16 %v1065
      %v1158 = vunpack.c.h.b16 %v1065
      %v1159 = vunpack.c.l.b16 %v1066
      %v1160 = vunpack.c.l.b16 %v1067
      %v1161 = vunpack.c.h.b16 %v1067
      %v1162 = vunpack.c.l.b16 %v1068
      %v1163 = vunpack.c.l.b16 %v1069
      %v1164 = vunpack.c.h.b16 %v1069
      %v1165 = vunpack.c.l.b16 %v1070
      %v1166 = vunpack.c.l.b16 %v1071
      %v1167 = vunpack.c.h.b16 %v1071
      %v1168 = vunpack.c.l.b16 %v1072
      %v1169 = vunpack.c.l.b16 %v1073
      %v1170 = vunpack.c.h.b16 %v1073
      %v1171 = vunpack.c.l.b16 %v1074
      %v1172 = vpack.c.b16 %v1127, %v1124
      %v1173 = vpack.c.b16 %v1128, %v1125
      %v1174 = vpack.c.b16 %v1129, %v1126
      %v1175 = vpack.c.b16 %v1133, %v1130
      %v1176 = vpack.c.b16 %v1134, %v1131
      %v1177 = vpack.c.b16 %v1135, %v1132
      %v1178 = vpack.c.b16 %v1139, %v1136
      %v1179 = vpack.c.b16 %v1140, %v1137
      %v1180 = vpack.c.b16 %v1141, %v1138
      %v1181 = vpack.c.b16 %v1145, %v1142
      %v1182 = vpack.c.b16 %v1146, %v1143
      %v1183 = vpack.c.b16 %v1147, %v1144
      %v1184 = vpack.c.b16 %v1151, %v1148
      %v1185 = vpack.c.b16 %v1152, %v1149
      %v1186 = vpack.c.b16 %v1153, %v1150
      %v1187 = vpack.c.b16 %v1157, %v1154
      %v1188 = vpack.c.b16 %v1158, %v1155
      %v1189 = vpack.c.b16 %v1159, %v1156
      %v1190 = vpack.c.b16 %v1163, %v1160
      %v1191 = vpack.c.b16 %v1164, %v1161
      %v1192 = vpack.c.b16 %v1165, %v1162
      %v1193 = vpack.c.b16 %v1169, %v1166
      %v1194 = vpack.c.b16 %v1170, %v1167
      %v1195 = vpack.c.b16 %v1171, %v1168
      %1220 = vmatprep.subr.bf16.mxu0 %v1194
      %1221 = vmatpush1.bf16.msra.mxu0 %v1193
      %1222 = vmatprep.subr.bf16.mxu0 %v1191
      %1223 = vmatpush1.bf16.msra.mxu0 %v1190
      %1224 = vmatprep.subr.bf16.mxu0 %v1188
      %1225 = vmatpush1.bf16.msra.mxu0 %v1187
      %1226 = vmatprep.subr.bf16.mxu0 %v1185
      %1227 = vmatpush1.bf16.msra.mxu0 %v1184
      %1228 = vmatprep.subr.bf16.mxu0 %v1182
      %1229 = vmatpush1.bf16.msra.mxu0 %v1181
      %1230 = vmatprep.subr.bf16.mxu0 %v1179
      %1231 = vmatpush1.bf16.msra.mxu0 %v1178
      %1232 = vmatprep.subr.bf16.mxu0 %v1176
      %1233 = vmatpush1.bf16.msra.mxu0 %v1175
      %1234 = vmatprep.subr.bf16.mxu0 %v1173
      %1235 = vmatpush1.bf16.msra.mxu0 %v1172
      %1236 = vmatprep.subr.bf16.mxu0 0
      %1237 = vmatpush2.bf16.msra.mxu0 0
      %1238 = vmatprep.subr.bf16.mxu0 0
      %1239 = vmatpush2.bf16.msra.mxu0 0
      %1240 = vmatprep.subr.bf16.mxu0 0
      %1241 = vmatpush2.bf16.msra.mxu0 0
      %1242 = vmatprep.subr.bf16.mxu0 0
      %1243 = vmatpush2.bf16.msra.mxu0 0
      %1244 = vmatprep.subr.bf16.mxu0 0
      %1245 = vmatpush2.bf16.msra.mxu0 0
      %1246 = vmatprep.subr.bf16.mxu0 0
      %1247 = vmatpush2.bf16.msra.mxu0 0
      %1248 = vmatprep.subr.bf16.mxu0 0
      %1249 = vmatpush2.bf16.msra.mxu0 0
      %1250 = vmatprep.subr.bf16.mxu0 0
      %1251 = vmatpush2.bf16.msra.mxu0 0
      %1252 = vmatprep.mubr.bf16.mxu0 0
      %1253 = vmatmul.mubr.bf16.gmra.mxu0 %v1039
      %v1254 = vpop.f32.mrf.mxu0
      %v1255 = vadd.f32 %v1080, %v1254
      %v1256 = vpop.f32.mrf.mxu0
      %v1257 = vadd.f32 %v1084, %v1256
      %v1258 = vpop.f32.mrf.mxu0
      %v1259 = vadd.f32 %v1080, %v1258
      %v1260 = vpop.f32.mrf.mxu0
      %v1261 = vadd.f32 %v1084, %v1260
      %1262 = vmatprep.mubr.bf16.mxu0 0
      %1263 = vmatmul.mubr.bf16.gmra.mxu0 %v1040
      %v1264 = vpop.f32.mrf.mxu0
      %v1265 = vadd.f32 %v1080, %v1264
      %v1266 = vpop.f32.mrf.mxu0
      %v1267 = vadd.f32 %v1084, %v1266
      %v1268 = vpop.f32.mrf.mxu0
      %v1269 = vadd.f32 %v1080, %v1268
      %v1270 = vpop.f32.mrf.mxu0
      %v1271 = vadd.f32 %v1084, %v1270
      %1272 = vmatprep.mubr.bf16.mxu0 0
      %1273 = vmatmul.mubr.bf16.gmra.mxu0 %v1041
      %v1274 = vpop.f32.mrf.mxu0
      %v1275 = vadd.f32 %v1080, %v1274
      %v1276 = vpop.f32.mrf.mxu0
      %v1277 = vadd.f32 %v1084, %v1276
      %v1278 = vpop.f32.mrf.mxu0
      %v1279 = vadd.f32 %v1080, %v1278
      %v1280 = vpop.f32.mrf.mxu0
      %v1281 = vadd.f32 %v1084, %v1280
      %1282 = vmatprep.mubr.bf16.mxu0 0
      %1283 = vmatmul.mubr.bf16.gmra.mxu0 %v1042
      %v1284 = vpop.f32.mrf.mxu0
      %v1285 = vadd.f32 %v1080, %v1284
      %v1286 = vpop.f32.mrf.mxu0
      %v1287 = vadd.f32 %v1084, %v1286
      %v1288 = vpop.f32.mrf.mxu0
      %v1289 = vadd.f32 %v1080, %v1288
      %v1290 = vpop.f32.mrf.mxu0
      %v1291 = vadd.f32 %v1084, %v1290
      %1292 = vdwg.mxu0
      %1293 = vmatprep.subr.bf16.mxu0 0
      %1294 = vmatpush1.bf16.msra.mxu0 %v1195
      %1295 = vmatprep.subr.bf16.mxu0 0
      %1296 = vmatpush1.bf16.msra.mxu0 %v1192
      %1297 = vmatprep.subr.bf16.mxu0 0
      %1298 = vmatpush1.bf16.msra.mxu0 %v1189
      %1299 = vmatprep.subr.bf16.mxu0 0
      %1300 = vmatpush1.bf16.msra.mxu0 %v1186
      %1301 = vmatprep.subr.bf16.mxu0 0
      %1302 = vmatpush1.bf16.msra.mxu0 %v1183
      %1303 = vmatprep.subr.bf16.mxu0 0
      %1304 = vmatpush1.bf16.msra.mxu0 %v1180
      %1305 = vmatprep.subr.bf16.mxu0 0
      %1306 = vmatpush1.bf16.msra.mxu0 %v1177
      %1307 = vmatprep.subr.bf16.mxu0 0
      %1308 = vmatpush1.bf16.msra.mxu0 %v1174
      %1309 = vmatprep.subr.bf16.mxu0 0
      %1310 = vmatpush2.bf16.msra.mxu0 0
      %1311 = vmatprep.subr.bf16.mxu0 0
      %1312 = vmatpush2.bf16.msra.mxu0 0
      %1313 = vmatprep.subr.bf16.mxu0 0
      %1314 = vmatpush2.bf16.msra.mxu0 0
      %1315 = vmatprep.subr.bf16.mxu0 0
      %1316 = vmatpush2.bf16.msra.mxu0 0
      %1317 = vmatprep.subr.bf16.mxu0 0
      %1318 = vmatpush2.bf16.msra.mxu0 0
      %1319 = vmatprep.subr.bf16.mxu0 0
      %1320 = vmatpush2.bf16.msra.mxu0 0
      %1321 = vmatprep.subr.bf16.mxu0 0
      %1322 = vmatpush2.bf16.msra.mxu0 0
      %1323 = vmatprep.subr.bf16.mxu0 0
      %1324 = vmatpush2.bf16.msra.mxu0 0
      %1325 = vmatprep.mubr.bf16.mxu0 0
      %1326 = vmatmul.mubr.bf16.gmra.mxu0 %v1039
      %v1327 = vpop.f32.mrf.mxu0
      %v1328 = vadd.f32 %v1088, %v1327
      %v1329 = vpop.f32.mrf.mxu0
      %v1330 = vpop.f32.mrf.mxu0
      %v1331 = vadd.f32 %v1088, %v1330
      %v1332 = vpop.f32.mrf.mxu0
      %1333 = vmatprep.mubr.bf16.mxu0 0
      %1334 = vmatmul.mubr.bf16.gmra.mxu0 %v1040
      %v1335 = vpop.f32.mrf.mxu0
      %v1336 = vadd.f32 %v1088, %v1335
      %v1337 = vpop.f32.mrf.mxu0
      %v1338 = vpop.f32.mrf.mxu0
      %v1339 = vadd.f32 %v1088, %v1338
      %v1340 = vpop.f32.mrf.mxu0
      %1341 = vmatprep.mubr.bf16.mxu0 0
      %1342 = vmatmul.mubr.bf16.gmra.mxu0 %v1041
      %v1343 = vpop.f32.mrf.mxu0
      %v1344 = vadd.f32 %v1088, %v1343
      %v1345 = vpop.f32.mrf.mxu0
      %v1346 = vpop.f32.mrf.mxu0
      %v1347 = vadd.f32 %v1088, %v1346
      %v1348 = vpop.f32.mrf.mxu0
      %1349 = vmatprep.mubr.bf16.mxu0 0
      %1350 = vmatmul.mubr.bf16.gmra.mxu0 %v1042
      %v1351 = vpop.f32.mrf.mxu0
      %v1352 = vadd.f32 %v1088, %v1351
      %v1353 = vpop.f32.mrf.mxu0
      %v1354 = vpop.f32.mrf.mxu0
      %v1355 = vadd.f32 %v1088, %v1354
      %v1356 = vpop.f32.mrf.mxu0
      %1357 = vdwg.mxu0
      %v1358 = vld [vmem:[%s2] sm:$0xff]
      %v1359 = vld [vmem:[%s2 + $0x8] sm:$0xff]
      %v1360 = vpack.c.bf16 %v1259, %v1255
      %v1361 = vpack.c.bf16 %v1269, %v1265
      %v1362 = vpack.c.bf16 %v1279, %v1275
      %v1363 = vpack.c.bf16 %v1289, %v1285
      %v1364 = vpack.c.bf16 %v1261, %v1257
      %v1365 = vpack.c.bf16 %v1271, %v1267
      %v1366 = vpack.c.bf16 %v1281, %v1277
      %v1367 = vpack.c.bf16 %v1291, %v1287
      %v1368 = vpack.c.bf16 %v1331, %v1328
      %v1369 = vpack.c.bf16 %v1339, %v1336
      %v1370 = vpack.c.bf16 %v1347, %v1344
      %v1371 = vpack.c.bf16 %v1355, %v1352
      %vm1372 = vcmask 523264
      %v1374 = vsel %vm1372, %v1360, 0
      %v1377 = vsel %vm1372, %v1364, 0
      %1379 = vmatprep.subr.bf16.mxu0 0
      %1380 = vmatpush1.bf16.xpose.msra.mxu0 0
      %1381 = vmatprep.subr.bf16.mxu0 0
      %1382 = vmatpush1.bf16.xpose.msra.mxu0 0
      %1383 = vmatprep.subr.bf16.mxu0 0
      %1384 = vmatpush1.bf16.xpose.msra.mxu0 0
      %1385 = vmatprep.subr.bf16.mxu0 0
      %1386 = vmatpush1.bf16.xpose.msra.mxu0 0
      %1387 = vmatprep.subr.bf16.mxu0 0
      %1388 = vmatpush1.bf16.xpose.msra.mxu0 0
      %1389 = vmatprep.subr.bf16.mxu0 0
      %1390 = vmatpush1.bf16.xpose.msra.mxu0 0
      %1391 = vmatprep.subr.bf16.mxu0 0
      %1392 = vmatpush1.bf16.xpose.msra.mxu0 0
      %1393 = vmatprep.subr.bf16.mxu0 0
      %1394 = vmatpush1.bf16.xpose.msra.mxu0 %v1377
      %1395 = vmatprep.subr.bf16.mxu0 0
      %1396 = vmatpush2.bf16.xpose.msra.mxu0 0
      %1397 = vmatprep.subr.bf16.mxu0 0
      %1398 = vmatpush2.bf16.xpose.msra.mxu0 0
      %1399 = vmatprep.subr.bf16.mxu0 0
      %1400 = vmatpush2.bf16.xpose.msra.mxu0 0
      %1401 = vmatprep.subr.bf16.mxu0 0
      %1402 = vmatpush2.bf16.xpose.msra.mxu0 0
      %1403 = vmatprep.subr.bf16.mxu0 0
      %1404 = vmatpush2.bf16.xpose.msra.mxu0 0
      %1405 = vmatprep.subr.bf16.mxu0 0
      %1406 = vmatpush2.bf16.xpose.msra.mxu0 0
      %1407 = vmatprep.subr.bf16.mxu0 0
      %1408 = vmatpush2.bf16.xpose.msra.mxu0 0
      %1409 = vmatprep.subr.bf16.mxu0 0
      %1410 = vmatpush2.bf16.xpose.msra.mxu0 0
      %1411 = vmatprep.mubr.bf16.mxu0 0
      %1412 = vmatmul.mubr.bf16.gmra.mxu0 %v1374
      %v1413 = vpop.f32.mrf.mxu0
      %v1414 = vadd.f32 0.0, %v1413
      %v1415 = vpop.f32.mrf.mxu0
      %v1416 = vpop.f32.mrf.mxu0
      %v1417 = vadd.f32 0.0, %v1416
      %v1418 = vpop.f32.mrf.mxu0
      %1419 = vdwg.mxu0
      %v1421 = vsel %vm1372, %v1361, 0
      %v1424 = vsel %vm1372, %v1365, 0
      %1426 = vmatprep.subr.bf16.mxu0 0
      %1427 = vmatpush1.bf16.xpose.msra.mxu0 0
      %1428 = vmatprep.subr.bf16.mxu0 0
      %1429 = vmatpush1.bf16.xpose.msra.mxu0 0
      %1430 = vmatprep.subr.bf16.mxu0 0
      %1431 = vmatpush1.bf16.xpose.msra.mxu0 0
      %1432 = vmatprep.subr.bf16.mxu0 0
      %1433 = vmatpush1.bf16.xpose.msra.mxu0 0
      %1434 = vmatprep.subr.bf16.mxu0 0
      %1435 = vmatpush1.bf16.xpose.msra.mxu0 0
      %1436 = vmatprep.subr.bf16.mxu0 0
      %1437 = vmatpush1.bf16.xpose.msra.mxu0 0
      %1438 = vmatprep.subr.bf16.mxu0 0
      %1439 = vmatpush1.bf16.xpose.msra.mxu0 0
      %1440 = vmatprep.subr.bf16.mxu0 0
      %1441 = vmatpush1.bf16.xpose.msra.mxu0 %v1424
      %1442 = vmatprep.subr.bf16.mxu0 0
      %1443 = vmatpush2.bf16.xpose.msra.mxu0 0
      %1444 = vmatprep.subr.bf16.mxu0 0
      %1445 = vmatpush2.bf16.xpose.msra.mxu0 0
      %1446 = vmatprep.subr.bf16.mxu0 0
      %1447 = vmatpush2.bf16.xpose.msra.mxu0 0
      %1448 = vmatprep.subr.bf16.mxu0 0
      %1449 = vmatpush2.bf16.xpose.msra.mxu0 0
      %1450 = vmatprep.subr.bf16.mxu0 0
      %1451 = vmatpush2.bf16.xpose.msra.mxu0 0
      %1452 = vmatprep.subr.bf16.mxu0 0
      %1453 = vmatpush2.bf16.xpose.msra.mxu0 0
      %1454 = vmatprep.subr.bf16.mxu0 0
      %1455 = vmatpush2.bf16.xpose.msra.mxu0 0
      %1456 = vmatprep.subr.bf16.mxu0 0
      %1457 = vmatpush2.bf16.xpose.msra.mxu0 0
      %1458 = vmatprep.mubr.bf16.mxu0 0
      %1459 = vmatmul.mubr.bf16.gmra.mxu0 %v1421
      %v1460 = vpop.f32.mrf.mxu0
      %v1461 = vadd.f32 0.0, %v1460
      %v1462 = vpop.f32.mrf.mxu0
      %v1463 = vpop.f32.mrf.mxu0
      %v1464 = vadd.f32 0.0, %v1463
      %v1465 = vpop.f32.mrf.mxu0
      %1466 = vdwg.mxu0
      %v1468 = vsel %vm1372, %v1362, 0
      %v1471 = vsel %vm1372, %v1366, 0
      %1473 = vmatprep.subr.bf16.mxu0 0
      %1474 = vmatpush1.bf16.xpose.msra.mxu0 0
      %1475 = vmatprep.subr.bf16.mxu0 0
      %1476 = vmatpush1.bf16.xpose.msra.mxu0 0
      %1477 = vmatprep.subr.bf16.mxu0 0
      %1478 = vmatpush1.bf16.xpose.msra.mxu0 0
      %1479 = vmatprep.subr.bf16.mxu0 0
      %1480 = vmatpush1.bf16.xpose.msra.mxu0 0
      %1481 = vmatprep.subr.bf16.mxu0 0
      %1482 = vmatpush1.bf16.xpose.msra.mxu0 0
      %1483 = vmatprep.subr.bf16.mxu0 0
      %1484 = vmatpush1.bf16.xpose.msra.mxu0 0
      %1485 = vmatprep.subr.bf16.mxu0 0
      %1486 = vmatpush1.bf16.xpose.msra.mxu0 0
      %1487 = vmatprep.subr.bf16.mxu0 0
      %1488 = vmatpush1.bf16.xpose.msra.mxu0 %v1471
      %1489 = vmatprep.subr.bf16.mxu0 0
      %1490 = vmatpush2.bf16.xpose.msra.mxu0 0
      %1491 = vmatprep.subr.bf16.mxu0 0
      %1492 = vmatpush2.bf16.xpose.msra.mxu0 0
      %1493 = vmatprep.subr.bf16.mxu0 0
      %1494 = vmatpush2.bf16.xpose.msra.mxu0 0
      %1495 = vmatprep.subr.bf16.mxu0 0
      %1496 = vmatpush2.bf16.xpose.msra.mxu0 0
      %1497 = vmatprep.subr.bf16.mxu0 0
      %1498 = vmatpush2.bf16.xpose.msra.mxu0 0
      %1499 = vmatprep.subr.bf16.mxu0 0
      %1500 = vmatpush2.bf16.xpose.msra.mxu0 0
      %1501 = vmatprep.subr.bf16.mxu0 0
      %1502 = vmatpush2.bf16.xpose.msra.mxu0 0
      %1503 = vmatprep.subr.bf16.mxu0 0
      %1504 = vmatpush2.bf16.xpose.msra.mxu0 0
      %1505 = vmatprep.mubr.bf16.mxu0 0
      %1506 = vmatmul.mubr.bf16.gmra.mxu0 %v1468
      %v1507 = vpop.f32.mrf.mxu0
      %v1508 = vadd.f32 0.0, %v1507
      %v1509 = vpop.f32.mrf.mxu0
      %v1510 = vpop.f32.mrf.mxu0
      %v1511 = vadd.f32 0.0, %v1510
      %v1512 = vpop.f32.mrf.mxu0
      %1513 = vdwg.mxu0
      %v1515 = vsel %vm1372, %v1363, 0
      %v1518 = vsel %vm1372, %v1367, 0
      %1520 = vmatprep.subr.bf16.mxu0 0
      %1521 = vmatpush1.bf16.xpose.msra.mxu0 0
      %1522 = vmatprep.subr.bf16.mxu0 0
      %1523 = vmatpush1.bf16.xpose.msra.mxu0 0
      %1524 = vmatprep.subr.bf16.mxu0 0
      %1525 = vmatpush1.bf16.xpose.msra.mxu0 0
      %1526 = vmatprep.subr.bf16.mxu0 0
      %1527 = vmatpush1.bf16.xpose.msra.mxu0 0
      %1528 = vmatprep.subr.bf16.mxu0 0
      %1529 = vmatpush1.bf16.xpose.msra.mxu0 0
      %1530 = vmatprep.subr.bf16.mxu0 0
      %1531 = vmatpush1.bf16.xpose.msra.mxu0 0
      %1532 = vmatprep.subr.bf16.mxu0 0
      %1533 = vmatpush1.bf16.xpose.msra.mxu0 0
      %1534 = vmatprep.subr.bf16.mxu0 0
      %1535 = vmatpush1.bf16.xpose.msra.mxu0 %v1518
      %1536 = vmatprep.subr.bf16.mxu0 0
      %1537 = vmatpush2.bf16.xpose.msra.mxu0 0
      %1538 = vmatprep.subr.bf16.mxu0 0
      %1539 = vmatpush2.bf16.xpose.msra.mxu0 0
      %1540 = vmatprep.subr.bf16.mxu0 0
      %1541 = vmatpush2.bf16.xpose.msra.mxu0 0
      %1542 = vmatprep.subr.bf16.mxu0 0
      %1543 = vmatpush2.bf16.xpose.msra.mxu0 0
      %1544 = vmatprep.subr.bf16.mxu0 0
      %1545 = vmatpush2.bf16.xpose.msra.mxu0 0
      %1546 = vmatprep.subr.bf16.mxu0 0
      %1547 = vmatpush2.bf16.xpose.msra.mxu0 0
      %1548 = vmatprep.subr.bf16.mxu0 0
      %1549 = vmatpush2.bf16.xpose.msra.mxu0 0
      %1550 = vmatprep.subr.bf16.mxu0 0
      %1551 = vmatpush2.bf16.xpose.msra.mxu0 0
      %1552 = vmatprep.mubr.bf16.mxu0 0
      %1553 = vmatmul.mubr.bf16.gmra.mxu0 %v1515
      %v1554 = vpop.f32.mrf.mxu0
      %v1555 = vadd.f32 0.0, %v1554
      %v1556 = vpop.f32.mrf.mxu0
      %v1557 = vpop.f32.mrf.mxu0
      %v1558 = vadd.f32 0.0, %v1557
      %v1559 = vpop.f32.mrf.mxu0
      %1560 = vdwg.mxu0
      %v1561 = vmul.f32 %v1414, 0.125
      %v1562 = vmul.f32 %v1417, 0.125
      %v1563 = vmul.f32 %v1461, 0.125
      %v1564 = vmul.f32 %v1464, 0.125
      %v1565 = vmul.f32 %v1508, 0.125
      %v1566 = vmul.f32 %v1511, 0.125
      %v1567 = vmul.f32 %v1555, 0.125
      %v1568 = vmul.f32 %v1558, 0.125
      %v1569 = vadd.f32 %v1561, %v1358
      %v1570 = vadd.f32 %v1562, %v1359
      %v1571 = vadd.f32 %v1563, %v1358
      %v1572 = vadd.f32 %v1564, %v1359
      %v1573 = vadd.f32 %v1565, %v1358
      %v1574 = vadd.f32 %v1566, %v1359
      %v1575 = vadd.f32 %v1567, %v1358
      %v1576 = vadd.f32 %v1568, %v1359
      %vm1577 = vcmask 130048
      %v1578 = vsel %vm1577, %v1569, -inf
      %1579 = vmax.xlane.f32.xlu0 %v1578
      %v1580 = vpop.xlane.xlu0 %1579
      %v1581 = vsel %vm1577, %v1570, -inf
      %1582 = vmax.xlane.f32.xlu0 %v1581
      %v1583 = vpop.xlane.xlu0 %1582
      %v1584 = vsel %vm1577, %v1571, -inf
      %1585 = vmax.xlane.f32.xlu0 %v1584
      %v1586 = vpop.xlane.xlu0 %1585
      %v1587 = vsel %vm1577, %v1572, -inf
      %1588 = vmax.xlane.f32.xlu0 %v1587
      %v1589 = vpop.xlane.xlu0 %1588
      %v1590 = vsel %vm1577, %v1573, -inf
      %1591 = vmax.xlane.f32.xlu0 %v1590
      %v1592 = vpop.xlane.xlu0 %1591
      %v1593 = vsel %vm1577, %v1574, -inf
      %1594 = vmax.xlane.f32.xlu0 %v1593
      %v1595 = vpop.xlane.xlu0 %1594
      %v1596 = vsel %vm1577, %v1575, -inf
      %1597 = vmax.xlane.f32.xlu0 %v1596
      %v1598 = vpop.xlane.xlu0 %1597
      %v1599 = vsel %vm1577, %v1576, -inf
      %1600 = vmax.xlane.f32.xlu0 %v1599
      %v1601 = vpop.xlane.xlu0 %1600
      %v1602 = vsub.f32 %v1569, %v1580
      %v1603 = vsub.f32 %v1570, %v1583
      %v1604 = vsub.f32 %v1571, %v1586
      %v1605 = vsub.f32 %v1572, %v1589
      %v1606 = vsub.f32 %v1573, %v1592
      %v1607 = vsub.f32 %v1574, %v1595
      %v1608 = vsub.f32 %v1575, %v1598
      %v1609 = vsub.f32 %v1576, %v1601
      %v1610 = vmul.f32 %v1602, 1.442695
      %v1611 = vpow.pop %v1610
      %v1612 = vmul.f32 %v1603, 1.442695
      %v1613 = vpow.pop %v1612
      %v1614 = vmul.f32 %v1604, 1.442695
      %v1615 = vpow.pop %v1614
      %v1616 = vmul.f32 %v1605, 1.442695
      %v1617 = vpow.pop %v1616
      %v1618 = vmul.f32 %v1606, 1.442695
      %v1619 = vpow.pop %v1618
      %v1620 = vmul.f32 %v1607, 1.442695
      %v1621 = vpow.pop %v1620
      %v1622 = vmul.f32 %v1608, 1.442695
      %v1623 = vpow.pop %v1622
      %v1624 = vmul.f32 %v1609, 1.442695
      %v1625 = vpow.pop %v1624
      %v1626 = vsel %vm1577, %v1611, 0.0
      %1627 = vadd.xlane.f32.xlu0 %v1626
      %v1628 = vpop.xlane.xlu0 %1627
      %v1629 = vsel %vm1577, %v1613, 0.0
      %1630 = vadd.xlane.f32.xlu0 %v1629
      %v1631 = vpop.xlane.xlu0 %1630
      %v1632 = vsel %vm1577, %v1615, 0.0
      %1633 = vadd.xlane.f32.xlu0 %v1632
      %v1634 = vpop.xlane.xlu0 %1633
      %v1635 = vsel %vm1577, %v1617, 0.0
      %1636 = vadd.xlane.f32.xlu0 %v1635
      %v1637 = vpop.xlane.xlu0 %1636
      %v1638 = vsel %vm1577, %v1619, 0.0
      %1639 = vadd.xlane.f32.xlu0 %v1638
      %v1640 = vpop.xlane.xlu0 %1639
      %v1641 = vsel %vm1577, %v1621, 0.0
      %1642 = vadd.xlane.f32.xlu0 %v1641
      %v1643 = vpop.xlane.xlu0 %1642
      %v1644 = vsel %vm1577, %v1623, 0.0
      %1645 = vadd.xlane.f32.xlu0 %v1644
      %v1646 = vpop.xlane.xlu0 %1645
      %v1647 = vsel %vm1577, %v1625, 0.0
      %1648 = vadd.xlane.f32.xlu0 %v1647
      %v1649 = vpop.xlane.xlu0 %1648
      %v1650 = vrcp.pop %v1628
      %v1651 = vrcp.pop %v1631
      %v1652 = vrcp.pop %v1634
      %v1653 = vrcp.pop %v1637
      %v1654 = vrcp.pop %v1640
      %v1655 = vrcp.pop %v1643
      %v1656 = vrcp.pop %v1646
      %v1657 = vrcp.pop %v1649
      %v1658 = vmul.f32 %v1611, %v1650
      %v1659 = vmul.f32 %v1613, %v1651
      %v1660 = vmul.f32 %v1615, %v1652
      %v1661 = vmul.f32 %v1617, %v1653
      %v1662 = vmul.f32 %v1619, %v1654
      %v1663 = vmul.f32 %v1621, %v1655
      %v1664 = vmul.f32 %v1623, %v1656
      %v1665 = vmul.f32 %v1625, %v1657
      %v1666 = vpack.c.bf16 %v1659, %v1658
      %v1667 = vpack.c.bf16 %v1661, %v1660
      %v1668 = vpack.c.bf16 %v1663, %v1662
      %v1669 = vpack.c.bf16 %v1665, %v1664
      %v1671 = vsel %vm1577, %v1666, 0
      %1673 = vmatprep.subr.bf16.mxu0 0
      %1674 = vmatpush1.bf16.msra.mxu0 0
      %1675 = vmatprep.subr.bf16.mxu0 0
      %1676 = vmatpush1.bf16.msra.mxu0 0
      %1677 = vmatprep.subr.bf16.mxu0 0
      %1678 = vmatpush1.bf16.msra.mxu0 0
      %1679 = vmatprep.subr.bf16.mxu0 0
      %1680 = vmatpush1.bf16.msra.mxu0 0
      %1681 = vmatprep.subr.bf16.mxu0 0
      %1682 = vmatpush1.bf16.msra.mxu0 0
      %1683 = vmatprep.subr.bf16.mxu0 0
      %1684 = vmatpush1.bf16.msra.mxu0 0
      %1685 = vmatprep.subr.bf16.mxu0 0
      %1686 = vmatpush1.bf16.msra.mxu0 0
      %1687 = vmatprep.subr.bf16.mxu0 0
      %1688 = vmatpush1.bf16.msra.mxu0 %v1368
      %1689 = vmatprep.subr.bf16.mxu0 0
      %1690 = vmatpush2.bf16.msra.mxu0 0
      %1691 = vmatprep.subr.bf16.mxu0 0
      %1692 = vmatpush2.bf16.msra.mxu0 0
      %1693 = vmatprep.subr.bf16.mxu0 0
      %1694 = vmatpush2.bf16.msra.mxu0 0
      %1695 = vmatprep.subr.bf16.mxu0 0
      %1696 = vmatpush2.bf16.msra.mxu0 0
      %1697 = vmatprep.subr.bf16.mxu0 0
      %1698 = vmatpush2.bf16.msra.mxu0 0
      %1699 = vmatprep.subr.bf16.mxu0 0
      %1700 = vmatpush2.bf16.msra.mxu0 0
      %1701 = vmatprep.subr.bf16.mxu0 0
      %1702 = vmatpush2.bf16.msra.mxu0 0
      %1703 = vmatprep.subr.bf16.mxu0 0
      %1704 = vmatpush2.bf16.msra.mxu0 0
      %1705 = vmatprep.mubr.bf16.mxu0 0
      %1706 = vmatmul.mubr.bf16.gmra.mxu0 %v1671
      %v1707 = vpop.f32.mrf.mxu0
      %v1708 = vadd.f32 0.0, %v1707
      %v1709 = vpop.f32.mrf.mxu0
      %v1710 = vpop.f32.mrf.mxu0
      %v1711 = vadd.f32 0.0, %v1710
      %v1712 = vpop.f32.mrf.mxu0
      %1713 = vdwg.mxu0
      %v1715 = vsel %vm1577, %v1667, 0
      %1717 = vmatprep.subr.bf16.mxu0 0
      %1718 = vmatpush1.bf16.msra.mxu0 0
      %1719 = vmatprep.subr.bf16.mxu0 0
      %1720 = vmatpush1.bf16.msra.mxu0 0
      %1721 = vmatprep.subr.bf16.mxu0 0
      %1722 = vmatpush1.bf16.msra.mxu0 0
      %1723 = vmatprep.subr.bf16.mxu0 0
      %1724 = vmatpush1.bf16.msra.mxu0 0
      %1725 = vmatprep.subr.bf16.mxu0 0
      %1726 = vmatpush1.bf16.msra.mxu0 0
      %1727 = vmatprep.subr.bf16.mxu0 0
      %1728 = vmatpush1.bf16.msra.mxu0 0
      %1729 = vmatprep.subr.bf16.mxu0 0
      %1730 = vmatpush1.bf16.msra.mxu0 0
      %1731 = vmatprep.subr.bf16.mxu0 0
      %1732 = vmatpush1.bf16.msra.mxu0 %v1369
      %1733 = vmatprep.subr.bf16.mxu0 0
      %1734 = vmatpush2.bf16.msra.mxu0 0
      %1735 = vmatprep.subr.bf16.mxu0 0
      %1736 = vmatpush2.bf16.msra.mxu0 0
      %1737 = vmatprep.subr.bf16.mxu0 0
      %1738 = vmatpush2.bf16.msra.mxu0 0
      %1739 = vmatprep.subr.bf16.mxu0 0
      %1740 = vmatpush2.bf16.msra.mxu0 0
      %1741 = vmatprep.subr.bf16.mxu0 0
      %1742 = vmatpush2.bf16.msra.mxu0 0
      %1743 = vmatprep.subr.bf16.mxu0 0
      %1744 = vmatpush2.bf16.msra.mxu0 0
      %1745 = vmatprep.subr.bf16.mxu0 0
      %1746 = vmatpush2.bf16.msra.mxu0 0
      %1747 = vmatprep.subr.bf16.mxu0 0
      %1748 = vmatpush2.bf16.msra.mxu0 0
      %1749 = vmatprep.mubr.bf16.mxu0 0
      %1750 = vmatmul.mubr.bf16.gmra.mxu0 %v1715
      %v1751 = vpop.f32.mrf.mxu0
      %v1752 = vadd.f32 0.0, %v1751
      %v1753 = vpop.f32.mrf.mxu0
      %v1754 = vpop.f32.mrf.mxu0
      %v1755 = vadd.f32 0.0, %v1754
      %v1756 = vpop.f32.mrf.mxu0
      %1757 = vdwg.mxu0
      %v1759 = vsel %vm1577, %v1668, 0
      %1761 = vmatprep.subr.bf16.mxu0 0
      %1762 = vmatpush1.bf16.msra.mxu0 0
      %1763 = vmatprep.subr.bf16.mxu0 0
      %1764 = vmatpush1.bf16.msra.mxu0 0
      %1765 = vmatprep.subr.bf16.mxu0 0
      %1766 = vmatpush1.bf16.msra.mxu0 0
      %1767 = vmatprep.subr.bf16.mxu0 0
      %1768 = vmatpush1.bf16.msra.mxu0 0
      %1769 = vmatprep.subr.bf16.mxu0 0
      %1770 = vmatpush1.bf16.msra.mxu0 0
      %1771 = vmatprep.subr.bf16.mxu0 0
      %1772 = vmatpush1.bf16.msra.mxu0 0
      %1773 = vmatprep.subr.bf16.mxu0 0
      %1774 = vmatpush1.bf16.msra.mxu0 0
      %1775 = vmatprep.subr.bf16.mxu0 0
      %1776 = vmatpush1.bf16.msra.mxu0 %v1370
      %1777 = vmatprep.subr.bf16.mxu0 0
      %1778 = vmatpush2.bf16.msra.mxu0 0
      %1779 = vmatprep.subr.bf16.mxu0 0
      %1780 = vmatpush2.bf16.msra.mxu0 0
      %1781 = vmatprep.subr.bf16.mxu0 0
      %1782 = vmatpush2.bf16.msra.mxu0 0
      %1783 = vmatprep.subr.bf16.mxu0 0
      %1784 = vmatpush2.bf16.msra.mxu0 0
      %1785 = vmatprep.subr.bf16.mxu0 0
      %1786 = vmatpush2.bf16.msra.mxu0 0
      %1787 = vmatprep.subr.bf16.mxu0 0
      %1788 = vmatpush2.bf16.msra.mxu0 0
      %1789 = vmatprep.subr.bf16.mxu0 0
      %1790 = vmatpush2.bf16.msra.mxu0 0
      %1791 = vmatprep.subr.bf16.mxu0 0
      %1792 = vmatpush2.bf16.msra.mxu0 0
      %1793 = vmatprep.mubr.bf16.mxu0 0
      %1794 = vmatmul.mubr.bf16.gmra.mxu0 %v1759
      %v1795 = vpop.f32.mrf.mxu0
      %v1796 = vadd.f32 0.0, %v1795
      %v1797 = vpop.f32.mrf.mxu0
      %v1798 = vpop.f32.mrf.mxu0
      %v1799 = vadd.f32 0.0, %v1798
      %v1800 = vpop.f32.mrf.mxu0
      %1801 = vdwg.mxu0
      %v1803 = vsel %vm1577, %v1669, 0
      %1805 = vmatprep.subr.bf16.mxu0 0
      %1806 = vmatpush1.bf16.msra.mxu0 0
      %1807 = vmatprep.subr.bf16.mxu0 0
      %1808 = vmatpush1.bf16.msra.mxu0 0
      %1809 = vmatprep.subr.bf16.mxu0 0
      %1810 = vmatpush1.bf16.msra.mxu0 0
      %1811 = vmatprep.subr.bf16.mxu0 0
      %1812 = vmatpush1.bf16.msra.mxu0 0
      %1813 = vmatprep.subr.bf16.mxu0 0
      %1814 = vmatpush1.bf16.msra.mxu0 0
      %1815 = vmatprep.subr.bf16.mxu0 0
      %1816 = vmatpush1.bf16.msra.mxu0 0
      %1817 = vmatprep.subr.bf16.mxu0 0
      %1818 = vmatpush1.bf16.msra.mxu0 0
      %1819 = vmatprep.subr.bf16.mxu0 0
      %1820 = vmatpush1.bf16.msra.mxu0 %v1371
      %1821 = vmatprep.subr.bf16.mxu0 0
      %1822 = vmatpush2.bf16.msra.mxu0 0
      %1823 = vmatprep.subr.bf16.mxu0 0
      %1824 = vmatpush2.bf16.msra.mxu0 0
      %1825 = vmatprep.subr.bf16.mxu0 0
      %1826 = vmatpush2.bf16.msra.mxu0 0
      %1827 = vmatprep.subr.bf16.mxu0 0
      %1828 = vmatpush2.bf16.msra.mxu0 0
      %1829 = vmatprep.subr.bf16.mxu0 0
      %1830 = vmatpush2.bf16.msra.mxu0 0
      %1831 = vmatprep.subr.bf16.mxu0 0
      %1832 = vmatpush2.bf16.msra.mxu0 0
      %1833 = vmatprep.subr.bf16.mxu0 0
      %1834 = vmatpush2.bf16.msra.mxu0 0
      %1835 = vmatprep.subr.bf16.mxu0 0
      %1836 = vmatpush2.bf16.msra.mxu0 0
      %1837 = vmatprep.mubr.bf16.mxu0 0
      %1838 = vmatmul.mubr.bf16.gmra.mxu0 %v1803
      %v1839 = vpop.f32.mrf.mxu0
      %v1840 = vadd.f32 0.0, %v1839
      %v1841 = vpop.f32.mrf.mxu0
      %v1842 = vpop.f32.mrf.mxu0
      %v1843 = vadd.f32 0.0, %v1842
      %v1844 = vpop.f32.mrf.mxu0
      %1845 = vdwg.mxu0
      %v1846 = vpack.c.bf16 %v1711, %v1708
      %v1847 = vpack.c.bf16 %v1755, %v1752
      %v1848 = vpack.c.bf16 %v1799, %v1796
      %v1849 = vpack.c.bf16 %v1843, %v1840
      %v1854 = vunpack.c.l.b16 %v1846
      %v1855 = vunpack.c.h.b16 %v1846
      %v1856 = vunpack.c.l.b16 %v1847
      %v1857 = vunpack.c.h.b16 %v1847
      %v1858 = vunpack.c.l.b16 %v1848
      %v1859 = vunpack.c.h.b16 %v1848
      %v1860 = vunpack.c.l.b16 %v1849
      %v1861 = vunpack.c.h.b16 %v1849
      %v1862 = vpack.c.b16 %v1854, %v1854
      %v1863 = vpack.c.b16 %v1855, %v1855
      %v1864 = vpack.c.b16 %v1856, %v1856
      %v1865 = vpack.c.b16 %v1857, %v1857
      %v1866 = vpack.c.b16 %v1858, %v1858
      %v1867 = vpack.c.b16 %v1859, %v1859
      %v1868 = vpack.c.b16 %v1860, %v1860
      %v1869 = vpack.c.b16 %v1861, %v1861
      %vm1878 = vcmask 519168
      %1879 = vst.msk [vmem:[#allocation3] sm:$0xf] %vm1878, %v1862
      %1880 = vst.msk [vmem:[#allocation3 + $0x4] sm:$0xf] %vm1878, %v1863
      %1881 = vst.msk [vmem:[#allocation3 + $0x8] sm:$0xf] %vm1878, %v1864
      %1882 = vst.msk [vmem:[#allocation3 + $0xc] sm:$0xf] %vm1878, %v1865
      %1883 = vst.msk [vmem:[#allocation3 + $0x10] sm:$0xf] %vm1878, %v1866
      %1884 = vst.msk [vmem:[#allocation3 + $0x14] sm:$0xf] %vm1878, %v1867
      %1885 = vst.msk [vmem:[#allocation3 + $0x18] sm:$0xf] %vm1878, %v1868
      %1886 = vst.msk [vmem:[#allocation3 + $0x1c] sm:$0xf] %vm1878, %v1869
      %1888 = vrot.lane.b32.xlu0 %v1360, 64
      %v1889 = vpop.permute.xlu0 %1888
      %1891 = vrot.lane.b32.xlu0 %v1364, 64
      %v1892 = vpop.permute.xlu0 %1891
      %v1894 = vsel %vm1372, %v1889, 0
      %v1897 = vsel %vm1372, %v1892, 0
      %1899 = vmatprep.subr.bf16.mxu0 0
      %1900 = vmatpush1.bf16.xpose.msra.mxu0 0
      %1901 = vmatprep.subr.bf16.mxu0 0
      %1902 = vmatpush1.bf16.xpose.msra.mxu0 0
      %1903 = vmatprep.subr.bf16.mxu0 0
      %1904 = vmatpush1.bf16.xpose.msra.mxu0 0
      %1905 = vmatprep.subr.bf16.mxu0 0
      %1906 = vmatpush1.bf16.xpose.msra.mxu0 0
      %1907 = vmatprep.subr.bf16.mxu0 0
      %1908 = vmatpush1.bf16.xpose.msra.mxu0 0
      %1909 = vmatprep.subr.bf16.mxu0 0
      %1910 = vmatpush1.bf16.xpose.msra.mxu0 0
      %1911 = vmatprep.subr.bf16.mxu0 0
      %1912 = vmatpush1.bf16.xpose.msra.mxu0 0
      %1913 = vmatprep.subr.bf16.mxu0 0
      %1914 = vmatpush1.bf16.xpose.msra.mxu0 %v1897
      %1915 = vmatprep.subr.bf16.mxu0 0
      %1916 = vmatpush2.bf16.xpose.msra.mxu0 0
      %1917 = vmatprep.subr.bf16.mxu0 0
      %1918 = vmatpush2.bf16.xpose.msra.mxu0 0
      %1919 = vmatprep.subr.bf16.mxu0 0
      %1920 = vmatpush2.bf16.xpose.msra.mxu0 0
      %1921 = vmatprep.subr.bf16.mxu0 0
      %1922 = vmatpush2.bf16.xpose.msra.mxu0 0
      %1923 = vmatprep.subr.bf16.mxu0 0
      %1924 = vmatpush2.bf16.xpose.msra.mxu0 0
      %1925 = vmatprep.subr.bf16.mxu0 0
      %1926 = vmatpush2.bf16.xpose.msra.mxu0 0
      %1927 = vmatprep.subr.bf16.mxu0 0
      %1928 = vmatpush2.bf16.xpose.msra.mxu0 0
      %1929 = vmatprep.subr.bf16.mxu0 0
      %1930 = vmatpush2.bf16.xpose.msra.mxu0 0
      %1931 = vmatprep.mubr.bf16.mxu0 0
      %1932 = vmatmul.mubr.bf16.gmra.mxu0 %v1894
      %v1933 = vpop.f32.mrf.mxu0
      %v1934 = vadd.f32 0.0, %v1933
      %v1935 = vpop.f32.mrf.mxu0
      %v1936 = vpop.f32.mrf.mxu0
      %v1937 = vadd.f32 0.0, %v1936
      %v1938 = vpop.f32.mrf.mxu0
      %1939 = vdwg.mxu0
      %1941 = vrot.lane.b32.xlu0 %v1361, 64
      %v1942 = vpop.permute.xlu0 %1941
      %1944 = vrot.lane.b32.xlu0 %v1365, 64
      %v1945 = vpop.permute.xlu0 %1944
      %v1947 = vsel %vm1372, %v1942, 0
      %v1950 = vsel %vm1372, %v1945, 0
      %1952 = vmatprep.subr.bf16.mxu0 0
      %1953 = vmatpush1.bf16.xpose.msra.mxu0 0
      %1954 = vmatprep.subr.bf16.mxu0 0
      %1955 = vmatpush1.bf16.xpose.msra.mxu0 0
      %1956 = vmatprep.subr.bf16.mxu0 0
      %1957 = vmatpush1.bf16.xpose.msra.mxu0 0
      %1958 = vmatprep.subr.bf16.mxu0 0
      %1959 = vmatpush1.bf16.xpose.msra.mxu0 0
      %1960 = vmatprep.subr.bf16.mxu0 0
      %1961 = vmatpush1.bf16.xpose.msra.mxu0 0
      %1962 = vmatprep.subr.bf16.mxu0 0
      %1963 = vmatpush1.bf16.xpose.msra.mxu0 0
      %1964 = vmatprep.subr.bf16.mxu0 0
      %1965 = vmatpush1.bf16.xpose.msra.mxu0 0
      %1966 = vmatprep.subr.bf16.mxu0 0
      %1967 = vmatpush1.bf16.xpose.msra.mxu0 %v1950
      %1968 = vmatprep.subr.bf16.mxu0 0
      %1969 = vmatpush2.bf16.xpose.msra.mxu0 0
      %1970 = vmatprep.subr.bf16.mxu0 0
      %1971 = vmatpush2.bf16.xpose.msra.mxu0 0
      %1972 = vmatprep.subr.bf16.mxu0 0
      %1973 = vmatpush2.bf16.xpose.msra.mxu0 0
      %1974 = vmatprep.subr.bf16.mxu0 0
      %1975 = vmatpush2.bf16.xpose.msra.mxu0 0
      %1976 = vmatprep.subr.bf16.mxu0 0
      %1977 = vmatpush2.bf16.xpose.msra.mxu0 0
      %1978 = vmatprep.subr.bf16.mxu0 0
      %1979 = vmatpush2.bf16.xpose.msra.mxu0 0
      %1980 = vmatprep.subr.bf16.mxu0 0
      %1981 = vmatpush2.bf16.xpose.msra.mxu0 0
      %1982 = vmatprep.subr.bf16.mxu0 0
      %1983 = vmatpush2.bf16.xpose.msra.mxu0 0
      %1984 = vmatprep.mubr.bf16.mxu0 0
      %1985 = vmatmul.mubr.bf16.gmra.mxu0 %v1947
      %v1986 = vpop.f32.mrf.mxu0
      %v1987 = vadd.f32 0.0, %v1986
      %v1988 = vpop.f32.mrf.mxu0
      %v1989 = vpop.f32.mrf.mxu0
      %v1990 = vadd.f32 0.0, %v1989
      %v1991 = vpop.f32.mrf.mxu0
      %1992 = vdwg.mxu0
      %1994 = vrot.lane.b32.xlu0 %v1362, 64
      %v1995 = vpop.permute.xlu0 %1994
      %1997 = vrot.lane.b32.xlu0 %v1366, 64
      %v1998 = vpop.permute.xlu0 %1997
      %v2000 = vsel %vm1372, %v1995, 0
      %v2003 = vsel %vm1372, %v1998, 0
      %2005 = vmatprep.subr.bf16.mxu0 0
      %2006 = vmatpush1.bf16.xpose.msra.mxu0 0
      %2007 = vmatprep.subr.bf16.mxu0 0
      %2008 = vmatpush1.bf16.xpose.msra.mxu0 0
      %2009 = vmatprep.subr.bf16.mxu0 0
      %2010 = vmatpush1.bf16.xpose.msra.mxu0 0
      %2011 = vmatprep.subr.bf16.mxu0 0
      %2012 = vmatpush1.bf16.xpose.msra.mxu0 0
      %2013 = vmatprep.subr.bf16.mxu0 0
      %2014 = vmatpush1.bf16.xpose.msra.mxu0 0
      %2015 = vmatprep.subr.bf16.mxu0 0
      %2016 = vmatpush1.bf16.xpose.msra.mxu0 0
      %2017 = vmatprep.subr.bf16.mxu0 0
      %2018 = vmatpush1.bf16.xpose.msra.mxu0 0
      %2019 = vmatprep.subr.bf16.mxu0 0
      %2020 = vmatpush1.bf16.xpose.msra.mxu0 %v2003
      %2021 = vmatprep.subr.bf16.mxu0 0
      %2022 = vmatpush2.bf16.xpose.msra.mxu0 0
      %2023 = vmatprep.subr.bf16.mxu0 0
      %2024 = vmatpush2.bf16.xpose.msra.mxu0 0
      %2025 = vmatprep.subr.bf16.mxu0 0
      %2026 = vmatpush2.bf16.xpose.msra.mxu0 0
      %2027 = vmatprep.subr.bf16.mxu0 0
      %2028 = vmatpush2.bf16.xpose.msra.mxu0 0
      %2029 = vmatprep.subr.bf16.mxu0 0
      %2030 = vmatpush2.bf16.xpose.msra.mxu0 0
      %2031 = vmatprep.subr.bf16.mxu0 0
      %2032 = vmatpush2.bf16.xpose.msra.mxu0 0
      %2033 = vmatprep.subr.bf16.mxu0 0
      %2034 = vmatpush2.bf16.xpose.msra.mxu0 0
      %2035 = vmatprep.subr.bf16.mxu0 0
      %2036 = vmatpush2.bf16.xpose.msra.mxu0 0
      %2037 = vmatprep.mubr.bf16.mxu0 0
      %2038 = vmatmul.mubr.bf16.gmra.mxu0 %v2000
      %v2039 = vpop.f32.mrf.mxu0
      %v2040 = vadd.f32 0.0, %v2039
      %v2041 = vpop.f32.mrf.mxu0
      %v2042 = vpop.f32.mrf.mxu0
      %v2043 = vadd.f32 0.0, %v2042
      %v2044 = vpop.f32.mrf.mxu0
      %2045 = vdwg.mxu0
      %2047 = vrot.lane.b32.xlu0 %v1363, 64
      %v2048 = vpop.permute.xlu0 %2047
      %2050 = vrot.lane.b32.xlu0 %v1367, 64
      %v2051 = vpop.permute.xlu0 %2050
      %v2053 = vsel %vm1372, %v2048, 0
      %v2056 = vsel %vm1372, %v2051, 0
      %2058 = vmatprep.subr.bf16.mxu0 0
      %2059 = vmatpush1.bf16.xpose.msra.mxu0 0
      %2060 = vmatprep.subr.bf16.mxu0 0
      %2061 = vmatpush1.bf16.xpose.msra.mxu0 0
      %2062 = vmatprep.subr.bf16.mxu0 0
      %2063 = vmatpush1.bf16.xpose.msra.mxu0 0
      %2064 = vmatprep.subr.bf16.mxu0 0
      %2065 = vmatpush1.bf16.xpose.msra.mxu0 0
      %2066 = vmatprep.subr.bf16.mxu0 0
      %2067 = vmatpush1.bf16.xpose.msra.mxu0 0
      %2068 = vmatprep.subr.bf16.mxu0 0
      %2069 = vmatpush1.bf16.xpose.msra.mxu0 0
      %2070 = vmatprep.subr.bf16.mxu0 0
      %2071 = vmatpush1.bf16.xpose.msra.mxu0 0
      %2072 = vmatprep.subr.bf16.mxu0 0
      %2073 = vmatpush1.bf16.xpose.msra.mxu0 %v2056
      %2074 = vmatprep.subr.bf16.mxu0 0
      %2075 = vmatpush2.bf16.xpose.msra.mxu0 0
      %2076 = vmatprep.subr.bf16.mxu0 0
      %2077 = vmatpush2.bf16.xpose.msra.mxu0 0
      %2078 = vmatprep.subr.bf16.mxu0 0
      %2079 = vmatpush2.bf16.xpose.msra.mxu0 0
      %2080 = vmatprep.subr.bf16.mxu0 0
      %2081 = vmatpush2.bf16.xpose.msra.mxu0 0
      %2082 = vmatprep.subr.bf16.mxu0 0
      %2083 = vmatpush2.bf16.xpose.msra.mxu0 0
      %2084 = vmatprep.subr.bf16.mxu0 0
      %2085 = vmatpush2.bf16.xpose.msra.mxu0 0
      %2086 = vmatprep.subr.bf16.mxu0 0
      %2087 = vmatpush2.bf16.xpose.msra.mxu0 0
      %2088 = vmatprep.subr.bf16.mxu0 0
      %2089 = vmatpush2.bf16.xpose.msra.mxu0 0
      %2090 = vmatprep.mubr.bf16.mxu0 0
      %2091 = vmatmul.mubr.bf16.gmra.mxu0 %v2053
      %v2092 = vpop.f32.mrf.mxu0
      %v2093 = vadd.f32 0.0, %v2092
      %v2094 = vpop.f32.mrf.mxu0
      %v2095 = vpop.f32.mrf.mxu0
      %v2096 = vadd.f32 0.0, %v2095
      %v2097 = vpop.f32.mrf.mxu0
      %2098 = vdwg.mxu0
      %v2099 = vmul.f32 %v1934, 0.125
      %v2100 = vmul.f32 %v1937, 0.125
      %v2101 = vmul.f32 %v1987, 0.125
      %v2102 = vmul.f32 %v1990, 0.125
      %v2103 = vmul.f32 %v2040, 0.125
      %v2104 = vmul.f32 %v2043, 0.125
      %v2105 = vmul.f32 %v2093, 0.125
      %v2106 = vmul.f32 %v2096, 0.125
      %v2107 = vadd.f32 %v2099, %v1358
      %v2108 = vadd.f32 %v2100, %v1359
      %v2109 = vadd.f32 %v2101, %v1358
      %v2110 = vadd.f32 %v2102, %v1359
      %v2111 = vadd.f32 %v2103, %v1358
      %v2112 = vadd.f32 %v2104, %v1359
      %v2113 = vadd.f32 %v2105, %v1358
      %v2114 = vadd.f32 %v2106, %v1359
      %v2115 = vsel %vm1577, %v2107, -inf
      %2116 = vmax.xlane.f32.xlu0 %v2115
      %v2117 = vpop.xlane.xlu0 %2116
      %v2118 = vsel %vm1577, %v2108, -inf
      %2119 = vmax.xlane.f32.xlu0 %v2118
      %v2120 = vpop.xlane.xlu0 %2119
      %v2121 = vsel %vm1577, %v2109, -inf
      %2122 = vmax.xlane.f32.xlu0 %v2121
      %v2123 = vpop.xlane.xlu0 %2122
      %v2124 = vsel %vm1577, %v2110, -inf
      %2125 = vmax.xlane.f32.xlu0 %v2124
      %v2126 = vpop.xlane.xlu0 %2125
      %v2127 = vsel %vm1577, %v2111, -inf
      %2128 = vmax.xlane.f32.xlu0 %v2127
      %v2129 = vpop.xlane.xlu0 %2128
      %v2130 = vsel %vm1577, %v2112, -inf
      %2131 = vmax.xlane.f32.xlu0 %v2130
      %v2132 = vpop.xlane.xlu0 %2131
      %v2133 = vsel %vm1577, %v2113, -inf
      %2134 = vmax.xlane.f32.xlu0 %v2133
      %v2135 = vpop.xlane.xlu0 %2134
      %v2136 = vsel %vm1577, %v2114, -inf
      %2137 = vmax.xlane.f32.xlu0 %v2136
      %v2138 = vpop.xlane.xlu0 %2137
      %v2139 = vsub.f32 %v2107, %v2117
      %v2140 = vsub.f32 %v2108, %v2120
      %v2141 = vsub.f32 %v2109, %v2123
      %v2142 = vsub.f32 %v2110, %v2126
      %v2143 = vsub.f32 %v2111, %v2129
      %v2144 = vsub.f32 %v2112, %v2132
      %v2145 = vsub.f32 %v2113, %v2135
      %v2146 = vsub.f32 %v2114, %v2138
      %v2147 = vmul.f32 %v2139, 1.442695
      %v2148 = vpow.pop %v2147
      %v2149 = vmul.f32 %v2140, 1.442695
      %v2150 = vpow.pop %v2149
      %v2151 = vmul.f32 %v2141, 1.442695
      %v2152 = vpow.pop %v2151
      %v2153 = vmul.f32 %v2142, 1.442695
      %v2154 = vpow.pop %v2153
      %v2155 = vmul.f32 %v2143, 1.442695
      %v2156 = vpow.pop %v2155
      %v2157 = vmul.f32 %v2144, 1.442695
      %v2158 = vpow.pop %v2157
      %v2159 = vmul.f32 %v2145, 1.442695
      %v2160 = vpow.pop %v2159
      %v2161 = vmul.f32 %v2146, 1.442695
      %v2162 = vpow.pop %v2161
      %v2163 = vsel %vm1577, %v2148, 0.0
      %2164 = vadd.xlane.f32.xlu0 %v2163
      %v2165 = vpop.xlane.xlu0 %2164
      %v2166 = vsel %vm1577, %v2150, 0.0
      %2167 = vadd.xlane.f32.xlu0 %v2166
      %v2168 = vpop.xlane.xlu0 %2167
      %v2169 = vsel %vm1577, %v2152, 0.0
      %2170 = vadd.xlane.f32.xlu0 %v2169
      %v2171 = vpop.xlane.xlu0 %2170
      %v2172 = vsel %vm1577, %v2154, 0.0
      %2173 = vadd.xlane.f32.xlu0 %v2172
      %v2174 = vpop.xlane.xlu0 %2173
      %v2175 = vsel %vm1577, %v2156, 0.0
      %2176 = vadd.xlane.f32.xlu0 %v2175
      %v2177 = vpop.xlane.xlu0 %2176
      %v2178 = vsel %vm1577, %v2158, 0.0
      %2179 = vadd.xlane.f32.xlu0 %v2178
      %v2180 = vpop.xlane.xlu0 %2179
      %v2181 = vsel %vm1577, %v2160, 0.0
      %2182 = vadd.xlane.f32.xlu0 %v2181
      %v2183 = vpop.xlane.xlu0 %2182
      %v2184 = vsel %vm1577, %v2162, 0.0
      %2185 = vadd.xlane.f32.xlu0 %v2184
      %v2186 = vpop.xlane.xlu0 %2185
      %v2187 = vrcp.pop %v2165
      %v2188 = vrcp.pop %v2168
      %v2189 = vrcp.pop %v2171
      %v2190 = vrcp.pop %v2174
      %v2191 = vrcp.pop %v2177
      %v2192 = vrcp.pop %v2180
      %v2193 = vrcp.pop %v2183
      %v2194 = vrcp.pop %v2186
      %v2195 = vmul.f32 %v2148, %v2187
      %v2196 = vmul.f32 %v2150, %v2188
      %v2197 = vmul.f32 %v2152, %v2189
      %v2198 = vmul.f32 %v2154, %v2190
      %v2199 = vmul.f32 %v2156, %v2191
      %v2200 = vmul.f32 %v2158, %v2192
      %v2201 = vmul.f32 %v2160, %v2193
      %v2202 = vmul.f32 %v2162, %v2194
      %v2203 = vpack.c.bf16 %v2196, %v2195
      %v2204 = vpack.c.bf16 %v2198, %v2197
      %v2205 = vpack.c.bf16 %v2200, %v2199
      %v2206 = vpack.c.bf16 %v2202, %v2201
      %2208 = vrot.lane.b32.xlu0 %v1368, 64
      %v2209 = vpop.permute.xlu0 %2208
      %v2212 = vsel %vm1577, %v2203, 0
      %2214 = vmatprep.subr.bf16.mxu0 0
      %2215 = vmatpush1.bf16.msra.mxu0 0
      %2216 = vmatprep.subr.bf16.mxu0 0
      %2217 = vmatpush1.bf16.msra.mxu0 0
      %2218 = vmatprep.subr.bf16.mxu0 0
      %2219 = vmatpush1.bf16.msra.mxu0 0
      %2220 = vmatprep.subr.bf16.mxu0 0
      %2221 = vmatpush1.bf16.msra.mxu0 0
      %2222 = vmatprep.subr.bf16.mxu0 0
      %2223 = vmatpush1.bf16.msra.mxu0 0
      %2224 = vmatprep.subr.bf16.mxu0 0
      %2225 = vmatpush1.bf16.msra.mxu0 0
      %2226 = vmatprep.subr.bf16.mxu0 0
      %2227 = vmatpush1.bf16.msra.mxu0 0
      %2228 = vmatprep.subr.bf16.mxu0 0
      %2229 = vmatpush1.bf16.msra.mxu0 %v2209
      %2230 = vmatprep.subr.bf16.mxu0 0
      %2231 = vmatpush2.bf16.msra.mxu0 0
      %2232 = vmatprep.subr.bf16.mxu0 0
      %2233 = vmatpush2.bf16.msra.mxu0 0
      %2234 = vmatprep.subr.bf16.mxu0 0
      %2235 = vmatpush2.bf16.msra.mxu0 0
      %2236 = vmatprep.subr.bf16.mxu0 0
      %2237 = vmatpush2.bf16.msra.mxu0 0
      %2238 = vmatprep.subr.bf16.mxu0 0
      %2239 = vmatpush2.bf16.msra.mxu0 0
      %2240 = vmatprep.subr.bf16.mxu0 0
      %2241 = vmatpush2.bf16.msra.mxu0 0
      %2242 = vmatprep.subr.bf16.mxu0 0
      %2243 = vmatpush2.bf16.msra.mxu0 0
      %2244 = vmatprep.subr.bf16.mxu0 0
      %2245 = vmatpush2.bf16.msra.mxu0 0
      %2246 = vmatprep.mubr.bf16.mxu0 0
      %2247 = vmatmul.mubr.bf16.gmra.mxu0 %v2212
      %v2248 = vpop.f32.mrf.mxu0
      %v2249 = vadd.f32 0.0, %v2248
      %v2250 = vpop.f32.mrf.mxu0
      %v2251 = vpop.f32.mrf.mxu0
      %v2252 = vadd.f32 0.0, %v2251
      %v2253 = vpop.f32.mrf.mxu0
      %2254 = vdwg.mxu0
      %2256 = vrot.lane.b32.xlu0 %v1369, 64
      %v2257 = vpop.permute.xlu0 %2256
      %v2260 = vsel %vm1577, %v2204, 0
      %2262 = vmatprep.subr.bf16.mxu0 0
      %2263 = vmatpush1.bf16.msra.mxu0 0
      %2264 = vmatprep.subr.bf16.mxu0 0
      %2265 = vmatpush1.bf16.msra.mxu0 0
      %2266 = vmatprep.subr.bf16.mxu0 0
      %2267 = vmatpush1.bf16.msra.mxu0 0
      %2268 = vmatprep.subr.bf16.mxu0 0
      %2269 = vmatpush1.bf16.msra.mxu0 0
      %2270 = vmatprep.subr.bf16.mxu0 0
      %2271 = vmatpush1.bf16.msra.mxu0 0
      %2272 = vmatprep.subr.bf16.mxu0 0
      %2273 = vmatpush1.bf16.msra.mxu0 0
      %2274 = vmatprep.subr.bf16.mxu0 0
      %2275 = vmatpush1.bf16.msra.mxu0 0
      %2276 = vmatprep.subr.bf16.mxu0 0
      %2277 = vmatpush1.bf16.msra.mxu0 %v2257
      %2278 = vmatprep.subr.bf16.mxu0 0
      %2279 = vmatpush2.bf16.msra.mxu0 0
      %2280 = vmatprep.subr.bf16.mxu0 0
      %2281 = vmatpush2.bf16.msra.mxu0 0
      %2282 = vmatprep.subr.bf16.mxu0 0
      %2283 = vmatpush2.bf16.msra.mxu0 0
      %2284 = vmatprep.subr.bf16.mxu0 0
      %2285 = vmatpush2.bf16.msra.mxu0 0
      %2286 = vmatprep.subr.bf16.mxu0 0
      %2287 = vmatpush2.bf16.msra.mxu0 0
      %2288 = vmatprep.subr.bf16.mxu0 0
      %2289 = vmatpush2.bf16.msra.mxu0 0
      %2290 = vmatprep.subr.bf16.mxu0 0
      %2291 = vmatpush2.bf16.msra.mxu0 0
      %2292 = vmatprep.subr.bf16.mxu0 0
      %2293 = vmatpush2.bf16.msra.mxu0 0
      %2294 = vmatprep.mubr.bf16.mxu0 0
      %2295 = vmatmul.mubr.bf16.gmra.mxu0 %v2260
      %v2296 = vpop.f32.mrf.mxu0
      %v2297 = vadd.f32 0.0, %v2296
      %v2298 = vpop.f32.mrf.mxu0
      %v2299 = vpop.f32.mrf.mxu0
      %v2300 = vadd.f32 0.0, %v2299
      %v2301 = vpop.f32.mrf.mxu0
      %2302 = vdwg.mxu0
      %2304 = vrot.lane.b32.xlu0 %v1370, 64
      %v2305 = vpop.permute.xlu0 %2304
      %v2308 = vsel %vm1577, %v2205, 0
      %2310 = vmatprep.subr.bf16.mxu0 0
      %2311 = vmatpush1.bf16.msra.mxu0 0
      %2312 = vmatprep.subr.bf16.mxu0 0
      %2313 = vmatpush1.bf16.msra.mxu0 0
      %2314 = vmatprep.subr.bf16.mxu0 0
      %2315 = vmatpush1.bf16.msra.mxu0 0
      %2316 = vmatprep.subr.bf16.mxu0 0
      %2317 = vmatpush1.bf16.msra.mxu0 0
      %2318 = vmatprep.subr.bf16.mxu0 0
      %2319 = vmatpush1.bf16.msra.mxu0 0
      %2320 = vmatprep.subr.bf16.mxu0 0
      %2321 = vmatpush1.bf16.msra.mxu0 0
      %2322 = vmatprep.subr.bf16.mxu0 0
      %2323 = vmatpush1.bf16.msra.mxu0 0
      %2324 = vmatprep.subr.bf16.mxu0 0
      %2325 = vmatpush1.bf16.msra.mxu0 %v2305
      %2326 = vmatprep.subr.bf16.mxu0 0
      %2327 = vmatpush2.bf16.msra.mxu0 0
      %2328 = vmatprep.subr.bf16.mxu0 0
      %2329 = vmatpush2.bf16.msra.mxu0 0
      %2330 = vmatprep.subr.bf16.mxu0 0
      %2331 = vmatpush2.bf16.msra.mxu0 0
      %2332 = vmatprep.subr.bf16.mxu0 0
      %2333 = vmatpush2.bf16.msra.mxu0 0
      %2334 = vmatprep.subr.bf16.mxu0 0
      %2335 = vmatpush2.bf16.msra.mxu0 0
      %2336 = vmatprep.subr.bf16.mxu0 0
      %2337 = vmatpush2.bf16.msra.mxu0 0
      %2338 = vmatprep.subr.bf16.mxu0 0
      %2339 = vmatpush2.bf16.msra.mxu0 0
      %2340 = vmatprep.subr.bf16.mxu0 0
      %2341 = vmatpush2.bf16.msra.mxu0 0
      %2342 = vmatprep.mubr.bf16.mxu0 0
      %2343 = vmatmul.mubr.bf16.gmra.mxu0 %v2308
      %v2344 = vpop.f32.mrf.mxu0
      %v2345 = vadd.f32 0.0, %v2344
      %v2346 = vpop.f32.mrf.mxu0
      %v2347 = vpop.f32.mrf.mxu0
      %v2348 = vadd.f32 0.0, %v2347
      %v2349 = vpop.f32.mrf.mxu0
      %2350 = vdwg.mxu0
      %2352 = vrot.lane.b32.xlu0 %v1371, 64
      %v2353 = vpop.permute.xlu0 %2352
      %v2356 = vsel %vm1577, %v2206, 0
      %2358 = vmatprep.subr.bf16.mxu0 0
      %2359 = vmatpush1.bf16.msra.mxu0 0
      %2360 = vmatprep.subr.bf16.mxu0 0
      %2361 = vmatpush1.bf16.msra.mxu0 0
      %2362 = vmatprep.subr.bf16.mxu0 0
      %2363 = vmatpush1.bf16.msra.mxu0 0
      %2364 = vmatprep.subr.bf16.mxu0 0
      %2365 = vmatpush1.bf16.msra.mxu0 0
      %2366 = vmatprep.subr.bf16.mxu0 0
      %2367 = vmatpush1.bf16.msra.mxu0 0
      %2368 = vmatprep.subr.bf16.mxu0 0
      %2369 = vmatpush1.bf16.msra.mxu0 0
      %2370 = vmatprep.subr.bf16.mxu0 0
      %2371 = vmatpush1.bf16.msra.mxu0 0
      %2372 = vmatprep.subr.bf16.mxu0 0
      %2373 = vmatpush1.bf16.msra.mxu0 %v2353
      %2374 = vmatprep.subr.bf16.mxu0 0
      %2375 = vmatpush2.bf16.msra.mxu0 0
      %2376 = vmatprep.subr.bf16.mxu0 0
      %2377 = vmatpush2.bf16.msra.mxu0 0
      %2378 = vmatprep.subr.bf16.mxu0 0
      %2379 = vmatpush2.bf16.msra.mxu0 0
      %2380 = vmatprep.subr.bf16.mxu0 0
      %2381 = vmatpush2.bf16.msra.mxu0 0
      %2382 = vmatprep.subr.bf16.mxu0 0
      %2383 = vmatpush2.bf16.msra.mxu0 0
      %2384 = vmatprep.subr.bf16.mxu0 0
      %2385 = vmatpush2.bf16.msra.mxu0 0
      %2386 = vmatprep.subr.bf16.mxu0 0
      %2387 = vmatpush2.bf16.msra.mxu0 0
      %2388 = vmatprep.subr.bf16.mxu0 0
      %2389 = vmatpush2.bf16.msra.mxu0 0
      %2390 = vmatprep.mubr.bf16.mxu0 0
      %2391 = vmatmul.mubr.bf16.gmra.mxu0 %v2356
      %v2392 = vpop.f32.mrf.mxu0
      %v2393 = vadd.f32 0.0, %v2392
      %v2394 = vpop.f32.mrf.mxu0
      %v2395 = vpop.f32.mrf.mxu0
      %v2396 = vadd.f32 0.0, %v2395
      %v2397 = vpop.f32.mrf.mxu0
      %2398 = vdwg.mxu0
      %v2399 = vpack.c.bf16 %v2252, %v2249
      %v2400 = vpack.c.bf16 %v2300, %v2297
      %v2401 = vpack.c.bf16 %v2348, %v2345
      %v2402 = vpack.c.bf16 %v2396, %v2393
      %v2407 = vunpack.c.l.b16 %v2399
      %v2408 = vunpack.c.h.b16 %v2399
      %v2409 = vunpack.c.l.b16 %v2400
      %v2410 = vunpack.c.h.b16 %v2400
      %v2411 = vunpack.c.l.b16 %v2401
      %v2412 = vunpack.c.h.b16 %v2401
      %v2413 = vunpack.c.l.b16 %v2402
      %v2414 = vunpack.c.h.b16 %v2402
      %v2415 = vpack.c.b16 %v2407, %v2407
      %v2416 = vpack.c.b16 %v2408, %v2408
      %v2417 = vpack.c.b16 %v2409, %v2409
      %v2418 = vpack.c.b16 %v2410, %v2410
      %v2419 = vpack.c.b16 %v2411, %v2411
      %v2420 = vpack.c.b16 %v2412, %v2412
      %v2421 = vpack.c.b16 %v2413, %v2413
      %v2422 = vpack.c.b16 %v2414, %v2414
      %2423 = vrot.lane.b32.xlu0 %v2415, 64
      %v2424 = vpop.permute.xlu0 %2423
      %2425 = vrot.lane.b32.xlu0 %v2416, 64
      %v2426 = vpop.permute.xlu0 %2425
      %2427 = vrot.lane.b32.xlu0 %v2417, 64
      %v2428 = vpop.permute.xlu0 %2427
      %2429 = vrot.lane.b32.xlu0 %v2418, 64
      %v2430 = vpop.permute.xlu0 %2429
      %2431 = vrot.lane.b32.xlu0 %v2419, 64
      %v2432 = vpop.permute.xlu0 %2431
      %2433 = vrot.lane.b32.xlu0 %v2420, 64
      %v2434 = vpop.permute.xlu0 %2433
      %2435 = vrot.lane.b32.xlu0 %v2421, 64
      %v2436 = vpop.permute.xlu0 %2435
      %2437 = vrot.lane.b32.xlu0 %v2422, 64
      %v2438 = vpop.permute.xlu0 %2437
      %vm2447 = vcmask 1043968
      %2448 = vst.msk [vmem:[#allocation3] sm:$0xf] %vm2447, %v2424
      %2449 = vst.msk [vmem:[#allocation3 + $0x4] sm:$0xf] %vm2447, %v2426
      %2450 = vst.msk [vmem:[#allocation3 + $0x8] sm:$0xf] %vm2447, %v2428
      %2451 = vst.msk [vmem:[#allocation3 + $0xc] sm:$0xf] %vm2447, %v2430
      %2452 = vst.msk [vmem:[#allocation3 + $0x10] sm:$0xf] %vm2447, %v2432
      %2453 = vst.msk [vmem:[#allocation3 + $0x14] sm:$0xf] %vm2447, %v2434
      %2454 = vst.msk [vmem:[#allocation3 + $0x18] sm:$0xf] %vm2447, %v2436
      %2455 = vst.msk [vmem:[#allocation3 + $0x1c] sm:$0xf] %vm2447, %v2438
      %v2456 = vld [vmem:[#allocation3] sm:$0xf]
      %v2457 = vld [vmem:[#allocation3 + $0x4] sm:$0xf]
      %v2458 = vld [vmem:[#allocation3 + $0x8] sm:$0xf]
      %v2459 = vld [vmem:[#allocation3 + $0xc] sm:$0xf]
      %v2460 = vld [vmem:[#allocation3 + $0x10] sm:$0xf]
      %v2461 = vld [vmem:[#allocation3 + $0x14] sm:$0xf]
      %v2462 = vld [vmem:[#allocation3 + $0x18] sm:$0xf]
      %v2463 = vld [vmem:[#allocation3 + $0x1c] sm:$0xf]
      %v2464 = vld [vmem:[%s663] sm:$0xf]
      %v2465 = vld [vmem:[%s663 + $0x4] sm:$0xf]
      %v2466 = vld [vmem:[%s663 + $0x8] sm:$0xf]
      %v2467 = vld [vmem:[%s663 + $0xc] sm:$0xf]
      %v2468 = vld [vmem:[%s663 + $0x10] sm:$0xf]
      %v2469 = vld [vmem:[%s663 + $0x14] sm:$0xf]
      %v2470 = vld [vmem:[%s663 + $0x18] sm:$0xf]
      %v2471 = vld [vmem:[%s663 + $0x1c] sm:$0xf]
      %v2472 = vld [vmem:[%s663 + $0x20] sm:$0xf]
      %v2473 = vld [vmem:[%s663 + $0x24] sm:$0xf]
      %v2474 = vld [vmem:[%s663 + $0x28] sm:$0xf]
      %v2475 = vld [vmem:[%s663 + $0x2c] sm:$0xf]
      %v2476 = vld [vmem:[%s663 + $0x30] sm:$0xf]
      %v2477 = vld [vmem:[%s663 + $0x34] sm:$0xf]
      %v2478 = vld [vmem:[%s663 + $0x38] sm:$0xf]
      %v2479 = vld [vmem:[%s663 + $0x3c] sm:$0xf]
      %v2488 = vunpack.c.l.b16 %v2456
      %v2489 = vunpack.c.l.b16 %v2457
      %v2490 = vunpack.c.l.b16 %v2458
      %v2491 = vunpack.c.l.b16 %v2459
      %v2492 = vunpack.c.l.b16 %v2460
      %v2493 = vunpack.c.l.b16 %v2461
      %v2494 = vunpack.c.l.b16 %v2462
      %v2495 = vunpack.c.l.b16 %v2463
      %v2496 = vpack.c.b16 %v2489, %v2488
      %v2497 = vpack.c.b16 %v2491, %v2490
      %v2498 = vpack.c.b16 %v2493, %v2492
      %v2499 = vpack.c.b16 %v2495, %v2494
      %v2520 = vunpack.c.l.b16 %v2464
      %v2521 = vunpack.c.l.b16 %v2465
      %v2522 = vunpack.c.l.b16 %v2466
      %v2523 = vunpack.c.l.b16 %v2467
      %v2524 = vunpack.c.l.b16 %v2468
      %v2525 = vunpack.c.l.b16 %v2469
      %v2526 = vunpack.c.l.b16 %v2470
      %v2527 = vunpack.c.l.b16 %v2471
      %v2528 = vunpack.c.l.b16 %v2472
      %v2529 = vunpack.c.l.b16 %v2473
      %v2530 = vunpack.c.l.b16 %v2474
      %v2531 = vunpack.c.l.b16 %v2475
      %v2532 = vunpack.c.l.b16 %v2476
      %v2533 = vunpack.c.l.b16 %v2477
      %v2534 = vunpack.c.l.b16 %v2478
      %v2535 = vunpack.c.l.b16 %v2479
      %v2536 = vpack.c.b16 %v2521, %v2520
      %v2537 = vpack.c.b16 %v2523, %v2522
      %v2538 = vpack.c.b16 %v2525, %v2524
      %v2539 = vpack.c.b16 %v2527, %v2526
      %v2540 = vpack.c.b16 %v2529, %v2528
      %v2541 = vpack.c.b16 %v2531, %v2530
      %v2542 = vpack.c.b16 %v2533, %v2532
      %v2543 = vpack.c.b16 %v2535, %v2534
      %2552 = vmatprep.subr.bf16.mxu0 0
      %2553 = vmatpush1.bf16.msra.mxu0 %v2543
      %2554 = vmatprep.subr.bf16.mxu0 0
      %2555 = vmatpush1.bf16.msra.mxu0 %v2542
      %2556 = vmatprep.subr.bf16.mxu0 0
      %2557 = vmatpush1.bf16.msra.mxu0 %v2541
      %2558 = vmatprep.subr.bf16.mxu0 0
      %2559 = vmatpush1.bf16.msra.mxu0 %v2540
      %2560 = vmatprep.subr.bf16.mxu0 0
      %2561 = vmatpush1.bf16.msra.mxu0 %v2539
      %2562 = vmatprep.subr.bf16.mxu0 0
      %2563 = vmatpush1.bf16.msra.mxu0 %v2538
      %2564 = vmatprep.subr.bf16.mxu0 0
      %2565 = vmatpush1.bf16.msra.mxu0 %v2537
      %2566 = vmatprep.subr.bf16.mxu0 0
      %2567 = vmatpush1.bf16.msra.mxu0 %v2536
      %2568 = vmatprep.subr.bf16.mxu0 0
      %2569 = vmatpush2.bf16.msra.mxu0 0
      %2570 = vmatprep.subr.bf16.mxu0 0
      %2571 = vmatpush2.bf16.msra.mxu0 0
      %2572 = vmatprep.subr.bf16.mxu0 0
      %2573 = vmatpush2.bf16.msra.mxu0 0
      %2574 = vmatprep.subr.bf16.mxu0 0
      %2575 = vmatpush2.bf16.msra.mxu0 0
      %2576 = vmatprep.subr.bf16.mxu0 0
      %2577 = vmatpush2.bf16.msra.mxu0 0
      %2578 = vmatprep.subr.bf16.mxu0 0
      %2579 = vmatpush2.bf16.msra.mxu0 0
      %2580 = vmatprep.subr.bf16.mxu0 0
      %2581 = vmatpush2.bf16.msra.mxu0 0
      %2582 = vmatprep.subr.bf16.mxu0 0
      %2583 = vmatpush2.bf16.msra.mxu0 0
      %2584 = vmatprep.mubr.bf16.mxu0 0
      %2585 = vmatmul.mubr.bf16.gmra.mxu0 %v2496
      %v2586 = vpop.f32.mrf.mxu0
      %v2587 = vadd.f32 0.0, %v2586
      %v2588 = vpop.f32.mrf.mxu0
      %v2589 = vpop.f32.mrf.mxu0
      %v2590 = vadd.f32 0.0, %v2589
      %v2591 = vpop.f32.mrf.mxu0
      %2592 = vmatprep.mubr.bf16.mxu0 0
      %2593 = vmatmul.mubr.bf16.gmra.mxu0 %v2497
      %v2594 = vpop.f32.mrf.mxu0
      %v2595 = vadd.f32 0.0, %v2594
      %v2596 = vpop.f32.mrf.mxu0
      %v2597 = vpop.f32.mrf.mxu0
      %v2598 = vadd.f32 0.0, %v2597
      %v2599 = vpop.f32.mrf.mxu0
      %2600 = vmatprep.mubr.bf16.mxu0 0
      %2601 = vmatmul.mubr.bf16.gmra.mxu0 %v2498
      %v2602 = vpop.f32.mrf.mxu0
      %v2603 = vadd.f32 0.0, %v2602
      %v2604 = vpop.f32.mrf.mxu0
      %v2605 = vpop.f32.mrf.mxu0
      %v2606 = vadd.f32 0.0, %v2605
      %v2607 = vpop.f32.mrf.mxu0
      %2608 = vmatprep.mubr.bf16.mxu0 0
      %2609 = vmatmul.mubr.bf16.gmra.mxu0 %v2499
      %v2610 = vpop.f32.mrf.mxu0
      %v2611 = vadd.f32 0.0, %v2610
      %v2612 = vpop.f32.mrf.mxu0
      %v2613 = vpop.f32.mrf.mxu0
      %v2614 = vadd.f32 0.0, %v2613
      %v2615 = vpop.f32.mrf.mxu0
      %2616 = vdwg.mxu0
      %v2617 = vadd.f32 %v942, %v2587
      %v2618 = vadd.f32 %v943, %v2590
      %v2619 = vadd.f32 %v944, %v2595
      %v2620 = vadd.f32 %v945, %v2598
      %v2621 = vadd.f32 %v946, %v2603
      %v2622 = vadd.f32 %v947, %v2606
      %v2623 = vadd.f32 %v948, %v2611
      %v2624 = vadd.f32 %v949, %v2614
      %v2625 = vld [vmem:[%s666] sm:$0x1]
      %v2627 = vlaneseq
      %v2628 = vshrl.u32 %v2627, 7
      %v2629 = vsub.s32 0, %v2628
      %v2630 = vrot.slane %v2625, %v2629
      %v2632 = vadd.f32 %v2617, %v2630
      %v2633 = vadd.f32 %v2618, %v2630
      %v2634 = vadd.f32 %v2619, %v2630
      %v2635 = vadd.f32 %v2620, %v2630
      %v2636 = vadd.f32 %v2621, %v2630
      %v2637 = vadd.f32 %v2622, %v2630
      %v2638 = vadd.f32 %v2623, %v2630
      %v2639 = vadd.f32 %v2624, %v2630
      %2640 = vadd.xlane.f32.xlu0 %v2632
      %v2641 = vpop.xlane.xlu0 %2640
      %2642 = vadd.xlane.f32.xlu0 %v2633
      %v2643 = vpop.xlane.xlu0 %2642
      %2644 = vadd.xlane.f32.xlu0 %v2634
      %v2645 = vpop.xlane.xlu0 %2644
      %2646 = vadd.xlane.f32.xlu0 %v2635
      %v2647 = vpop.xlane.xlu0 %2646
      %2648 = vadd.xlane.f32.xlu0 %v2636
      %v2649 = vpop.xlane.xlu0 %2648
      %2650 = vadd.xlane.f32.xlu0 %v2637
      %v2651 = vpop.xlane.xlu0 %2650
      %2652 = vadd.xlane.f32.xlu0 %v2638
      %v2653 = vpop.xlane.xlu0 %2652
      %2654 = vadd.xlane.f32.xlu0 %v2639
      %v2655 = vpop.xlane.xlu0 %2654
      %v2656 = vmul.f32 %v2641, %v966
      %v2657 = vmul.f32 %v2643, %v966
      %v2658 = vmul.f32 %v2645, %v966
      %v2659 = vmul.f32 %v2647, %v966
      %v2660 = vmul.f32 %v2649, %v966
      %v2661 = vmul.f32 %v2651, %v966
      %v2662 = vmul.f32 %v2653, %v966
      %v2663 = vmul.f32 %v2655, %v966
      %v2664 = vsub.f32 %v2632, %v2656
      %v2665 = vsub.f32 %v2633, %v2657
      %v2666 = vsub.f32 %v2634, %v2658
      %v2667 = vsub.f32 %v2635, %v2659
      %v2668 = vsub.f32 %v2636, %v2660
      %v2669 = vsub.f32 %v2637, %v2661
      %v2670 = vsub.f32 %v2638, %v2662
      %v2671 = vsub.f32 %v2639, %v2663
      %v2672 = vmul.f32 %v2664, %v2664
      %v2673 = vmul.f32 %v2665, %v2665
      %v2674 = vmul.f32 %v2666, %v2666
      %v2675 = vmul.f32 %v2667, %v2667
      %v2676 = vmul.f32 %v2668, %v2668
      %v2677 = vmul.f32 %v2669, %v2669
      %v2678 = vmul.f32 %v2670, %v2670
      %v2679 = vmul.f32 %v2671, %v2671
      %2680 = vadd.xlane.f32.xlu0 %v2672
      %v2681 = vpop.xlane.xlu0 %2680
      %2682 = vadd.xlane.f32.xlu0 %v2673
      %v2683 = vpop.xlane.xlu0 %2682
      %2684 = vadd.xlane.f32.xlu0 %v2674
      %v2685 = vpop.xlane.xlu0 %2684
      %2686 = vadd.xlane.f32.xlu0 %v2675
      %v2687 = vpop.xlane.xlu0 %2686
      %2688 = vadd.xlane.f32.xlu0 %v2676
      %v2689 = vpop.xlane.xlu0 %2688
      %2690 = vadd.xlane.f32.xlu0 %v2677
      %v2691 = vpop.xlane.xlu0 %2690
      %2692 = vadd.xlane.f32.xlu0 %v2678
      %v2693 = vpop.xlane.xlu0 %2692
      %2694 = vadd.xlane.f32.xlu0 %v2679
      %v2695 = vpop.xlane.xlu0 %2694
      %v2696 = vmul.f32 %v2681, %v966
      %v2697 = vmul.f32 %v2683, %v966
      %v2698 = vmul.f32 %v2685, %v966
      %v2699 = vmul.f32 %v2687, %v966
      %v2700 = vmul.f32 %v2689, %v966
      %v2701 = vmul.f32 %v2691, %v966
      %v2702 = vmul.f32 %v2693, %v966
      %v2703 = vmul.f32 %v2695, %v966
      %v2704 = vadd.f32 %v2696, 1e-05
      %v2705 = vadd.f32 %v2697, 1e-05
      %v2706 = vadd.f32 %v2698, 1e-05
      %v2707 = vadd.f32 %v2699, 1e-05
      %v2708 = vadd.f32 %v2700, 1e-05
      %v2709 = vadd.f32 %v2701, 1e-05
      %v2710 = vadd.f32 %v2702, 1e-05
      %v2711 = vadd.f32 %v2703, 1e-05
      %v2712 = vrsqrt.pop %v2704
      %v2713 = vrsqrt.pop %v2705
      %v2714 = vrsqrt.pop %v2706
      %v2715 = vrsqrt.pop %v2707
      %v2716 = vrsqrt.pop %v2708
      %v2717 = vrsqrt.pop %v2709
      %v2718 = vrsqrt.pop %v2710
      %v2719 = vrsqrt.pop %v2711
      %v2720 = vmul.f32 %v2664, %v2712
      %v2721 = vmul.f32 %v2665, %v2713
      %v2722 = vmul.f32 %v2666, %v2714
      %v2723 = vmul.f32 %v2667, %v2715
      %v2724 = vmul.f32 %v2668, %v2716
      %v2725 = vmul.f32 %v2669, %v2717
      %v2726 = vmul.f32 %v2670, %v2718
      %v2727 = vmul.f32 %v2671, %v2719
      %v2728 = vpack.c.bf16 %v2721, %v2720
      %v2729 = vpack.c.bf16 %v2723, %v2722
      %v2730 = vpack.c.bf16 %v2725, %v2724
      %v2731 = vpack.c.bf16 %v2727, %v2726
      %v2732 = vld [vmem:[%s671] sm:$0xff]
      %v2733 = vld [vmem:[%s671 + $0x8] sm:$0xff]
      %v2734 = vld [vmem:[%s671 + $0x10] sm:$0xff]
      %v2735 = vld [vmem:[%s671 + $0x18] sm:$0xff]
      %v2736 = vld [vmem:[%s671 + $0x20] sm:$0xff]
      %v2737 = vld [vmem:[%s671 + $0x28] sm:$0xff]
      %v2738 = vld [vmem:[%s671 + $0x30] sm:$0xff]
      %v2739 = vld [vmem:[%s671 + $0x38] sm:$0xff]
      %v2740 = vld [vmem:[%s671 + $0x40] sm:$0xff]
      %v2741 = vld [vmem:[%s671 + $0x48] sm:$0xff]
      %v2742 = vld [vmem:[%s671 + $0x50] sm:$0xff]
      %v2743 = vld [vmem:[%s671 + $0x58] sm:$0xff]
      %v2744 = vld [vmem:[%s671 + $0x60] sm:$0xff]
      %v2745 = vld [vmem:[%s671 + $0x68] sm:$0xff]
      %v2746 = vld [vmem:[%s671 + $0x70] sm:$0xff]
      %v2747 = vld [vmem:[%s671 + $0x78] sm:$0xff]
      %v2748 = vld [vmem:[%s671 + $0x80] sm:$0xff]
      %v2749 = vld [vmem:[%s671 + $0x88] sm:$0xff]
      %v2750 = vld [vmem:[%s671 + $0x90] sm:$0xff]
      %v2751 = vld [vmem:[%s671 + $0x98] sm:$0xff]
      %v2752 = vld [vmem:[%s671 + $0xa0] sm:$0xff]
      %v2753 = vld [vmem:[%s671 + $0xa8] sm:$0xff]
      %v2754 = vld [vmem:[%s671 + $0xb0] sm:$0xff]
      %v2755 = vld [vmem:[%s671 + $0xb8] sm:$0xff]
      %v2756 = vld [vmem:[%s671 + $0xc0] sm:$0xff]
      %v2757 = vld [vmem:[%s671 + $0xc8] sm:$0xff]
      %v2758 = vld [vmem:[%s671 + $0xd0] sm:$0xff]
      %v2759 = vld [vmem:[%s671 + $0xd8] sm:$0xff]
      %v2760 = vld [vmem:[%s671 + $0xe0] sm:$0xff]
      %v2761 = vld [vmem:[%s671 + $0xe8] sm:$0xff]
      %v2762 = vld [vmem:[%s671 + $0xf0] sm:$0xff]
      %v2763 = vld [vmem:[%s671 + $0xf8] sm:$0xff]
      %v2764 = vld [vmem:[%s675] sm:$0xf]
      %v2766 = vlaneseq
      %v2767 = vshrl.u32 %v2766, 7
      %v2768 = vsub.s32 0, %v2767
      %v2769 = vrot.slane %v2764, %v2768
      %v2770 = vlaneseq
      %v2771 = vshrl.u32 %v2770, 7
      %v2772 = vsub.s32 1, %v2771
      %v2773 = vrot.slane %v2764, %v2772
      %v2774 = vlaneseq
      %v2775 = vshrl.u32 %v2774, 7
      %v2776 = vsub.s32 2, %v2775
      %v2777 = vrot.slane %v2764, %v2776
      %v2778 = vlaneseq
      %v2779 = vshrl.u32 %v2778, 7
      %v2780 = vsub.s32 3, %v2779
      %v2781 = vrot.slane %v2764, %v2780
      %v2818 = vunpack.c.l.b16 %v2732
      %v2819 = vunpack.c.h.b16 %v2732
      %v2820 = vunpack.c.l.b16 %v2733
      %v2821 = vunpack.c.h.b16 %v2733
      %v2822 = vunpack.c.l.b16 %v2734
      %v2823 = vunpack.c.h.b16 %v2734
      %v2824 = vunpack.c.l.b16 %v2735
      %v2825 = vunpack.c.h.b16 %v2735
      %v2826 = vunpack.c.l.b16 %v2736
      %v2827 = vunpack.c.h.b16 %v2736
      %v2828 = vunpack.c.l.b16 %v2737
      %v2829 = vunpack.c.h.b16 %v2737
      %v2830 = vunpack.c.l.b16 %v2738
      %v2831 = vunpack.c.h.b16 %v2738
      %v2832 = vunpack.c.l.b16 %v2739
      %v2833 = vunpack.c.h.b16 %v2739
      %v2834 = vunpack.c.l.b16 %v2740
      %v2835 = vunpack.c.h.b16 %v2740
      %v2836 = vunpack.c.l.b16 %v2741
      %v2837 = vunpack.c.h.b16 %v2741
      %v2838 = vunpack.c.l.b16 %v2742
      %v2839 = vunpack.c.h.b16 %v2742
      %v2840 = vunpack.c.l.b16 %v2743
      %v2841 = vunpack.c.h.b16 %v2743
      %v2842 = vunpack.c.l.b16 %v2744
      %v2843 = vunpack.c.h.b16 %v2744
      %v2844 = vunpack.c.l.b16 %v2745
      %v2845 = vunpack.c.h.b16 %v2745
      %v2846 = vunpack.c.l.b16 %v2746
      %v2847 = vunpack.c.h.b16 %v2746
      %v2848 = vunpack.c.l.b16 %v2747
      %v2849 = vunpack.c.h.b16 %v2747
      %v2850 = vunpack.c.l.b16 %v2748
      %v2851 = vunpack.c.h.b16 %v2748
      %v2852 = vunpack.c.l.b16 %v2749
      %v2853 = vunpack.c.h.b16 %v2749
      %v2854 = vunpack.c.l.b16 %v2750
      %v2855 = vunpack.c.h.b16 %v2750
      %v2856 = vunpack.c.l.b16 %v2751
      %v2857 = vunpack.c.h.b16 %v2751
      %v2858 = vunpack.c.l.b16 %v2752
      %v2859 = vunpack.c.h.b16 %v2752
      %v2860 = vunpack.c.l.b16 %v2753
      %v2861 = vunpack.c.h.b16 %v2753
      %v2862 = vunpack.c.l.b16 %v2754
      %v2863 = vunpack.c.h.b16 %v2754
      %v2864 = vunpack.c.l.b16 %v2755
      %v2865 = vunpack.c.h.b16 %v2755
      %v2866 = vunpack.c.l.b16 %v2756
      %v2867 = vunpack.c.h.b16 %v2756
      %v2868 = vunpack.c.l.b16 %v2757
      %v2869 = vunpack.c.h.b16 %v2757
      %v2870 = vunpack.c.l.b16 %v2758
      %v2871 = vunpack.c.h.b16 %v2758
      %v2872 = vunpack.c.l.b16 %v2759
      %v2873 = vunpack.c.h.b16 %v2759
      %v2874 = vunpack.c.l.b16 %v2760
      %v2875 = vunpack.c.h.b16 %v2760
      %v2876 = vunpack.c.l.b16 %v2761
      %v2877 = vunpack.c.h.b16 %v2761
      %v2878 = vunpack.c.l.b16 %v2762
      %v2879 = vunpack.c.h.b16 %v2762
      %v2880 = vunpack.c.l.b16 %v2763
      %v2881 = vunpack.c.h.b16 %v2763
      %v2882 = vpack.c.b16 %v2822, %v2818
      %v2883 = vpack.c.b16 %v2823, %v2819
      %v2884 = vpack.c.b16 %v2824, %v2820
      %v2885 = vpack.c.b16 %v2825, %v2821
      %v2886 = vpack.c.b16 %v2830, %v2826
      %v2887 = vpack.c.b16 %v2831, %v2827
      %v2888 = vpack.c.b16 %v2832, %v2828
      %v2889 = vpack.c.b16 %v2833, %v2829
      %v2890 = vpack.c.b16 %v2838, %v2834
      %v2891 = vpack.c.b16 %v2839, %v2835
      %v2892 = vpack.c.b16 %v2840, %v2836
      %v2893 = vpack.c.b16 %v2841, %v2837
      %v2894 = vpack.c.b16 %v2846, %v2842
      %v2895 = vpack.c.b16 %v2847, %v2843
      %v2896 = vpack.c.b16 %v2848, %v2844
      %v2897 = vpack.c.b16 %v2849, %v2845
      %v2898 = vpack.c.b16 %v2854, %v2850
      %v2899 = vpack.c.b16 %v2855, %v2851
      %v2900 = vpack.c.b16 %v2856, %v2852
      %v2901 = vpack.c.b16 %v2857, %v2853
      %v2902 = vpack.c.b16 %v2862, %v2858
      %v2903 = vpack.c.b16 %v2863, %v2859
      %v2904 = vpack.c.b16 %v2864, %v2860
      %v2905 = vpack.c.b16 %v2865, %v2861
      %v2906 = vpack.c.b16 %v2870, %v2866
      %v2907 = vpack.c.b16 %v2871, %v2867
      %v2908 = vpack.c.b16 %v2872, %v2868
      %v2909 = vpack.c.b16 %v2873, %v2869
      %v2910 = vpack.c.b16 %v2878, %v2874
      %v2911 = vpack.c.b16 %v2879, %v2875
      %v2912 = vpack.c.b16 %v2880, %v2876
      %v2913 = vpack.c.b16 %v2881, %v2877
      %2946 = vmatprep.subr.bf16.mxu0 %v2911
      %2947 = vmatpush1.bf16.msra.mxu0 %v2910
      %2948 = vmatprep.subr.bf16.mxu0 %v2907
      %2949 = vmatpush1.bf16.msra.mxu0 %v2906
      %2950 = vmatprep.subr.bf16.mxu0 %v2903
      %2951 = vmatpush1.bf16.msra.mxu0 %v2902
      %2952 = vmatprep.subr.bf16.mxu0 %v2899
      %2953 = vmatpush1.bf16.msra.mxu0 %v2898
      %2954 = vmatprep.subr.bf16.mxu0 %v2895
      %2955 = vmatpush1.bf16.msra.mxu0 %v2894
      %2956 = vmatprep.subr.bf16.mxu0 %v2891
      %2957 = vmatpush1.bf16.msra.mxu0 %v2890
      %2958 = vmatprep.subr.bf16.mxu0 %v2887
      %2959 = vmatpush1.bf16.msra.mxu0 %v2886
      %2960 = vmatprep.subr.bf16.mxu0 %v2883
      %2961 = vmatpush1.bf16.msra.mxu0 %v2882
      %2962 = vmatprep.subr.bf16.mxu0 0
      %2963 = vmatpush2.bf16.msra.mxu0 0
      %2964 = vmatprep.subr.bf16.mxu0 0
      %2965 = vmatpush2.bf16.msra.mxu0 0
      %2966 = vmatprep.subr.bf16.mxu0 0
      %2967 = vmatpush2.bf16.msra.mxu0 0
      %2968 = vmatprep.subr.bf16.mxu0 0
      %2969 = vmatpush2.bf16.msra.mxu0 0
      %2970 = vmatprep.subr.bf16.mxu0 0
      %2971 = vmatpush2.bf16.msra.mxu0 0
      %2972 = vmatprep.subr.bf16.mxu0 0
      %2973 = vmatpush2.bf16.msra.mxu0 0
      %2974 = vmatprep.subr.bf16.mxu0 0
      %2975 = vmatpush2.bf16.msra.mxu0 0
      %2976 = vmatprep.subr.bf16.mxu0 0
      %2977 = vmatpush2.bf16.msra.mxu0 0
      %2978 = vmatprep.mubr.bf16.mxu0 0
      %2979 = vmatmul.mubr.bf16.gmra.mxu0 %v2728
      %v2980 = vpop.f32.mrf.mxu0
      %v2981 = vadd.f32 %v2769, %v2980
      %v2982 = vpop.f32.mrf.mxu0
      %v2983 = vadd.f32 %v2773, %v2982
      %v2984 = vpop.f32.mrf.mxu0
      %v2985 = vadd.f32 %v2769, %v2984
      %v2986 = vpop.f32.mrf.mxu0
      %v2987 = vadd.f32 %v2773, %v2986
      %2988 = vmatprep.mubr.bf16.mxu0 0
      %2989 = vmatmul.mubr.bf16.gmra.mxu0 %v2729
      %v2990 = vpop.f32.mrf.mxu0
      %v2991 = vadd.f32 %v2769, %v2990
      %v2992 = vpop.f32.mrf.mxu0
      %v2993 = vadd.f32 %v2773, %v2992
      %v2994 = vpop.f32.mrf.mxu0
      %v2995 = vadd.f32 %v2769, %v2994
      %v2996 = vpop.f32.mrf.mxu0
      %v2997 = vadd.f32 %v2773, %v2996
      %2998 = vmatprep.mubr.bf16.mxu0 0
      %2999 = vmatmul.mubr.bf16.gmra.mxu0 %v2730
      %v3000 = vpop.f32.mrf.mxu0
      %v3001 = vadd.f32 %v2769, %v3000
      %v3002 = vpop.f32.mrf.mxu0
      %v3003 = vadd.f32 %v2773, %v3002
      %v3004 = vpop.f32.mrf.mxu0
      %v3005 = vadd.f32 %v2769, %v3004
      %v3006 = vpop.f32.mrf.mxu0
      %v3007 = vadd.f32 %v2773, %v3006
      %3008 = vmatprep.mubr.bf16.mxu0 0
      %3009 = vmatmul.mubr.bf16.gmra.mxu0 %v2731
      %v3010 = vpop.f32.mrf.mxu0
      %v3011 = vadd.f32 %v2769, %v3010
      %v3012 = vpop.f32.mrf.mxu0
      %v3013 = vadd.f32 %v2773, %v3012
      %v3014 = vpop.f32.mrf.mxu0
      %v3015 = vadd.f32 %v2769, %v3014
      %v3016 = vpop.f32.mrf.mxu0
      %v3017 = vadd.f32 %v2773, %v3016
      %3018 = vdwg.mxu0
      %3019 = vmatprep.subr.bf16.mxu0 %v2913
      %3020 = vmatpush1.bf16.msra.mxu0 %v2912
      %3021 = vmatprep.subr.bf16.mxu0 %v2909
      %3022 = vmatpush1.bf16.msra.mxu0 %v2908
      %3023 = vmatprep.subr.bf16.mxu0 %v2905
      %3024 = vmatpush1.bf16.msra.mxu0 %v2904
      %3025 = vmatprep.subr.bf16.mxu0 %v2901
      %3026 = vmatpush1.bf16.msra.mxu0 %v2900
      %3027 = vmatprep.subr.bf16.mxu0 %v2897
      %3028 = vmatpush1.bf16.msra.mxu0 %v2896
      %3029 = vmatprep.subr.bf16.mxu0 %v2893
      %3030 = vmatpush1.bf16.msra.mxu0 %v2892
      %3031 = vmatprep.subr.bf16.mxu0 %v2889
      %3032 = vmatpush1.bf16.msra.mxu0 %v2888
      %3033 = vmatprep.subr.bf16.mxu0 %v2885
      %3034 = vmatpush1.bf16.msra.mxu0 %v2884
      %3035 = vmatprep.subr.bf16.mxu0 0
      %3036 = vmatpush2.bf16.msra.mxu0 0
      %3037 = vmatprep.subr.bf16.mxu0 0
      %3038 = vmatpush2.bf16.msra.mxu0 0
      %3039 = vmatprep.subr.bf16.mxu0 0
      %3040 = vmatpush2.bf16.msra.mxu0 0
      %3041 = vmatprep.subr.bf16.mxu0 0
      %3042 = vmatpush2.bf16.msra.mxu0 0
      %3043 = vmatprep.subr.bf16.mxu0 0
      %3044 = vmatpush2.bf16.msra.mxu0 0
      %3045 = vmatprep.subr.bf16.mxu0 0
      %3046 = vmatpush2.bf16.msra.mxu0 0
      %3047 = vmatprep.subr.bf16.mxu0 0
      %3048 = vmatpush2.bf16.msra.mxu0 0
      %3049 = vmatprep.subr.bf16.mxu0 0
      %3050 = vmatpush2.bf16.msra.mxu0 0
      %3051 = vmatprep.mubr.bf16.mxu0 0
      %3052 = vmatmul.mubr.bf16.gmra.mxu0 %v2728
      %v3053 = vpop.f32.mrf.mxu0
      %v3054 = vadd.f32 %v2777, %v3053
      %v3055 = vpop.f32.mrf.mxu0
      %v3056 = vadd.f32 %v2781, %v3055
      %v3057 = vpop.f32.mrf.mxu0
      %v3058 = vadd.f32 %v2777, %v3057
      %v3059 = vpop.f32.mrf.mxu0
      %v3060 = vadd.f32 %v2781, %v3059
      %3061 = vmatprep.mubr.bf16.mxu0 0
      %3062 = vmatmul.mubr.bf16.gmra.mxu0 %v2729
      %v3063 = vpop.f32.mrf.mxu0
      %v3064 = vadd.f32 %v2777, %v3063
      %v3065 = vpop.f32.mrf.mxu0
      %v3066 = vadd.f32 %v2781, %v3065
      %v3067 = vpop.f32.mrf.mxu0
      %v3068 = vadd.f32 %v2777, %v3067
      %v3069 = vpop.f32.mrf.mxu0
      %v3070 = vadd.f32 %v2781, %v3069
      %3071 = vmatprep.mubr.bf16.mxu0 0
      %3072 = vmatmul.mubr.bf16.gmra.mxu0 %v2730
      %v3073 = vpop.f32.mrf.mxu0
      %v3074 = vadd.f32 %v2777, %v3073
      %v3075 = vpop.f32.mrf.mxu0
      %v3076 = vadd.f32 %v2781, %v3075
      %v3077 = vpop.f32.mrf.mxu0
      %v3078 = vadd.f32 %v2777, %v3077
      %v3079 = vpop.f32.mrf.mxu0
      %v3080 = vadd.f32 %v2781, %v3079
      %3081 = vmatprep.mubr.bf16.mxu0 0
      %3082 = vmatmul.mubr.bf16.gmra.mxu0 %v2731
      %v3083 = vpop.f32.mrf.mxu0
      %v3084 = vadd.f32 %v2777, %v3083
      %v3085 = vpop.f32.mrf.mxu0
      %v3086 = vadd.f32 %v2781, %v3085
      %v3087 = vpop.f32.mrf.mxu0
      %v3088 = vadd.f32 %v2777, %v3087
      %v3089 = vpop.f32.mrf.mxu0
      %v3090 = vadd.f32 %v2781, %v3089
      %3091 = vdwg.mxu0
      %v3092 = vmul.f32 %v2981, %v2981
      %v3093 = vmul.f32 %v2983, %v2983
      %v3094 = vmul.f32 %v3054, %v3054
      %v3095 = vmul.f32 %v3056, %v3056
      %v3096 = vmul.f32 %v2985, %v2985
      %v3097 = vmul.f32 %v2987, %v2987
      %v3098 = vmul.f32 %v3058, %v3058
      %v3099 = vmul.f32 %v3060, %v3060
      %v3100 = vmul.f32 %v2991, %v2991
      %v3101 = vmul.f32 %v2993, %v2993
      %v3102 = vmul.f32 %v3064, %v3064
      %v3103 = vmul.f32 %v3066, %v3066
      %v3104 = vmul.f32 %v2995, %v2995
      %v3105 = vmul.f32 %v2997, %v2997
      %v3106 = vmul.f32 %v3068, %v3068
      %v3107 = vmul.f32 %v3070, %v3070
      %v3108 = vmul.f32 %v3001, %v3001
      %v3109 = vmul.f32 %v3003, %v3003
      %v3110 = vmul.f32 %v3074, %v3074
      %v3111 = vmul.f32 %v3076, %v3076
      %v3112 = vmul.f32 %v3005, %v3005
      %v3113 = vmul.f32 %v3007, %v3007
      %v3114 = vmul.f32 %v3078, %v3078
      %v3115 = vmul.f32 %v3080, %v3080
      %v3116 = vmul.f32 %v3011, %v3011
      %v3117 = vmul.f32 %v3013, %v3013
      %v3118 = vmul.f32 %v3084, %v3084
      %v3119 = vmul.f32 %v3086, %v3086
      %v3120 = vmul.f32 %v3015, %v3015
      %v3121 = vmul.f32 %v3017, %v3017
      %v3122 = vmul.f32 %v3088, %v3088
      %v3123 = vmul.f32 %v3090, %v3090
      %v3124 = vmul.f32 %v2981, %v3092
      %v3125 = vmul.f32 %v2983, %v3093
      %v3126 = vmul.f32 %v3054, %v3094
      %v3127 = vmul.f32 %v3056, %v3095
      %v3128 = vmul.f32 %v2985, %v3096
      %v3129 = vmul.f32 %v2987, %v3097
      %v3130 = vmul.f32 %v3058, %v3098
      %v3131 = vmul.f32 %v3060, %v3099
      %v3132 = vmul.f32 %v2991, %v3100
      %v3133 = vmul.f32 %v2993, %v3101
      %v3134 = vmul.f32 %v3064, %v3102
      %v3135 = vmul.f32 %v3066, %v3103
      %v3136 = vmul.f32 %v2995, %v3104
      %v3137 = vmul.f32 %v2997, %v3105
      %v3138 = vmul.f32 %v3068, %v3106
      %v3139 = vmul.f32 %v3070, %v3107
      %v3140 = vmul.f32 %v3001, %v3108
      %v3141 = vmul.f32 %v3003, %v3109
      %v3142 = vmul.f32 %v3074, %v3110
      %v3143 = vmul.f32 %v3076, %v3111
      %v3144 = vmul.f32 %v3005, %v3112
      %v3145 = vmul.f32 %v3007, %v3113
      %v3146 = vmul.f32 %v3078, %v3114
      %v3147 = vmul.f32 %v3080, %v3115
      %v3148 = vmul.f32 %v3011, %v3116
      %v3149 = vmul.f32 %v3013, %v3117
      %v3150 = vmul.f32 %v3084, %v3118
      %v3151 = vmul.f32 %v3086, %v3119
      %v3152 = vmul.f32 %v3015, %v3120
      %v3153 = vmul.f32 %v3017, %v3121
      %v3154 = vmul.f32 %v3088, %v3122
      %v3155 = vmul.f32 %v3090, %v3123
      %v3156 = vmul.f32 %v3124, 0.044715
      %v3157 = vmul.f32 %v3125, 0.044715
      %v3158 = vmul.f32 %v3126, 0.044715
      %v3159 = vmul.f32 %v3127, 0.044715
      %v3160 = vmul.f32 %v3128, 0.044715
      %v3161 = vmul.f32 %v3129, 0.044715
      %v3162 = vmul.f32 %v3130, 0.044715
      %v3163 = vmul.f32 %v3131, 0.044715
      %v3164 = vmul.f32 %v3132, 0.044715
      %v3165 = vmul.f32 %v3133, 0.044715
      %v3166 = vmul.f32 %v3134, 0.044715
      %v3167 = vmul.f32 %v3135, 0.044715
      %v3168 = vmul.f32 %v3136, 0.044715
      %v3169 = vmul.f32 %v3137, 0.044715
      %v3170 = vmul.f32 %v3138, 0.044715
      %v3171 = vmul.f32 %v3139, 0.044715
      %v3172 = vmul.f32 %v3140, 0.044715
      %v3173 = vmul.f32 %v3141, 0.044715
      %v3174 = vmul.f32 %v3142, 0.044715
      %v3175 = vmul.f32 %v3143, 0.044715
      %v3176 = vmul.f32 %v3144, 0.044715
      %v3177 = vmul.f32 %v3145, 0.044715
      %v3178 = vmul.f32 %v3146, 0.044715
      %v3179 = vmul.f32 %v3147, 0.044715
      %v3180 = vmul.f32 %v3148, 0.044715
      %v3181 = vmul.f32 %v3149, 0.044715
      %v3182 = vmul.f32 %v3150, 0.044715
      %v3183 = vmul.f32 %v3151, 0.044715
      %v3184 = vmul.f32 %v3152, 0.044715
      %v3185 = vmul.f32 %v3153, 0.044715
      %v3186 = vmul.f32 %v3154, 0.044715
      %v3187 = vmul.f32 %v3155, 0.044715
      %v3188 = vadd.f32 %v2981, %v3156
      %v3189 = vadd.f32 %v2983, %v3157
      %v3190 = vadd.f32 %v3054, %v3158
      %v3191 = vadd.f32 %v3056, %v3159
      %v3192 = vadd.f32 %v2985, %v3160
      %v3193 = vadd.f32 %v2987, %v3161
      %v3194 = vadd.f32 %v3058, %v3162
      %v3195 = vadd.f32 %v3060, %v3163
      %v3196 = vadd.f32 %v2991, %v3164
      %v3197 = vadd.f32 %v2993, %v3165
      %v3198 = vadd.f32 %v3064, %v3166
      %v3199 = vadd.f32 %v3066, %v3167
      %v3200 = vadd.f32 %v2995, %v3168
      %v3201 = vadd.f32 %v2997, %v3169
      %v3202 = vadd.f32 %v3068, %v3170
      %v3203 = vadd.f32 %v3070, %v3171
      %v3204 = vadd.f32 %v3001, %v3172
      %v3205 = vadd.f32 %v3003, %v3173
      %v3206 = vadd.f32 %v3074, %v3174
      %v3207 = vadd.f32 %v3076, %v3175
      %v3208 = vadd.f32 %v3005, %v3176
      %v3209 = vadd.f32 %v3007, %v3177
      %v3210 = vadd.f32 %v3078, %v3178
      %v3211 = vadd.f32 %v3080, %v3179
      %v3212 = vadd.f32 %v3011, %v3180
      %v3213 = vadd.f32 %v3013, %v3181
      %v3214 = vadd.f32 %v3084, %v3182
      %v3215 = vadd.f32 %v3086, %v3183
      %v3216 = vadd.f32 %v3015, %v3184
      %v3217 = vadd.f32 %v3017, %v3185
      %v3218 = vadd.f32 %v3088, %v3186
      %v3219 = vadd.f32 %v3090, %v3187
      %v3220 = vmul.f32 %v3188, 0.7978846
      %v3221 = vmul.f32 %v3189, 0.7978846
      %v3222 = vmul.f32 %v3190, 0.7978846
      %v3223 = vmul.f32 %v3191, 0.7978846
      %v3224 = vmul.f32 %v3192, 0.7978846
      %v3225 = vmul.f32 %v3193, 0.7978846
      %v3226 = vmul.f32 %v3194, 0.7978846
      %v3227 = vmul.f32 %v3195, 0.7978846
      %v3228 = vmul.f32 %v3196, 0.7978846
      %v3229 = vmul.f32 %v3197, 0.7978846
      %v3230 = vmul.f32 %v3198, 0.7978846
      %v3231 = vmul.f32 %v3199, 0.7978846
      %v3232 = vmul.f32 %v3200, 0.7978846
      %v3233 = vmul.f32 %v3201, 0.7978846
      %v3234 = vmul.f32 %v3202, 0.7978846
      %v3235 = vmul.f32 %v3203, 0.7978846
      %v3236 = vmul.f32 %v3204, 0.7978846
      %v3237 = vmul.f32 %v3205, 0.7978846
      %v3238 = vmul.f32 %v3206, 0.7978846
      %v3239 = vmul.f32 %v3207, 0.7978846
      %v3240 = vmul.f32 %v3208, 0.7978846
      %v3241 = vmul.f32 %v3209, 0.7978846
      %v3242 = vmul.f32 %v3210, 0.7978846
      %v3243 = vmul.f32 %v3211, 0.7978846
      %v3244 = vmul.f32 %v3212, 0.7978846
      %v3245 = vmul.f32 %v3213, 0.7978846
      %v3246 = vmul.f32 %v3214, 0.7978846
      %v3247 = vmul.f32 %v3215, 0.7978846
      %v3248 = vmul.f32 %v3216, 0.7978846
      %v3249 = vmul.f32 %v3217, 0.7978846
      %v3250 = vmul.f32 %v3218, 0.7978846
      %v3251 = vmul.f32 %v3219, 0.7978846
      %v3252 = vtanh.pop %v3220
      %v3253 = vtanh.pop %v3221
      %v3254 = vtanh.pop %v3222
      %v3255 = vtanh.pop %v3223
      %v3256 = vtanh.pop %v3224
      %v3257 = vtanh.pop %v3225
      %v3258 = vtanh.pop %v3226
      %v3259 = vtanh.pop %v3227
      %v3260 = vtanh.pop %v3228
      %v3261 = vtanh.pop %v3229
      %v3262 = vtanh.pop %v3230
      %v3263 = vtanh.pop %v3231
      %v3264 = vtanh.pop %v3232
      %v3265 = vtanh.pop %v3233
      %v3266 = vtanh.pop %v3234
      %v3267 = vtanh.pop %v3235
      %v3268 = vtanh.pop %v3236
      %v3269 = vtanh.pop %v3237
      %v3270 = vtanh.pop %v3238
      %v3271 = vtanh.pop %v3239
      %v3272 = vtanh.pop %v3240
      %v3273 = vtanh.pop %v3241
      %v3274 = vtanh.pop %v3242
      %v3275 = vtanh.pop %v3243
      %v3276 = vtanh.pop %v3244
      %v3277 = vtanh.pop %v3245
      %v3278 = vtanh.pop %v3246
      %v3279 = vtanh.pop %v3247
      %v3280 = vtanh.pop %v3248
      %v3281 = vtanh.pop %v3249
      %v3282 = vtanh.pop %v3250
      %v3283 = vtanh.pop %v3251
      %v3284 = vadd.f32 %v3252, 1.0
      %v3285 = vadd.f32 %v3253, 1.0
      %v3286 = vadd.f32 %v3254, 1.0
      %v3287 = vadd.f32 %v3255, 1.0
      %v3288 = vadd.f32 %v3256, 1.0
      %v3289 = vadd.f32 %v3257, 1.0
      %v3290 = vadd.f32 %v3258, 1.0
      %v3291 = vadd.f32 %v3259, 1.0
      %v3292 = vadd.f32 %v3260, 1.0
      %v3293 = vadd.f32 %v3261, 1.0
      %v3294 = vadd.f32 %v3262, 1.0
      %v3295 = vadd.f32 %v3263, 1.0
      %v3296 = vadd.f32 %v3264, 1.0
      %v3297 = vadd.f32 %v3265, 1.0
      %v3298 = vadd.f32 %v3266, 1.0
      %v3299 = vadd.f32 %v3267, 1.0
      %v3300 = vadd.f32 %v3268, 1.0
      %v3301 = vadd.f32 %v3269, 1.0
      %v3302 = vadd.f32 %v3270, 1.0
      %v3303 = vadd.f32 %v3271, 1.0
      %v3304 = vadd.f32 %v3272, 1.0
      %v3305 = vadd.f32 %v3273, 1.0
      %v3306 = vadd.f32 %v3274, 1.0
      %v3307 = vadd.f32 %v3275, 1.0
      %v3308 = vadd.f32 %v3276, 1.0
      %v3309 = vadd.f32 %v3277, 1.0
      %v3310 = vadd.f32 %v3278, 1.0
      %v3311 = vadd.f32 %v3279, 1.0
      %v3312 = vadd.f32 %v3280, 1.0
      %v3313 = vadd.f32 %v3281, 1.0
      %v3314 = vadd.f32 %v3282, 1.0
      %v3315 = vadd.f32 %v3283, 1.0
      %v3316 = vmul.f32 %v3284, 0.5
      %v3317 = vmul.f32 %v3285, 0.5
      %v3318 = vmul.f32 %v3286, 0.5
      %v3319 = vmul.f32 %v3287, 0.5
      %v3320 = vmul.f32 %v3288, 0.5
      %v3321 = vmul.f32 %v3289, 0.5
      %v3322 = vmul.f32 %v3290, 0.5
      %v3323 = vmul.f32 %v3291, 0.5
      %v3324 = vmul.f32 %v3292, 0.5
      %v3325 = vmul.f32 %v3293, 0.5
      %v3326 = vmul.f32 %v3294, 0.5
      %v3327 = vmul.f32 %v3295, 0.5
      %v3328 = vmul.f32 %v3296, 0.5
      %v3329 = vmul.f32 %v3297, 0.5
      %v3330 = vmul.f32 %v3298, 0.5
      %v3331 = vmul.f32 %v3299, 0.5
      %v3332 = vmul.f32 %v3300, 0.5
      %v3333 = vmul.f32 %v3301, 0.5
      %v3334 = vmul.f32 %v3302, 0.5
      %v3335 = vmul.f32 %v3303, 0.5
      %v3336 = vmul.f32 %v3304, 0.5
      %v3337 = vmul.f32 %v3305, 0.5
      %v3338 = vmul.f32 %v3306, 0.5
      %v3339 = vmul.f32 %v3307, 0.5
      %v3340 = vmul.f32 %v3308, 0.5
      %v3341 = vmul.f32 %v3309, 0.5
      %v3342 = vmul.f32 %v3310, 0.5
      %v3343 = vmul.f32 %v3311, 0.5
      %v3344 = vmul.f32 %v3312, 0.5
      %v3345 = vmul.f32 %v3313, 0.5
      %v3346 = vmul.f32 %v3314, 0.5
      %v3347 = vmul.f32 %v3315, 0.5
      %v3348 = vmul.f32 %v2981, %v3316
      %v3349 = vmul.f32 %v2983, %v3317
      %v3350 = vmul.f32 %v3054, %v3318
      %v3351 = vmul.f32 %v3056, %v3319
      %v3352 = vmul.f32 %v2985, %v3320
      %v3353 = vmul.f32 %v2987, %v3321
      %v3354 = vmul.f32 %v3058, %v3322
      %v3355 = vmul.f32 %v3060, %v3323
      %v3356 = vmul.f32 %v2991, %v3324
      %v3357 = vmul.f32 %v2993, %v3325
      %v3358 = vmul.f32 %v3064, %v3326
      %v3359 = vmul.f32 %v3066, %v3327
      %v3360 = vmul.f32 %v2995, %v3328
      %v3361 = vmul.f32 %v2997, %v3329
      %v3362 = vmul.f32 %v3068, %v3330
      %v3363 = vmul.f32 %v3070, %v3331
      %v3364 = vmul.f32 %v3001, %v3332
      %v3365 = vmul.f32 %v3003, %v3333
      %v3366 = vmul.f32 %v3074, %v3334
      %v3367 = vmul.f32 %v3076, %v3335
      %v3368 = vmul.f32 %v3005, %v3336
      %v3369 = vmul.f32 %v3007, %v3337
      %v3370 = vmul.f32 %v3078, %v3338
      %v3371 = vmul.f32 %v3080, %v3339
      %v3372 = vmul.f32 %v3011, %v3340
      %v3373 = vmul.f32 %v3013, %v3341
      %v3374 = vmul.f32 %v3084, %v3342
      %v3375 = vmul.f32 %v3086, %v3343
      %v3376 = vmul.f32 %v3015, %v3344
      %v3377 = vmul.f32 %v3017, %v3345
      %v3378 = vmul.f32 %v3088, %v3346
      %v3379 = vmul.f32 %v3090, %v3347
      %v3380 = vpack.c.bf16 %v3352, %v3348
      %v3381 = vpack.c.bf16 %v3353, %v3349
      %v3382 = vpack.c.bf16 %v3354, %v3350
      %v3383 = vpack.c.bf16 %v3355, %v3351
      %v3384 = vpack.c.bf16 %v3360, %v3356
      %v3385 = vpack.c.bf16 %v3361, %v3357
      %v3386 = vpack.c.bf16 %v3362, %v3358
      %v3387 = vpack.c.bf16 %v3363, %v3359
      %v3388 = vpack.c.bf16 %v3368, %v3364
      %v3389 = vpack.c.bf16 %v3369, %v3365
      %v3390 = vpack.c.bf16 %v3370, %v3366
      %v3391 = vpack.c.bf16 %v3371, %v3367
      %v3392 = vpack.c.bf16 %v3376, %v3372
      %v3393 = vpack.c.bf16 %v3377, %v3373
      %v3394 = vpack.c.bf16 %v3378, %v3374
      %v3395 = vpack.c.bf16 %v3379, %v3375
      %v3396 = vld [vmem:[%s680] sm:$0xf]
      %v3397 = vld [vmem:[%s680 + $0x4] sm:$0xf]
      %v3398 = vld [vmem:[%s680 + $0x8] sm:$0xf]
      %v3399 = vld [vmem:[%s680 + $0xc] sm:$0xf]
      %v3400 = vld [vmem:[%s680 + $0x10] sm:$0xf]
      %v3401 = vld [vmem:[%s680 + $0x14] sm:$0xf]
      %v3402 = vld [vmem:[%s680 + $0x18] sm:$0xf]
      %v3403 = vld [vmem:[%s680 + $0x1c] sm:$0xf]
      %v3404 = vld [vmem:[%s680 + $0x20] sm:$0xf]
      %v3405 = vld [vmem:[%s680 + $0x24] sm:$0xf]
      %v3406 = vld [vmem:[%s680 + $0x28] sm:$0xf]
      %v3407 = vld [vmem:[%s680 + $0x2c] sm:$0xf]
      %v3408 = vld [vmem:[%s680 + $0x30] sm:$0xf]
      %v3409 = vld [vmem:[%s680 + $0x34] sm:$0xf]
      %v3410 = vld [vmem:[%s680 + $0x38] sm:$0xf]
      %v3411 = vld [vmem:[%s680 + $0x3c] sm:$0xf]
      %v3412 = vld [vmem:[%s680 + $0x40] sm:$0xf]
      %v3413 = vld [vmem:[%s680 + $0x44] sm:$0xf]
      %v3414 = vld [vmem:[%s680 + $0x48] sm:$0xf]
      %v3415 = vld [vmem:[%s680 + $0x4c] sm:$0xf]
      %v3416 = vld [vmem:[%s680 + $0x50] sm:$0xf]
      %v3417 = vld [vmem:[%s680 + $0x54] sm:$0xf]
      %v3418 = vld [vmem:[%s680 + $0x58] sm:$0xf]
      %v3419 = vld [vmem:[%s680 + $0x5c] sm:$0xf]
      %v3420 = vld [vmem:[%s680 + $0x60] sm:$0xf]
      %v3421 = vld [vmem:[%s680 + $0x64] sm:$0xf]
      %v3422 = vld [vmem:[%s680 + $0x68] sm:$0xf]
      %v3423 = vld [vmem:[%s680 + $0x6c] sm:$0xf]
      %v3424 = vld [vmem:[%s680 + $0x70] sm:$0xf]
      %v3425 = vld [vmem:[%s680 + $0x74] sm:$0xf]
      %v3426 = vld [vmem:[%s680 + $0x78] sm:$0xf]
      %v3427 = vld [vmem:[%s680 + $0x7c] sm:$0xf]
      %v3428 = vld [vmem:[%s680 + $0x80] sm:$0xf]
      %v3429 = vld [vmem:[%s680 + $0x84] sm:$0xf]
      %v3430 = vld [vmem:[%s680 + $0x88] sm:$0xf]
      %v3431 = vld [vmem:[%s680 + $0x8c] sm:$0xf]
      %v3432 = vld [vmem:[%s680 + $0x90] sm:$0xf]
      %v3433 = vld [vmem:[%s680 + $0x94] sm:$0xf]
      %v3434 = vld [vmem:[%s680 + $0x98] sm:$0xf]
      %v3435 = vld [vmem:[%s680 + $0x9c] sm:$0xf]
      %v3436 = vld [vmem:[%s680 + $0xa0] sm:$0xf]
      %v3437 = vld [vmem:[%s680 + $0xa4] sm:$0xf]
      %v3438 = vld [vmem:[%s680 + $0xa8] sm:$0xf]
      %v3439 = vld [vmem:[%s680 + $0xac] sm:$0xf]
      %v3440 = vld [vmem:[%s680 + $0xb0] sm:$0xf]
      %v3441 = vld [vmem:[%s680 + $0xb4] sm:$0xf]
      %v3442 = vld [vmem:[%s680 + $0xb8] sm:$0xf]
      %v3443 = vld [vmem:[%s680 + $0xbc] sm:$0xf]
      %v3444 = vld [vmem:[%s680 + $0xc0] sm:$0xf]
      %v3445 = vld [vmem:[%s680 + $0xc4] sm:$0xf]
      %v3446 = vld [vmem:[%s680 + $0xc8] sm:$0xf]
      %v3447 = vld [vmem:[%s680 + $0xcc] sm:$0xf]
      %v3448 = vld [vmem:[%s680 + $0xd0] sm:$0xf]
      %v3449 = vld [vmem:[%s680 + $0xd4] sm:$0xf]
      %v3450 = vld [vmem:[%s680 + $0xd8] sm:$0xf]
      %v3451 = vld [vmem:[%s680 + $0xdc] sm:$0xf]
      %v3452 = vld [vmem:[%s680 + $0xe0] sm:$0xf]
      %v3453 = vld [vmem:[%s680 + $0xe4] sm:$0xf]
      %v3454 = vld [vmem:[%s680 + $0xe8] sm:$0xf]
      %v3455 = vld [vmem:[%s680 + $0xec] sm:$0xf]
      %v3456 = vld [vmem:[%s680 + $0xf0] sm:$0xf]
      %v3457 = vld [vmem:[%s680 + $0xf4] sm:$0xf]
      %v3458 = vld [vmem:[%s680 + $0xf8] sm:$0xf]
      %v3459 = vld [vmem:[%s680 + $0xfc] sm:$0xf]
      %v3524 = vunpack.c.l.b16 %v3396
      %v3525 = vunpack.c.l.b16 %v3397
      %v3526 = vunpack.c.l.b16 %v3398
      %v3527 = vunpack.c.l.b16 %v3399
      %v3528 = vunpack.c.l.b16 %v3400
      %v3529 = vunpack.c.l.b16 %v3401
      %v3530 = vunpack.c.l.b16 %v3402
      %v3531 = vunpack.c.l.b16 %v3403
      %v3532 = vunpack.c.l.b16 %v3404
      %v3533 = vunpack.c.l.b16 %v3405
      %v3534 = vunpack.c.l.b16 %v3406
      %v3535 = vunpack.c.l.b16 %v3407
      %v3536 = vunpack.c.l.b16 %v3408
      %v3537 = vunpack.c.l.b16 %v3409
      %v3538 = vunpack.c.l.b16 %v3410
      %v3539 = vunpack.c.l.b16 %v3411
      %v3540 = vunpack.c.l.b16 %v3412
      %v3541 = vunpack.c.l.b16 %v3413
      %v3542 = vunpack.c.l.b16 %v3414
      %v3543 = vunpack.c.l.b16 %v3415
      %v3544 = vunpack.c.l.b16 %v3416
      %v3545 = vunpack.c.l.b16 %v3417
      %v3546 = vunpack.c.l.b16 %v3418
      %v3547 = vunpack.c.l.b16 %v3419
      %v3548 = vunpack.c.l.b16 %v3420
      %v3549 = vunpack.c.l.b16 %v3421
      %v3550 = vunpack.c.l.b16 %v3422
      %v3551 = vunpack.c.l.b16 %v3423
      %v3552 = vunpack.c.l.b16 %v3424
      %v3553 = vunpack.c.l.b16 %v3425
      %v3554 = vunpack.c.l.b16 %v3426
      %v3555 = vunpack.c.l.b16 %v3427
      %v3556 = vunpack.c.l.b16 %v3428
      %v3557 = vunpack.c.l.b16 %v3429
      %v3558 = vunpack.c.l.b16 %v3430
      %v3559 = vunpack.c.l.b16 %v3431
      %v3560 = vunpack.c.l.b16 %v3432
      %v3561 = vunpack.c.l.b16 %v3433
      %v3562 = vunpack.c.l.b16 %v3434
      %v3563 = vunpack.c.l.b16 %v3435
      %v3564 = vunpack.c.l.b16 %v3436
      %v3565 = vunpack.c.l.b16 %v3437
      %v3566 = vunpack.c.l.b16 %v3438
      %v3567 = vunpack.c.l.b16 %v3439
      %v3568 = vunpack.c.l.b16 %v3440
      %v3569 = vunpack.c.l.b16 %v3441
      %v3570 = vunpack.c.l.b16 %v3442
      %v3571 = vunpack.c.l.b16 %v3443
      %v3572 = vunpack.c.l.b16 %v3444
      %v3573 = vunpack.c.l.b16 %v3445
      %v3574 = vunpack.c.l.b16 %v3446
      %v3575 = vunpack.c.l.b16 %v3447
      %v3576 = vunpack.c.l.b16 %v3448
      %v3577 = vunpack.c.l.b16 %v3449
      %v3578 = vunpack.c.l.b16 %v3450
      %v3579 = vunpack.c.l.b16 %v3451
      %v3580 = vunpack.c.l.b16 %v3452
      %v3581 = vunpack.c.l.b16 %v3453
      %v3582 = vunpack.c.l.b16 %v3454
      %v3583 = vunpack.c.l.b16 %v3455
      %v3584 = vunpack.c.l.b16 %v3456
      %v3585 = vunpack.c.l.b16 %v3457
      %v3586 = vunpack.c.l.b16 %v3458
      %v3587 = vunpack.c.l.b16 %v3459
      %v3588 = vpack.c.b16 %v3525, %v3524
      %v3589 = vpack.c.b16 %v3527, %v3526
      %v3590 = vpack.c.b16 %v3529, %v3528
      %v3591 = vpack.c.b16 %v3531, %v3530
      %v3592 = vpack.c.b16 %v3533, %v3532
      %v3593 = vpack.c.b16 %v3535, %v3534
      %v3594 = vpack.c.b16 %v3537, %v3536
      %v3595 = vpack.c.b16 %v3539, %v3538
      %v3596 = vpack.c.b16 %v3541, %v3540
      %v3597 = vpack.c.b16 %v3543, %v3542
      %v3598 = vpack.c.b16 %v3545, %v3544
      %v3599 = vpack.c.b16 %v3547, %v3546
      %v3600 = vpack.c.b16 %v3549, %v3548
      %v3601 = vpack.c.b16 %v3551, %v3550
      %v3602 = vpack.c.b16 %v3553, %v3552
      %v3603 = vpack.c.b16 %v3555, %v3554
      %v3604 = vpack.c.b16 %v3557, %v3556
      %v3605 = vpack.c.b16 %v3559, %v3558
      %v3606 = vpack.c.b16 %v3561, %v3560
      %v3607 = vpack.c.b16 %v3563, %v3562
      %v3608 = vpack.c.b16 %v3565, %v3564
      %v3609 = vpack.c.b16 %v3567, %v3566
      %v3610 = vpack.c.b16 %v3569, %v3568
      %v3611 = vpack.c.b16 %v3571, %v3570
      %v3612 = vpack.c.b16 %v3573, %v3572
      %v3613 = vpack.c.b16 %v3575, %v3574
      %v3614 = vpack.c.b16 %v3577, %v3576
      %v3615 = vpack.c.b16 %v3579, %v3578
      %v3616 = vpack.c.b16 %v3581, %v3580
      %v3617 = vpack.c.b16 %v3583, %v3582
      %v3618 = vpack.c.b16 %v3585, %v3584
      %v3619 = vpack.c.b16 %v3587, %v3586
      %3652 = vmatprep.subr.bf16.mxu0 0
      %3653 = vmatpush1.bf16.msra.mxu0 %v3595
      %3654 = vmatprep.subr.bf16.mxu0 0
      %3655 = vmatpush1.bf16.msra.mxu0 %v3594
      %3656 = vmatprep.subr.bf16.mxu0 0
      %3657 = vmatpush1.bf16.msra.mxu0 %v3593
      %3658 = vmatprep.subr.bf16.mxu0 0
      %3659 = vmatpush1.bf16.msra.mxu0 %v3592
      %3660 = vmatprep.subr.bf16.mxu0 0
      %3661 = vmatpush1.bf16.msra.mxu0 %v3591
      %3662 = vmatprep.subr.bf16.mxu0 0
      %3663 = vmatpush1.bf16.msra.mxu0 %v3590
      %3664 = vmatprep.subr.bf16.mxu0 0
      %3665 = vmatpush1.bf16.msra.mxu0 %v3589
      %3666 = vmatprep.subr.bf16.mxu0 0
      %3667 = vmatpush1.bf16.msra.mxu0 %v3588
      %3668 = vmatprep.subr.bf16.mxu0 0
      %3669 = vmatpush2.bf16.msra.mxu0 %v3603
      %3670 = vmatprep.subr.bf16.mxu0 0
      %3671 = vmatpush2.bf16.msra.mxu0 %v3602
      %3672 = vmatprep.subr.bf16.mxu0 0
      %3673 = vmatpush2.bf16.msra.mxu0 %v3601
      %3674 = vmatprep.subr.bf16.mxu0 0
      %3675 = vmatpush2.bf16.msra.mxu0 %v3600
      %3676 = vmatprep.subr.bf16.mxu0 0
      %3677 = vmatpush2.bf16.msra.mxu0 %v3599
      %3678 = vmatprep.subr.bf16.mxu0 0
      %3679 = vmatpush2.bf16.msra.mxu0 %v3598
      %3680 = vmatprep.subr.bf16.mxu0 0
      %3681 = vmatpush2.bf16.msra.mxu0 %v3597
      %3682 = vmatprep.subr.bf16.mxu0 0
      %3683 = vmatpush2.bf16.msra.mxu0 %v3596
      %3684 = vmatprep.mubr.bf16.mxu0 %v3381
      %3685 = vmatmul.mubr.bf16.gmra.mxu0 %v3380
      %v3686 = vpop.f32.mrf.mxu0
      %v3687 = vadd.f32 0.0, %v3686
      %v3688 = vpop.f32.mrf.mxu0
      %v3689 = vpop.f32.mrf.mxu0
      %v3690 = vadd.f32 0.0, %v3689
      %v3691 = vpop.f32.mrf.mxu0
      %3692 = vmatprep.mubr.bf16.mxu0 %v3385
      %3693 = vmatmul.mubr.bf16.gmra.mxu0 %v3384
      %v3694 = vpop.f32.mrf.mxu0
      %v3695 = vadd.f32 0.0, %v3694
      %v3696 = vpop.f32.mrf.mxu0
      %v3697 = vpop.f32.mrf.mxu0
      %v3698 = vadd.f32 0.0, %v3697
      %v3699 = vpop.f32.mrf.mxu0
      %3700 = vmatprep.mubr.bf16.mxu0 %v3389
      %3701 = vmatmul.mubr.bf16.gmra.mxu0 %v3388
      %v3702 = vpop.f32.mrf.mxu0
      %v3703 = vadd.f32 0.0, %v3702
      %v3704 = vpop.f32.mrf.mxu0
      %v3705 = vpop.f32.mrf.mxu0
      %v3706 = vadd.f32 0.0, %v3705
      %v3707 = vpop.f32.mrf.mxu0
      %3708 = vmatprep.mubr.bf16.mxu0 %v3393
      %3709 = vmatmul.mubr.bf16.gmra.mxu0 %v3392
      %v3710 = vpop.f32.mrf.mxu0
      %v3711 = vadd.f32 0.0, %v3710
      %v3712 = vpop.f32.mrf.mxu0
      %v3713 = vpop.f32.mrf.mxu0
      %v3714 = vadd.f32 0.0, %v3713
      %v3715 = vpop.f32.mrf.mxu0
      %3716 = vdwg.mxu0
      %3717 = vmatprep.subr.bf16.mxu0 0
      %3718 = vmatpush1.bf16.msra.mxu0 %v3611
      %3719 = vmatprep.subr.bf16.mxu0 0
      %3720 = vmatpush1.bf16.msra.mxu0 %v3610
      %3721 = vmatprep.subr.bf16.mxu0 0
      %3722 = vmatpush1.bf16.msra.mxu0 %v3609
      %3723 = vmatprep.subr.bf16.mxu0 0
      %3724 = vmatpush1.bf16.msra.mxu0 %v3608
      %3725 = vmatprep.subr.bf16.mxu0 0
      %3726 = vmatpush1.bf16.msra.mxu0 %v3607
      %3727 = vmatprep.subr.bf16.mxu0 0
      %3728 = vmatpush1.bf16.msra.mxu0 %v3606
      %3729 = vmatprep.subr.bf16.mxu0 0
      %3730 = vmatpush1.bf16.msra.mxu0 %v3605
      %3731 = vmatprep.subr.bf16.mxu0 0
      %3732 = vmatpush1.bf16.msra.mxu0 %v3604
      %3733 = vmatprep.subr.bf16.mxu0 0
      %3734 = vmatpush2.bf16.msra.mxu0 %v3619
      %3735 = vmatprep.subr.bf16.mxu0 0
      %3736 = vmatpush2.bf16.msra.mxu0 %v3618
      %3737 = vmatprep.subr.bf16.mxu0 0
      %3738 = vmatpush2.bf16.msra.mxu0 %v3617
      %3739 = vmatprep.subr.bf16.mxu0 0
      %3740 = vmatpush2.bf16.msra.mxu0 %v3616
      %3741 = vmatprep.subr.bf16.mxu0 0
      %3742 = vmatpush2.bf16.msra.mxu0 %v3615
      %3743 = vmatprep.subr.bf16.mxu0 0
      %3744 = vmatpush2.bf16.msra.mxu0 %v3614
      %3745 = vmatprep.subr.bf16.mxu0 0
      %3746 = vmatpush2.bf16.msra.mxu0 %v3613
      %3747 = vmatprep.subr.bf16.mxu0 0
      %3748 = vmatpush2.bf16.msra.mxu0 %v3612
      %3749 = vmatprep.mubr.bf16.mxu0 %v3383
      %3750 = vmatmul.mubr.bf16.gmra.mxu0 %v3382
      %v3751 = vpop.f32.mrf.mxu0
      %v3752 = vadd.f32 %v3687, %v3751
      %v3753 = vpop.f32.mrf.mxu0
      %v3754 = vpop.f32.mrf.mxu0
      %v3755 = vadd.f32 %v3690, %v3754
      %v3756 = vpop.f32.mrf.mxu0
      %3757 = vmatprep.mubr.bf16.mxu0 %v3387
      %3758 = vmatmul.mubr.bf16.gmra.mxu0 %v3386
      %v3759 = vpop.f32.mrf.mxu0
      %v3760 = vadd.f32 %v3695, %v3759
      %v3761 = vpop.f32.mrf.mxu0
      %v3762 = vpop.f32.mrf.mxu0
      %v3763 = vadd.f32 %v3698, %v3762
      %v3764 = vpop.f32.mrf.mxu0
      %3765 = vmatprep.mubr.bf16.mxu0 %v3391
      %3766 = vmatmul.mubr.bf16.gmra.mxu0 %v3390
      %v3767 = vpop.f32.mrf.mxu0
      %v3768 = vadd.f32 %v3703, %v3767
      %v3769 = vpop.f32.mrf.mxu0
      %v3770 = vpop.f32.mrf.mxu0
      %v3771 = vadd.f32 %v3706, %v3770
      %v3772 = vpop.f32.mrf.mxu0
      %3773 = vmatprep.mubr.bf16.mxu0 %v3395
      %3774 = vmatmul.mubr.bf16.gmra.mxu0 %v3394
      %v3775 = vpop.f32.mrf.mxu0
      %v3776 = vadd.f32 %v3711, %v3775
      %v3777 = vpop.f32.mrf.mxu0
      %v3778 = vpop.f32.mrf.mxu0
      %v3779 = vadd.f32 %v3714, %v3778
      %v3780 = vpop.f32.mrf.mxu0
      %3781 = vdwg.mxu0
      %v3782 = vadd.f32 %v2632, %v3752
      %v3783 = vadd.f32 %v2633, %v3755
      %v3784 = vadd.f32 %v2634, %v3760
      %v3785 = vadd.f32 %v2635, %v3763
      %v3786 = vadd.f32 %v2636, %v3768
      %v3787 = vadd.f32 %v2637, %v3771
      %v3788 = vadd.f32 %v2638, %v3776
      %v3789 = vadd.f32 %v2639, %v3779
      %v3790 = vld [vmem:[%s683] sm:$0x1]
      %v3792 = vlaneseq
      %v3793 = vshrl.u32 %v3792, 7
      %v3794 = vsub.s32 0, %v3793
      %v3795 = vrot.slane %v3790, %v3794
      %v3797 = vadd.f32 %v3782, %v3795
      %v3798 = vadd.f32 %v3783, %v3795
      %v3799 = vadd.f32 %v3784, %v3795
      %v3800 = vadd.f32 %v3785, %v3795
      %v3801 = vadd.f32 %v3786, %v3795
      %v3802 = vadd.f32 %v3787, %v3795
      %v3803 = vadd.f32 %v3788, %v3795
      %v3804 = vadd.f32 %v3789, %v3795
      %3805 = vst [vmem:[#allocation2] sm:$0xff] %v3797
      %3806 = vst [vmem:[#allocation2 + $0x8] sm:$0xff] %v3798
      %3807 = vst [vmem:[#allocation2 + $0x10] sm:$0xff] %v3799
      %3808 = vst [vmem:[#allocation2 + $0x18] sm:$0xff] %v3800
      %3809 = vst [vmem:[#allocation2 + $0x20] sm:$0xff] %v3801
      %3810 = vst [vmem:[#allocation2 + $0x28] sm:$0xff] %v3802
      %3811 = vst [vmem:[#allocation2 + $0x30] sm:$0xff] %v3803
      %3812 = vst [vmem:[#allocation2 + $0x38] sm:$0xff] %v3804
      %p3813 = scmp.eq.s32.totalorder %s33, 1
      // Predicated region
      $region85: #{model_forward.3} parent=79 // pred_check
        %p3814 = pneg %p3813
      $region86: #{model_forward.3} parent=79 // pred_check_branch
        %3816 = sbr.rel (%p3814) target = $region88
      $region87: #{model_forward.3} parent=79 // pred_region
        %v3817 = vpack.c.bf16 %v3798, %v3797
        %v3818 = vpack.c.bf16 %v3800, %v3799
        %v3819 = vpack.c.bf16 %v3802, %v3801
        %v3820 = vpack.c.bf16 %v3804, %v3803
        %v3821 = vld [vmem:[%s13] sm:$0xff]
        %v3822 = vld [vmem:[%s13 + $0x8] sm:$0xff]
        %v3823 = vld [vmem:[%s13 + $0x10] sm:$0xff]
        %v3824 = vld [vmem:[%s13 + $0x18] sm:$0xff]
        %v3825 = vld [vmem:[%s13 + $0x20] sm:$0xff]
        %v3826 = vld [vmem:[%s13 + $0x28] sm:$0xff]
        %v3827 = vld [vmem:[%s13 + $0x30] sm:$0xff]
        %v3828 = vld [vmem:[%s13 + $0x38] sm:$0xff]
        %v3829 = vld [vmem:[%s13 + $0x40] sm:$0xff]
        %v3830 = vld [vmem:[%s13 + $0x48] sm:$0xff]
        %v3831 = vld [vmem:[%s13 + $0x50] sm:$0xff]
        %v3832 = vld [vmem:[%s13 + $0x58] sm:$0xff]
        %v3833 = vld [vmem:[%s13 + $0x60] sm:$0xff]
        %v3834 = vld [vmem:[%s13 + $0x68] sm:$0xff]
        %v3835 = vld [vmem:[%s13 + $0x70] sm:$0xff]
        %v3836 = vld [vmem:[%s13 + $0x78] sm:$0xff]
        %v3837 = vld [vmem:[%s13 + $0x80] sm:$0xff]
        %v3838 = vld [vmem:[%s13 + $0x88] sm:$0xff]
        %v3839 = vld [vmem:[%s13 + $0x90] sm:$0xff]
        %v3840 = vld [vmem:[%s13 + $0x98] sm:$0xff]
        %v3841 = vld [vmem:[%s13 + $0xa0] sm:$0xff]
        %v3842 = vld [vmem:[%s13 + $0xa8] sm:$0xff]
        %v3843 = vld [vmem:[%s13 + $0xb0] sm:$0xff]
        %v3844 = vld [vmem:[%s13 + $0xb8] sm:$0xff]
        %v3845 = vld [vmem:[%s13 + $0xc0] sm:$0xff]
        %v3846 = vld [vmem:[%s13 + $0xc8] sm:$0xff]
        %v3847 = vld [vmem:[%s13 + $0xd0] sm:$0xff]
        %v3848 = vld [vmem:[%s13 + $0xd8] sm:$0xff]
        %v3849 = vld [vmem:[%s13 + $0xe0] sm:$0xff]
        %v3850 = vld [vmem:[%s13 + $0xe8] sm:$0xff]
        %v3851 = vld [vmem:[%s13 + $0xf0] sm:$0xff]
        %v3852 = vld [vmem:[%s13 + $0xf8] sm:$0xff]
        %v3853 = vld [vmem:[%s14] sm:$0xf]
        %v3855 = vlaneseq
        %v3856 = vshrl.u32 %v3855, 7
        %v3857 = vsub.s32 0, %v3856
        %v3858 = vrot.slane %v3853, %v3857
        %v3859 = vlaneseq
        %v3860 = vshrl.u32 %v3859, 7
        %v3861 = vsub.s32 1, %v3860
        %v3862 = vrot.slane %v3853, %v3861
        %v3863 = vlaneseq
        %v3864 = vshrl.u32 %v3863, 7
        %v3865 = vsub.s32 2, %v3864
        %v3866 = vrot.slane %v3853, %v3865
        %v3867 = vlaneseq
        %v3868 = vshrl.u32 %v3867, 7
        %v3869 = vsub.s32 3, %v3868
        %v3870 = vrot.slane %v3853, %v3869
        %v3907 = vunpack.c.l.b16 %v3821
        %v3908 = vunpack.c.h.b16 %v3821
        %v3909 = vunpack.c.l.b16 %v3822
        %v3910 = vunpack.c.h.b16 %v3822
        %v3911 = vunpack.c.l.b16 %v3823
        %v3912 = vunpack.c.h.b16 %v3823
        %v3913 = vunpack.c.l.b16 %v3824
        %v3914 = vunpack.c.h.b16 %v3824
        %v3915 = vunpack.c.l.b16 %v3825
        %v3916 = vunpack.c.h.b16 %v3825
        %v3917 = vunpack.c.l.b16 %v3826
        %v3918 = vunpack.c.h.b16 %v3826
        %v3919 = vunpack.c.l.b16 %v3827
        %v3920 = vunpack.c.h.b16 %v3827
        %v3921 = vunpack.c.l.b16 %v3828
        %v3922 = vunpack.c.h.b16 %v3828
        %v3923 = vunpack.c.l.b16 %v3829
        %v3924 = vunpack.c.h.b16 %v3829
        %v3925 = vunpack.c.l.b16 %v3830
        %v3926 = vunpack.c.h.b16 %v3830
        %v3927 = vunpack.c.l.b16 %v3831
        %v3928 = vunpack.c.h.b16 %v3831
        %v3929 = vunpack.c.l.b16 %v3832
        %v3930 = vunpack.c.h.b16 %v3832
        %v3931 = vunpack.c.l.b16 %v3833
        %v3932 = vunpack.c.h.b16 %v3833
        %v3933 = vunpack.c.l.b16 %v3834
        %v3934 = vunpack.c.h.b16 %v3834
        %v3935 = vunpack.c.l.b16 %v3835
        %v3936 = vunpack.c.h.b16 %v3835
        %v3937 = vunpack.c.l.b16 %v3836
        %v3938 = vunpack.c.h.b16 %v3836
        %v3939 = vunpack.c.l.b16 %v3837
        %v3940 = vunpack.c.h.b16 %v3837
        %v3941 = vunpack.c.l.b16 %v3838
        %v3942 = vunpack.c.h.b16 %v3838
        %v3943 = vunpack.c.l.b16 %v3839
        %v3944 = vunpack.c.h.b16 %v3839
        %v3945 = vunpack.c.l.b16 %v3840
        %v3946 = vunpack.c.h.b16 %v3840
        %v3947 = vunpack.c.l.b16 %v3841
        %v3948 = vunpack.c.h.b16 %v3841
        %v3949 = vunpack.c.l.b16 %v3842
        %v3950 = vunpack.c.h.b16 %v3842
        %v3951 = vunpack.c.l.b16 %v3843
        %v3952 = vunpack.c.h.b16 %v3843
        %v3953 = vunpack.c.l.b16 %v3844
        %v3954 = vunpack.c.h.b16 %v3844
        %v3955 = vunpack.c.l.b16 %v3845
        %v3956 = vunpack.c.h.b16 %v3845
        %v3957 = vunpack.c.l.b16 %v3846
        %v3958 = vunpack.c.h.b16 %v3846
        %v3959 = vunpack.c.l.b16 %v3847
        %v3960 = vunpack.c.h.b16 %v3847
        %v3961 = vunpack.c.l.b16 %v3848
        %v3962 = vunpack.c.h.b16 %v3848
        %v3963 = vunpack.c.l.b16 %v3849
        %v3964 = vunpack.c.h.b16 %v3849
        %v3965 = vunpack.c.l.b16 %v3850
        %v3966 = vunpack.c.h.b16 %v3850
        %v3967 = vunpack.c.l.b16 %v3851
        %v3968 = vunpack.c.h.b16 %v3851
        %v3969 = vunpack.c.l.b16 %v3852
        %v3970 = vunpack.c.h.b16 %v3852
        %v3971 = vpack.c.b16 %v3911, %v3907
        %v3972 = vpack.c.b16 %v3912, %v3908
        %v3973 = vpack.c.b16 %v3913, %v3909
        %v3974 = vpack.c.b16 %v3914, %v3910
        %v3975 = vpack.c.b16 %v3919, %v3915
        %v3976 = vpack.c.b16 %v3920, %v3916
        %v3977 = vpack.c.b16 %v3921, %v3917
        %v3978 = vpack.c.b16 %v3922, %v3918
        %v3979 = vpack.c.b16 %v3927, %v3923
        %v3980 = vpack.c.b16 %v3928, %v3924
        %v3981 = vpack.c.b16 %v3929, %v3925
        %v3982 = vpack.c.b16 %v3930, %v3926
        %v3983 = vpack.c.b16 %v3935, %v3931
        %v3984 = vpack.c.b16 %v3936, %v3932
        %v3985 = vpack.c.b16 %v3937, %v3933
        %v3986 = vpack.c.b16 %v3938, %v3934
        %v3987 = vpack.c.b16 %v3943, %v3939
        %v3988 = vpack.c.b16 %v3944, %v3940
        %v3989 = vpack.c.b16 %v3945, %v3941
        %v3990 = vpack.c.b16 %v3946, %v3942
        %v3991 = vpack.c.b16 %v3951, %v3947
        %v3992 = vpack.c.b16 %v3952, %v3948
        %v3993 = vpack.c.b16 %v3953, %v3949
        %v3994 = vpack.c.b16 %v3954, %v3950
        %v3995 = vpack.c.b16 %v3959, %v3955
        %v3996 = vpack.c.b16 %v3960, %v3956
        %v3997 = vpack.c.b16 %v3961, %v3957
        %v3998 = vpack.c.b16 %v3962, %v3958
        %v3999 = vpack.c.b16 %v3967, %v3963
        %v4000 = vpack.c.b16 %v3968, %v3964
        %v4001 = vpack.c.b16 %v3969, %v3965
        %v4002 = vpack.c.b16 %v3970, %v3966
        %4035 = vmatprep.subr.bf16.mxu0 %v4000
        %4036 = vmatpush1.bf16.msra.mxu0 %v3999
        %4037 = vmatprep.subr.bf16.mxu0 %v3996
        %4038 = vmatpush1.bf16.msra.mxu0 %v3995
        %4039 = vmatprep.subr.bf16.mxu0 %v3992
        %4040 = vmatpush1.bf16.msra.mxu0 %v3991
        %4041 = vmatprep.subr.bf16.mxu0 %v3988
        %4042 = vmatpush1.bf16.msra.mxu0 %v3987
        %4043 = vmatprep.subr.bf16.mxu0 %v3984
        %4044 = vmatpush1.bf16.msra.mxu0 %v3983
        %4045 = vmatprep.subr.bf16.mxu0 %v3980
        %4046 = vmatpush1.bf16.msra.mxu0 %v3979
        %4047 = vmatprep.subr.bf16.mxu0 %v3976
        %4048 = vmatpush1.bf16.msra.mxu0 %v3975
        %4049 = vmatprep.subr.bf16.mxu0 %v3972
        %4050 = vmatpush1.bf16.msra.mxu0 %v3971
        %4051 = vmatprep.subr.bf16.mxu0 0
        %4052 = vmatpush2.bf16.msra.mxu0 0
        %4053 = vmatprep.subr.bf16.mxu0 0
        %4054 = vmatpush2.bf16.msra.mxu0 0
        %4055 = vmatprep.subr.bf16.mxu0 0
        %4056 = vmatpush2.bf16.msra.mxu0 0
        %4057 = vmatprep.subr.bf16.mxu0 0
        %4058 = vmatpush2.bf16.msra.mxu0 0
        %4059 = vmatprep.subr.bf16.mxu0 0
        %4060 = vmatpush2.bf16.msra.mxu0 0
        %4061 = vmatprep.subr.bf16.mxu0 0
        %4062 = vmatpush2.bf16.msra.mxu0 0
        %4063 = vmatprep.subr.bf16.mxu0 0
        %4064 = vmatpush2.bf16.msra.mxu0 0
        %4065 = vmatprep.subr.bf16.mxu0 0
        %4066 = vmatpush2.bf16.msra.mxu0 0
        %4067 = vmatprep.mubr.bf16.mxu0 0
        %4068 = vmatmul.mubr.bf16.gmra.mxu0 %v3817
        %v4069 = vpop.f32.mrf.mxu0
        %v4070 = vadd.f32 %v3858, %v4069
        %v4071 = vpop.f32.mrf.mxu0
        %v4072 = vadd.f32 %v3862, %v4071
        %v4073 = vpop.f32.mrf.mxu0
        %v4074 = vadd.f32 %v3858, %v4073
        %v4075 = vpop.f32.mrf.mxu0
        %v4076 = vadd.f32 %v3862, %v4075
        %4077 = vmatprep.mubr.bf16.mxu0 0
        %4078 = vmatmul.mubr.bf16.gmra.mxu0 %v3818
        %v4079 = vpop.f32.mrf.mxu0
        %v4080 = vadd.f32 %v3858, %v4079
        %v4081 = vpop.f32.mrf.mxu0
        %v4082 = vadd.f32 %v3862, %v4081
        %v4083 = vpop.f32.mrf.mxu0
        %v4084 = vadd.f32 %v3858, %v4083
        %v4085 = vpop.f32.mrf.mxu0
        %v4086 = vadd.f32 %v3862, %v4085
        %4087 = vmatprep.mubr.bf16.mxu0 0
        %4088 = vmatmul.mubr.bf16.gmra.mxu0 %v3819
        %v4089 = vpop.f32.mrf.mxu0
        %v4090 = vadd.f32 %v3858, %v4089
        %v4091 = vpop.f32.mrf.mxu0
        %v4092 = vadd.f32 %v3862, %v4091
        %v4093 = vpop.f32.mrf.mxu0
        %v4094 = vadd.f32 %v3858, %v4093
        %v4095 = vpop.f32.mrf.mxu0
        %v4096 = vadd.f32 %v3862, %v4095
        %4097 = vmatprep.mubr.bf16.mxu0 0
        %4098 = vmatmul.mubr.bf16.gmra.mxu0 %v3820
        %v4099 = vpop.f32.mrf.mxu0
        %v4100 = vadd.f32 %v3858, %v4099
        %v4101 = vpop.f32.mrf.mxu0
        %v4102 = vadd.f32 %v3862, %v4101
        %v4103 = vpop.f32.mrf.mxu0
        %v4104 = vadd.f32 %v3858, %v4103
        %v4105 = vpop.f32.mrf.mxu0
        %v4106 = vadd.f32 %v3862, %v4105
        %4107 = vdwg.mxu0
        %4108 = vmatprep.subr.bf16.mxu0 %v4002
        %4109 = vmatpush1.bf16.msra.mxu0 %v4001
        %4110 = vmatprep.subr.bf16.mxu0 %v3998
        %4111 = vmatpush1.bf16.msra.mxu0 %v3997
        %4112 = vmatprep.subr.bf16.mxu0 %v3994
        %4113 = vmatpush1.bf16.msra.mxu0 %v3993
        %4114 = vmatprep.subr.bf16.mxu0 %v3990
        %4115 = vmatpush1.bf16.msra.mxu0 %v3989
        %4116 = vmatprep.subr.bf16.mxu0 %v3986
        %4117 = vmatpush1.bf16.msra.mxu0 %v3985
        %4118 = vmatprep.subr.bf16.mxu0 %v3982
        %4119 = vmatpush1.bf16.msra.mxu0 %v3981
        %4120 = vmatprep.subr.bf16.mxu0 %v3978
        %4121 = vmatpush1.bf16.msra.mxu0 %v3977
        %4122 = vmatprep.subr.bf16.mxu0 %v3974
        %4123 = vmatpush1.bf16.msra.mxu0 %v3973
        %4124 = vmatprep.subr.bf16.mxu0 0
        %4125 = vmatpush2.bf16.msra.mxu0 0
        %4126 = vmatprep.subr.bf16.mxu0 0
        %4127 = vmatpush2.bf16.msra.mxu0 0
        %4128 = vmatprep.subr.bf16.mxu0 0
        %4129 = vmatpush2.bf16.msra.mxu0 0
        %4130 = vmatprep.subr.bf16.mxu0 0
        %4131 = vmatpush2.bf16.msra.mxu0 0
        %4132 = vmatprep.subr.bf16.mxu0 0
        %4133 = vmatpush2.bf16.msra.mxu0 0
        %4134 = vmatprep.subr.bf16.mxu0 0
        %4135 = vmatpush2.bf16.msra.mxu0 0
        %4136 = vmatprep.subr.bf16.mxu0 0
        %4137 = vmatpush2.bf16.msra.mxu0 0
        %4138 = vmatprep.subr.bf16.mxu0 0
        %4139 = vmatpush2.bf16.msra.mxu0 0
        %4140 = vmatprep.mubr.bf16.mxu0 0
        %4141 = vmatmul.mubr.bf16.gmra.mxu0 %v3817
        %v4142 = vpop.f32.mrf.mxu0
        %v4143 = vadd.f32 %v3866, %v4142
        %v4144 = vpop.f32.mrf.mxu0
        %v4145 = vadd.f32 %v3870, %v4144
        %v4146 = vpop.f32.mrf.mxu0
        %v4147 = vadd.f32 %v3866, %v4146
        %v4148 = vpop.f32.mrf.mxu0
        %v4149 = vadd.f32 %v3870, %v4148
        %4150 = vmatprep.mubr.bf16.mxu0 0
        %4151 = vmatmul.mubr.bf16.gmra.mxu0 %v3818
        %v4152 = vpop.f32.mrf.mxu0
        %v4153 = vadd.f32 %v3866, %v4152
        %v4154 = vpop.f32.mrf.mxu0
        %v4155 = vadd.f32 %v3870, %v4154
        %v4156 = vpop.f32.mrf.mxu0
        %v4157 = vadd.f32 %v3866, %v4156
        %v4158 = vpop.f32.mrf.mxu0
        %v4159 = vadd.f32 %v3870, %v4158
        %4160 = vmatprep.mubr.bf16.mxu0 0
        %4161 = vmatmul.mubr.bf16.gmra.mxu0 %v3819
        %v4162 = vpop.f32.mrf.mxu0
        %v4163 = vadd.f32 %v3866, %v4162
        %v4164 = vpop.f32.mrf.mxu0
        %v4165 = vadd.f32 %v3870, %v4164
        %v4166 = vpop.f32.mrf.mxu0
        %v4167 = vadd.f32 %v3866, %v4166
        %v4168 = vpop.f32.mrf.mxu0
        %v4169 = vadd.f32 %v3870, %v4168
        %4170 = vmatprep.mubr.bf16.mxu0 0
        %4171 = vmatmul.mubr.bf16.gmra.mxu0 %v3820
        %v4172 = vpop.f32.mrf.mxu0
        %v4173 = vadd.f32 %v3866, %v4172
        %v4174 = vpop.f32.mrf.mxu0
        %v4175 = vadd.f32 %v3870, %v4174
        %v4176 = vpop.f32.mrf.mxu0
        %v4177 = vadd.f32 %v3866, %v4176
        %v4178 = vpop.f32.mrf.mxu0
        %v4179 = vadd.f32 %v3870, %v4178
        %4180 = vdwg.mxu0
        %v4181 = vrot.slane %v4070, 1
        %v4182 = vrot.slane %v4072, 1
        %v4183 = vrot.slane %v4143, 1
        %v4184 = vrot.slane %v4145, 1
        %v4185 = vrot.slane %v4074, 1
        %v4186 = vrot.slane %v4076, 1
        %v4187 = vrot.slane %v4147, 1
        %v4188 = vrot.slane %v4149, 1
        %v4189 = vrot.slane %v4080, 1
        %v4190 = vrot.slane %v4082, 1
        %v4191 = vrot.slane %v4153, 1
        %v4192 = vrot.slane %v4155, 1
        %v4193 = vrot.slane %v4084, 1
        %v4194 = vrot.slane %v4086, 1
        %v4195 = vrot.slane %v4157, 1
        %v4196 = vrot.slane %v4159, 1
        %v4197 = vrot.slane %v4090, 1
        %v4198 = vrot.slane %v4092, 1
        %v4199 = vrot.slane %v4163, 1
        %v4200 = vrot.slane %v4165, 1
        %v4201 = vrot.slane %v4094, 1
        %v4202 = vrot.slane %v4096, 1
        %v4203 = vrot.slane %v4167, 1
        %v4204 = vrot.slane %v4169, 1
        %v4205 = vrot.slane %v4100, 1
        %v4206 = vrot.slane %v4102, 1
        %v4207 = vrot.slane %v4173, 1
        %v4208 = vrot.slane %v4175, 1
        %v4209 = vrot.slane %v4104, 1
        %v4210 = vrot.slane %v4106, 1
        %v4211 = vrot.slane %v4177, 1
        %v4212 = vrot.slane %v4179, 1
        %v4213 = vlaneseq
        %v4214 = vshrl.u32 %v4213, 7
        %vm4215 = vcmp.lt.s32.totalorder %v4214, 7
        %v4216 = vsel %vm4215, %v4205, %v4209
        %v4217 = vsel %vm4215, %v4206, %v4210
        %v4218 = vsel %vm4215, %v4207, %v4211
        %v4219 = vsel %vm4215, %v4208, %v4212
        %v4220 = vsel %vm4215, %v4201, %v4205
        %v4221 = vsel %vm4215, %v4202, %v4206
        %v4222 = vsel %vm4215, %v4203, %v4207
        %v4223 = vsel %vm4215, %v4204, %v4208
        %v4224 = vsel %vm4215, %v4197, %v4201
        %v4225 = vsel %vm4215, %v4198, %v4202
        %v4226 = vsel %vm4215, %v4199, %v4203
        %v4227 = vsel %vm4215, %v4200, %v4204
        %v4228 = vsel %vm4215, %v4193, %v4197
        %v4229 = vsel %vm4215, %v4194, %v4198
        %v4230 = vsel %vm4215, %v4195, %v4199
        %v4231 = vsel %vm4215, %v4196, %v4200
        %v4232 = vsel %vm4215, %v4189, %v4193
        %v4233 = vsel %vm4215, %v4190, %v4194
        %v4234 = vsel %vm4215, %v4191, %v4195
        %v4235 = vsel %vm4215, %v4192, %v4196
        %v4236 = vsel %vm4215, %v4185, %v4189
        %v4237 = vsel %vm4215, %v4186, %v4190
        %v4238 = vsel %vm4215, %v4187, %v4191
        %v4239 = vsel %vm4215, %v4188, %v4192
        %v4240 = vsel %vm4215, %v4181, %v4185
        %v4241 = vsel %vm4215, %v4182, %v4186
        %v4242 = vsel %vm4215, %v4183, %v4187
        %v4243 = vsel %vm4215, %v4184, %v4188
        %v4244 = vsel %vm4215, %v4209, %v4181
        %v4245 = vsel %vm4215, %v4210, %v4182
        %v4246 = vsel %vm4215, %v4211, %v4183
        %v4247 = vsel %vm4215, %v4212, %v4184
        %v4248 = vadd.s32 %v4214, 8
        %v4249 = vadd.s32 %v4214, 16
        %v4250 = vadd.s32 %v4214, 24
        %v4251 = vadd.s32 %v4214, 32
        %v4252 = vadd.s32 %v4214, 40
        %v4253 = vadd.s32 %v4214, 48
        %v4254 = vadd.s32 %v4214, 56
        %vm4255 = vcmp.lt.s32.totalorder %v4214, 0
        %v4256 = vsub.s32 0, %v4214
        %v4257 = vsel %vm4255, %v4256, %v4214
        %v4258 = vshrl.u32 %v4257, 4
        %v4259 = vand.u32 %v4257, 15
        %v4260 = vsub.s32 0, %v4259
        %v4261 = vsel %vm4255, %v4260, %v4259
        %vm4262 = vcmp.lt.s32.totalorder %v4248, 0
        %v4263 = vsub.s32 0, %v4248
        %v4264 = vsel %vm4262, %v4263, %v4248
        %v4265 = vshrl.u32 %v4264, 4
        %v4266 = vand.u32 %v4264, 15
        %v4267 = vsub.s32 0, %v4266
        %v4268 = vsel %vm4262, %v4267, %v4266
        %vm4269 = vcmp.lt.s32.totalorder %v4249, 0
        %v4270 = vsub.s32 0, %v4249
        %v4271 = vsel %vm4269, %v4270, %v4249
        %v4272 = vshrl.u32 %v4271, 4
        %v4273 = vand.u32 %v4271, 15
        %v4274 = vsub.s32 0, %v4273
        %v4275 = vsel %vm4269, %v4274, %v4273
        %vm4276 = vcmp.lt.s32.totalorder %v4250, 0
        %v4277 = vsub.s32 0, %v4250
        %v4278 = vsel %vm4276, %v4277, %v4250
        %v4279 = vshrl.u32 %v4278, 4
        %v4280 = vand.u32 %v4278, 15
        %v4281 = vsub.s32 0, %v4280
        %v4282 = vsel %vm4276, %v4281, %v4280
        %vm4283 = vcmp.lt.s32.totalorder %v4251, 0
        %v4284 = vsub.s32 0, %v4251
        %v4285 = vsel %vm4283, %v4284, %v4251
        %v4286 = vshrl.u32 %v4285, 4
        %v4287 = vand.u32 %v4285, 15
        %v4288 = vsub.s32 0, %v4287
        %v4289 = vsel %vm4283, %v4288, %v4287
        %vm4290 = vcmp.lt.s32.totalorder %v4252, 0
        %v4291 = vsub.s32 0, %v4252
        %v4292 = vsel %vm4290, %v4291, %v4252
        %v4293 = vshrl.u32 %v4292, 4
        %v4294 = vand.u32 %v4292, 15
        %v4295 = vsub.s32 0, %v4294
        %v4296 = vsel %vm4290, %v4295, %v4294
        %vm4297 = vcmp.lt.s32.totalorder %v4253, 0
        %v4298 = vsub.s32 0, %v4253
        %v4299 = vsel %vm4297, %v4298, %v4253
        %v4300 = vshrl.u32 %v4299, 4
        %v4301 = vand.u32 %v4299, 15
        %v4302 = vsub.s32 0, %v4301
        %v4303 = vsel %vm4297, %v4302, %v4301
        %vm4304 = vcmp.lt.s32.totalorder %v4254, 0
        %v4305 = vsub.s32 0, %v4254
        %v4306 = vsel %vm4304, %v4305, %v4254
        %v4307 = vshrl.u32 %v4306, 4
        %v4308 = vand.u32 %v4306, 15
        %v4309 = vsub.s32 0, %v4308
        %v4310 = vsel %vm4304, %v4309, %v4308
        %vm4311 = vcmp.ne.s32.totalorder %v4261, 0
        %vm4312 = vcmp.ne.s32.totalorder %v4268, 0
        %vm4313 = vcmp.ne.s32.totalorder %v4275, 0
        %vm4314 = vcmp.ne.s32.totalorder %v4282, 0
        %vm4315 = vcmp.ne.s32.totalorder %v4289, 0
        %vm4316 = vcmp.ne.s32.totalorder %v4296, 0
        %vm4317 = vcmp.ne.s32.totalorder %v4303, 0
        %vm4318 = vcmp.ne.s32.totalorder %v4310, 0
        %vm4319 = vcmp.lt.s32.totalorder %v4261, 0
        %vm4320 = vcmp.lt.s32.totalorder %v4268, 0
        %vm4321 = vcmp.lt.s32.totalorder %v4275, 0
        %vm4322 = vcmp.lt.s32.totalorder %v4282, 0
        %vm4323 = vcmp.lt.s32.totalorder %v4289, 0
        %vm4324 = vcmp.lt.s32.totalorder %v4296, 0
        %vm4325 = vcmp.lt.s32.totalorder %v4303, 0
        %vm4326 = vcmp.lt.s32.totalorder %v4310, 0
        %vm4327 = vmand %vm4319, %vm4311
        %vm4328 = vmand %vm4320, %vm4312
        %vm4329 = vmand %vm4321, %vm4313
        %vm4330 = vmand %vm4322, %vm4314
        %vm4331 = vmand %vm4323, %vm4315
        %vm4332 = vmand %vm4324, %vm4316
        %vm4333 = vmand %vm4325, %vm4317
        %vm4334 = vmand %vm4326, %vm4318
        %v4335 = vadd.s32 %v4261, 16
        %v4336 = vadd.s32 %v4268, 16
        %v4337 = vadd.s32 %v4275, 16
        %v4338 = vadd.s32 %v4282, 16
        %v4339 = vadd.s32 %v4289, 16
        %v4340 = vadd.s32 %v4296, 16
        %v4341 = vadd.s32 %v4303, 16
        %v4342 = vadd.s32 %v4310, 16
        %v4343 = vsel %vm4327, %v4335, %v4261
        %v4344 = vsel %vm4328, %v4336, %v4268
        %v4345 = vsel %vm4329, %v4337, %v4275
        %v4346 = vsel %vm4330, %v4338, %v4282
        %v4347 = vsel %vm4331, %v4339, %v4289
        %v4348 = vsel %vm4332, %v4340, %v4296
        %v4349 = vsel %vm4333, %v4341, %v4303
        %v4350 = vsel %vm4334, %v4342, %v4310
        %vm4351 = vcmp.eq.s32.totalorder %v4343, 15
        %vm4352 = vcmp.eq.s32.totalorder %v4344, 15
        %vm4353 = vcmp.eq.s32.totalorder %v4345, 15
        %vm4354 = vcmp.eq.s32.totalorder %v4346, 15
        %vm4355 = vcmp.eq.s32.totalorder %v4347, 15
        %vm4356 = vcmp.eq.s32.totalorder %v4348, 15
        %vm4357 = vcmp.eq.s32.totalorder %v4349, 15
        %vm4358 = vcmp.eq.s32.totalorder %v4350, 15
        %v4359 = vsel %vm4351, 1, 0
        %v4360 = vsel %vm4352, 1, 0
        %v4361 = vsel %vm4353, 1, 0
        %v4362 = vsel %vm4354, 1, 0
        %v4363 = vsel %vm4355, 1, 0
        %v4364 = vsel %vm4356, 1, 0
        %v4365 = vsel %vm4357, 1, 0
        %v4366 = vsel %vm4358, 1, 0
        %vm4367 = vcmp.eq.s32.totalorder %v4359, 1
        %vm4368 = vcmp.eq.s32.totalorder %v4360, 1
        %vm4369 = vcmp.eq.s32.totalorder %v4361, 1
        %vm4370 = vcmp.eq.s32.totalorder %v4362, 1
        %vm4371 = vcmp.eq.s32.totalorder %v4363, 1
        %vm4372 = vcmp.eq.s32.totalorder %v4364, 1
        %vm4373 = vcmp.eq.s32.totalorder %v4365, 1
        %vm4374 = vcmp.eq.s32.totalorder %v4366, 1
        %v4375 = vsel %vm4367, 0.0, %v4240
        %v4376 = vsel %vm4367, 0.0, %v4241
        %v4377 = vsel %vm4367, 0.0, %v4242
        %v4378 = vsel %vm4367, 0.0, %v4243
        %v4379 = vsel %vm4368, 0.0, %v4236
        %v4380 = vsel %vm4368, 0.0, %v4237
        %v4381 = vsel %vm4368, 0.0, %v4238
        %v4382 = vsel %vm4368, 0.0, %v4239
        %v4383 = vsel %vm4369, 0.0, %v4232
        %v4384 = vsel %vm4369, 0.0, %v4233
        %v4385 = vsel %vm4369, 0.0, %v4234
        %v4386 = vsel %vm4369, 0.0, %v4235
        %v4387 = vsel %vm4370, 0.0, %v4228
        %v4388 = vsel %vm4370, 0.0, %v4229
        %v4389 = vsel %vm4370, 0.0, %v4230
        %v4390 = vsel %vm4370, 0.0, %v4231
        %v4391 = vsel %vm4371, 0.0, %v4224
        %v4392 = vsel %vm4371, 0.0, %v4225
        %v4393 = vsel %vm4371, 0.0, %v4226
        %v4394 = vsel %vm4371, 0.0, %v4227
        %v4395 = vsel %vm4372, 0.0, %v4220
        %v4396 = vsel %vm4372, 0.0, %v4221
        %v4397 = vsel %vm4372, 0.0, %v4222
        %v4398 = vsel %vm4372, 0.0, %v4223
        %v4399 = vsel %vm4373, 0.0, %v4216
        %v4400 = vsel %vm4373, 0.0, %v4217
        %v4401 = vsel %vm4373, 0.0, %v4218
        %v4402 = vsel %vm4373, 0.0, %v4219
        %v4403 = vsel %vm4374, 0.0, %v4244
        %v4404 = vsel %vm4374, 0.0, %v4245
        %v4405 = vsel %vm4374, 0.0, %v4246
        %v4406 = vsel %vm4374, 0.0, %v4247
        %v4407 = vld [vmem:[%s648] sm:$0xff]
        %v4408 = vld [vmem:[%s648 + $0x8] sm:$0xff]
        %v4409 = vld [vmem:[%s648 + $0x10] sm:$0xff]
        %v4410 = vld [vmem:[%s648 + $0x18] sm:$0xff]
        %v4411 = vld [vmem:[%s648 + $0x20] sm:$0xff]
        %v4412 = vld [vmem:[%s648 + $0x28] sm:$0xff]
        %v4413 = vld [vmem:[%s648 + $0x30] sm:$0xff]
        %v4414 = vld [vmem:[%s648 + $0x38] sm:$0xff]
        %v4415 = vld [vmem:[%s648 + $0x40] sm:$0xff]
        %v4416 = vld [vmem:[%s648 + $0x48] sm:$0xff]
        %v4417 = vld [vmem:[%s648 + $0x50] sm:$0xff]
        %v4418 = vld [vmem:[%s648 + $0x58] sm:$0xff]
        %v4419 = vld [vmem:[%s648 + $0x60] sm:$0xff]
        %v4420 = vld [vmem:[%s648 + $0x68] sm:$0xff]
        %v4421 = vld [vmem:[%s648 + $0x70] sm:$0xff]
        %v4422 = vld [vmem:[%s648 + $0x78] sm:$0xff]
        %v4423 = vsub.f32 %v4407, %v4377
        %v4424 = vsub.f32 %v4408, %v4378
        %v4425 = vsub.f32 %v4409, %v4381
        %v4426 = vsub.f32 %v4410, %v4382
        %v4427 = vsub.f32 %v4411, %v4385
        %v4428 = vsub.f32 %v4412, %v4386
        %v4429 = vsub.f32 %v4413, %v4389
        %v4430 = vsub.f32 %v4414, %v4390
        %v4431 = vsub.f32 %v4415, %v4393
        %v4432 = vsub.f32 %v4416, %v4394
        %v4433 = vsub.f32 %v4417, %v4397
        %v4434 = vsub.f32 %v4418, %v4398
        %v4435 = vsub.f32 %v4419, %v4401
        %v4436 = vsub.f32 %v4420, %v4402
        %v4437 = vsub.f32 %v4421, %v4405
        %v4438 = vsub.f32 %v4422, %v4406
        %v4439 = vsub.f32 0.0, %v4375
        %v4440 = vsub.f32 0.0, %v4376
        %v4441 = vsub.f32 0.0, %v4379
        %v4442 = vsub.f32 0.0, %v4380
        %v4443 = vsub.f32 0.0, %v4383
        %v4444 = vsub.f32 0.0, %v4384
        %v4445 = vsub.f32 0.0, %v4387
        %v4446 = vsub.f32 0.0, %v4388
        %v4447 = vsub.f32 0.0, %v4391
        %v4448 = vsub.f32 0.0, %v4392
        %v4449 = vsub.f32 0.0, %v4395
        %v4450 = vsub.f32 0.0, %v4396
        %v4451 = vsub.f32 0.0, %v4399
        %v4452 = vsub.f32 0.0, %v4400
        %v4453 = vsub.f32 0.0, %v4403
        %v4454 = vsub.f32 0.0, %v4404
        %v4455 = vmul.f32 %v4439, 1.442695
        %v4456 = vpow.pop %v4455
        %v4457 = vmul.f32 %v4440, 1.442695
        %v4458 = vpow.pop %v4457
        %v4459 = vmul.f32 %v4441, 1.442695
        %v4460 = vpow.pop %v4459
        %v4461 = vmul.f32 %v4442, 1.442695
        %v4462 = vpow.pop %v4461
        %v4463 = vmul.f32 %v4443, 1.442695
        %v4464 = vpow.pop %v4463
        %v4465 = vmul.f32 %v4444, 1.442695
        %v4466 = vpow.pop %v4465
        %v4467 = vmul.f32 %v4445, 1.442695
        %v4468 = vpow.pop %v4467
        %v4469 = vmul.f32 %v4446, 1.442695
        %v4470 = vpow.pop %v4469
        %v4471 = vmul.f32 %v4447, 1.442695
        %v4472 = vpow.pop %v4471
        %v4473 = vmul.f32 %v4448, 1.442695
        %v4474 = vpow.pop %v4473
        %v4475 = vmul.f32 %v4449, 1.442695
        %v4476 = vpow.pop %v4475
        %v4477 = vmul.f32 %v4450, 1.442695
        %v4478 = vpow.pop %v4477
        %v4479 = vmul.f32 %v4451, 1.442695
        %v4480 = vpow.pop %v4479
        %v4481 = vmul.f32 %v4452, 1.442695
        %v4482 = vpow.pop %v4481
        %v4483 = vmul.f32 %v4453, 1.442695
        %v4484 = vpow.pop %v4483
        %v4485 = vmul.f32 %v4454, 1.442695
        %v4486 = vpow.pop %v4485
        %v4487 = vmul.f32 %v4423, %v4456
        %v4488 = vmul.f32 %v4424, %v4458
        %v4489 = vmul.f32 %v4425, %v4460
        %v4490 = vmul.f32 %v4426, %v4462
        %v4491 = vmul.f32 %v4427, %v4464
        %v4492 = vmul.f32 %v4428, %v4466
        %v4493 = vmul.f32 %v4429, %v4468
        %v4494 = vmul.f32 %v4430, %v4470
        %v4495 = vmul.f32 %v4431, %v4472
        %v4496 = vmul.f32 %v4432, %v4474
        %v4497 = vmul.f32 %v4433, %v4476
        %v4498 = vmul.f32 %v4434, %v4478
        %v4499 = vmul.f32 %v4435, %v4480
        %v4500 = vmul.f32 %v4436, %v4482
        %v4501 = vmul.f32 %v4437, %v4484
        %v4502 = vmul.f32 %v4438, %v4486
        %4503 = vst [vmem:[%s689] sm:$0xff] %v4487
        %4504 = vst [vmem:[%s689 + $0x8] sm:$0xff] %v4488
        %4505 = vst [vmem:[%s689 + $0x10] sm:$0xff] %v4489
        %4506 = vst [vmem:[%s689 + $0x18] sm:$0xff] %v4490
        %4507 = vst [vmem:[%s689 + $0x20] sm:$0xff] %v4491
        %4508 = vst [vmem:[%s689 + $0x28] sm:$0xff] %v4492
        %4509 = vst [vmem:[%s689 + $0x30] sm:$0xff] %v4493
        %4510 = vst [vmem:[%s689 + $0x38] sm:$0xff] %v4494
        %4511 = vst [vmem:[%s689 + $0x40] sm:$0xff] %v4495
        %4512 = vst [vmem:[%s689 + $0x48] sm:$0xff] %v4496
        %4513 = vst [vmem:[%s689 + $0x50] sm:$0xff] %v4497
        %4514 = vst [vmem:[%s689 + $0x58] sm:$0xff] %v4498
        %4515 = vst [vmem:[%s689 + $0x60] sm:$0xff] %v4499
        %4516 = vst [vmem:[%s689 + $0x68] sm:$0xff] %v4500
        %4517 = vst [vmem:[%s689 + $0x70] sm:$0xff] %v4501
        %4518 = vst [vmem:[%s689 + $0x78] sm:$0xff] %v4502
        %v4519 = vadd.f32 %v4375, %v4376
        %4520 = vadd.xlane.f32.xlu0 %v4519
        %v4521 = vpop.xlane.xlu0 %4520
        %v4522 = vadd.f32 %v4379, %v4380
        %4523 = vadd.xlane.f32.xlu0 %v4522
        %v4524 = vpop.xlane.xlu0 %4523
        %v4525 = vadd.f32 %v4383, %v4384
        %4526 = vadd.xlane.f32.xlu0 %v4525
        %v4527 = vpop.xlane.xlu0 %4526
        %v4528 = vadd.f32 %v4387, %v4388
        %4529 = vadd.xlane.f32.xlu0 %v4528
        %v4530 = vpop.xlane.xlu0 %4529
        %v4531 = vadd.f32 %v4391, %v4392
        %4532 = vadd.xlane.f32.xlu0 %v4531
        %v4533 = vpop.xlane.xlu0 %4532
        %v4534 = vadd.f32 %v4395, %v4396
        %4535 = vadd.xlane.f32.xlu0 %v4534
        %v4536 = vpop.xlane.xlu0 %4535
        %v4537 = vadd.f32 %v4399, %v4400
        %4538 = vadd.xlane.f32.xlu0 %v4537
        %v4539 = vpop.xlane.xlu0 %4538
        %v4540 = vadd.f32 %v4403, %v4404
        %4541 = vadd.xlane.f32.xlu0 %v4540
        %v4542 = vpop.xlane.xlu0 %4541
        %v4551 = vlaneseq
        %v4552 = vand.u32 %v4551, 127
        %v4553 = vlaneseq
        %v4554 = vshrl.u32 %v4553, 7
        %v4555 = vsub.s32 %v4552, %v4554
        %v4556 = vrot.slane %v4521, %v4555
        %v4557 = vadd.s32 %v4552, 4294967288
        %v4558 = vlaneseq
        %v4559 = vshrl.u32 %v4558, 7
        %v4560 = vsub.s32 %v4557, %v4559
        %v4561 = vrot.slane %v4524, %v4560
        %vm4562 = vcmask 130112
        %v4563 = vsel %vm4562, %v4561, %v4556
        %v4564 = vlaneseq
        %v4565 = vshrl.u32 %v4564, 7
        %v4566 = vsub.s32 %v4552, %v4565
        %v4567 = vrot.slane %v4527, %v4566
        %v4568 = vlaneseq
        %v4569 = vshrl.u32 %v4568, 7
        %v4570 = vsub.s32 %v4557, %v4569
        %v4571 = vrot.slane %v4530, %v4570
        %v4572 = vsel %vm4562, %v4571, %v4567
        %v4573 = vlaneseq
        %v4574 = vshrl.u32 %v4573, 7
        %v4575 = vsub.s32 %v4552, %v4574
        %v4576 = vrot.slane %v4533, %v4575
        %v4577 = vlaneseq
        %v4578 = vshrl.u32 %v4577, 7
        %v4579 = vsub.s32 %v4557, %v4578
        %v4580 = vrot.slane %v4536, %v4579
        %v4581 = vsel %vm4562, %v4580, %v4576
        %v4582 = vlaneseq
        %v4583 = vshrl.u32 %v4582, 7
        %v4584 = vsub.s32 %v4552, %v4583
        %v4585 = vrot.slane %v4539, %v4584
        %v4586 = vlaneseq
        %v4587 = vshrl.u32 %v4586, 7
        %v4588 = vsub.s32 %v4557, %v4587
        %v4589 = vrot.slane %v4542, %v4588
        %v4590 = vsel %vm4562, %v4589, %v4585
        %vm4591 = vcmask 1041409
        %v4592 = vsel %vm4591, %v4572, %v4563
        %vm4593 = vcmask 1042434
        %v4594 = vsel %vm4593, %v4581, %v4592
        %vm4595 = vcmask 1043459
        %v4596 = vsel %vm4595, %v4590, %v4594
        %vm4598 = vcmask 125952
        %v4599 = vsel %vm4598, %v4596, 0.0
        %4600 = vadd.xlane.f32.xlu0 %v4599
        %v4601 = vpop.xlane.xlu0 %4600
        %v4602 = vmul.f32 %v4601, 0.00024414063
        %v4603 = vsub.f32 0.0, %v4602
        %4604 = vst [vmem:[%s694] sm:$0xf] %v4603
      $region88: #{model_forward.3} parent=79 // pred_fallthru
        _
      %s4605 = smul.u32 4, %s32
      %p4606 = scmp.lt.s32.totalorder %s4605, 7
      %s4607 = scalar_select %p4606, %s4605, 7
      %s4608 = smul.addr %s4607, 4
      %s4609 = smul.addr %s4608, 8
      %s4610 = scalar_lea.vmem %s15, %s4609
      %p4611 = scmp.lt.s32.totalorder %s32, 1
      %s4612 = scalar_select %p4611, %s32, 1
      %s4613 = smul.addr %s4612, 4
      %s4614 = scalar_lea.vmem %s16, %s4613
      // Predicated region
      $region89: #{model_forward.3} parent=79 // pred_check
        %p4615 = pneg %p418
      $region90: #{model_forward.3} parent=79 // pred_check_branch
        %4617 = sbr.rel (%p4615) target = $region92
      $region91: #{model_forward.3} parent=79 // pred_region
        %s4618 = smul.u32 4, %s32
      $region92: #{model_forward.3} parent=79 // pred_fallthru
        _
      // Predicated region
      $region93: #{model_forward.3} parent=79 // pred_check
        %p4619 = pneg %p444
      $region94: #{model_forward.3} parent=79 // pred_check_branch
        %4621 = sbr.rel (%p4619) target = $region96
      $region95: #{model_forward.3} parent=79 // pred_region
        _
      $region96: #{model_forward.3} parent=79 // pred_fallthru
        _
    $region80: #{model_forward.3} parent=5 // pred_fallthru
      _
    %p4622 = scmp.le.s32.totalorder 2, %s23
    // Predicated region
    $region97: #{model_forward.3} parent=5 // pred_check
      %p4623 = pneg %p4622
    $region98: #{model_forward.3} parent=5 // pred_check_branch
      %4625 = sbr.rel (%p4623) target = $region100
    $region99: #{model_forward.3} parent=5 // pred_region
      %s4626 = ssub.s32 %s23, 2
      // Predicated region
      $region101: #{model_forward.3} parent=99 // pred_check
        %p4627 = pneg %p424
      $region102: #{model_forward.3} parent=99 // pred_check_branch
        %4629 = sbr.rel (%p4627) target = $region104
      $region103: #{model_forward.3} parent=99 // pred_region
        %s4630 = smul.u32 4, %s34
        %p4631 = scmp.lt.s32.totalorder %s4630, 7
        %s4632 = scalar_select %p4631, %s4630, 7
        %s4633 = smul.addr %s4632, 4
        %s4634 = smul.addr %s4633, 8
        %s4635 = scalar_lea.vmem %s15, %s4634
      $region104: #{model_forward.3} parent=99 // pred_fallthru
        _
      // Predicated region
      $region105: #{model_forward.3} parent=99 // pred_check
        %p4636 = pneg %p450
      $region106: #{model_forward.3} parent=99 // pred_check_branch
        %4638 = sbr.rel (%p4636) target = $region108
      $region107: #{model_forward.3} parent=99 // pred_region
        %p4639 = scmp.lt.s32.totalorder %s34, 1
        %s4640 = scalar_select %p4639, %s34, 1
        %s4641 = smul.addr %s4640, 4
        %s4642 = scalar_lea.vmem %s16, %s4641
      $region108: #{model_forward.3} parent=99 // pred_fallthru
        _
    $region100: #{model_forward.3} parent=5 // pred_fallthru
      _
  $region6: #{model_forward.3} parent=0 // loop_footer
    %s27 = sadd.s32 1, %s23
  $region7: #{model_forward.3} parent=0 // loop_footer_branch
    %22 = sbr.rel target = $region3
  $region8: #{model_forward.3} parent=0 // loop_exit
    _

</llo_original>
